<compile_context>
chip_gen: v7x
topology: tpu7x:2x2x1
jax: 0.10.0
libtpu: 0.0.40
codegen_flags: <defaults>
</compile_context>

<pallas_src>
import math
import numpy as np
import jax
import jax.numpy as jnp
from jax.experimental import pallas as pl
from jax.experimental.pallas import tpu as pltpu

SQRT2 = math.sqrt(2.0)
SQRT_HALF = math.sqrt(0.5)
LRELU_SLOPE = 0.2


def _lrelu(v):
    return jnp.maximum(v, LRELU_SLOPE * v)


def _disc_block_depth_kernel(img_ref, wfrom_ref, bfrom_ref, w0_ref, b0_ref,
                             w1_ref, b1_ref, wsk_ref, out_ref,
                             xw_ref, x0w_ref, spad_ref, hb_ref):
    P = out_ref.shape[1]                 # R // 2
    R = 2 * P
    Rext = R + 2
    Ct = b0_ref.shape[-1]                # tmp_channels
    Cout = out_ref.shape[-1]             # out_channels
    f0, f1, f2, f3 = 0.125, 0.375, 0.375, 0.125       # [1,3,3,1] / 8 blur taps

    # ---- fromrgb + fromdepth: merged 1x1 conv, bias, lrelu * sqrt(2) --------
    pix = img_ref[0]                                               # (R*R, 4)
    y = jnp.dot(pix, wfrom_ref[...], preferred_element_type=jnp.float32)
    y = _lrelu(y + bfrom_ref[...]) * SQRT2                         # (R*R, 2*Ct)
    x = y[:, :Ct] + y[:, Ct:]                                      # (R*R, Ct)

    # ---- skip 1x1 at full resolution (blur + down applied later on VPU) ----
    s = jnp.dot(x, wsk_ref[...], preferred_element_type=jnp.float32)   # (R*R, Cout)

    x3 = x.reshape(R, R, Ct)
    s3 = s.reshape(R, R, Cout)

    # ---- W-direction im2col of x zero-padded by 1: xw[h, w, kw*Ct:] = xpad[h, w+kw]
    # (halo re-zeroed each step; interior fully overwritten)
    xw_ref[0] = jnp.zeros((R, 3 * Ct), jnp.float32)
    xw_ref[R + 1] = jnp.zeros((R, 3 * Ct), jnp.float32)
    xw_ref[1:R + 1, 0:1, 0:Ct] = jnp.zeros((R, 1, Ct), jnp.float32)
    xw_ref[1:R + 1, R - 1:R, 2 * Ct:3 * Ct] = jnp.zeros((R, 1, Ct), jnp.float32)
    xw_ref[1:R + 1, 1:R, 0:Ct] = x3[:, 0:R - 1, :]
    xw_ref[1:R + 1, 0:R, Ct:2 * Ct] = x3
    xw_ref[1:R + 1, 0:R - 1, 2 * Ct:3 * Ct] = x3[:, 1:R, :]

    # ---- conv0: 3x3, pad 1, stride 1 -> 3 matmuls with K = 3*Ct -------------
    acc0 = jnp.zeros((R * R, Ct), jnp.float32)
    for kh in range(3):
        acc0 = acc0 + jnp.dot(xw_ref[kh:kh + R].reshape(R * R, 3 * Ct), w0_ref[kh],
                              preferred_element_type=jnp.float32)
    x0 = _lrelu(acc0 + b0_ref[...]) * SQRT2
    x03 = x0.reshape(R, R, Ct)

    # ---- W-direction im2col of conv0 output zero-padded by 2 ----------------
    x0w_ref[0] = jnp.zeros((Rext, 3 * Ct), jnp.float32)
    x0w_ref[1] = jnp.zeros((Rext, 3 * Ct), jnp.float32)
    x0w_ref[R + 2] = jnp.zeros((Rext, 3 * Ct), jnp.float32)
    x0w_ref[R + 3] = jnp.zeros((Rext, 3 * Ct), jnp.float32)
    x0w_ref[2:R + 2, 0:2, 0:Ct] = jnp.zeros((R, 2, Ct), jnp.float32)
    x0w_ref[2:R + 2, 0:1, Ct:2 * Ct] = jnp.zeros((R, 1, Ct), jnp.float32)
    x0w_ref[2:R + 2, R + 1:R + 2, Ct:2 * Ct] = jnp.zeros((R, 1, Ct), jnp.float32)
    x0w_ref[2:R + 2, R:R + 2, 2 * Ct:3 * Ct] = jnp.zeros((R, 2, Ct), jnp.float32)
    x0w_ref[2:R + 2, 2:R + 2, 0:Ct] = x03
    x0w_ref[2:R + 2, 1:R + 1, Ct:2 * Ct] = x03
    x0w_ref[2:R + 2, 0:R, 2 * Ct:3 * Ct] = x03

    # ---- conv1: plain 3x3 on the extended (R+2)^2 domain, 3 matmuls (no folded blur)
    acc1 = jnp.zeros((Rext * Rext, Cout), jnp.float32)
    for kh in range(3):
        acc1 = acc1 + jnp.dot(x0w_ref[kh:kh + Rext].reshape(Rext * Rext, 3 * Ct),
                              w1_ref[kh], preferred_element_type=jnp.float32)

    # ---- separable [1,3,3,1] blur + 2x downsample on the VPU ----------------
    def blurdown(v_ext):
        # v_ext: (R+2, R+2, Cout) covering original coords [-1, R]; returns (P, P, Cout).
        vr = v_ext.reshape(P + 1, 2, Rext, Cout)                   # free leading-dim split
        hb_ref[...] = (f0 * vr[:P, 0] + f1 * vr[:P, 1]             # H pass
                       + f2 * vr[1:, 0] + f3 * vr[1:, 1])
        return (f0 * hb_ref[:, pl.ds(0, P, stride=2), :]           # W pass (stride-2 reads)
                + f1 * hb_ref[:, pl.ds(1, P, stride=2), :]
                + f2 * hb_ref[:, pl.ds(2, P, stride=2), :]
                + f3 * hb_ref[:, pl.ds(3, P, stride=2), :])

    bd_c = blurdown(acc1.reshape(Rext, Rext, Cout))                # conv1 path

    # skip path: zero-halo padded skip pre-blur, then the same blurdown
    spad_ref[0] = jnp.zeros((Rext, Cout), jnp.float32)
    spad_ref[R + 1] = jnp.zeros((Rext, Cout), jnp.float32)
    spad_ref[1:R + 1, 0:1, :] = jnp.zeros((R, 1, Cout), jnp.float32)
    spad_ref[1:R + 1, R + 1:R + 2, :] = jnp.zeros((R, 1, Cout), jnp.float32)
    spad_ref[1:R + 1, 1:R + 1, :] = s3
    bd_s = blurdown(spad_ref[...])

    # ---- bias + lrelu + gains, residual add ---------------------------------
    out2 = (_lrelu(bd_c.reshape(P * P, Cout) + b1_ref[...]) * (SQRT2 * SQRT_HALF)
            + SQRT_HALF * bd_s.reshape(P * P, Cout))
    out_ref[...] = out2.reshape(1, P, P, Cout)


def discriminator_block_depth_forward(img, params):
    """img: (N, img_channels+1, R, R) float32 NCHW (RGB planes + 1 depth plane).
    Returns (x, img): x is (N, out_channels, R//2, R//2) NCHW float32."""
    N, Cimg, R, _ = img.shape
    assert Cimg == 4, "this kernel implements the rgb+depth (img_channels+1) branch"
    # TODO(synk): the img_channels-only branch (no depth plane), the in_channels!=0
    #             (x is not None) branch, and the fp16/channels_last path are not
    #             implemented here.
    # TODO(synk): production-scale R / channels need generation-aware spatial tiling
    #             (v7x: 64 MiB VMEM) and HBM-resident single-buffered weights; this
    #             version keeps one image resident per grid step.
    Ct = params["w0"].shape[0]
    Cout = params["w1"].shape[0]
    P = R // 2

    # equalized-lr weight gains (as in Conv2dLayer.forward)
    wg_rgb = 1.0 / math.sqrt(3.0 * 1 * 1)
    wg_d = 1.0
    wg_0 = 1.0 / math.sqrt(Ct * 9.0)
    wg_1 = 1.0 / math.sqrt(Ct * 9.0)
    wg_s = 1.0 / math.sqrt(Ct * 1.0)

    # merged fromrgb | fromdepth 1x1 weights (4, 2*Ct) and biases (1, 2*Ct)
    wfrom = jnp.zeros((4, 2 * Ct), jnp.float32)
    wfrom = wfrom.at[:3, :Ct].set((params["w_rgb"][:, :, 0, 0] * wg_rgb).T)
    wfrom = wfrom.at[3:, Ct:].set((params["w_d"][:, :, 0, 0] * wg_d).T)
    bfrom = jnp.concatenate([params["b_rgb"], params["b_d"]]).reshape(1, 2 * Ct)
    bfrom = bfrom.astype(jnp.float32)

    # conv taps grouped along K per kh-row: (kh, kw*Cin, Cout_of_conv)
    w0cat = jnp.transpose(params["w0"] * wg_0, (2, 3, 1, 0)).reshape(3, 3 * Ct, Ct)
    w1cat = jnp.transpose(params["w1"] * wg_1, (2, 3, 1, 0)).reshape(3, 3 * Ct, Cout)
    wsk = (params["w_skip"][:, :, 0, 0] * wg_s).T.astype(jnp.float32)       # (Ct, Cout)
    b0 = params["b0"].reshape(1, Ct).astype(jnp.float32)
    b1 = params["b1"].reshape(1, Cout).astype(jnp.float32)

    # NCHW -> channels-last flattened pixels: (N, R*R, 4)
    img_flat = jnp.transpose(img, (0, 2, 3, 1)).astype(jnp.float32).reshape(N, R * R, 4)

    zmap2 = lambda n: (0, 0)
    zmap3 = lambda n: (0, 0, 0)
    in_specs = [
        pl.BlockSpec((1, R * R, 4), lambda n: (n, 0, 0)),
        pl.BlockSpec((4, 2 * Ct), zmap2),
        pl.BlockSpec((1, 2 * Ct), zmap2),
        pl.BlockSpec((3, 3 * Ct, Ct), zmap3),
        pl.BlockSpec((1, Ct), zmap2),
        pl.BlockSpec((3, 3 * Ct, Cout), zmap3),
        pl.BlockSpec((1, Cout), zmap2),
        pl.BlockSpec((Ct, Cout), zmap2),
    ]
    out_spec = pl.BlockSpec((1, P, P, Cout), lambda n: (n, 0, 0, 0))
    scratch = [
        pltpu.VMEM((R + 2, R, 3 * Ct), jnp.float32),      # xw   conv0 W-im2col (halo 1)
        pltpu.VMEM((R + 4, R + 2, 3 * Ct), jnp.float32),  # x0w  conv1 W-im2col (halo 2)
        pltpu.VMEM((R + 2, R + 2, Cout), jnp.float32),    # spad skip pre-blur  (halo 1)
        pltpu.VMEM((P, R + 2, Cout), jnp.float32),        # hb   blur H-pass buffer
    ]

    out_nhwc = pl.pallas_call(
        _disc_block_depth_kernel,
        out_shape=jax.ShapeDtypeStruct((N, P, P, Cout), jnp.float32),
        grid_spec=pltpu.PrefetchScalarGridSpec(
            num_scalar_prefetch=0,
            grid=(N,),
            in_specs=in_specs,
            out_specs=out_spec,
            scratch_shapes=scratch),
        compiler_params=pltpu.CompilerParams(
            dimension_semantics=("parallel",),
            vmem_limit_bytes=32 * 1024 * 1024),
    )(img_flat, wfrom, bfrom, w0cat, b0, w1cat, b1, wsk)

    x_out = jnp.transpose(out_nhwc, (0, 3, 1, 2))
    return x_out, img


def reference_forward(img, params):
    """Pure-JAX reference reproducing the StyleGAN2-ADA Conv2dLayer / upfirdn2d pipeline."""
    Ct = params["w0"].shape[0]
    f1 = np.array([1.0, 3.0, 3.0, 1.0], np.float32)
    f1 /= f1.sum()
    f2 = jnp.asarray(np.outer(f1, f1), jnp.float32)
    prec = jax.lax.Precision.HIGHEST

    def conv(x, w, stride=1, pad=0):
        return jax.lax.conv_general_dilated(
            x, w, (stride, stride), [(pad, pad), (pad, pad)],
            dimension_numbers=("NCHW", "OIHW", "NCHW"), precision=prec)

    def blur(x, pad):
        C = x.shape[1]
        xp = jnp.pad(x, ((0, 0), (0, 0), (pad, pad), (pad, pad)))
        fk = jnp.broadcast_to(f2[None, None], (C, 1, 4, 4))
        return jax.lax.conv_general_dilated(
            xp, fk, (1, 1), "VALID", dimension_numbers=("NCHW", "OIHW", "NCHW"),
            feature_group_count=C, precision=prec)

    lrelu = lambda v: jnp.where(v >= 0, v, LRELU_SLOPE * v)
    rgb, d = img[:, :3], img[:, 3:4]
    y_rgb = lrelu(conv(rgb, params["w_rgb"] / math.sqrt(3))
                  + params["b_rgb"][None, :, None, None]) * SQRT2
    y_d = lrelu(conv(d, params["w_d"])
                + params["b_d"][None, :, None, None]) * SQRT2
    x = y_rgb + y_d
    y = conv(blur(x, 1)[:, :, ::2, ::2], params["w_skip"] / math.sqrt(Ct)) * math.sqrt(0.5)
    x = lrelu(conv(x, params["w0"] / math.sqrt(Ct * 9), pad=1)
              + params["b0"][None, :, None, None]) * SQRT2
    x = lrelu(conv(blur(x, 2), params["w1"] / math.sqrt(Ct * 9), stride=2)
              + params["b1"][None, :, None, None]) * (SQRT2 * math.sqrt(0.5))
    return y + x


if __name__ == "__main__":
    N, img_channels, R = 2, 3, 16
    tmp_channels, out_channels = 8, 16

    key = jax.random.PRNGKey(0)
    ks = jax.random.split(key, 10)
    params = {
        "w_rgb": jax.random.normal(ks[0], (tmp_channels, img_channels, 1, 1), jnp.float32),
        "b_rgb": 0.1 * jax.random.normal(ks[1], (tmp_channels,), jnp.float32),
        "w_d": jax.random.normal(ks[2], (tmp_channels, 1, 1, 1), jnp.float32),
        "b_d": 0.1 * jax.random.normal(ks[3], (tmp_channels,), jnp.float32),
        "w0": jax.random.normal(ks[4], (tmp_channels, tmp_channels, 3, 3), jnp.float32),
        "b0": 0.1 * jax.random.normal(ks[5], (tmp_channels,), jnp.float32),
        "w1": jax.random.normal(ks[6], (out_channels, tmp_channels, 3, 3), jnp.float32),
        "b1": 0.1 * jax.random.normal(ks[7], (out_channels,), jnp.float32),
        "w_skip": jax.random.normal(ks[8], (out_channels, tmp_channels, 1, 1), jnp.float32),
    }
    img = jax.random.normal(ks[9], (N, img_channels + 1, R, R), jnp.float32)

    x_out, img_out = discriminator_block_depth_forward(img, params)
    jax.block_until_ready(x_out)

    assert x_out.shape == (N, out_channels, R // 2, R // 2)
    x_ref = reference_forward(img, params)
    if not np.allclose(np.asarray(x_out), np.asarray(x_ref), rtol=2e-2, atol=2e-2):
        err = float(np.max(np.abs(np.asarray(x_out) - np.asarray(x_ref))))
        raise AssertionError(f"Pallas kernel mismatch vs reference, max abs err {err}")
    print("KERNEL_OK")
</pallas_src>

<mosaic_0001>
module attributes {stable_mosaic.version = 11 : i64} {
  func.func @_disc_block_depth_kernel(%arg0: i32, %arg1: memref<1x256x4xf32, #tpu.memory_space<vmem>>, %arg2: memref<4x16xf32, #tpu.memory_space<vmem>>, %arg3: memref<1x16xf32, #tpu.memory_space<vmem>>, %arg4: memref<3x24x8xf32, #tpu.memory_space<vmem>>, %arg5: memref<1x8xf32, #tpu.memory_space<vmem>>, %arg6: memref<3x24x16xf32, #tpu.memory_space<vmem>>, %arg7: memref<1x16xf32, #tpu.memory_space<vmem>>, %arg8: memref<8x16xf32, #tpu.memory_space<vmem>>, %arg9: memref<1x8x8x16xf32, #tpu.memory_space<vmem>>, %arg10: memref<18x16x24xf32, #tpu.memory_space<vmem>>, %arg11: memref<20x18x24xf32, #tpu.memory_space<vmem>>, %arg12: memref<18x18x16xf32, #tpu.memory_space<vmem>>, %arg13: memref<8x18x16xf32, #tpu.memory_space<vmem>>) attributes {dimension_semantics = [#tpu.dimension_semantics<parallel>], iteration_bounds = array<i64: 2>, scalar_prefetch = 0 : i64, scratch_operands = 4 : i64, tpu.core_type = #tpu.core_type<tc>, window_params = [{transform_indices = @transform_0, window_bounds = array<i64: 1, 256, 4>}, {pipeline_mode = #tpu.pipeline_mode<synchronous>, transform_indices = @transform_1, window_bounds = array<i64: 4, 16>}, {pipeline_mode = #tpu.pipeline_mode<synchronous>, transform_indices = @transform_2, window_bounds = array<i64: 1, 16>}, {pipeline_mode = #tpu.pipeline_mode<synchronous>, transform_indices = @transform_3, window_bounds = array<i64: 3, 24, 8>}, {pipeline_mode = #tpu.pipeline_mode<synchronous>, transform_indices = @transform_4, window_bounds = array<i64: 1, 8>}, {pipeline_mode = #tpu.pipeline_mode<synchronous>, transform_indices = @transform_5, window_bounds = array<i64: 3, 24, 16>}, {pipeline_mode = #tpu.pipeline_mode<synchronous>, transform_indices = @transform_6, window_bounds = array<i64: 1, 16>}, {pipeline_mode = #tpu.pipeline_mode<synchronous>, transform_indices = @transform_7, window_bounds = array<i64: 8, 16>}, {transform_indices = @transform_8, window_bounds = array<i64: 1, 8, 8, 16>}]} {
    %c0 = arith.constant 0 : index
    %c0_0 = arith.constant 0 : index
    %c0_1 = arith.constant 0 : index
    %0 = vector.load %arg1[%c0, %c0_0, %c0_1] : memref<1x256x4xf32, #tpu.memory_space<vmem>>, vector<1x256x4xf32>
    %1 = vector.shape_cast %0 : vector<1x256x4xf32> to vector<256x4xf32>
    %c0_2 = arith.constant 0 : index
    %c0_3 = arith.constant 0 : index
    %2 = vector.load %arg2[%c0_2, %c0_3] : memref<4x16xf32, #tpu.memory_space<vmem>>, vector<4x16xf32>
    %cst = arith.constant dense<0.000000e+00> : vector<256x16xf32>
    %3 = tpu.matmul %1, %2, %cst {dimension_numbers = #tpu.dot_dimension_numbers<[1], [0], [0], [1], [0, 0, 1, 1], [], []>} : vector<256x4xf32>, vector<4x16xf32>, vector<256x16xf32> -> vector<256x16xf32>
    %c0_4 = arith.constant 0 : index
    %c0_5 = arith.constant 0 : index
    %4 = vector.load %arg3[%c0_4, %c0_5] : memref<1x16xf32, #tpu.memory_space<vmem>>, vector<1x16xf32>
    %5 = vector.broadcast %4 : vector<1x16xf32> to vector<256x16xf32>
    %6 = arith.addf %3, %5 : vector<256x16xf32>
    %cst_6 = arith.constant 2.000000e-01 : f32
    %7 = vector.broadcast %cst_6 : f32 to vector<256x16xf32>
    %8 = arith.mulf %7, %6 : vector<256x16xf32>
    %9 = arith.maximumf %6, %8 : vector<256x16xf32>
    %cst_7 = arith.constant 1.41421354 : f32
    %10 = vector.broadcast %cst_7 : f32 to vector<256x16xf32>
    %11 = arith.mulf %9, %10 : vector<256x16xf32>
    %12 = vector.extract_strided_slice %11 {offsets = [0, 0], sizes = [256, 8], strides = [1, 1]} : vector<256x16xf32> to vector<256x8xf32>
    %13 = vector.extract_strided_slice %11 {offsets = [0, 8], sizes = [256, 8], strides = [1, 1]} : vector<256x16xf32> to vector<256x8xf32>
    %14 = arith.addf %12, %13 : vector<256x8xf32>
    %c0_8 = arith.constant 0 : index
    %c0_9 = arith.constant 0 : index
    %15 = vector.load %arg8[%c0_8, %c0_9] : memref<8x16xf32, #tpu.memory_space<vmem>>, vector<8x16xf32>
    %cst_10 = arith.constant dense<0.000000e+00> : vector<256x16xf32>
    %16 = tpu.matmul %14, %15, %cst_10 {dimension_numbers = #tpu.dot_dimension_numbers<[1], [0], [0], [1], [0, 0, 1, 1], [], []>} : vector<256x8xf32>, vector<8x16xf32>, vector<256x16xf32> -> vector<256x16xf32>
    %17 = vector.shape_cast %14 : vector<256x8xf32> to vector<16x16x8xf32>
    %18 = vector.shape_cast %16 : vector<256x16xf32> to vector<16x16x16xf32>
    %cst_11 = arith.constant 0.000000e+00 : f32
    %19 = vector.broadcast %cst_11 : f32 to vector<16x24xf32>
    %c0_12 = arith.constant 0 : index
    %c0_13 = arith.constant 0 : index
    %c0_14 = arith.constant 0 : index
    %20 = vector.load %arg10[%c0_12, %c0_13, %c0_14] : memref<18x16x24xf32, #tpu.memory_space<vmem>>, vector<1x16x24xf32>
    %21 = vector.shape_cast %20 : vector<1x16x24xf32> to vector<16x24xf32>
    %22 = vector.shape_cast %19 : vector<16x24xf32> to vector<1x16x24xf32>
    tpu.vector_store %arg10[%c0_12, %c0_13, %c0_14], %22 {strides = array<i32>} : memref<18x16x24xf32, #tpu.memory_space<vmem>>, vector<1x16x24xf32>,
    %cst_15 = arith.constant 0.000000e+00 : f32
    %23 = vector.broadcast %cst_15 : f32 to vector<16x24xf32>
    %c17 = arith.constant 17 : index
    %c0_16 = arith.constant 0 : index
    %c0_17 = arith.constant 0 : index
    %24 = vector.load %arg10[%c17, %c0_16, %c0_17] : memref<18x16x24xf32, #tpu.memory_space<vmem>>, vector<1x16x24xf32>
    %25 = vector.shape_cast %24 : vector<1x16x24xf32> to vector<16x24xf32>
    %26 = vector.shape_cast %23 : vector<16x24xf32> to vector<1x16x24xf32>
    tpu.vector_store %arg10[%c17, %c0_16, %c0_17], %26 {strides = array<i32>} : memref<18x16x24xf32, #tpu.memory_space<vmem>>, vector<1x16x24xf32>,
    %cst_18 = arith.constant 0.000000e+00 : f32
    %27 = vector.broadcast %cst_18 : f32 to vector<16x1x8xf32>
    %c1 = arith.constant 1 : index
    %c0_19 = arith.constant 0 : index
    %c0_20 = arith.constant 0 : index
    %28 = vector.load %arg10[%c1, %c0_19, %c0_20] : memref<18x16x24xf32, #tpu.memory_space<vmem>>, vector<16x1x8xf32>
    tpu.vector_store %arg10[%c1, %c0_19, %c0_20], %27 {strides = array<i32>} : memref<18x16x24xf32, #tpu.memory_space<vmem>>, vector<16x1x8xf32>,
    %cst_21 = arith.constant 0.000000e+00 : f32
    %29 = vector.broadcast %cst_21 : f32 to vector<16x1x8xf32>
    %c1_22 = arith.constant 1 : index
    %c15 = arith.constant 15 : index
    %c16 = arith.constant 16 : index
    %30 = vector.load %arg10[%c1_22, %c15, %c16] : memref<18x16x24xf32, #tpu.memory_space<vmem>>, vector<16x1x8xf32>
    tpu.vector_store %arg10[%c1_22, %c15, %c16], %29 {strides = array<i32>} : memref<18x16x24xf32, #tpu.memory_space<vmem>>, vector<16x1x8xf32>,
    %31 = vector.extract_strided_slice %17 {offsets = [0, 0, 0], sizes = [16, 15, 8], strides = [1, 1, 1]} : vector<16x16x8xf32> to vector<16x15x8xf32>
    %c1_23 = arith.constant 1 : index
    %c1_24 = arith.constant 1 : index
    %c0_25 = arith.constant 0 : index
    %32 = vector.load %arg10[%c1_23, %c1_24, %c0_25] : memref<18x16x24xf32, #tpu.memory_space<vmem>>, vector<16x15x8xf32>
    tpu.vector_store %arg10[%c1_23, %c1_24, %c0_25], %31 {strides = array<i32>} : memref<18x16x24xf32, #tpu.memory_space<vmem>>, vector<16x15x8xf32>,
    %c1_26 = arith.constant 1 : index
    %c0_27 = arith.constant 0 : index
    %c8 = arith.constant 8 : index
    %33 = vector.load %arg10[%c1_26, %c0_27, %c8] : memref<18x16x24xf32, #tpu.memory_space<vmem>>, vector<16x16x8xf32>
    tpu.vector_store %arg10[%c1_26, %c0_27, %c8], %17 {strides = array<i32>} : memref<18x16x24xf32, #tpu.memory_space<vmem>>, vector<16x16x8xf32>,
    %34 = vector.extract_strided_slice %17 {offsets = [0, 1, 0], sizes = [16, 15, 8], strides = [1, 1, 1]} : vector<16x16x8xf32> to vector<16x15x8xf32>
    %c1_28 = arith.constant 1 : index
    %c0_29 = arith.constant 0 : index
    %c16_30 = arith.constant 16 : index
    %35 = vector.load %arg10[%c1_28, %c0_29, %c16_30] : memref<18x16x24xf32, #tpu.memory_space<vmem>>, vector<16x15x8xf32>
    tpu.vector_store %arg10[%c1_28, %c0_29, %c16_30], %34 {strides = array<i32>} : memref<18x16x24xf32, #tpu.memory_space<vmem>>, vector<16x15x8xf32>,
    %cst_31 = arith.constant 0.000000e+00 : f32
    %36 = vector.broadcast %cst_31 : f32 to vector<256x8xf32>
    %c0_32 = arith.constant 0 : index
    %c0_33 = arith.constant 0 : index
    %c0_34 = arith.constant 0 : index
    %37 = vector.load %arg10[%c0_32, %c0_33, %c0_34] : memref<18x16x24xf32, #tpu.memory_space<vmem>>, vector<16x16x24xf32>
    %38 = vector.shape_cast %37 : vector<16x16x24xf32> to vector<256x24xf32>
    %c0_35 = arith.constant 0 : index
    %c0_36 = arith.constant 0 : index
    %c0_37 = arith.constant 0 : index
    %39 = vector.load %arg4[%c0_35, %c0_36, %c0_37] : memref<3x24x8xf32, #tpu.memory_space<vmem>>, vector<1x24x8xf32>
    %40 = vector.shape_cast %39 : vector<1x24x8xf32> to vector<24x8xf32>
    %cst_38 = arith.constant dense<0.000000e+00> : vector<256x8xf32>
    %41 = tpu.matmul %38, %40, %cst_38 {dimension_numbers = #tpu.dot_dimension_numbers<[1], [0], [0], [1], [0, 0, 1, 1], [], []>} : vector<256x24xf32>, vector<24x8xf32>, vector<256x8xf32> -> vector<256x8xf32>
    %42 = arith.addf %36, %41 : vector<256x8xf32>
    %c1_39 = arith.constant 1 : index
    %c0_40 = arith.constant 0 : index
    %c0_41 = arith.constant 0 : index
    %43 = vector.load %arg10[%c1_39, %c0_40, %c0_41] : memref<18x16x24xf32, #tpu.memory_space<vmem>>, vector<16x16x24xf32>
    %44 = vector.shape_cast %43 : vector<16x16x24xf32> to vector<256x24xf32>
    %c1_42 = arith.constant 1 : index
    %c0_43 = arith.constant 0 : index
    %c0_44 = arith.constant 0 : index
    %45 = vector.load %arg4[%c1_42, %c0_43, %c0_44] : memref<3x24x8xf32, #tpu.memory_space<vmem>>, vector<1x24x8xf32>
    %46 = vector.shape_cast %45 : vector<1x24x8xf32> to vector<24x8xf32>
    %cst_45 = arith.constant dense<0.000000e+00> : vector<256x8xf32>
    %47 = tpu.matmul %44, %46, %cst_45 {dimension_numbers = #tpu.dot_dimension_numbers<[1], [0], [0], [1], [0, 0, 1, 1], [], []>} : vector<256x24xf32>, vector<24x8xf32>, vector<256x8xf32> -> vector<256x8xf32>
    %48 = arith.addf %42, %47 : vector<256x8xf32>
    %c2 = arith.constant 2 : index
    %c0_46 = arith.constant 0 : index
    %c0_47 = arith.constant 0 : index
    %49 = vector.load %arg10[%c2, %c0_46, %c0_47] : memref<18x16x24xf32, #tpu.memory_space<vmem>>, vector<16x16x24xf32>
    %50 = vector.shape_cast %49 : vector<16x16x24xf32> to vector<256x24xf32>
    %c2_48 = arith.constant 2 : index
    %c0_49 = arith.constant 0 : index
    %c0_50 = arith.constant 0 : index
    %51 = vector.load %arg4[%c2_48, %c0_49, %c0_50] : memref<3x24x8xf32, #tpu.memory_space<vmem>>, vector<1x24x8xf32>
    %52 = vector.shape_cast %51 : vector<1x24x8xf32> to vector<24x8xf32>
    %cst_51 = arith.constant dense<0.000000e+00> : vector<256x8xf32>
    %53 = tpu.matmul %50, %52, %cst_51 {dimension_numbers = #tpu.dot_dimension_numbers<[1], [0], [0], [1], [0, 0, 1, 1], [], []>} : vector<256x24xf32>, vector<24x8xf32>, vector<256x8xf32> -> vector<256x8xf32>
    %54 = arith.addf %48, %53 : vector<256x8xf32>
    %c0_52 = arith.constant 0 : index
    %c0_53 = arith.constant 0 : index
    %55 = vector.load %arg5[%c0_52, %c0_53] : memref<1x8xf32, #tpu.memory_space<vmem>>, vector<1x8xf32>
    %56 = vector.broadcast %55 : vector<1x8xf32> to vector<256x8xf32>
    %57 = arith.addf %54, %56 : vector<256x8xf32>
    %cst_54 = arith.constant 2.000000e-01 : f32
    %58 = vector.broadcast %cst_54 : f32 to vector<256x8xf32>
    %59 = arith.mulf %58, %57 : vector<256x8xf32>
    %60 = arith.maximumf %57, %59 : vector<256x8xf32>
    %cst_55 = arith.constant 1.41421354 : f32
    %61 = vector.broadcast %cst_55 : f32 to vector<256x8xf32>
    %62 = arith.mulf %60, %61 : vector<256x8xf32>
    %63 = vector.shape_cast %62 : vector<256x8xf32> to vector<16x16x8xf32>
    %cst_56 = arith.constant 0.000000e+00 : f32
    %64 = vector.broadcast %cst_56 : f32 to vector<18x24xf32>
    %c0_57 = arith.constant 0 : index
    %c0_58 = arith.constant 0 : index
    %c0_59 = arith.constant 0 : index
    %65 = vector.load %arg11[%c0_57, %c0_58, %c0_59] : memref<20x18x24xf32, #tpu.memory_space<vmem>>, vector<1x18x24xf32>
    %66 = vector.shape_cast %65 : vector<1x18x24xf32> to vector<18x24xf32>
    %67 = vector.shape_cast %64 : vector<18x24xf32> to vector<1x18x24xf32>
    tpu.vector_store %arg11[%c0_57, %c0_58, %c0_59], %67 {strides = array<i32>} : memref<20x18x24xf32, #tpu.memory_space<vmem>>, vector<1x18x24xf32>,
    %cst_60 = arith.constant 0.000000e+00 : f32
    %68 = vector.broadcast %cst_60 : f32 to vector<18x24xf32>
    %c1_61 = arith.constant 1 : index
    %c0_62 = arith.constant 0 : index
    %c0_63 = arith.constant 0 : index
    %69 = vector.load %arg11[%c1_61, %c0_62, %c0_63] : memref<20x18x24xf32, #tpu.memory_space<vmem>>, vector<1x18x24xf32>
    %70 = vector.shape_cast %69 : vector<1x18x24xf32> to vector<18x24xf32>
    %71 = vector.shape_cast %68 : vector<18x24xf32> to vector<1x18x24xf32>
    tpu.vector_store %arg11[%c1_61, %c0_62, %c0_63], %71 {strides = array<i32>} : memref<20x18x24xf32, #tpu.memory_space<vmem>>, vector<1x18x24xf32>,
    %cst_64 = arith.constant 0.000000e+00 : f32
    %72 = vector.broadcast %cst_64 : f32 to vector<18x24xf32>
    %c18 = arith.constant 18 : index
    %c0_65 = arith.constant 0 : index
    %c0_66 = arith.constant 0 : index
    %73 = vector.load %arg11[%c18, %c0_65, %c0_66] : memref<20x18x24xf32, #tpu.memory_space<vmem>>, vector<1x18x24xf32>
    %74 = vector.shape_cast %73 : vector<1x18x24xf32> to vector<18x24xf32>
    %75 = vector.shape_cast %72 : vector<18x24xf32> to vector<1x18x24xf32>
    tpu.vector_store %arg11[%c18, %c0_65, %c0_66], %75 {strides = array<i32>} : memref<20x18x24xf32, #tpu.memory_space<vmem>>, vector<1x18x24xf32>,
    %cst_67 = arith.constant 0.000000e+00 : f32
    %76 = vector.broadcast %cst_67 : f32 to vector<18x24xf32>
    %c19 = arith.constant 19 : index
    %c0_68 = arith.constant 0 : index
    %c0_69 = arith.constant 0 : index
    %77 = vector.load %arg11[%c19, %c0_68, %c0_69] : memref<20x18x24xf32, #tpu.memory_space<vmem>>, vector<1x18x24xf32>
    %78 = vector.shape_cast %77 : vector<1x18x24xf32> to vector<18x24xf32>
    %79 = vector.shape_cast %76 : vector<18x24xf32> to vector<1x18x24xf32>
    tpu.vector_store %arg11[%c19, %c0_68, %c0_69], %79 {strides = array<i32>} : memref<20x18x24xf32, #tpu.memory_space<vmem>>, vector<1x18x24xf32>,
    %cst_70 = arith.constant 0.000000e+00 : f32
    %80 = vector.broadcast %cst_70 : f32 to vector<16x2x8xf32>
    %c2_71 = arith.constant 2 : index
    %c0_72 = arith.constant 0 : index
    %c0_73 = arith.constant 0 : index
    %81 = vector.load %arg11[%c2_71, %c0_72, %c0_73] : memref<20x18x24xf32, #tpu.memory_space<vmem>>, vector<16x2x8xf32>
    tpu.vector_store %arg11[%c2_71, %c0_72, %c0_73], %80 {strides = array<i32>} : memref<20x18x24xf32, #tpu.memory_space<vmem>>, vector<16x2x8xf32>,
    %cst_74 = arith.constant 0.000000e+00 : f32
    %82 = vector.broadcast %cst_74 : f32 to vector<16x1x8xf32>
    %c2_75 = arith.constant 2 : index
    %c0_76 = arith.constant 0 : index
    %c8_77 = arith.constant 8 : index
    %83 = vector.load %arg11[%c2_75, %c0_76, %c8_77] : memref<20x18x24xf32, #tpu.memory_space<vmem>>, vector<16x1x8xf32>
    tpu.vector_store %arg11[%c2_75, %c0_76, %c8_77], %82 {strides = array<i32>} : memref<20x18x24xf32, #tpu.memory_space<vmem>>, vector<16x1x8xf32>,
    %cst_78 = arith.constant 0.000000e+00 : f32
    %84 = vector.broadcast %cst_78 : f32 to vector<16x1x8xf32>
    %c2_79 = arith.constant 2 : index
    %c17_80 = arith.constant 17 : index
    %c8_81 = arith.constant 8 : index
    %85 = vector.load %arg11[%c2_79, %c17_80, %c8_81] : memref<20x18x24xf32, #tpu.memory_space<vmem>>, vector<16x1x8xf32>
    tpu.vector_store %arg11[%c2_79, %c17_80, %c8_81], %84 {strides = array<i32>} : memref<20x18x24xf32, #tpu.memory_space<vmem>>, vector<16x1x8xf32>,
    %cst_82 = arith.constant 0.000000e+00 : f32
    %86 = vector.broadcast %cst_82 : f32 to vector<16x2x8xf32>
    %c2_83 = arith.constant 2 : index
    %c16_84 = arith.constant 16 : index
    %c16_85 = arith.constant 16 : index
    %87 = vector.load %arg11[%c2_83, %c16_84, %c16_85] : memref<20x18x24xf32, #tpu.memory_space<vmem>>, vector<16x2x8xf32>
    tpu.vector_store %arg11[%c2_83, %c16_84, %c16_85], %86 {strides = array<i32>} : memref<20x18x24xf32, #tpu.memory_space<vmem>>, vector<16x2x8xf32>,
    %c2_86 = arith.constant 2 : index
    %c2_87 = arith.constant 2 : index
    %c0_88 = arith.constant 0 : index
    %88 = vector.load %arg11[%c2_86, %c2_87, %c0_88] : memref<20x18x24xf32, #tpu.memory_space<vmem>>, vector<16x16x8xf32>
    tpu.vector_store %arg11[%c2_86, %c2_87, %c0_88], %63 {strides = array<i32>} : memref<20x18x24xf32, #tpu.memory_space<vmem>>, vector<16x16x8xf32>,
    %c2_89 = arith.constant 2 : index
    %c1_90 = arith.constant 1 : index
    %c8_91 = arith.constant 8 : index
    %89 = vector.load %arg11[%c2_89, %c1_90, %c8_91] : memref<20x18x24xf32, #tpu.memory_space<vmem>>, vector<16x16x8xf32>
    tpu.vector_store %arg11[%c2_89, %c1_90, %c8_91], %63 {strides = array<i32>} : memref<20x18x24xf32, #tpu.memory_space<vmem>>, vector<16x16x8xf32>,
    %c2_92 = arith.constant 2 : index
    %c0_93 = arith.constant 0 : index
    %c16_94 = arith.constant 16 : index
    %90 = vector.load %arg11[%c2_92, %c0_93, %c16_94] : memref<20x18x24xf32, #tpu.memory_space<vmem>>, vector<16x16x8xf32>
    tpu.vector_store %arg11[%c2_92, %c0_93, %c16_94], %63 {strides = array<i32>} : memref<20x18x24xf32, #tpu.memory_space<vmem>>, vector<16x16x8xf32>,
    %cst_95 = arith.constant 0.000000e+00 : f32
    %91 = vector.broadcast %cst_95 : f32 to vector<324x16xf32>
    %c0_96 = arith.constant 0 : index
    %c0_97 = arith.constant 0 : index
    %c0_98 = arith.constant 0 : index
    %92 = vector.load %arg11[%c0_96, %c0_97, %c0_98] : memref<20x18x24xf32, #tpu.memory_space<vmem>>, vector<18x18x24xf32>
    %93 = vector.shape_cast %92 : vector<18x18x24xf32> to vector<324x24xf32>
    %c0_99 = arith.constant 0 : index
    %c0_100 = arith.constant 0 : index
    %c0_101 = arith.constant 0 : index
    %94 = vector.load %arg6[%c0_99, %c0_100, %c0_101] : memref<3x24x16xf32, #tpu.memory_space<vmem>>, vector<1x24x16xf32>
    %95 = vector.shape_cast %94 : vector<1x24x16xf32> to vector<24x16xf32>
    %cst_102 = arith.constant dense<0.000000e+00> : vector<324x16xf32>
    %96 = tpu.matmul %93, %95, %cst_102 {dimension_numbers = #tpu.dot_dimension_numbers<[1], [0], [0], [1], [0, 0, 1, 1], [], []>} : vector<324x24xf32>, vector<24x16xf32>, vector<324x16xf32> -> vector<324x16xf32>
    %97 = arith.addf %91, %96 : vector<324x16xf32>
    %c1_103 = arith.constant 1 : index
    %c0_104 = arith.constant 0 : index
    %c0_105 = arith.constant 0 : index
    %98 = vector.load %arg11[%c1_103, %c0_104, %c0_105] : memref<20x18x24xf32, #tpu.memory_space<vmem>>, vector<18x18x24xf32>
    %99 = vector.shape_cast %98 : vector<18x18x24xf32> to vector<324x24xf32>
    %c1_106 = arith.constant 1 : index
    %c0_107 = arith.constant 0 : index
    %c0_108 = arith.constant 0 : index
    %100 = vector.load %arg6[%c1_106, %c0_107, %c0_108] : memref<3x24x16xf32, #tpu.memory_space<vmem>>, vector<1x24x16xf32>
    %101 = vector.shape_cast %100 : vector<1x24x16xf32> to vector<24x16xf32>
    %cst_109 = arith.constant dense<0.000000e+00> : vector<324x16xf32>
    %102 = tpu.matmul %99, %101, %cst_109 {dimension_numbers = #tpu.dot_dimension_numbers<[1], [0], [0], [1], [0, 0, 1, 1], [], []>} : vector<324x24xf32>, vector<24x16xf32>, vector<324x16xf32> -> vector<324x16xf32>
    %103 = arith.addf %97, %102 : vector<324x16xf32>
    %c2_110 = arith.constant 2 : index
    %c0_111 = arith.constant 0 : index
    %c0_112 = arith.constant 0 : index
    %104 = vector.load %arg11[%c2_110, %c0_111, %c0_112] : memref<20x18x24xf32, #tpu.memory_space<vmem>>, vector<18x18x24xf32>
    %105 = vector.shape_cast %104 : vector<18x18x24xf32> to vector<324x24xf32>
    %c2_113 = arith.constant 2 : index
    %c0_114 = arith.constant 0 : index
    %c0_115 = arith.constant 0 : index
    %106 = vector.load %arg6[%c2_113, %c0_114, %c0_115] : memref<3x24x16xf32, #tpu.memory_space<vmem>>, vector<1x24x16xf32>
    %107 = vector.shape_cast %106 : vector<1x24x16xf32> to vector<24x16xf32>
    %cst_116 = arith.constant dense<0.000000e+00> : vector<324x16xf32>
    %108 = tpu.matmul %105, %107, %cst_116 {dimension_numbers = #tpu.dot_dimension_numbers<[1], [0], [0], [1], [0, 0, 1, 1], [], []>} : vector<324x24xf32>, vector<24x16xf32>, vector<324x16xf32> -> vector<324x16xf32>
    %109 = arith.addf %103, %108 : vector<324x16xf32>
    %110 = vector.shape_cast %109 : vector<324x16xf32> to vector<18x18x16xf32>
    %111 = vector.shape_cast %110 : vector<18x18x16xf32> to vector<9x2x18x16xf32>
    %112 = vector.extract_strided_slice %111 {offsets = [0, 0, 0, 0], sizes = [8, 1, 18, 16], strides = [1, 1, 1, 1]} : vector<9x2x18x16xf32> to vector<8x1x18x16xf32>
    %113 = vector.shape_cast %112 : vector<8x1x18x16xf32> to vector<8x18x16xf32>
    %cst_117 = arith.constant 1.250000e-01 : f32
    %114 = vector.broadcast %cst_117 : f32 to vector<8x18x16xf32>
    %115 = arith.mulf %114, %113 : vector<8x18x16xf32>
    %116 = vector.extract_strided_slice %111 {offsets = [0, 1, 0, 0], sizes = [8, 1, 18, 16], strides = [1, 1, 1, 1]} : vector<9x2x18x16xf32> to vector<8x1x18x16xf32>
    %117 = vector.shape_cast %116 : vector<8x1x18x16xf32> to vector<8x18x16xf32>
    %cst_118 = arith.constant 3.750000e-01 : f32
    %118 = vector.broadcast %cst_118 : f32 to vector<8x18x16xf32>
    %119 = arith.mulf %118, %117 : vector<8x18x16xf32>
    %120 = arith.addf %115, %119 : vector<8x18x16xf32>
    %121 = vector.extract_strided_slice %111 {offsets = [1, 0, 0, 0], sizes = [8, 1, 18, 16], strides = [1, 1, 1, 1]} : vector<9x2x18x16xf32> to vector<8x1x18x16xf32>
    %122 = vector.shape_cast %121 : vector<8x1x18x16xf32> to vector<8x18x16xf32>
    %cst_119 = arith.constant 3.750000e-01 : f32
    %123 = vector.broadcast %cst_119 : f32 to vector<8x18x16xf32>
    %124 = arith.mulf %123, %122 : vector<8x18x16xf32>
    %125 = arith.addf %120, %124 : vector<8x18x16xf32>
    %126 = vector.extract_strided_slice %111 {offsets = [1, 1, 0, 0], sizes = [8, 1, 18, 16], strides = [1, 1, 1, 1]} : vector<9x2x18x16xf32> to vector<8x1x18x16xf32>
    %127 = vector.shape_cast %126 : vector<8x1x18x16xf32> to vector<8x18x16xf32>
    %cst_120 = arith.constant 1.250000e-01 : f32
    %128 = vector.broadcast %cst_120 : f32 to vector<8x18x16xf32>
    %129 = arith.mulf %128, %127 : vector<8x18x16xf32>
    %130 = arith.addf %125, %129 : vector<8x18x16xf32>
    %c0_121 = arith.constant 0 : index
    %c0_122 = arith.constant 0 : index
    %c0_123 = arith.constant 0 : index
    %131 = vector.load %arg13[%c0_121, %c0_122, %c0_123] : memref<8x18x16xf32, #tpu.memory_space<vmem>>, vector<8x18x16xf32>
    tpu.vector_store %arg13[%c0_121, %c0_122, %c0_123], %130 {strides = array<i32>} : memref<8x18x16xf32, #tpu.memory_space<vmem>>, vector<8x18x16xf32>,
    %c0_124 = arith.constant 0 : index
    %c0_125 = arith.constant 0 : index
    %c0_126 = arith.constant 0 : index
    %132 = tpu.strided_load %arg13[%c0_124, %c0_125, %c0_126] {strides = array<i32: 1, 2, 1>} : memref<8x18x16xf32, #tpu.memory_space<vmem>>, vector<8x8x16xf32>
    %cst_127 = arith.constant 1.250000e-01 : f32
    %133 = vector.broadcast %cst_127 : f32 to vector<8x8x16xf32>
    %134 = arith.mulf %133, %132 : vector<8x8x16xf32>
    %c0_128 = arith.constant 0 : index
    %c1_129 = arith.constant 1 : index
    %c0_130 = arith.constant 0 : index
    %135 = tpu.strided_load %arg13[%c0_128, %c1_129, %c0_130] {strides = array<i32: 1, 2, 1>} : memref<8x18x16xf32, #tpu.memory_space<vmem>>, vector<8x8x16xf32>
    %cst_131 = arith.constant 3.750000e-01 : f32
    %136 = vector.broadcast %cst_131 : f32 to vector<8x8x16xf32>
    %137 = arith.mulf %136, %135 : vector<8x8x16xf32>
    %138 = arith.addf %134, %137 : vector<8x8x16xf32>
    %c0_132 = arith.constant 0 : index
    %c2_133 = arith.constant 2 : index
    %c0_134 = arith.constant 0 : index
    %139 = tpu.strided_load %arg13[%c0_132, %c2_133, %c0_134] {strides = array<i32: 1, 2, 1>} : memref<8x18x16xf32, #tpu.memory_space<vmem>>, vector<8x8x16xf32>
    %cst_135 = arith.constant 3.750000e-01 : f32
    %140 = vector.broadcast %cst_135 : f32 to vector<8x8x16xf32>
    %141 = arith.mulf %140, %139 : vector<8x8x16xf32>
    %142 = arith.addf %138, %141 : vector<8x8x16xf32>
    %c0_136 = arith.constant 0 : index
    %c3 = arith.constant 3 : index
    %c0_137 = arith.constant 0 : index
    %143 = tpu.strided_load %arg13[%c0_136, %c3, %c0_137] {strides = array<i32: 1, 2, 1>} : memref<8x18x16xf32, #tpu.memory_space<vmem>>, vector<8x8x16xf32>
    %cst_138 = arith.constant 1.250000e-01 : f32
    %144 = vector.broadcast %cst_138 : f32 to vector<8x8x16xf32>
    %145 = arith.mulf %144, %143 : vector<8x8x16xf32>
    %146 = arith.addf %142, %145 : vector<8x8x16xf32>
    %cst_139 = arith.constant 0.000000e+00 : f32
    %147 = vector.broadcast %cst_139 : f32 to vector<18x16xf32>
    %c0_140 = arith.constant 0 : index
    %c0_141 = arith.constant 0 : index
    %c0_142 = arith.constant 0 : index
    %148 = vector.load %arg12[%c0_140, %c0_141, %c0_142] : memref<18x18x16xf32, #tpu.memory_space<vmem>>, vector<1x18x16xf32>
    %149 = vector.shape_cast %148 : vector<1x18x16xf32> to vector<18x16xf32>
    %150 = vector.shape_cast %147 : vector<18x16xf32> to vector<1x18x16xf32>
    tpu.vector_store %arg12[%c0_140, %c0_141, %c0_142], %150 {strides = array<i32>} : memref<18x18x16xf32, #tpu.memory_space<vmem>>, vector<1x18x16xf32>,
    %cst_143 = arith.constant 0.000000e+00 : f32
    %151 = vector.broadcast %cst_143 : f32 to vector<18x16xf32>
    %c17_144 = arith.constant 17 : index
    %c0_145 = arith.constant 0 : index
    %c0_146 = arith.constant 0 : index
    %152 = vector.load %arg12[%c17_144, %c0_145, %c0_146] : memref<18x18x16xf32, #tpu.memory_space<vmem>>, vector<1x18x16xf32>
    %153 = vector.shape_cast %152 : vector<1x18x16xf32> to vector<18x16xf32>
    %154 = vector.shape_cast %151 : vector<18x16xf32> to vector<1x18x16xf32>
    tpu.vector_store %arg12[%c17_144, %c0_145, %c0_146], %154 {strides = array<i32>} : memref<18x18x16xf32, #tpu.memory_space<vmem>>, vector<1x18x16xf32>,
    %cst_147 = arith.constant 0.000000e+00 : f32
    %155 = vector.broadcast %cst_147 : f32 to vector<16x1x16xf32>
    %c1_148 = arith.constant 1 : index
    %c0_149 = arith.constant 0 : index
    %c0_150 = arith.constant 0 : index
    %156 = vector.load %arg12[%c1_148, %c0_149, %c0_150] : memref<18x18x16xf32, #tpu.memory_space<vmem>>, vector<16x1x16xf32>
    tpu.vector_store %arg12[%c1_148, %c0_149, %c0_150], %155 {strides = array<i32>} : memref<18x18x16xf32, #tpu.memory_space<vmem>>, vector<16x1x16xf32>,
    %cst_151 = arith.constant 0.000000e+00 : f32
    %157 = vector.broadcast %cst_151 : f32 to vector<16x1x16xf32>
    %c1_152 = arith.constant 1 : index
    %c17_153 = arith.constant 17 : index
    %c0_154 = arith.constant 0 : index
    %158 = vector.load %arg12[%c1_152, %c17_153, %c0_154] : memref<18x18x16xf32, #tpu.memory_space<vmem>>, vector<16x1x16xf32>
    tpu.vector_store %arg12[%c1_152, %c17_153, %c0_154], %157 {strides = array<i32>} : memref<18x18x16xf32, #tpu.memory_space<vmem>>, vector<16x1x16xf32>,
    %c1_155 = arith.constant 1 : index
    %c1_156 = arith.constant 1 : index
    %c0_157 = arith.constant 0 : index
    %159 = vector.load %arg12[%c1_155, %c1_156, %c0_157] : memref<18x18x16xf32, #tpu.memory_space<vmem>>, vector<16x16x16xf32>
    tpu.vector_store %arg12[%c1_155, %c1_156, %c0_157], %18 {strides = array<i32>} : memref<18x18x16xf32, #tpu.memory_space<vmem>>, vector<16x16x16xf32>,
    %c0_158 = arith.constant 0 : index
    %c0_159 = arith.constant 0 : index
    %c0_160 = arith.constant 0 : index
    %160 = vector.load %arg12[%c0_158, %c0_159, %c0_160] : memref<18x18x16xf32, #tpu.memory_space<vmem>>, vector<18x18x16xf32>
    %161 = vector.shape_cast %160 : vector<18x18x16xf32> to vector<9x2x18x16xf32>
    %162 = vector.extract_strided_slice %161 {offsets = [0, 0, 0, 0], sizes = [8, 1, 18, 16], strides = [1, 1, 1, 1]} : vector<9x2x18x16xf32> to vector<8x1x18x16xf32>
    %163 = vector.shape_cast %162 : vector<8x1x18x16xf32> to vector<8x18x16xf32>
    %cst_161 = arith.constant 1.250000e-01 : f32
    %164 = vector.broadcast %cst_161 : f32 to vector<8x18x16xf32>
    %165 = arith.mulf %164, %163 : vector<8x18x16xf32>
    %166 = vector.extract_strided_slice %161 {offsets = [0, 1, 0, 0], sizes = [8, 1, 18, 16], strides = [1, 1, 1, 1]} : vector<9x2x18x16xf32> to vector<8x1x18x16xf32>
    %167 = vector.shape_cast %166 : vector<8x1x18x16xf32> to vector<8x18x16xf32>
    %cst_162 = arith.constant 3.750000e-01 : f32
    %168 = vector.broadcast %cst_162 : f32 to vector<8x18x16xf32>
    %169 = arith.mulf %168, %167 : vector<8x18x16xf32>
    %170 = arith.addf %165, %169 : vector<8x18x16xf32>
    %171 = vector.extract_strided_slice %161 {offsets = [1, 0, 0, 0], sizes = [8, 1, 18, 16], strides = [1, 1, 1, 1]} : vector<9x2x18x16xf32> to vector<8x1x18x16xf32>
    %172 = vector.shape_cast %171 : vector<8x1x18x16xf32> to vector<8x18x16xf32>
    %cst_163 = arith.constant 3.750000e-01 : f32
    %173 = vector.broadcast %cst_163 : f32 to vector<8x18x16xf32>
    %174 = arith.mulf %173, %172 : vector<8x18x16xf32>
    %175 = arith.addf %170, %174 : vector<8x18x16xf32>
    %176 = vector.extract_strided_slice %161 {offsets = [1, 1, 0, 0], sizes = [8, 1, 18, 16], strides = [1, 1, 1, 1]} : vector<9x2x18x16xf32> to vector<8x1x18x16xf32>
    %177 = vector.shape_cast %176 : vector<8x1x18x16xf32> to vector<8x18x16xf32>
    %cst_164 = arith.constant 1.250000e-01 : f32
    %178 = vector.broadcast %cst_164 : f32 to vector<8x18x16xf32>
    %179 = arith.mulf %178, %177 : vector<8x18x16xf32>
    %180 = arith.addf %175, %179 : vector<8x18x16xf32>
    %c0_165 = arith.constant 0 : index
    %c0_166 = arith.constant 0 : index
    %c0_167 = arith.constant 0 : index
    %181 = vector.load %arg13[%c0_165, %c0_166, %c0_167] : memref<8x18x16xf32, #tpu.memory_space<vmem>>, vector<8x18x16xf32>
    tpu.vector_store %arg13[%c0_165, %c0_166, %c0_167], %180 {strides = array<i32>} : memref<8x18x16xf32, #tpu.memory_space<vmem>>, vector<8x18x16xf32>,
    %c0_168 = arith.constant 0 : index
    %c0_169 = arith.constant 0 : index
    %c0_170 = arith.constant 0 : index
    %182 = tpu.strided_load %arg13[%c0_168, %c0_169, %c0_170] {strides = array<i32: 1, 2, 1>} : memref<8x18x16xf32, #tpu.memory_space<vmem>>, vector<8x8x16xf32>
    %cst_171 = arith.constant 1.250000e-01 : f32
    %183 = vector.broadcast %cst_171 : f32 to vector<8x8x16xf32>
    %184 = arith.mulf %183, %182 : vector<8x8x16xf32>
    %c0_172 = arith.constant 0 : index
    %c1_173 = arith.constant 1 : index
    %c0_174 = arith.constant 0 : index
    %185 = tpu.strided_load %arg13[%c0_172, %c1_173, %c0_174] {strides = array<i32: 1, 2, 1>} : memref<8x18x16xf32, #tpu.memory_space<vmem>>, vector<8x8x16xf32>
    %cst_175 = arith.constant 3.750000e-01 : f32
    %186 = vector.broadcast %cst_175 : f32 to vector<8x8x16xf32>
    %187 = arith.mulf %186, %185 : vector<8x8x16xf32>
    %188 = arith.addf %184, %187 : vector<8x8x16xf32>
    %c0_176 = arith.constant 0 : index
    %c2_177 = arith.constant 2 : index
    %c0_178 = arith.constant 0 : index
    %189 = tpu.strided_load %arg13[%c0_176, %c2_177, %c0_178] {strides = array<i32: 1, 2, 1>} : memref<8x18x16xf32, #tpu.memory_space<vmem>>, vector<8x8x16xf32>
    %cst_179 = arith.constant 3.750000e-01 : f32
    %190 = vector.broadcast %cst_179 : f32 to vector<8x8x16xf32>
    %191 = arith.mulf %190, %189 : vector<8x8x16xf32>
    %192 = arith.addf %188, %191 : vector<8x8x16xf32>
    %c0_180 = arith.constant 0 : index
    %c3_181 = arith.constant 3 : index
    %c0_182 = arith.constant 0 : index
    %193 = tpu.strided_load %arg13[%c0_180, %c3_181, %c0_182] {strides = array<i32: 1, 2, 1>} : memref<8x18x16xf32, #tpu.memory_space<vmem>>, vector<8x8x16xf32>
    %cst_183 = arith.constant 1.250000e-01 : f32
    %194 = vector.broadcast %cst_183 : f32 to vector<8x8x16xf32>
    %195 = arith.mulf %194, %193 : vector<8x8x16xf32>
    %196 = arith.addf %192, %195 : vector<8x8x16xf32>
    %197 = vector.shape_cast %146 : vector<8x8x16xf32> to vector<64x16xf32>
    %c0_184 = arith.constant 0 : index
    %c0_185 = arith.constant 0 : index
    %198 = vector.load %arg7[%c0_184, %c0_185] : memref<1x16xf32, #tpu.memory_space<vmem>>, vector<1x16xf32>
    %199 = vector.broadcast %198 : vector<1x16xf32> to vector<64x16xf32>
    %200 = arith.addf %197, %199 : vector<64x16xf32>
    %cst_186 = arith.constant 2.000000e-01 : f32
    %201 = vector.broadcast %cst_186 : f32 to vector<64x16xf32>
    %202 = arith.mulf %201, %200 : vector<64x16xf32>
    %203 = arith.maximumf %200, %202 : vector<64x16xf32>
    %cst_187 = arith.constant 1.000000e+00 : f32
    %204 = vector.broadcast %cst_187 : f32 to vector<64x16xf32>
    %205 = arith.mulf %203, %204 : vector<64x16xf32>
    %206 = vector.shape_cast %196 : vector<8x8x16xf32> to vector<64x16xf32>
    %cst_188 = arith.constant 0.707106769 : f32
    %207 = vector.broadcast %cst_188 : f32 to vector<64x16xf32>
    %208 = arith.mulf %207, %206 : vector<64x16xf32>
    %209 = arith.addf %205, %208 : vector<64x16xf32>
    %210 = vector.shape_cast %209 : vector<64x16xf32> to vector<1x8x8x16xf32>
    %c0_189 = arith.constant 0 : index
    %c0_190 = arith.constant 0 : index
    %c0_191 = arith.constant 0 : index
    %c0_192 = arith.constant 0 : index
    %211 = vector.load %arg9[%c0_189, %c0_190, %c0_191, %c0_192] : memref<1x8x8x16xf32, #tpu.memory_space<vmem>>, vector<1x8x8x16xf32>
    tpu.vector_store %arg9[%c0_189, %c0_190, %c0_191, %c0_192], %210 {strides = array<i32>} : memref<1x8x8x16xf32, #tpu.memory_space<vmem>>, vector<1x8x8x16xf32>,
    return
  }
  func.func @transform_0(%arg0: i32) -> (i32, i32, i32) {
    %c0_i32 = arith.constant 0 : i32
    %c0_i32_0 = arith.constant 0 : i32
    %c0_i32_1 = arith.constant 0 : i32
    return %arg0, %c0_i32, %c0_i32_0 : i32, i32, i32
  }
  func.func @transform_1(%arg0: i32) -> (i32, i32) {
    %c0_i32 = arith.constant 0 : i32
    %c0_i32_0 = arith.constant 0 : i32
    %c0_i32_1 = arith.constant 0 : i32
    return %c0_i32, %c0_i32_0 : i32, i32
  }
  func.func @transform_2(%arg0: i32) -> (i32, i32) {
    %c0_i32 = arith.constant 0 : i32
    %c0_i32_0 = arith.constant 0 : i32
    %c0_i32_1 = arith.constant 0 : i32
    return %c0_i32, %c0_i32_0 : i32, i32
  }
  func.func @transform_3(%arg0: i32) -> (i32, i32, i32) {
    %c0_i32 = arith.constant 0 : i32
    %c0_i32_0 = arith.constant 0 : i32
    %c0_i32_1 = arith.constant 0 : i32
    %c0_i32_2 = arith.constant 0 : i32
    return %c0_i32, %c0_i32_0, %c0_i32_1 : i32, i32, i32
  }
  func.func @transform_4(%arg0: i32) -> (i32, i32) {
    %c0_i32 = arith.constant 0 : i32
    %c0_i32_0 = arith.constant 0 : i32
    %c0_i32_1 = arith.constant 0 : i32
    return %c0_i32, %c0_i32_0 : i32, i32
  }
  func.func @transform_5(%arg0: i32) -> (i32, i32, i32) {
    %c0_i32 = arith.constant 0 : i32
    %c0_i32_0 = arith.constant 0 : i32
    %c0_i32_1 = arith.constant 0 : i32
    %c0_i32_2 = arith.constant 0 : i32
    return %c0_i32, %c0_i32_0, %c0_i32_1 : i32, i32, i32
  }
  func.func @transform_6(%arg0: i32) -> (i32, i32) {
    %c0_i32 = arith.constant 0 : i32
    %c0_i32_0 = arith.constant 0 : i32
    %c0_i32_1 = arith.constant 0 : i32
    return %c0_i32, %c0_i32_0 : i32, i32
  }
  func.func @transform_7(%arg0: i32) -> (i32, i32) {
    %c0_i32 = arith.constant 0 : i32
    %c0_i32_0 = arith.constant 0 : i32
    %c0_i32_1 = arith.constant 0 : i32
    return %c0_i32, %c0_i32_0 : i32, i32
  }
  func.func @transform_8(%arg0: i32) -> (i32, i32, i32, i32) {
    %c0_i32 = arith.constant 0 : i32
    %c0_i32_0 = arith.constant 0 : i32
    %c0_i32_1 = arith.constant 0 : i32
    %c0_i32_2 = arith.constant 0 : i32
    return %arg0, %c0_i32, %c0_i32_0, %c0_i32_1 : i32, i32, i32, i32
  }
}

</mosaic_0001>

<llo_original>
// kernel: tpu_custom_call.1
$region0: #{tpu_custom_call.1}
  #allocation0 [shape = 'u32[]', space=smem, size = 0x4, offset = 0x4, fixed_abs, tag = 'smem constant byte address 0x4 - core index']
  #allocation1 [shape = 'u32[144,128]{1,0:T(1,128)}', space=vmem, size = 0x12000, scoped, tag = 'internal scratch']
  #allocation2 [shape = 'f32[18,16,24]{2,1,0:T(8,128)}', space=vmem, size = 0x24000, scoped, tag = 'scratch operand']
  #allocation3 [shape = 'f32[20,18,24]{2,1,0:T(8,128)}', space=vmem, size = 0x3c000, scoped, tag = 'scratch operand']
  #allocation4 [shape = 'f32[18,18,16]{2,1,0:T(8,128)}', space=vmem, size = 0x36000, scoped, tag = 'scratch operand']
  #allocation5 [shape = 'f32[8,18,16]{2,1,0:T(8,128)}', space=vmem, size = 0x18000, scoped, tag = 'scratch operand']
  %s0 = inlined_call_operand.vmem [shape: f32[2,256,4], index: 0, kind: input, shape index: {}]
  %s1 = inlined_call_operand.vmem [shape: f32[4,16], index: 1, kind: input, shape index: {}]
  %s2 = inlined_call_operand.vmem [shape: f32[1,16], index: 2, kind: input, shape index: {}]
  %s3 = inlined_call_operand.vmem [shape: f32[3,24,8], index: 3, kind: input, shape index: {}]
  %s4 = inlined_call_operand.vmem [shape: f32[1,8], index: 4, kind: input, shape index: {}]
  %s5 = inlined_call_operand.vmem [shape: f32[3,24,16], index: 5, kind: input, shape index: {}]
  %s6 = inlined_call_operand.vmem [shape: f32[1,16], index: 6, kind: input, shape index: {}]
  %s7 = inlined_call_operand.vmem [shape: f32[8,16], index: 7, kind: input, shape index: {}]
  %s8 = inlined_call_operand.hbm [shape: f32[2,8,8,16], index: 8, kind: output, shape index: {}]
  %s9 = sld [smem:[#allocation0]]
  $region65: #{tpu_custom_call.1} parent=0
    _
  %s11 = ssub.s32 1, %s9
  %s12 = scalar_select 0, %s11, %s9
  $region1: #{tpu_custom_call.1} parent=0
    #allocation6 [shape = 'u8[65536]{0}', space=vmem, size = 0x10000, scoped, tag = 'output window, operand 0']
    #allocation7 [shape = 's32[2]{0}', space=sflag, size = 0x8, scoped, tag = 'scoped memory for tpu_custom_call.1']
    %13 = vsyncpa [#allocation7], 0
    %s14 = scalar_lea.sflag [#allocation7], 1
    %15 = vsyncpa %s14, 0
    loop: start=0, step=1, limit=4
    $region2: #{tpu_custom_call.1} parent=1 // loop_pre_header
      _
    $region3: #{tpu_custom_call.1} parent=1 // loop_header
      %s17 = sphi 0, %s21
      %p18 = scmp.ge.s32.totalorder %s17, 4
      %s27 = sphi 0, %s29
      %s30 = sphi 0, %s27
      %s31 = sphi 0, %s30
      %s47 = sphi 0, %s31
      %s51 = sphi 0, %s51
      %s53 = sphi 0, %s51
      %s54 = sphi 0, %s53
      %s68 = sphi 0, %s54
      %s72 = sphi 0, %s72
      %s74 = sphi 0, %s72
      %s75 = sphi 0, %s74
      %s89 = sphi 0, %s75
      %s93 = sphi 0, %s93
      %s95 = sphi 0, %s93
      %s96 = sphi 0, %s95
      %s110 = sphi 0, %s96
      %s114 = sphi 0, %s114
      %s116 = sphi 0, %s114
      %s117 = sphi 0, %s116
      %s131 = sphi 0, %s117
      %s135 = sphi 0, %s135
      %s137 = sphi 0, %s135
      %s138 = sphi 0, %s137
      %s152 = sphi 0, %s138
      %s156 = sphi 0, %s156
      %s158 = sphi 0, %s156
      %s159 = sphi 0, %s158
      %s173 = sphi 0, %s159
      %s177 = sphi 0, %s177
      %s179 = sphi 0, %s177
      %s180 = sphi 0, %s179
      %s194 = sphi 0, %s180
      %s200 = sphi 0, %s202
      %s203 = sphi 0, %s200
      %s204 = sphi 0, %s203
      %s220 = sphi 0, %s204
    $region4: #{tpu_custom_call.1} parent=1 // loop_header_branch
      %20 = sbr.rel (%p18) target = $region8
    $region5: #{tpu_custom_call.1} parent=1 // loop_body
      %s22 = ssub.s32 %s17, 1
      %s23 = ssub.s32 %s17, 2
      %s24 = sadd.s32 %s17, 1
      %s25 = ssub.s32 %s17, %s24
      %p26 = scmp.eq.s32.totalorder %s25, 0
      %s28 = sadd.s32 %s27, 1
      %s29 = scalar_select %p26, %s27, %s28
      %p32 = pneg %p26
      %p33 = scmp.eq.s32.totalorder %s17, 1
      %p34 = por %p32, %p33
      %p35 = scmp.ne.s32.totalorder %s27, %s30
      %p36 = scmp.eq.s32.totalorder %s17, 0
      %p37 = por %p35, %p36
      %p38 = scmp.ne.s32.totalorder %s27, %s30
      %p39 = scmp.eq.s32.totalorder %s22, 1
      %p40 = por %p38, %p39
      %p41 = scmp.ne.s32.totalorder %s30, %s31
      %p42 = scmp.eq.s32.totalorder %s22, 0
      %p43 = por %p41, %p42
      %p44 = scmp.ne.s32.totalorder %s30, %s31
      %p45 = scmp.eq.s32.totalorder %s23, 1
      %p46 = por %p44, %p45
      %p48 = scmp.ne.s32.totalorder %s31, %s47
      %p49 = scmp.eq.s32.totalorder %s23, 0
      %p50 = por %p48, %p49
      %s52 = sadd.s32 %s51, 1
      %p55 = scmp.eq.s32.totalorder %s17, 1
      %p56 = scmp.ne.s32.totalorder %s51, %s53
      %p57 = scmp.eq.s32.totalorder %s17, 0
      %p58 = por %p56, %p57
      %p59 = scmp.ne.s32.totalorder %s51, %s53
      %p60 = scmp.eq.s32.totalorder %s22, 1
      %p61 = por %p59, %p60
      %p62 = scmp.ne.s32.totalorder %s53, %s54
      %p63 = scmp.eq.s32.totalorder %s22, 0
      %p64 = por %p62, %p63
      %p65 = scmp.ne.s32.totalorder %s53, %s54
      %p66 = scmp.eq.s32.totalorder %s23, 1
      %p67 = por %p65, %p66
      %p69 = scmp.ne.s32.totalorder %s54, %s68
      %p70 = scmp.eq.s32.totalorder %s23, 0
      %p71 = por %p69, %p70
      %s73 = sadd.s32 %s72, 1
      %p76 = scmp.eq.s32.totalorder %s17, 1
      %p77 = scmp.ne.s32.totalorder %s72, %s74
      %p78 = scmp.eq.s32.totalorder %s17, 0
      %p79 = por %p77, %p78
      %p80 = scmp.ne.s32.totalorder %s72, %s74
      %p81 = scmp.eq.s32.totalorder %s22, 1
      %p82 = por %p80, %p81
      %p83 = scmp.ne.s32.totalorder %s74, %s75
      %p84 = scmp.eq.s32.totalorder %s22, 0
      %p85 = por %p83, %p84
      %p86 = scmp.ne.s32.totalorder %s74, %s75
      %p87 = scmp.eq.s32.totalorder %s23, 1
      %p88 = por %p86, %p87
      %p90 = scmp.ne.s32.totalorder %s75, %s89
      %p91 = scmp.eq.s32.totalorder %s23, 0
      %p92 = por %p90, %p91
      %s94 = sadd.s32 %s93, 1
      %p97 = scmp.eq.s32.totalorder %s17, 1
      %p98 = scmp.ne.s32.totalorder %s93, %s95
      %p99 = scmp.eq.s32.totalorder %s17, 0
      %p100 = por %p98, %p99
      %p101 = scmp.ne.s32.totalorder %s93, %s95
      %p102 = scmp.eq.s32.totalorder %s22, 1
      %p103 = por %p101, %p102
      %p104 = scmp.ne.s32.totalorder %s95, %s96
      %p105 = scmp.eq.s32.totalorder %s22, 0
      %p106 = por %p104, %p105
      %p107 = scmp.ne.s32.totalorder %s95, %s96
      %p108 = scmp.eq.s32.totalorder %s23, 1
      %p109 = por %p107, %p108
      %p111 = scmp.ne.s32.totalorder %s96, %s110
      %p112 = scmp.eq.s32.totalorder %s23, 0
      %p113 = por %p111, %p112
      %s115 = sadd.s32 %s114, 1
      %p118 = scmp.eq.s32.totalorder %s17, 1
      %p119 = scmp.ne.s32.totalorder %s114, %s116
      %p120 = scmp.eq.s32.totalorder %s17, 0
      %p121 = por %p119, %p120
      %p122 = scmp.ne.s32.totalorder %s114, %s116
      %p123 = scmp.eq.s32.totalorder %s22, 1
      %p124 = por %p122, %p123
      %p125 = scmp.ne.s32.totalorder %s116, %s117
      %p126 = scmp.eq.s32.totalorder %s22, 0
      %p127 = por %p125, %p126
      %p128 = scmp.ne.s32.totalorder %s116, %s117
      %p129 = scmp.eq.s32.totalorder %s23, 1
      %p130 = por %p128, %p129
      %p132 = scmp.ne.s32.totalorder %s117, %s131
      %p133 = scmp.eq.s32.totalorder %s23, 0
      %p134 = por %p132, %p133
      %s136 = sadd.s32 %s135, 1
      %p139 = scmp.eq.s32.totalorder %s17, 1
      %p140 = scmp.ne.s32.totalorder %s135, %s137
      %p141 = scmp.eq.s32.totalorder %s17, 0
      %p142 = por %p140, %p141
      %p143 = scmp.ne.s32.totalorder %s135, %s137
      %p144 = scmp.eq.s32.totalorder %s22, 1
      %p145 = por %p143, %p144
      %p146 = scmp.ne.s32.totalorder %s137, %s138
      %p147 = scmp.eq.s32.totalorder %s22, 0
      %p148 = por %p146, %p147
      %p149 = scmp.ne.s32.totalorder %s137, %s138
      %p150 = scmp.eq.s32.totalorder %s23, 1
      %p151 = por %p149, %p150
      %p153 = scmp.ne.s32.totalorder %s138, %s152
      %p154 = scmp.eq.s32.totalorder %s23, 0
      %p155 = por %p153, %p154
      %s157 = sadd.s32 %s156, 1
      %p160 = scmp.eq.s32.totalorder %s17, 1
      %p161 = scmp.ne.s32.totalorder %s156, %s158
      %p162 = scmp.eq.s32.totalorder %s17, 0
      %p163 = por %p161, %p162
      %p164 = scmp.ne.s32.totalorder %s156, %s158
      %p165 = scmp.eq.s32.totalorder %s22, 1
      %p166 = por %p164, %p165
      %p167 = scmp.ne.s32.totalorder %s158, %s159
      %p168 = scmp.eq.s32.totalorder %s22, 0
      %p169 = por %p167, %p168
      %p170 = scmp.ne.s32.totalorder %s158, %s159
      %p171 = scmp.eq.s32.totalorder %s23, 1
      %p172 = por %p170, %p171
      %p174 = scmp.ne.s32.totalorder %s159, %s173
      %p175 = scmp.eq.s32.totalorder %s23, 0
      %p176 = por %p174, %p175
      %s178 = sadd.s32 %s177, 1
      %p181 = scmp.eq.s32.totalorder %s17, 1
      %p182 = scmp.ne.s32.totalorder %s177, %s179
      %p183 = scmp.eq.s32.totalorder %s17, 0
      %p184 = por %p182, %p183
      %p185 = scmp.ne.s32.totalorder %s177, %s179
      %p186 = scmp.eq.s32.totalorder %s22, 1
      %p187 = por %p185, %p186
      %p188 = scmp.ne.s32.totalorder %s179, %s180
      %p189 = scmp.eq.s32.totalorder %s22, 0
      %p190 = por %p188, %p189
      %p191 = scmp.ne.s32.totalorder %s179, %s180
      %p192 = scmp.eq.s32.totalorder %s23, 1
      %p193 = por %p191, %p192
      %p195 = scmp.ne.s32.totalorder %s180, %s194
      %p196 = scmp.eq.s32.totalorder %s23, 0
      %p197 = por %p195, %p196
      %s198 = ssub.s32 %s17, %s24
      %p199 = scmp.eq.s32.totalorder %s198, 0
      %s201 = sadd.s32 %s200, 1
      %s202 = scalar_select %p199, %s200, %s201
      %p205 = pneg %p199
      %p206 = scmp.eq.s32.totalorder %s17, 1
      %p207 = por %p205, %p206
      %p208 = scmp.ne.s32.totalorder %s200, %s203
      %p209 = scmp.eq.s32.totalorder %s17, 0
      %p210 = por %p208, %p209
      %p211 = scmp.ne.s32.totalorder %s200, %s203
      %p212 = scmp.eq.s32.totalorder %s22, 1
      %p213 = por %p211, %p212
      %p214 = scmp.ne.s32.totalorder %s203, %s204
      %p215 = scmp.eq.s32.totalorder %s22, 0
      %p216 = por %p214, %p215
      %p217 = scmp.ne.s32.totalorder %s203, %s204
      %p218 = scmp.eq.s32.totalorder %s23, 1
      %p219 = por %p217, %p218
      %p221 = scmp.ne.s32.totalorder %s204, %s220
      %p222 = scmp.eq.s32.totalorder %s23, 0
      %p223 = por %p221, %p222
      %p224 = scmp.le.s32.totalorder 1, %s17
      %p225 = scmp.lt.s32.totalorder %s17, 3
      %p226 = pnand %p224, %p225
      %p227 = pneg %p226
      // Predicated region
      $region9: #{tpu_custom_call.1} parent=5 // pred_check
        _
      $region10: #{tpu_custom_call.1} parent=5 // pred_check_branch
        %229 = sbr.rel (%p226) target = $region12
      $region11: #{tpu_custom_call.1} parent=5 // pred_region
        %s230 = ssub.s32 %s17, 1
        // Predicated region
        $region13: #{tpu_custom_call.1} parent=11 // pred_check
          %p231 = pneg %p64
        $region14: #{tpu_custom_call.1} parent=11 // pred_check_branch
          %233 = sbr.rel (%p231) target = $region16
        $region15: #{tpu_custom_call.1} parent=11 // pred_region
          _
        $region16: #{tpu_custom_call.1} parent=11 // pred_fallthru
          _
        // Predicated region
        $region17: #{tpu_custom_call.1} parent=11 // pred_check
          %p234 = pneg %p85
        $region18: #{tpu_custom_call.1} parent=11 // pred_check_branch
          %236 = sbr.rel (%p234) target = $region20
        $region19: #{tpu_custom_call.1} parent=11 // pred_region
          _
        $region20: #{tpu_custom_call.1} parent=11 // pred_fallthru
          _
        // Predicated region
        $region21: #{tpu_custom_call.1} parent=11 // pred_check
          %p237 = pneg %p106
        $region22: #{tpu_custom_call.1} parent=11 // pred_check_branch
          %239 = sbr.rel (%p237) target = $region24
        $region23: #{tpu_custom_call.1} parent=11 // pred_region
          _
        $region24: #{tpu_custom_call.1} parent=11 // pred_fallthru
          _
        // Predicated region
        $region25: #{tpu_custom_call.1} parent=11 // pred_check
          %p240 = pneg %p127
        $region26: #{tpu_custom_call.1} parent=11 // pred_check_branch
          %242 = sbr.rel (%p240) target = $region28
        $region27: #{tpu_custom_call.1} parent=11 // pred_region
          _
        $region28: #{tpu_custom_call.1} parent=11 // pred_fallthru
          _
        // Predicated region
        $region29: #{tpu_custom_call.1} parent=11 // pred_check
          %p243 = pneg %p148
        $region30: #{tpu_custom_call.1} parent=11 // pred_check_branch
          %245 = sbr.rel (%p243) target = $region32
        $region31: #{tpu_custom_call.1} parent=11 // pred_region
          _
        $region32: #{tpu_custom_call.1} parent=11 // pred_fallthru
          _
        // Predicated region
        $region33: #{tpu_custom_call.1} parent=11 // pred_check
          %p246 = pneg %p169
        $region34: #{tpu_custom_call.1} parent=11 // pred_check_branch
          %248 = sbr.rel (%p246) target = $region36
        $region35: #{tpu_custom_call.1} parent=11 // pred_region
          _
        $region36: #{tpu_custom_call.1} parent=11 // pred_fallthru
          _
        // Predicated region
        $region37: #{tpu_custom_call.1} parent=11 // pred_check
          %p249 = pneg %p190
        $region38: #{tpu_custom_call.1} parent=11 // pred_check_branch
          %251 = sbr.rel (%p249) target = $region40
        $region39: #{tpu_custom_call.1} parent=11 // pred_region
          _
        $region40: #{tpu_custom_call.1} parent=11 // pred_fallthru
          _
      $region12: #{tpu_custom_call.1} parent=5 // pred_fallthru
        _
      %p252 = scmp.lt.s32.totalorder %s17, 2
      // Predicated region
      $region41: #{tpu_custom_call.1} parent=5 // pred_check
        %p253 = pneg %p252
      $region42: #{tpu_custom_call.1} parent=5 // pred_check_branch
        %255 = sbr.rel (%p253) target = $region44
      $region43: #{tpu_custom_call.1} parent=5 // pred_region
        // Predicated region
        $region45: #{tpu_custom_call.1} parent=43 // pred_check
          %p256 = pneg %p37
        $region46: #{tpu_custom_call.1} parent=43 // pred_check_branch
          %258 = sbr.rel (%p256) target = $region48
        $region47: #{tpu_custom_call.1} parent=43 // pred_region
          %p259 = scmp.lt.s32.totalorder %s17, 1
          %s260 = scalar_select %p259, %s17, 1
          %s261 = smul.addr %s260, 32
          %s262 = smul.addr %s261, 8
          %s263 = scalar_lea.vmem %s0, %s262
        $region48: #{tpu_custom_call.1} parent=43 // pred_fallthru
          _
      $region44: #{tpu_custom_call.1} parent=5 // pred_fallthru
        _
      %p264 = scmp.le.s32.totalorder 1, %s17
      %p265 = scmp.lt.s32.totalorder %s17, 3
      %p266 = pnand %p264, %p265
      %p267 = pneg %p266
      // Predicated region
      $region49: #{tpu_custom_call.1} parent=5 // pred_check
        _
      $region50: #{tpu_custom_call.1} parent=5 // pred_check_branch
        %269 = sbr.rel (%p266) target = $region52
      $region51: #{tpu_custom_call.1} parent=5 // pred_region
        %s270 = ssub.s32 %s17, 1
        %p271 = scmp.lt.s32.totalorder %s22, 1
        %s272 = scalar_select %p271, %s22, 1
        %s273 = smul.addr %s272, 32
        %s274 = smul.addr %s273, 8
        %s275 = scalar_lea.vmem %s0, %s274
        %p276 = pneg %p43
        %p277 = pneg %p40
        %p278 = pneg %p64
        %p279 = pneg %p61
        %p280 = pneg %p85
        %p281 = pneg %p82
        %p282 = pneg %p106
        %p283 = pneg %p103
        %p284 = pneg %p127
        %p285 = pneg %p124
        %p286 = pneg %p148
        %p287 = pneg %p145
        %p288 = pneg %p169
        %p289 = pneg %p166
        %p290 = pneg %p190
        %p291 = pneg %p187
        %p292 = pneg %p216
        %p293 = pneg %p213
        %s294 = sand.u32 %s203, 1
        %s295 = scalar_lea.sflag [#allocation7], %s294
        %s296 = sand.u32 %s203, 1
        %s297 = smul.addr %s296, 64
        %s298 = scalar_lea.vmem [#allocation6], %s297
        %p299 = scmp.lt.s32.totalorder %s22, 1
        %s300 = scalar_select %p299, %s22, 1
        %s301 = smul.addr %s300, 32
        %s302 = smul.addr %s301, 8
        %s303 = scalar_lea.vmem %s0, %s302
        %v304 = vld [vmem:[%s303] sm:$0xff]
        %v305 = vld [vmem:[%s303 + $0x8] sm:$0xff]
        %v306 = vld [vmem:[%s303 + $0x10] sm:$0xff]
        %v307 = vld [vmem:[%s303 + $0x18] sm:$0xff]
        %v308 = vld [vmem:[%s303 + $0x20] sm:$0xff]
        %v309 = vld [vmem:[%s303 + $0x28] sm:$0xff]
        %v310 = vld [vmem:[%s303 + $0x30] sm:$0xff]
        %v311 = vld [vmem:[%s303 + $0x38] sm:$0xff]
        %v312 = vld [vmem:[%s303 + $0x40] sm:$0xff]
        %v313 = vld [vmem:[%s303 + $0x48] sm:$0xff]
        %v314 = vld [vmem:[%s303 + $0x50] sm:$0xff]
        %v315 = vld [vmem:[%s303 + $0x58] sm:$0xff]
        %v316 = vld [vmem:[%s303 + $0x60] sm:$0xff]
        %v317 = vld [vmem:[%s303 + $0x68] sm:$0xff]
        %v318 = vld [vmem:[%s303 + $0x70] sm:$0xff]
        %v319 = vld [vmem:[%s303 + $0x78] sm:$0xff]
        %v320 = vld [vmem:[%s303 + $0x80] sm:$0xff]
        %v321 = vld [vmem:[%s303 + $0x88] sm:$0xff]
        %v322 = vld [vmem:[%s303 + $0x90] sm:$0xff]
        %v323 = vld [vmem:[%s303 + $0x98] sm:$0xff]
        %v324 = vld [vmem:[%s303 + $0xa0] sm:$0xff]
        %v325 = vld [vmem:[%s303 + $0xa8] sm:$0xff]
        %v326 = vld [vmem:[%s303 + $0xb0] sm:$0xff]
        %v327 = vld [vmem:[%s303 + $0xb8] sm:$0xff]
        %v328 = vld [vmem:[%s303 + $0xc0] sm:$0xff]
        %v329 = vld [vmem:[%s303 + $0xc8] sm:$0xff]
        %v330 = vld [vmem:[%s303 + $0xd0] sm:$0xff]
        %v331 = vld [vmem:[%s303 + $0xd8] sm:$0xff]
        %v332 = vld [vmem:[%s303 + $0xe0] sm:$0xff]
        %v333 = vld [vmem:[%s303 + $0xe8] sm:$0xff]
        %v334 = vld [vmem:[%s303 + $0xf0] sm:$0xff]
        %v335 = vld [vmem:[%s303 + $0xf8] sm:$0xff]
        %v336 = vld [vmem:[%s1] sm:$0xf]
        %v337 = vld [vmem:[%s2] sm:$0x1]
        %v339 = vlaneseq
        %v340 = vshrl.u32 %v339, 7
        %v341 = vsub.s32 0, %v340
        %v342 = vrot.slane %v337, %v341
        %vm344 = vcmask 31744
        %v346 = vsel %vm344, %v304, 0
        %v349 = vsel %vm344, %v305, 0
        %v352 = vsel %vm344, %v306, 0
        %v355 = vsel %vm344, %v307, 0
        %v358 = vsel %vm344, %v308, 0
        %v361 = vsel %vm344, %v309, 0
        %v364 = vsel %vm344, %v310, 0
        %v367 = vsel %vm344, %v311, 0
        %v370 = vsel %vm344, %v312, 0
        %v373 = vsel %vm344, %v313, 0
        %v376 = vsel %vm344, %v314, 0
        %v379 = vsel %vm344, %v315, 0
        %v382 = vsel %vm344, %v316, 0
        %v385 = vsel %vm344, %v317, 0
        %v388 = vsel %vm344, %v318, 0
        %v391 = vsel %vm344, %v319, 0
        %v394 = vsel %vm344, %v320, 0
        %v397 = vsel %vm344, %v321, 0
        %v400 = vsel %vm344, %v322, 0
        %v403 = vsel %vm344, %v323, 0
        %v406 = vsel %vm344, %v324, 0
        %v409 = vsel %vm344, %v325, 0
        %v412 = vsel %vm344, %v326, 0
        %v415 = vsel %vm344, %v327, 0
        %v418 = vsel %vm344, %v328, 0
        %v421 = vsel %vm344, %v329, 0
        %v424 = vsel %vm344, %v330, 0
        %v427 = vsel %vm344, %v331, 0
        %v430 = vsel %vm344, %v332, 0
        %v433 = vsel %vm344, %v333, 0
        %v436 = vsel %vm344, %v334, 0
        %v439 = vsel %vm344, %v335, 0
        %vm441 = vcmask 1043456
        %v443 = vsel %vm441, %v336, 0
        %445 = vmatprep.subr.mxu0 0.0
        %446 = vmatpush1.msra.mxu0 %v443
        %447 = vmatprep.subr.mxu0 0.0
        %448 = vmatpush1.msra.mxu0 0.0
        %449 = vmatprep.subr.mxu0 0.0
        %450 = vmatpush1.msra.mxu0 0.0
        %451 = vmatprep.subr.mxu0 0.0
        %452 = vmatpush1.msra.mxu0 0.0
        %453 = vmatprep.subr.mxu0 0.0
        %454 = vmatpush1.msra.mxu0 0.0
        %455 = vmatprep.subr.mxu0 0.0
        %456 = vmatpush1.msra.mxu0 0.0
        %457 = vmatprep.subr.mxu0 0.0
        %458 = vmatpush1.msra.mxu0 0.0
        %459 = vmatprep.subr.mxu0 0.0
        %460 = vmatpush1.msra.mxu0 0.0
        %461 = vmatprep.subr.mxu0 0.0
        %462 = vmatpush1.msra.mxu0 0.0
        %463 = vmatprep.subr.mxu0 0.0
        %464 = vmatpush1.msra.mxu0 0.0
        %465 = vmatprep.subr.mxu0 0.0
        %466 = vmatpush1.msra.mxu0 0.0
        %467 = vmatprep.subr.mxu0 0.0
        %468 = vmatpush1.msra.mxu0 0.0
        %469 = vmatprep.subr.mxu0 0.0
        %470 = vmatpush1.msra.mxu0 0.0
        %471 = vmatprep.subr.mxu0 0.0
        %472 = vmatpush1.msra.mxu0 0.0
        %473 = vmatprep.subr.mxu0 0.0
        %474 = vmatpush1.msra.mxu0 0.0
        %475 = vmatprep.subr.mxu0 0.0
        %476 = vmatpush1.msra.mxu0 0.0
        %477 = vmatprep.subr.mxu0 0.0
        %478 = vmatpush1.msra.mxu0 0.0
        %479 = vmatprep.subr.mxu0 0.0
        %480 = vmatpush1.msra.mxu0 0.0
        %481 = vmatprep.subr.mxu0 0.0
        %482 = vmatpush1.msra.mxu0 0.0
        %483 = vmatprep.subr.mxu0 0.0
        %484 = vmatpush1.msra.mxu0 0.0
        %485 = vmatprep.subr.mxu0 0.0
        %486 = vmatpush1.msra.mxu0 0.0
        %487 = vmatprep.subr.mxu0 0.0
        %488 = vmatpush1.msra.mxu0 0.0
        %489 = vmatprep.subr.mxu0 0.0
        %490 = vmatpush1.msra.mxu0 0.0
        %491 = vmatprep.subr.mxu0 0.0
        %492 = vmatpush1.msra.mxu0 0.0
        %493 = vmatprep.subr.mxu0 0.0
        %494 = vmatpush1.msra.mxu0 0.0
        %495 = vmatprep.subr.mxu0 0.0
        %496 = vmatpush1.msra.mxu0 0.0
        %497 = vmatprep.subr.mxu0 0.0
        %498 = vmatpush1.msra.mxu0 0.0
        %499 = vmatprep.subr.mxu0 0.0
        %500 = vmatpush1.msra.mxu0 0.0
        %501 = vmatprep.subr.mxu0 0.0
        %502 = vmatpush1.msra.mxu0 0.0
        %503 = vmatprep.subr.mxu0 0.0
        %504 = vmatpush1.msra.mxu0 0.0
        %505 = vmatprep.subr.mxu0 0.0
        %506 = vmatpush1.msra.mxu0 0.0
        %507 = vmatprep.subr.mxu0 0.0
        %508 = vmatpush1.msra.mxu0 0.0
        %509 = vmatprep.mubr.f32.mxu0 0.0
        %510 = vmatmul.mubr.f32.gmra.mrb[0].mxu0 %v346
        %v511 = vpop.f32.mrb[0].mxu0
        %v512 = vadd.f32 %v342, %v511
        %v513 = vpop.f32.mrb[0].mxu0
        %514 = vmatprep.mubr.f32.mxu0 0.0
        %515 = vmatmul.mubr.f32.gmra.mrb[0].mxu0 %v349
        %v516 = vpop.f32.mrb[0].mxu0
        %v517 = vadd.f32 %v342, %v516
        %v518 = vpop.f32.mrb[0].mxu0
        %519 = vmatprep.mubr.f32.mxu0 0.0
        %520 = vmatmul.mubr.f32.gmra.mrb[0].mxu0 %v352
        %v521 = vpop.f32.mrb[0].mxu0
        %v522 = vadd.f32 %v342, %v521
        %v523 = vpop.f32.mrb[0].mxu0
        %524 = vmatprep.mubr.f32.mxu0 0.0
        %525 = vmatmul.mubr.f32.gmra.mrb[0].mxu0 %v355
        %v526 = vpop.f32.mrb[0].mxu0
        %v527 = vadd.f32 %v342, %v526
        %v528 = vpop.f32.mrb[0].mxu0
        %529 = vmatprep.mubr.f32.mxu0 0.0
        %530 = vmatmul.mubr.f32.gmra.mrb[0].mxu0 %v358
        %v531 = vpop.f32.mrb[0].mxu0
        %v532 = vadd.f32 %v342, %v531
        %v533 = vpop.f32.mrb[0].mxu0
        %534 = vmatprep.mubr.f32.mxu0 0.0
        %535 = vmatmul.mubr.f32.gmra.mrb[0].mxu0 %v361
        %v536 = vpop.f32.mrb[0].mxu0
        %v537 = vadd.f32 %v342, %v536
        %v538 = vpop.f32.mrb[0].mxu0
        %539 = vmatprep.mubr.f32.mxu0 0.0
        %540 = vmatmul.mubr.f32.gmra.mrb[0].mxu0 %v364
        %v541 = vpop.f32.mrb[0].mxu0
        %v542 = vadd.f32 %v342, %v541
        %v543 = vpop.f32.mrb[0].mxu0
        %544 = vmatprep.mubr.f32.mxu0 0.0
        %545 = vmatmul.mubr.f32.gmra.mrb[0].mxu0 %v367
        %v546 = vpop.f32.mrb[0].mxu0
        %v547 = vadd.f32 %v342, %v546
        %v548 = vpop.f32.mrb[0].mxu0
        %549 = vmatprep.mubr.f32.mxu0 0.0
        %550 = vmatmul.mubr.f32.gmra.mrb[0].mxu0 %v370
        %v551 = vpop.f32.mrb[0].mxu0
        %v552 = vadd.f32 %v342, %v551
        %v553 = vpop.f32.mrb[0].mxu0
        %554 = vmatprep.mubr.f32.mxu0 0.0
        %555 = vmatmul.mubr.f32.gmra.mrb[0].mxu0 %v373
        %v556 = vpop.f32.mrb[0].mxu0
        %v557 = vadd.f32 %v342, %v556
        %v558 = vpop.f32.mrb[0].mxu0
        %559 = vmatprep.mubr.f32.mxu0 0.0
        %560 = vmatmul.mubr.f32.gmra.mrb[0].mxu0 %v376
        %v561 = vpop.f32.mrb[0].mxu0
        %v562 = vadd.f32 %v342, %v561
        %v563 = vpop.f32.mrb[0].mxu0
        %564 = vmatprep.mubr.f32.mxu0 0.0
        %565 = vmatmul.mubr.f32.gmra.mrb[0].mxu0 %v379
        %v566 = vpop.f32.mrb[0].mxu0
        %v567 = vadd.f32 %v342, %v566
        %v568 = vpop.f32.mrb[0].mxu0
        %569 = vmatprep.mubr.f32.mxu0 0.0
        %570 = vmatmul.mubr.f32.gmra.mrb[0].mxu0 %v382
        %v571 = vpop.f32.mrb[0].mxu0
        %v572 = vadd.f32 %v342, %v571
        %v573 = vpop.f32.mrb[0].mxu0
        %574 = vmatprep.mubr.f32.mxu0 0.0
        %575 = vmatmul.mubr.f32.gmra.mrb[0].mxu0 %v385
        %v576 = vpop.f32.mrb[0].mxu0
        %v577 = vadd.f32 %v342, %v576
        %v578 = vpop.f32.mrb[0].mxu0
        %579 = vmatprep.mubr.f32.mxu0 0.0
        %580 = vmatmul.mubr.f32.gmra.mrb[0].mxu0 %v388
        %v581 = vpop.f32.mrb[0].mxu0
        %v582 = vadd.f32 %v342, %v581
        %v583 = vpop.f32.mrb[0].mxu0
        %584 = vmatprep.mubr.f32.mxu0 0.0
        %585 = vmatmul.mubr.f32.gmra.mrb[0].mxu0 %v391
        %v586 = vpop.f32.mrb[0].mxu0
        %v587 = vadd.f32 %v342, %v586
        %v588 = vpop.f32.mrb[0].mxu0
        %589 = vmatprep.mubr.f32.mxu0 0.0
        %590 = vmatmul.mubr.f32.gmra.mrb[0].mxu0 %v394
        %v591 = vpop.f32.mrb[0].mxu0
        %v592 = vadd.f32 %v342, %v591
        %v593 = vpop.f32.mrb[0].mxu0
        %594 = vmatprep.mubr.f32.mxu0 0.0
        %595 = vmatmul.mubr.f32.gmra.mrb[0].mxu0 %v397
        %v596 = vpop.f32.mrb[0].mxu0
        %v597 = vadd.f32 %v342, %v596
        %v598 = vpop.f32.mrb[0].mxu0
        %599 = vmatprep.mubr.f32.mxu0 0.0
        %600 = vmatmul.mubr.f32.gmra.mrb[0].mxu0 %v400
        %v601 = vpop.f32.mrb[0].mxu0
        %v602 = vadd.f32 %v342, %v601
        %v603 = vpop.f32.mrb[0].mxu0
        %604 = vmatprep.mubr.f32.mxu0 0.0
        %605 = vmatmul.mubr.f32.gmra.mrb[0].mxu0 %v403
        %v606 = vpop.f32.mrb[0].mxu0
        %v607 = vadd.f32 %v342, %v606
        %v608 = vpop.f32.mrb[0].mxu0
        %609 = vmatprep.mubr.f32.mxu0 0.0
        %610 = vmatmul.mubr.f32.gmra.mrb[0].mxu0 %v406
        %v611 = vpop.f32.mrb[0].mxu0
        %v612 = vadd.f32 %v342, %v611
        %v613 = vpop.f32.mrb[0].mxu0
        %614 = vmatprep.mubr.f32.mxu0 0.0
        %615 = vmatmul.mubr.f32.gmra.mrb[0].mxu0 %v409
        %v616 = vpop.f32.mrb[0].mxu0
        %v617 = vadd.f32 %v342, %v616
        %v618 = vpop.f32.mrb[0].mxu0
        %619 = vmatprep.mubr.f32.mxu0 0.0
        %620 = vmatmul.mubr.f32.gmra.mrb[0].mxu0 %v412
        %v621 = vpop.f32.mrb[0].mxu0
        %v622 = vadd.f32 %v342, %v621
        %v623 = vpop.f32.mrb[0].mxu0
        %624 = vmatprep.mubr.f32.mxu0 0.0
        %625 = vmatmul.mubr.f32.gmra.mrb[0].mxu0 %v415
        %v626 = vpop.f32.mrb[0].mxu0
        %v627 = vadd.f32 %v342, %v626
        %v628 = vpop.f32.mrb[0].mxu0
        %629 = vmatprep.mubr.f32.mxu0 0.0
        %630 = vmatmul.mubr.f32.gmra.mrb[0].mxu0 %v418
        %v631 = vpop.f32.mrb[0].mxu0
        %v632 = vadd.f32 %v342, %v631
        %v633 = vpop.f32.mrb[0].mxu0
        %634 = vmatprep.mubr.f32.mxu0 0.0
        %635 = vmatmul.mubr.f32.gmra.mrb[0].mxu0 %v421
        %v636 = vpop.f32.mrb[0].mxu0
        %v637 = vadd.f32 %v342, %v636
        %v638 = vpop.f32.mrb[0].mxu0
        %639 = vmatprep.mubr.f32.mxu0 0.0
        %640 = vmatmul.mubr.f32.gmra.mrb[0].mxu0 %v424
        %v641 = vpop.f32.mrb[0].mxu0
        %v642 = vadd.f32 %v342, %v641
        %v643 = vpop.f32.mrb[0].mxu0
        %644 = vmatprep.mubr.f32.mxu0 0.0
        %645 = vmatmul.mubr.f32.gmra.mrb[0].mxu0 %v427
        %v646 = vpop.f32.mrb[0].mxu0
        %v647 = vadd.f32 %v342, %v646
        %v648 = vpop.f32.mrb[0].mxu0
        %649 = vmatprep.mubr.f32.mxu0 0.0
        %650 = vmatmul.mubr.f32.gmra.mrb[0].mxu0 %v430
        %v651 = vpop.f32.mrb[0].mxu0
        %v652 = vadd.f32 %v342, %v651
        %v653 = vpop.f32.mrb[0].mxu0
        %654 = vmatprep.mubr.f32.mxu0 0.0
        %655 = vmatmul.mubr.f32.gmra.mrb[0].mxu0 %v433
        %v656 = vpop.f32.mrb[0].mxu0
        %v657 = vadd.f32 %v342, %v656
        %v658 = vpop.f32.mrb[0].mxu0
        %659 = vmatprep.mubr.f32.mxu0 0.0
        %660 = vmatmul.mubr.f32.gmra.mrb[0].mxu0 %v436
        %v661 = vpop.f32.mrb[0].mxu0
        %v662 = vadd.f32 %v342, %v661
        %v663 = vpop.f32.mrb[0].mxu0
        %664 = vmatprep.mubr.f32.mxu0 0.0
        %665 = vmatmul.mubr.f32.gmra.mrb[0].mxu0 %v439
        %v666 = vpop.f32.mrb[0].mxu0
        %v667 = vadd.f32 %v342, %v666
        %v668 = vpop.f32.mrb[0].mxu0
        %669 = vdwg.mxu0
        %v670 = vmul.f32 %v512, 0.2
        %v671 = vmul.f32 %v517, 0.2
        %v672 = vmul.f32 %v522, 0.2
        %v673 = vmul.f32 %v527, 0.2
        %v674 = vmul.f32 %v532, 0.2
        %v675 = vmul.f32 %v537, 0.2
        %v676 = vmul.f32 %v542, 0.2
        %v677 = vmul.f32 %v547, 0.2
        %v678 = vmul.f32 %v552, 0.2
        %v679 = vmul.f32 %v557, 0.2
        %v680 = vmul.f32 %v562, 0.2
        %v681 = vmul.f32 %v567, 0.2
        %v682 = vmul.f32 %v572, 0.2
        %v683 = vmul.f32 %v577, 0.2
        %v684 = vmul.f32 %v582, 0.2
        %v685 = vmul.f32 %v587, 0.2
        %v686 = vmul.f32 %v592, 0.2
        %v687 = vmul.f32 %v597, 0.2
        %v688 = vmul.f32 %v602, 0.2
        %v689 = vmul.f32 %v607, 0.2
        %v690 = vmul.f32 %v612, 0.2
        %v691 = vmul.f32 %v617, 0.2
        %v692 = vmul.f32 %v622, 0.2
        %v693 = vmul.f32 %v627, 0.2
        %v694 = vmul.f32 %v632, 0.2
        %v695 = vmul.f32 %v637, 0.2
        %v696 = vmul.f32 %v642, 0.2
        %v697 = vmul.f32 %v647, 0.2
        %v698 = vmul.f32 %v652, 0.2
        %v699 = vmul.f32 %v657, 0.2
        %v700 = vmul.f32 %v662, 0.2
        %v701 = vmul.f32 %v667, 0.2
        %v702 = vmax.f32 %v512, %v670
        %v703 = vmax.f32 %v517, %v671
        %v704 = vmax.f32 %v522, %v672
        %v705 = vmax.f32 %v527, %v673
        %v706 = vmax.f32 %v532, %v674
        %v707 = vmax.f32 %v537, %v675
        %v708 = vmax.f32 %v542, %v676
        %v709 = vmax.f32 %v547, %v677
        %v710 = vmax.f32 %v552, %v678
        %v711 = vmax.f32 %v557, %v679
        %v712 = vmax.f32 %v562, %v680
        %v713 = vmax.f32 %v567, %v681
        %v714 = vmax.f32 %v572, %v682
        %v715 = vmax.f32 %v577, %v683
        %v716 = vmax.f32 %v582, %v684
        %v717 = vmax.f32 %v587, %v685
        %v718 = vmax.f32 %v592, %v686
        %v719 = vmax.f32 %v597, %v687
        %v720 = vmax.f32 %v602, %v688
        %v721 = vmax.f32 %v607, %v689
        %v722 = vmax.f32 %v612, %v690
        %v723 = vmax.f32 %v617, %v691
        %v724 = vmax.f32 %v622, %v692
        %v725 = vmax.f32 %v627, %v693
        %v726 = vmax.f32 %v632, %v694
        %v727 = vmax.f32 %v637, %v695
        %v728 = vmax.f32 %v642, %v696
        %v729 = vmax.f32 %v647, %v697
        %v730 = vmax.f32 %v652, %v698
        %v731 = vmax.f32 %v657, %v699
        %v732 = vmax.f32 %v662, %v700
        %v733 = vmax.f32 %v667, %v701
        %v734 = vmul.f32 %v702, 1.4142135
        %v735 = vmul.f32 %v703, 1.4142135
        %v736 = vmul.f32 %v704, 1.4142135
        %v737 = vmul.f32 %v705, 1.4142135
        %v738 = vmul.f32 %v706, 1.4142135
        %v739 = vmul.f32 %v707, 1.4142135
        %v740 = vmul.f32 %v708, 1.4142135
        %v741 = vmul.f32 %v709, 1.4142135
        %v742 = vmul.f32 %v710, 1.4142135
        %v743 = vmul.f32 %v711, 1.4142135
        %v744 = vmul.f32 %v712, 1.4142135
        %v745 = vmul.f32 %v713, 1.4142135
        %v746 = vmul.f32 %v714, 1.4142135
        %v747 = vmul.f32 %v715, 1.4142135
        %v748 = vmul.f32 %v716, 1.4142135
        %v749 = vmul.f32 %v717, 1.4142135
        %v750 = vmul.f32 %v718, 1.4142135
        %v751 = vmul.f32 %v719, 1.4142135
        %v752 = vmul.f32 %v720, 1.4142135
        %v753 = vmul.f32 %v721, 1.4142135
        %v754 = vmul.f32 %v722, 1.4142135
        %v755 = vmul.f32 %v723, 1.4142135
        %v756 = vmul.f32 %v724, 1.4142135
        %v757 = vmul.f32 %v725, 1.4142135
        %v758 = vmul.f32 %v726, 1.4142135
        %v759 = vmul.f32 %v727, 1.4142135
        %v760 = vmul.f32 %v728, 1.4142135
        %v761 = vmul.f32 %v729, 1.4142135
        %v762 = vmul.f32 %v730, 1.4142135
        %v763 = vmul.f32 %v731, 1.4142135
        %v764 = vmul.f32 %v732, 1.4142135
        %v765 = vmul.f32 %v733, 1.4142135
        %798 = vrot.lane.b32.xlu0 %v734, 120
        %v799 = vpop.permute.xlu0 %798
        %800 = vrot.lane.b32.xlu0 %v735, 120
        %v801 = vpop.permute.xlu0 %800
        %802 = vrot.lane.b32.xlu0 %v736, 120
        %v803 = vpop.permute.xlu0 %802
        %804 = vrot.lane.b32.xlu0 %v737, 120
        %v805 = vpop.permute.xlu0 %804
        %806 = vrot.lane.b32.xlu0 %v738, 120
        %v807 = vpop.permute.xlu0 %806
        %808 = vrot.lane.b32.xlu0 %v739, 120
        %v809 = vpop.permute.xlu0 %808
        %810 = vrot.lane.b32.xlu0 %v740, 120
        %v811 = vpop.permute.xlu0 %810
        %812 = vrot.lane.b32.xlu0 %v741, 120
        %v813 = vpop.permute.xlu0 %812
        %814 = vrot.lane.b32.xlu0 %v742, 120
        %v815 = vpop.permute.xlu0 %814
        %816 = vrot.lane.b32.xlu0 %v743, 120
        %v817 = vpop.permute.xlu0 %816
        %818 = vrot.lane.b32.xlu0 %v744, 120
        %v819 = vpop.permute.xlu0 %818
        %820 = vrot.lane.b32.xlu0 %v745, 120
        %v821 = vpop.permute.xlu0 %820
        %822 = vrot.lane.b32.xlu0 %v746, 120
        %v823 = vpop.permute.xlu0 %822
        %824 = vrot.lane.b32.xlu0 %v747, 120
        %v825 = vpop.permute.xlu0 %824
        %826 = vrot.lane.b32.xlu0 %v748, 120
        %v827 = vpop.permute.xlu0 %826
        %828 = vrot.lane.b32.xlu0 %v749, 120
        %v829 = vpop.permute.xlu0 %828
        %830 = vrot.lane.b32.xlu0 %v750, 120
        %v831 = vpop.permute.xlu0 %830
        %832 = vrot.lane.b32.xlu0 %v751, 120
        %v833 = vpop.permute.xlu0 %832
        %834 = vrot.lane.b32.xlu0 %v752, 120
        %v835 = vpop.permute.xlu0 %834
        %836 = vrot.lane.b32.xlu0 %v753, 120
        %v837 = vpop.permute.xlu0 %836
        %838 = vrot.lane.b32.xlu0 %v754, 120
        %v839 = vpop.permute.xlu0 %838
        %840 = vrot.lane.b32.xlu0 %v755, 120
        %v841 = vpop.permute.xlu0 %840
        %842 = vrot.lane.b32.xlu0 %v756, 120
        %v843 = vpop.permute.xlu0 %842
        %844 = vrot.lane.b32.xlu0 %v757, 120
        %v845 = vpop.permute.xlu0 %844
        %846 = vrot.lane.b32.xlu0 %v758, 120
        %v847 = vpop.permute.xlu0 %846
        %848 = vrot.lane.b32.xlu0 %v759, 120
        %v849 = vpop.permute.xlu0 %848
        %850 = vrot.lane.b32.xlu0 %v760, 120
        %v851 = vpop.permute.xlu0 %850
        %852 = vrot.lane.b32.xlu0 %v761, 120
        %v853 = vpop.permute.xlu0 %852
        %854 = vrot.lane.b32.xlu0 %v762, 120
        %v855 = vpop.permute.xlu0 %854
        %856 = vrot.lane.b32.xlu0 %v763, 120
        %v857 = vpop.permute.xlu0 %856
        %858 = vrot.lane.b32.xlu0 %v764, 120
        %v859 = vpop.permute.xlu0 %858
        %860 = vrot.lane.b32.xlu0 %v765, 120
        %v861 = vpop.permute.xlu0 %860
        %v894 = vadd.f32 %v734, %v799
        %v895 = vadd.f32 %v735, %v801
        %v896 = vadd.f32 %v736, %v803
        %v897 = vadd.f32 %v737, %v805
        %v898 = vadd.f32 %v738, %v807
        %v899 = vadd.f32 %v739, %v809
        %v900 = vadd.f32 %v740, %v811
        %v901 = vadd.f32 %v741, %v813
        %v902 = vadd.f32 %v742, %v815
        %v903 = vadd.f32 %v743, %v817
        %v904 = vadd.f32 %v744, %v819
        %v905 = vadd.f32 %v745, %v821
        %v906 = vadd.f32 %v746, %v823
        %v907 = vadd.f32 %v747, %v825
        %v908 = vadd.f32 %v748, %v827
        %v909 = vadd.f32 %v749, %v829
        %v910 = vadd.f32 %v750, %v831
        %v911 = vadd.f32 %v751, %v833
        %v912 = vadd.f32 %v752, %v835
        %v913 = vadd.f32 %v753, %v837
        %v914 = vadd.f32 %v754, %v839
        %v915 = vadd.f32 %v755, %v841
        %v916 = vadd.f32 %v756, %v843
        %v917 = vadd.f32 %v757, %v845
        %v918 = vadd.f32 %v758, %v847
        %v919 = vadd.f32 %v759, %v849
        %v920 = vadd.f32 %v760, %v851
        %v921 = vadd.f32 %v761, %v853
        %v922 = vadd.f32 %v762, %v855
        %v923 = vadd.f32 %v763, %v857
        %v924 = vadd.f32 %v764, %v859
        %v925 = vadd.f32 %v765, %v861
        %v926 = vld [vmem:[%s7] sm:$0xff]
        %vm927 = vcmask 64512
        %v929 = vsel %vm927, %v894, 0
        %v932 = vsel %vm927, %v895, 0
        %v935 = vsel %vm927, %v896, 0
        %v938 = vsel %vm927, %v897, 0
        %v941 = vsel %vm927, %v898, 0
        %v944 = vsel %vm927, %v899, 0
        %v947 = vsel %vm927, %v900, 0
        %v950 = vsel %vm927, %v901, 0
        %v953 = vsel %vm927, %v902, 0
        %v956 = vsel %vm927, %v903, 0
        %v959 = vsel %vm927, %v904, 0
        %v962 = vsel %vm927, %v905, 0
        %v965 = vsel %vm927, %v906, 0
        %v968 = vsel %vm927, %v907, 0
        %v971 = vsel %vm927, %v908, 0
        %v974 = vsel %vm927, %v909, 0
        %v977 = vsel %vm927, %v910, 0
        %v980 = vsel %vm927, %v911, 0
        %v983 = vsel %vm927, %v912, 0
        %v986 = vsel %vm927, %v913, 0
        %v989 = vsel %vm927, %v914, 0
        %v992 = vsel %vm927, %v915, 0
        %v995 = vsel %vm927, %v916, 0
        %v998 = vsel %vm927, %v917, 0
        %v1001 = vsel %vm927, %v918, 0
        %v1004 = vsel %vm927, %v919, 0
        %v1007 = vsel %vm927, %v920, 0
        %v1010 = vsel %vm927, %v921, 0
        %v1013 = vsel %vm927, %v922, 0
        %v1016 = vsel %vm927, %v923, 0
        %v1019 = vsel %vm927, %v924, 0
        %v1022 = vsel %vm927, %v925, 0
        %1024 = vmatprep.subr.mxu0 0.0
        %1025 = vmatpush1.msra.mxu0 %v926
        %1026 = vmatprep.subr.mxu0 0.0
        %1027 = vmatpush1.msra.mxu0 0.0
        %1028 = vmatprep.subr.mxu0 0.0
        %1029 = vmatpush1.msra.mxu0 0.0
        %1030 = vmatprep.subr.mxu0 0.0
        %1031 = vmatpush1.msra.mxu0 0.0
        %1032 = vmatprep.subr.mxu0 0.0
        %1033 = vmatpush1.msra.mxu0 0.0
        %1034 = vmatprep.subr.mxu0 0.0
        %1035 = vmatpush1.msra.mxu0 0.0
        %1036 = vmatprep.subr.mxu0 0.0
        %1037 = vmatpush1.msra.mxu0 0.0
        %1038 = vmatprep.subr.mxu0 0.0
        %1039 = vmatpush1.msra.mxu0 0.0
        %1040 = vmatprep.subr.mxu0 0.0
        %1041 = vmatpush1.msra.mxu0 0.0
        %1042 = vmatprep.subr.mxu0 0.0
        %1043 = vmatpush1.msra.mxu0 0.0
        %1044 = vmatprep.subr.mxu0 0.0
        %1045 = vmatpush1.msra.mxu0 0.0
        %1046 = vmatprep.subr.mxu0 0.0
        %1047 = vmatpush1.msra.mxu0 0.0
        %1048 = vmatprep.subr.mxu0 0.0
        %1049 = vmatpush1.msra.mxu0 0.0
        %1050 = vmatprep.subr.mxu0 0.0
        %1051 = vmatpush1.msra.mxu0 0.0
        %1052 = vmatprep.subr.mxu0 0.0
        %1053 = vmatpush1.msra.mxu0 0.0
        %1054 = vmatprep.subr.mxu0 0.0
        %1055 = vmatpush1.msra.mxu0 0.0
        %1056 = vmatprep.subr.mxu0 0.0
        %1057 = vmatpush1.msra.mxu0 0.0
        %1058 = vmatprep.subr.mxu0 0.0
        %1059 = vmatpush1.msra.mxu0 0.0
        %1060 = vmatprep.subr.mxu0 0.0
        %1061 = vmatpush1.msra.mxu0 0.0
        %1062 = vmatprep.subr.mxu0 0.0
        %1063 = vmatpush1.msra.mxu0 0.0
        %1064 = vmatprep.subr.mxu0 0.0
        %1065 = vmatpush1.msra.mxu0 0.0
        %1066 = vmatprep.subr.mxu0 0.0
        %1067 = vmatpush1.msra.mxu0 0.0
        %1068 = vmatprep.subr.mxu0 0.0
        %1069 = vmatpush1.msra.mxu0 0.0
        %1070 = vmatprep.subr.mxu0 0.0
        %1071 = vmatpush1.msra.mxu0 0.0
        %1072 = vmatprep.subr.mxu0 0.0
        %1073 = vmatpush1.msra.mxu0 0.0
        %1074 = vmatprep.subr.mxu0 0.0
        %1075 = vmatpush1.msra.mxu0 0.0
        %1076 = vmatprep.subr.mxu0 0.0
        %1077 = vmatpush1.msra.mxu0 0.0
        %1078 = vmatprep.subr.mxu0 0.0
        %1079 = vmatpush1.msra.mxu0 0.0
        %1080 = vmatprep.subr.mxu0 0.0
        %1081 = vmatpush1.msra.mxu0 0.0
        %1082 = vmatprep.subr.mxu0 0.0
        %1083 = vmatpush1.msra.mxu0 0.0
        %1084 = vmatprep.subr.mxu0 0.0
        %1085 = vmatpush1.msra.mxu0 0.0
        %1086 = vmatprep.subr.mxu0 0.0
        %1087 = vmatpush1.msra.mxu0 0.0
        %1088 = vmatprep.mubr.f32.mxu0 0.0
        %1089 = vmatmul.mubr.f32.gmra.mrb[0].mxu0 %v929
        %v1090 = vpop.f32.mrb[0].mxu0
        %v1091 = vadd.f32 0.0, %v1090
        %v1092 = vpop.f32.mrb[0].mxu0
        %1093 = vmatprep.mubr.f32.mxu0 0.0
        %1094 = vmatmul.mubr.f32.gmra.mrb[0].mxu0 %v932
        %v1095 = vpop.f32.mrb[0].mxu0
        %v1096 = vadd.f32 0.0, %v1095
        %v1097 = vpop.f32.mrb[0].mxu0
        %1098 = vmatprep.mubr.f32.mxu0 0.0
        %1099 = vmatmul.mubr.f32.gmra.mrb[0].mxu0 %v935
        %v1100 = vpop.f32.mrb[0].mxu0
        %v1101 = vadd.f32 0.0, %v1100
        %v1102 = vpop.f32.mrb[0].mxu0
        %1103 = vmatprep.mubr.f32.mxu0 0.0
        %1104 = vmatmul.mubr.f32.gmra.mrb[0].mxu0 %v938
        %v1105 = vpop.f32.mrb[0].mxu0
        %v1106 = vadd.f32 0.0, %v1105
        %v1107 = vpop.f32.mrb[0].mxu0
        %1108 = vmatprep.mubr.f32.mxu0 0.0
        %1109 = vmatmul.mubr.f32.gmra.mrb[0].mxu0 %v941
        %v1110 = vpop.f32.mrb[0].mxu0
        %v1111 = vadd.f32 0.0, %v1110
        %v1112 = vpop.f32.mrb[0].mxu0
        %1113 = vmatprep.mubr.f32.mxu0 0.0
        %1114 = vmatmul.mubr.f32.gmra.mrb[0].mxu0 %v944
        %v1115 = vpop.f32.mrb[0].mxu0
        %v1116 = vadd.f32 0.0, %v1115
        %v1117 = vpop.f32.mrb[0].mxu0
        %1118 = vmatprep.mubr.f32.mxu0 0.0
        %1119 = vmatmul.mubr.f32.gmra.mrb[0].mxu0 %v947
        %v1120 = vpop.f32.mrb[0].mxu0
        %v1121 = vadd.f32 0.0, %v1120
        %v1122 = vpop.f32.mrb[0].mxu0
        %1123 = vmatprep.mubr.f32.mxu0 0.0
        %1124 = vmatmul.mubr.f32.gmra.mrb[0].mxu0 %v950
        %v1125 = vpop.f32.mrb[0].mxu0
        %v1126 = vadd.f32 0.0, %v1125
        %v1127 = vpop.f32.mrb[0].mxu0
        %1128 = vmatprep.mubr.f32.mxu0 0.0
        %1129 = vmatmul.mubr.f32.gmra.mrb[0].mxu0 %v953
        %v1130 = vpop.f32.mrb[0].mxu0
        %v1131 = vadd.f32 0.0, %v1130
        %v1132 = vpop.f32.mrb[0].mxu0
        %1133 = vmatprep.mubr.f32.mxu0 0.0
        %1134 = vmatmul.mubr.f32.gmra.mrb[0].mxu0 %v956
        %v1135 = vpop.f32.mrb[0].mxu0
        %v1136 = vadd.f32 0.0, %v1135
        %v1137 = vpop.f32.mrb[0].mxu0
        %1138 = vmatprep.mubr.f32.mxu0 0.0
        %1139 = vmatmul.mubr.f32.gmra.mrb[0].mxu0 %v959
        %v1140 = vpop.f32.mrb[0].mxu0
        %v1141 = vadd.f32 0.0, %v1140
        %v1142 = vpop.f32.mrb[0].mxu0
        %1143 = vmatprep.mubr.f32.mxu0 0.0
        %1144 = vmatmul.mubr.f32.gmra.mrb[0].mxu0 %v962
        %v1145 = vpop.f32.mrb[0].mxu0
        %v1146 = vadd.f32 0.0, %v1145
        %v1147 = vpop.f32.mrb[0].mxu0
        %1148 = vmatprep.mubr.f32.mxu0 0.0
        %1149 = vmatmul.mubr.f32.gmra.mrb[0].mxu0 %v965
        %v1150 = vpop.f32.mrb[0].mxu0
        %v1151 = vadd.f32 0.0, %v1150
        %v1152 = vpop.f32.mrb[0].mxu0
        %1153 = vmatprep.mubr.f32.mxu0 0.0
        %1154 = vmatmul.mubr.f32.gmra.mrb[0].mxu0 %v968
        %v1155 = vpop.f32.mrb[0].mxu0
        %v1156 = vadd.f32 0.0, %v1155
        %v1157 = vpop.f32.mrb[0].mxu0
        %1158 = vmatprep.mubr.f32.mxu0 0.0
        %1159 = vmatmul.mubr.f32.gmra.mrb[0].mxu0 %v971
        %v1160 = vpop.f32.mrb[0].mxu0
        %v1161 = vadd.f32 0.0, %v1160
        %v1162 = vpop.f32.mrb[0].mxu0
        %1163 = vmatprep.mubr.f32.mxu0 0.0
        %1164 = vmatmul.mubr.f32.gmra.mrb[0].mxu0 %v974
        %v1165 = vpop.f32.mrb[0].mxu0
        %v1166 = vadd.f32 0.0, %v1165
        %v1167 = vpop.f32.mrb[0].mxu0
        %1168 = vmatprep.mubr.f32.mxu0 0.0
        %1169 = vmatmul.mubr.f32.gmra.mrb[0].mxu0 %v977
        %v1170 = vpop.f32.mrb[0].mxu0
        %v1171 = vadd.f32 0.0, %v1170
        %v1172 = vpop.f32.mrb[0].mxu0
        %1173 = vmatprep.mubr.f32.mxu0 0.0
        %1174 = vmatmul.mubr.f32.gmra.mrb[0].mxu0 %v980
        %v1175 = vpop.f32.mrb[0].mxu0
        %v1176 = vadd.f32 0.0, %v1175
        %v1177 = vpop.f32.mrb[0].mxu0
        %1178 = vmatprep.mubr.f32.mxu0 0.0
        %1179 = vmatmul.mubr.f32.gmra.mrb[0].mxu0 %v983
        %v1180 = vpop.f32.mrb[0].mxu0
        %v1181 = vadd.f32 0.0, %v1180
        %v1182 = vpop.f32.mrb[0].mxu0
        %1183 = vmatprep.mubr.f32.mxu0 0.0
        %1184 = vmatmul.mubr.f32.gmra.mrb[0].mxu0 %v986
        %v1185 = vpop.f32.mrb[0].mxu0
        %v1186 = vadd.f32 0.0, %v1185
        %v1187 = vpop.f32.mrb[0].mxu0
        %1188 = vmatprep.mubr.f32.mxu0 0.0
        %1189 = vmatmul.mubr.f32.gmra.mrb[0].mxu0 %v989
        %v1190 = vpop.f32.mrb[0].mxu0
        %v1191 = vadd.f32 0.0, %v1190
        %v1192 = vpop.f32.mrb[0].mxu0
        %1193 = vmatprep.mubr.f32.mxu0 0.0
        %1194 = vmatmul.mubr.f32.gmra.mrb[0].mxu0 %v992
        %v1195 = vpop.f32.mrb[0].mxu0
        %v1196 = vadd.f32 0.0, %v1195
        %v1197 = vpop.f32.mrb[0].mxu0
        %1198 = vmatprep.mubr.f32.mxu0 0.0
        %1199 = vmatmul.mubr.f32.gmra.mrb[0].mxu0 %v995
        %v1200 = vpop.f32.mrb[0].mxu0
        %v1201 = vadd.f32 0.0, %v1200
        %v1202 = vpop.f32.mrb[0].mxu0
        %1203 = vmatprep.mubr.f32.mxu0 0.0
        %1204 = vmatmul.mubr.f32.gmra.mrb[0].mxu0 %v998
        %v1205 = vpop.f32.mrb[0].mxu0
        %v1206 = vadd.f32 0.0, %v1205
        %v1207 = vpop.f32.mrb[0].mxu0
        %1208 = vmatprep.mubr.f32.mxu0 0.0
        %1209 = vmatmul.mubr.f32.gmra.mrb[0].mxu0 %v1001
        %v1210 = vpop.f32.mrb[0].mxu0
        %v1211 = vadd.f32 0.0, %v1210
        %v1212 = vpop.f32.mrb[0].mxu0
        %1213 = vmatprep.mubr.f32.mxu0 0.0
        %1214 = vmatmul.mubr.f32.gmra.mrb[0].mxu0 %v1004
        %v1215 = vpop.f32.mrb[0].mxu0
        %v1216 = vadd.f32 0.0, %v1215
        %v1217 = vpop.f32.mrb[0].mxu0
        %1218 = vmatprep.mubr.f32.mxu0 0.0
        %1219 = vmatmul.mubr.f32.gmra.mrb[0].mxu0 %v1007
        %v1220 = vpop.f32.mrb[0].mxu0
        %v1221 = vadd.f32 0.0, %v1220
        %v1222 = vpop.f32.mrb[0].mxu0
        %1223 = vmatprep.mubr.f32.mxu0 0.0
        %1224 = vmatmul.mubr.f32.gmra.mrb[0].mxu0 %v1010
        %v1225 = vpop.f32.mrb[0].mxu0
        %v1226 = vadd.f32 0.0, %v1225
        %v1227 = vpop.f32.mrb[0].mxu0
        %1228 = vmatprep.mubr.f32.mxu0 0.0
        %1229 = vmatmul.mubr.f32.gmra.mrb[0].mxu0 %v1013
        %v1230 = vpop.f32.mrb[0].mxu0
        %v1231 = vadd.f32 0.0, %v1230
        %v1232 = vpop.f32.mrb[0].mxu0
        %1233 = vmatprep.mubr.f32.mxu0 0.0
        %1234 = vmatmul.mubr.f32.gmra.mrb[0].mxu0 %v1016
        %v1235 = vpop.f32.mrb[0].mxu0
        %v1236 = vadd.f32 0.0, %v1235
        %v1237 = vpop.f32.mrb[0].mxu0
        %1238 = vmatprep.mubr.f32.mxu0 0.0
        %1239 = vmatmul.mubr.f32.gmra.mrb[0].mxu0 %v1019
        %v1240 = vpop.f32.mrb[0].mxu0
        %v1241 = vadd.f32 0.0, %v1240
        %v1242 = vpop.f32.mrb[0].mxu0
        %1243 = vmatprep.mubr.f32.mxu0 0.0
        %1244 = vmatmul.mubr.f32.gmra.mrb[0].mxu0 %v1022
        %v1245 = vpop.f32.mrb[0].mxu0
        %v1246 = vadd.f32 0.0, %v1245
        %v1247 = vpop.f32.mrb[0].mxu0
        %1248 = vdwg.mxu0
        %vm1249 = vcmask 195584
        %1250 = vst.msk [vmem:[#allocation2] sm:$0xff] %vm1249, 0.0
        %1251 = vst.msk [vmem:[#allocation2 + $0x8] sm:$0xff] %vm1249, 0.0
        %s1252 = scalar_lea.vmem [#allocation2], 272
        %1253 = vst.msk [vmem:[%s1252] sm:$0xff] %vm1249, 0.0
        %1254 = vst.msk [vmem:[%s1252 + $0x8] sm:$0xff] %vm1249, 0.0
        %s1255 = scalar_lea.vmem [#allocation2], 16
        %vm1256 = vcmask 57344
        %1257 = vst.msk [vmem:[%s1255] sm:$0x1] %vm1256, 0.0
        %1258 = vst.msk [vmem:[%s1255 + $0x10] sm:$0x1] %vm1256, 0.0
        %1259 = vst.msk [vmem:[%s1255 + $0x20] sm:$0x1] %vm1256, 0.0
        %1260 = vst.msk [vmem:[%s1255 + $0x30] sm:$0x1] %vm1256, 0.0
        %1261 = vst.msk [vmem:[%s1255 + $0x40] sm:$0x1] %vm1256, 0.0
        %1262 = vst.msk [vmem:[%s1255 + $0x50] sm:$0x1] %vm1256, 0.0
        %1263 = vst.msk [vmem:[%s1255 + $0x60] sm:$0x1] %vm1256, 0.0
        %1264 = vst.msk [vmem:[%s1255 + $0x70] sm:$0x1] %vm1256, 0.0
        %1265 = vst.msk [vmem:[%s1255 + $0x80] sm:$0x1] %vm1256, 0.0
        %1266 = vst.msk [vmem:[%s1255 + $0x90] sm:$0x1] %vm1256, 0.0
        %1267 = vst.msk [vmem:[%s1255 + $0xa0] sm:$0x1] %vm1256, 0.0
        %1268 = vst.msk [vmem:[%s1255 + $0xb0] sm:$0x1] %vm1256, 0.0
        %1269 = vst.msk [vmem:[%s1255 + $0xc0] sm:$0x1] %vm1256, 0.0
        %1270 = vst.msk [vmem:[%s1255 + $0xd0] sm:$0x1] %vm1256, 0.0
        %1271 = vst.msk [vmem:[%s1255 + $0xe0] sm:$0x1] %vm1256, 0.0
        %1272 = vst.msk [vmem:[%s1255 + $0xf0] sm:$0x1] %vm1256, 0.0
        %vm1273 = vcmask 188544
        %1274 = vst.msk [vmem:[%s1255 + $0xf] sm:$0x1] %vm1273, 0.0
        %1275 = vst.msk [vmem:[%s1255 + $0x1f] sm:$0x1] %vm1273, 0.0
        %1276 = vst.msk [vmem:[%s1255 + $0x2f] sm:$0x1] %vm1273, 0.0
        %1277 = vst.msk [vmem:[%s1255 + $0x3f] sm:$0x1] %vm1273, 0.0
        %1278 = vst.msk [vmem:[%s1255 + $0x4f] sm:$0x1] %vm1273, 0.0
        %1279 = vst.msk [vmem:[%s1255 + $0x5f] sm:$0x1] %vm1273, 0.0
        %1280 = vst.msk [vmem:[%s1255 + $0x6f] sm:$0x1] %vm1273, 0.0
        %1281 = vst.msk [vmem:[%s1255 + $0x7f] sm:$0x1] %vm1273, 0.0
        %1282 = vst.msk [vmem:[%s1255 + $0x8f] sm:$0x1] %vm1273, 0.0
        %1283 = vst.msk [vmem:[%s1255 + $0x9f] sm:$0x1] %vm1273, 0.0
        %1284 = vst.msk [vmem:[%s1255 + $0xaf] sm:$0x1] %vm1273, 0.0
        %1285 = vst.msk [vmem:[%s1255 + $0xbf] sm:$0x1] %vm1273, 0.0
        %1286 = vst.msk [vmem:[%s1255 + $0xcf] sm:$0x1] %vm1273, 0.0
        %1287 = vst.msk [vmem:[%s1255 + $0xdf] sm:$0x1] %vm1273, 0.0
        %1288 = vst.msk [vmem:[%s1255 + $0xef] sm:$0x1] %vm1273, 0.0
        %1289 = vst.msk [vmem:[%s1255 + $0xff] sm:$0x1] %vm1273, 0.0
        %1290 = vst.msk [vmem:[%s1255 + $0x1] sm:$0xff] %vm927, %v894
        %vm1291 = vcmask 63488
        %1292 = vst.msk [vmem:[%s1255 + $0x9] sm:$0x7f] %vm1291, %v895
        %1293 = vst.msk [vmem:[%s1255 + $0x11] sm:$0xff] %vm927, %v896
        %1294 = vst.msk [vmem:[%s1255 + $0x19] sm:$0x7f] %vm1291, %v897
        %1295 = vst.msk [vmem:[%s1255 + $0x21] sm:$0xff] %vm927, %v898
        %1296 = vst.msk [vmem:[%s1255 + $0x29] sm:$0x7f] %vm1291, %v899
        %1297 = vst.msk [vmem:[%s1255 + $0x31] sm:$0xff] %vm927, %v900
        %1298 = vst.msk [vmem:[%s1255 + $0x39] sm:$0x7f] %vm1291, %v901
        %1299 = vst.msk [vmem:[%s1255 + $0x41] sm:$0xff] %vm927, %v902
        %1300 = vst.msk [vmem:[%s1255 + $0x49] sm:$0x7f] %vm1291, %v903
        %1301 = vst.msk [vmem:[%s1255 + $0x51] sm:$0xff] %vm927, %v904
        %1302 = vst.msk [vmem:[%s1255 + $0x59] sm:$0x7f] %vm1291, %v905
        %1303 = vst.msk [vmem:[%s1255 + $0x61] sm:$0xff] %vm927, %v906
        %1304 = vst.msk [vmem:[%s1255 + $0x69] sm:$0x7f] %vm1291, %v907
        %1305 = vst.msk [vmem:[%s1255 + $0x71] sm:$0xff] %vm927, %v908
        %1306 = vst.msk [vmem:[%s1255 + $0x79] sm:$0x7f] %vm1291, %v909
        %1307 = vst.msk [vmem:[%s1255 + $0x81] sm:$0xff] %vm927, %v910
        %1308 = vst.msk [vmem:[%s1255 + $0x89] sm:$0x7f] %vm1291, %v911
        %1309 = vst.msk [vmem:[%s1255 + $0x91] sm:$0xff] %vm927, %v912
        %1310 = vst.msk [vmem:[%s1255 + $0x99] sm:$0x7f] %vm1291, %v913
        %1311 = vst.msk [vmem:[%s1255 + $0xa1] sm:$0xff] %vm927, %v914
        %1312 = vst.msk [vmem:[%s1255 + $0xa9] sm:$0x7f] %vm1291, %v915
        %1313 = vst.msk [vmem:[%s1255 + $0xb1] sm:$0xff] %vm927, %v916
        %1314 = vst.msk [vmem:[%s1255 + $0xb9] sm:$0x7f] %vm1291, %v917
        %1315 = vst.msk [vmem:[%s1255 + $0xc1] sm:$0xff] %vm927, %v918
        %1316 = vst.msk [vmem:[%s1255 + $0xc9] sm:$0x7f] %vm1291, %v919
        %1317 = vst.msk [vmem:[%s1255 + $0xd1] sm:$0xff] %vm927, %v920
        %1318 = vst.msk [vmem:[%s1255 + $0xd9] sm:$0x7f] %vm1291, %v921
        %1319 = vst.msk [vmem:[%s1255 + $0xe1] sm:$0xff] %vm927, %v922
        %1320 = vst.msk [vmem:[%s1255 + $0xe9] sm:$0x7f] %vm1291, %v923
        %1321 = vst.msk [vmem:[%s1255 + $0xf1] sm:$0xff] %vm927, %v924
        %1322 = vst.msk [vmem:[%s1255 + $0xf9] sm:$0x7f] %vm1291, %v925
        %1323 = vrot.lane.b32.xlu0 %v894, 8
        %v1324 = vpop.permute.xlu0 %1323
        %1325 = vrot.lane.b32.xlu0 %v895, 8
        %v1326 = vpop.permute.xlu0 %1325
        %1327 = vrot.lane.b32.xlu0 %v896, 8
        %v1328 = vpop.permute.xlu0 %1327
        %1329 = vrot.lane.b32.xlu0 %v897, 8
        %v1330 = vpop.permute.xlu0 %1329
        %1331 = vrot.lane.b32.xlu0 %v898, 8
        %v1332 = vpop.permute.xlu0 %1331
        %1333 = vrot.lane.b32.xlu0 %v899, 8
        %v1334 = vpop.permute.xlu0 %1333
        %1335 = vrot.lane.b32.xlu0 %v900, 8
        %v1336 = vpop.permute.xlu0 %1335
        %1337 = vrot.lane.b32.xlu0 %v901, 8
        %v1338 = vpop.permute.xlu0 %1337
        %1339 = vrot.lane.b32.xlu0 %v902, 8
        %v1340 = vpop.permute.xlu0 %1339
        %1341 = vrot.lane.b32.xlu0 %v903, 8
        %v1342 = vpop.permute.xlu0 %1341
        %1343 = vrot.lane.b32.xlu0 %v904, 8
        %v1344 = vpop.permute.xlu0 %1343
        %1345 = vrot.lane.b32.xlu0 %v905, 8
        %v1346 = vpop.permute.xlu0 %1345
        %1347 = vrot.lane.b32.xlu0 %v906, 8
        %v1348 = vpop.permute.xlu0 %1347
        %1349 = vrot.lane.b32.xlu0 %v907, 8
        %v1350 = vpop.permute.xlu0 %1349
        %1351 = vrot.lane.b32.xlu0 %v908, 8
        %v1352 = vpop.permute.xlu0 %1351
        %1353 = vrot.lane.b32.xlu0 %v909, 8
        %v1354 = vpop.permute.xlu0 %1353
        %1355 = vrot.lane.b32.xlu0 %v910, 8
        %v1356 = vpop.permute.xlu0 %1355
        %1357 = vrot.lane.b32.xlu0 %v911, 8
        %v1358 = vpop.permute.xlu0 %1357
        %1359 = vrot.lane.b32.xlu0 %v912, 8
        %v1360 = vpop.permute.xlu0 %1359
        %1361 = vrot.lane.b32.xlu0 %v913, 8
        %v1362 = vpop.permute.xlu0 %1361
        %1363 = vrot.lane.b32.xlu0 %v914, 8
        %v1364 = vpop.permute.xlu0 %1363
        %1365 = vrot.lane.b32.xlu0 %v915, 8
        %v1366 = vpop.permute.xlu0 %1365
        %1367 = vrot.lane.b32.xlu0 %v916, 8
        %v1368 = vpop.permute.xlu0 %1367
        %1369 = vrot.lane.b32.xlu0 %v917, 8
        %v1370 = vpop.permute.xlu0 %1369
        %1371 = vrot.lane.b32.xlu0 %v918, 8
        %v1372 = vpop.permute.xlu0 %1371
        %1373 = vrot.lane.b32.xlu0 %v919, 8
        %v1374 = vpop.permute.xlu0 %1373
        %1375 = vrot.lane.b32.xlu0 %v920, 8
        %v1376 = vpop.permute.xlu0 %1375
        %1377 = vrot.lane.b32.xlu0 %v921, 8
        %v1378 = vpop.permute.xlu0 %1377
        %1379 = vrot.lane.b32.xlu0 %v922, 8
        %v1380 = vpop.permute.xlu0 %1379
        %1381 = vrot.lane.b32.xlu0 %v923, 8
        %v1382 = vpop.permute.xlu0 %1381
        %1383 = vrot.lane.b32.xlu0 %v924, 8
        %v1384 = vpop.permute.xlu0 %1383
        %1385 = vrot.lane.b32.xlu0 %v925, 8
        %v1386 = vpop.permute.xlu0 %1385
        %vm1419 = vcmask 130112
        %1420 = vst.msk [vmem:[%s1255] sm:$0xff] %vm1419, %v1324
        %1421 = vst.msk [vmem:[%s1255 + $0x8] sm:$0xff] %vm1419, %v1326
        %1422 = vst.msk [vmem:[%s1255 + $0x10] sm:$0xff] %vm1419, %v1328
        %1423 = vst.msk [vmem:[%s1255 + $0x18] sm:$0xff] %vm1419, %v1330
        %1424 = vst.msk [vmem:[%s1255 + $0x20] sm:$0xff] %vm1419, %v1332
        %1425 = vst.msk [vmem:[%s1255 + $0x28] sm:$0xff] %vm1419, %v1334
        %1426 = vst.msk [vmem:[%s1255 + $0x30] sm:$0xff] %vm1419, %v1336
        %1427 = vst.msk [vmem:[%s1255 + $0x38] sm:$0xff] %vm1419, %v1338
        %1428 = vst.msk [vmem:[%s1255 + $0x40] sm:$0xff] %vm1419, %v1340
        %1429 = vst.msk [vmem:[%s1255 + $0x48] sm:$0xff] %vm1419, %v1342
        %1430 = vst.msk [vmem:[%s1255 + $0x50] sm:$0xff] %vm1419, %v1344
        %1431 = vst.msk [vmem:[%s1255 + $0x58] sm:$0xff] %vm1419, %v1346
        %1432 = vst.msk [vmem:[%s1255 + $0x60] sm:$0xff] %vm1419, %v1348
        %1433 = vst.msk [vmem:[%s1255 + $0x68] sm:$0xff] %vm1419, %v1350
        %1434 = vst.msk [vmem:[%s1255 + $0x70] sm:$0xff] %vm1419, %v1352
        %1435 = vst.msk [vmem:[%s1255 + $0x78] sm:$0xff] %vm1419, %v1354
        %1436 = vst.msk [vmem:[%s1255 + $0x80] sm:$0xff] %vm1419, %v1356
        %1437 = vst.msk [vmem:[%s1255 + $0x88] sm:$0xff] %vm1419, %v1358
        %1438 = vst.msk [vmem:[%s1255 + $0x90] sm:$0xff] %vm1419, %v1360
        %1439 = vst.msk [vmem:[%s1255 + $0x98] sm:$0xff] %vm1419, %v1362
        %1440 = vst.msk [vmem:[%s1255 + $0xa0] sm:$0xff] %vm1419, %v1364
        %1441 = vst.msk [vmem:[%s1255 + $0xa8] sm:$0xff] %vm1419, %v1366
        %1442 = vst.msk [vmem:[%s1255 + $0xb0] sm:$0xff] %vm1419, %v1368
        %1443 = vst.msk [vmem:[%s1255 + $0xb8] sm:$0xff] %vm1419, %v1370
        %1444 = vst.msk [vmem:[%s1255 + $0xc0] sm:$0xff] %vm1419, %v1372
        %1445 = vst.msk [vmem:[%s1255 + $0xc8] sm:$0xff] %vm1419, %v1374
        %1446 = vst.msk [vmem:[%s1255 + $0xd0] sm:$0xff] %vm1419, %v1376
        %1447 = vst.msk [vmem:[%s1255 + $0xd8] sm:$0xff] %vm1419, %v1378
        %1448 = vst.msk [vmem:[%s1255 + $0xe0] sm:$0xff] %vm1419, %v1380
        %1449 = vst.msk [vmem:[%s1255 + $0xe8] sm:$0xff] %vm1419, %v1382
        %1450 = vst.msk [vmem:[%s1255 + $0xf0] sm:$0xff] %vm1419, %v1384
        %1451 = vst.msk [vmem:[%s1255 + $0xf8] sm:$0xff] %vm1419, %v1386
        %1452 = vrot.lane.b32.xlu0 %v894, 16
        %v1453 = vpop.permute.xlu0 %1452
        %1454 = vrot.lane.b32.xlu0 %v895, 16
        %v1455 = vpop.permute.xlu0 %1454
        %1456 = vrot.lane.b32.xlu0 %v896, 16
        %v1457 = vpop.permute.xlu0 %1456
        %1458 = vrot.lane.b32.xlu0 %v897, 16
        %v1459 = vpop.permute.xlu0 %1458
        %1460 = vrot.lane.b32.xlu0 %v898, 16
        %v1461 = vpop.permute.xlu0 %1460
        %1462 = vrot.lane.b32.xlu0 %v899, 16
        %v1463 = vpop.permute.xlu0 %1462
        %1464 = vrot.lane.b32.xlu0 %v900, 16
        %v1465 = vpop.permute.xlu0 %1464
        %1466 = vrot.lane.b32.xlu0 %v901, 16
        %v1467 = vpop.permute.xlu0 %1466
        %1468 = vrot.lane.b32.xlu0 %v902, 16
        %v1469 = vpop.permute.xlu0 %1468
        %1470 = vrot.lane.b32.xlu0 %v903, 16
        %v1471 = vpop.permute.xlu0 %1470
        %1472 = vrot.lane.b32.xlu0 %v904, 16
        %v1473 = vpop.permute.xlu0 %1472
        %1474 = vrot.lane.b32.xlu0 %v905, 16
        %v1475 = vpop.permute.xlu0 %1474
        %1476 = vrot.lane.b32.xlu0 %v906, 16
        %v1477 = vpop.permute.xlu0 %1476
        %1478 = vrot.lane.b32.xlu0 %v907, 16
        %v1479 = vpop.permute.xlu0 %1478
        %1480 = vrot.lane.b32.xlu0 %v908, 16
        %v1481 = vpop.permute.xlu0 %1480
        %1482 = vrot.lane.b32.xlu0 %v909, 16
        %v1483 = vpop.permute.xlu0 %1482
        %1484 = vrot.lane.b32.xlu0 %v910, 16
        %v1485 = vpop.permute.xlu0 %1484
        %1486 = vrot.lane.b32.xlu0 %v911, 16
        %v1487 = vpop.permute.xlu0 %1486
        %1488 = vrot.lane.b32.xlu0 %v912, 16
        %v1489 = vpop.permute.xlu0 %1488
        %1490 = vrot.lane.b32.xlu0 %v913, 16
        %v1491 = vpop.permute.xlu0 %1490
        %1492 = vrot.lane.b32.xlu0 %v914, 16
        %v1493 = vpop.permute.xlu0 %1492
        %1494 = vrot.lane.b32.xlu0 %v915, 16
        %v1495 = vpop.permute.xlu0 %1494
        %1496 = vrot.lane.b32.xlu0 %v916, 16
        %v1497 = vpop.permute.xlu0 %1496
        %1498 = vrot.lane.b32.xlu0 %v917, 16
        %v1499 = vpop.permute.xlu0 %1498
        %1500 = vrot.lane.b32.xlu0 %v918, 16
        %v1501 = vpop.permute.xlu0 %1500
        %1502 = vrot.lane.b32.xlu0 %v919, 16
        %v1503 = vpop.permute.xlu0 %1502
        %1504 = vrot.lane.b32.xlu0 %v920, 16
        %v1505 = vpop.permute.xlu0 %1504
        %1506 = vrot.lane.b32.xlu0 %v921, 16
        %v1507 = vpop.permute.xlu0 %1506
        %1508 = vrot.lane.b32.xlu0 %v922, 16
        %v1509 = vpop.permute.xlu0 %1508
        %1510 = vrot.lane.b32.xlu0 %v923, 16
        %v1511 = vpop.permute.xlu0 %1510
        %1512 = vrot.lane.b32.xlu0 %v924, 16
        %v1513 = vpop.permute.xlu0 %1512
        %1514 = vrot.lane.b32.xlu0 %v925, 16
        %v1515 = vpop.permute.xlu0 %1514
        %vm1548 = vcmask 195713
        %1549 = vst.msk [vmem:[%s1255 - $0x1] sm:$0xfe] %vm1548, %v1453
        %vm1550 = vcmask 195712
        %1551 = vst.msk [vmem:[%s1255 + $0x7] sm:$0xff] %vm1550, %v1455
        %1552 = vst.msk [vmem:[%s1255 + $0xf] sm:$0xfe] %vm1548, %v1457
        %1553 = vst.msk [vmem:[%s1255 + $0x17] sm:$0xff] %vm1550, %v1459
        %1554 = vst.msk [vmem:[%s1255 + $0x1f] sm:$0xfe] %vm1548, %v1461
        %1555 = vst.msk [vmem:[%s1255 + $0x27] sm:$0xff] %vm1550, %v1463
        %1556 = vst.msk [vmem:[%s1255 + $0x2f] sm:$0xfe] %vm1548, %v1465
        %1557 = vst.msk [vmem:[%s1255 + $0x37] sm:$0xff] %vm1550, %v1467
        %1558 = vst.msk [vmem:[%s1255 + $0x3f] sm:$0xfe] %vm1548, %v1469
        %1559 = vst.msk [vmem:[%s1255 + $0x47] sm:$0xff] %vm1550, %v1471
        %1560 = vst.msk [vmem:[%s1255 + $0x4f] sm:$0xfe] %vm1548, %v1473
        %1561 = vst.msk [vmem:[%s1255 + $0x57] sm:$0xff] %vm1550, %v1475
        %1562 = vst.msk [vmem:[%s1255 + $0x5f] sm:$0xfe] %vm1548, %v1477
        %1563 = vst.msk [vmem:[%s1255 + $0x67] sm:$0xff] %vm1550, %v1479
        %1564 = vst.msk [vmem:[%s1255 + $0x6f] sm:$0xfe] %vm1548, %v1481
        %1565 = vst.msk [vmem:[%s1255 + $0x77] sm:$0xff] %vm1550, %v1483
        %1566 = vst.msk [vmem:[%s1255 + $0x7f] sm:$0xfe] %vm1548, %v1485
        %1567 = vst.msk [vmem:[%s1255 + $0x87] sm:$0xff] %vm1550, %v1487
        %1568 = vst.msk [vmem:[%s1255 + $0x8f] sm:$0xfe] %vm1548, %v1489
        %1569 = vst.msk [vmem:[%s1255 + $0x97] sm:$0xff] %vm1550, %v1491
        %1570 = vst.msk [vmem:[%s1255 + $0x9f] sm:$0xfe] %vm1548, %v1493
        %1571 = vst.msk [vmem:[%s1255 + $0xa7] sm:$0xff] %vm1550, %v1495
        %1572 = vst.msk [vmem:[%s1255 + $0xaf] sm:$0xfe] %vm1548, %v1497
        %1573 = vst.msk [vmem:[%s1255 + $0xb7] sm:$0xff] %vm1550, %v1499
        %1574 = vst.msk [vmem:[%s1255 + $0xbf] sm:$0xfe] %vm1548, %v1501
        %1575 = vst.msk [vmem:[%s1255 + $0xc7] sm:$0xff] %vm1550, %v1503
        %1576 = vst.msk [vmem:[%s1255 + $0xcf] sm:$0xfe] %vm1548, %v1505
        %1577 = vst.msk [vmem:[%s1255 + $0xd7] sm:$0xff] %vm1550, %v1507
        %1578 = vst.msk [vmem:[%s1255 + $0xdf] sm:$0xfe] %vm1548, %v1509
        %1579 = vst.msk [vmem:[%s1255 + $0xe7] sm:$0xff] %vm1550, %v1511
        %1580 = vst.msk [vmem:[%s1255 + $0xef] sm:$0xfe] %vm1548, %v1513
        %1581 = vst.msk [vmem:[%s1255 + $0xf7] sm:$0xff] %vm1550, %v1515
        %v1582 = vld [vmem:[#allocation2] sm:$0xff]
        %v1583 = vld [vmem:[#allocation2 + $0x8] sm:$0xff]
        %v1584 = vld [vmem:[#allocation2 + $0x10] sm:$0xff]
        %v1585 = vld [vmem:[#allocation2 + $0x18] sm:$0xff]
        %v1586 = vld [vmem:[#allocation2 + $0x20] sm:$0xff]
        %v1587 = vld [vmem:[#allocation2 + $0x28] sm:$0xff]
        %v1588 = vld [vmem:[#allocation2 + $0x30] sm:$0xff]
        %v1589 = vld [vmem:[#allocation2 + $0x38] sm:$0xff]
        %v1590 = vld [vmem:[#allocation2 + $0x40] sm:$0xff]
        %v1591 = vld [vmem:[#allocation2 + $0x48] sm:$0xff]
        %v1592 = vld [vmem:[#allocation2 + $0x50] sm:$0xff]
        %v1593 = vld [vmem:[#allocation2 + $0x58] sm:$0xff]
        %v1594 = vld [vmem:[#allocation2 + $0x60] sm:$0xff]
        %v1595 = vld [vmem:[#allocation2 + $0x68] sm:$0xff]
        %v1596 = vld [vmem:[#allocation2 + $0x70] sm:$0xff]
        %v1597 = vld [vmem:[#allocation2 + $0x78] sm:$0xff]
        %v1598 = vld [vmem:[#allocation2 + $0x80] sm:$0xff]
        %v1599 = vld [vmem:[#allocation2 + $0x88] sm:$0xff]
        %v1600 = vld [vmem:[#allocation2 + $0x90] sm:$0xff]
        %v1601 = vld [vmem:[#allocation2 + $0x98] sm:$0xff]
        %v1602 = vld [vmem:[#allocation2 + $0xa0] sm:$0xff]
        %v1603 = vld [vmem:[#allocation2 + $0xa8] sm:$0xff]
        %v1604 = vld [vmem:[#allocation2 + $0xb0] sm:$0xff]
        %v1605 = vld [vmem:[#allocation2 + $0xb8] sm:$0xff]
        %v1606 = vld [vmem:[#allocation2 + $0xc0] sm:$0xff]
        %v1607 = vld [vmem:[#allocation2 + $0xc8] sm:$0xff]
        %v1608 = vld [vmem:[#allocation2 + $0xd0] sm:$0xff]
        %v1609 = vld [vmem:[#allocation2 + $0xd8] sm:$0xff]
        %v1610 = vld [vmem:[#allocation2 + $0xe0] sm:$0xff]
        %v1611 = vld [vmem:[#allocation2 + $0xe8] sm:$0xff]
        %v1612 = vld [vmem:[#allocation2 + $0xf0] sm:$0xff]
        %v1613 = vld [vmem:[#allocation2 + $0xf8] sm:$0xff]
        %v1614 = vld [vmem:[%s3] sm:$0xff]
        %v1615 = vld [vmem:[%s3 + $0x8] sm:$0xff]
        %v1616 = vld [vmem:[%s3 + $0x10] sm:$0xff]
        %v1617 = vld [vmem:[%s1255] sm:$0xff]
        %v1618 = vld [vmem:[%s1255 + $0x8] sm:$0xff]
        %v1619 = vld [vmem:[%s1255 + $0x10] sm:$0xff]
        %v1620 = vld [vmem:[%s1255 + $0x18] sm:$0xff]
        %v1621 = vld [vmem:[%s1255 + $0x20] sm:$0xff]
        %v1622 = vld [vmem:[%s1255 + $0x28] sm:$0xff]
        %v1623 = vld [vmem:[%s1255 + $0x30] sm:$0xff]
        %v1624 = vld [vmem:[%s1255 + $0x38] sm:$0xff]
        %v1625 = vld [vmem:[%s1255 + $0x40] sm:$0xff]
        %v1626 = vld [vmem:[%s1255 + $0x48] sm:$0xff]
        %v1627 = vld [vmem:[%s1255 + $0x50] sm:$0xff]
        %v1628 = vld [vmem:[%s1255 + $0x58] sm:$0xff]
        %v1629 = vld [vmem:[%s1255 + $0x60] sm:$0xff]
        %v1630 = vld [vmem:[%s1255 + $0x68] sm:$0xff]
        %v1631 = vld [vmem:[%s1255 + $0x70] sm:$0xff]
        %v1632 = vld [vmem:[%s1255 + $0x78] sm:$0xff]
        %v1633 = vld [vmem:[%s1255 + $0x80] sm:$0xff]
        %v1634 = vld [vmem:[%s1255 + $0x88] sm:$0xff]
        %v1635 = vld [vmem:[%s1255 + $0x90] sm:$0xff]
        %v1636 = vld [vmem:[%s1255 + $0x98] sm:$0xff]
        %v1637 = vld [vmem:[%s1255 + $0xa0] sm:$0xff]
        %v1638 = vld [vmem:[%s1255 + $0xa8] sm:$0xff]
        %v1639 = vld [vmem:[%s1255 + $0xb0] sm:$0xff]
        %v1640 = vld [vmem:[%s1255 + $0xb8] sm:$0xff]
        %v1641 = vld [vmem:[%s1255 + $0xc0] sm:$0xff]
        %v1642 = vld [vmem:[%s1255 + $0xc8] sm:$0xff]
        %v1643 = vld [vmem:[%s1255 + $0xd0] sm:$0xff]
        %v1644 = vld [vmem:[%s1255 + $0xd8] sm:$0xff]
        %v1645 = vld [vmem:[%s1255 + $0xe0] sm:$0xff]
        %v1646 = vld [vmem:[%s1255 + $0xe8] sm:$0xff]
        %v1647 = vld [vmem:[%s1255 + $0xf0] sm:$0xff]
        %v1648 = vld [vmem:[%s1255 + $0xf8] sm:$0xff]
        %s1649 = scalar_lea.vmem %s3, 24
        %v1650 = vld [vmem:[%s1649] sm:$0xff]
        %v1651 = vld [vmem:[%s1649 + $0x8] sm:$0xff]
        %v1652 = vld [vmem:[%s1649 + $0x10] sm:$0xff]
        %v1654 = vsel %vm1249, %v1617, 0
        %v1657 = vsel %vm1249, %v1618, 0
        %v1660 = vsel %vm1249, %v1619, 0
        %v1663 = vsel %vm1249, %v1620, 0
        %v1666 = vsel %vm1249, %v1621, 0
        %v1669 = vsel %vm1249, %v1622, 0
        %v1672 = vsel %vm1249, %v1623, 0
        %v1675 = vsel %vm1249, %v1624, 0
        %v1678 = vsel %vm1249, %v1625, 0
        %v1681 = vsel %vm1249, %v1626, 0
        %v1684 = vsel %vm1249, %v1627, 0
        %v1687 = vsel %vm1249, %v1628, 0
        %v1690 = vsel %vm1249, %v1629, 0
        %v1693 = vsel %vm1249, %v1630, 0
        %v1696 = vsel %vm1249, %v1631, 0
        %v1699 = vsel %vm1249, %v1632, 0
        %v1702 = vsel %vm1249, %v1633, 0
        %v1705 = vsel %vm1249, %v1634, 0
        %v1708 = vsel %vm1249, %v1635, 0
        %v1711 = vsel %vm1249, %v1636, 0
        %v1714 = vsel %vm1249, %v1637, 0
        %v1717 = vsel %vm1249, %v1638, 0
        %v1720 = vsel %vm1249, %v1639, 0
        %v1723 = vsel %vm1249, %v1640, 0
        %v1726 = vsel %vm1249, %v1641, 0
        %v1729 = vsel %vm1249, %v1642, 0
        %v1732 = vsel %vm1249, %v1643, 0
        %v1735 = vsel %vm1249, %v1644, 0
        %v1738 = vsel %vm1249, %v1645, 0
        %v1741 = vsel %vm1249, %v1646, 0
        %v1744 = vsel %vm1249, %v1647, 0
        %v1747 = vsel %vm1249, %v1648, 0
        %1749 = vmatprep.subr.mxu0 0.0
        %1750 = vmatpush1.msra.mxu0 %v1650
        %1751 = vmatprep.subr.mxu0 0.0
        %1752 = vmatpush1.msra.mxu0 %v1651
        %1753 = vmatprep.subr.mxu0 0.0
        %1754 = vmatpush1.msra.mxu0 %v1652
        %1755 = vmatprep.subr.mxu0 0.0
        %1756 = vmatpush1.msra.mxu0 0.0
        %1757 = vmatprep.subr.mxu0 0.0
        %1758 = vmatpush1.msra.mxu0 0.0
        %1759 = vmatprep.subr.mxu0 0.0
        %1760 = vmatpush1.msra.mxu0 0.0
        %1761 = vmatprep.subr.mxu0 0.0
        %1762 = vmatpush1.msra.mxu0 0.0
        %1763 = vmatprep.subr.mxu0 0.0
        %1764 = vmatpush1.msra.mxu0 0.0
        %1765 = vmatprep.subr.mxu0 0.0
        %1766 = vmatpush1.msra.mxu0 0.0
        %1767 = vmatprep.subr.mxu0 0.0
        %1768 = vmatpush1.msra.mxu0 0.0
        %1769 = vmatprep.subr.mxu0 0.0
        %1770 = vmatpush1.msra.mxu0 0.0
        %1771 = vmatprep.subr.mxu0 0.0
        %1772 = vmatpush1.msra.mxu0 0.0
        %1773 = vmatprep.subr.mxu0 0.0
        %1774 = vmatpush1.msra.mxu0 0.0
        %1775 = vmatprep.subr.mxu0 0.0
        %1776 = vmatpush1.msra.mxu0 0.0
        %1777 = vmatprep.subr.mxu0 0.0
        %1778 = vmatpush1.msra.mxu0 0.0
        %1779 = vmatprep.subr.mxu0 0.0
        %1780 = vmatpush1.msra.mxu0 0.0
        %1781 = vmatprep.subr.mxu0 0.0
        %1782 = vmatpush1.msra.mxu0 0.0
        %1783 = vmatprep.subr.mxu0 0.0
        %1784 = vmatpush1.msra.mxu0 0.0
        %1785 = vmatprep.subr.mxu0 0.0
        %1786 = vmatpush1.msra.mxu0 0.0
        %1787 = vmatprep.subr.mxu0 0.0
        %1788 = vmatpush1.msra.mxu0 0.0
        %1789 = vmatprep.subr.mxu0 0.0
        %1790 = vmatpush1.msra.mxu0 0.0
        %1791 = vmatprep.subr.mxu0 0.0
        %1792 = vmatpush1.msra.mxu0 0.0
        %1793 = vmatprep.subr.mxu0 0.0
        %1794 = vmatpush1.msra.mxu0 0.0
        %1795 = vmatprep.subr.mxu0 0.0
        %1796 = vmatpush1.msra.mxu0 0.0
        %1797 = vmatprep.subr.mxu0 0.0
        %1798 = vmatpush1.msra.mxu0 0.0
        %1799 = vmatprep.subr.mxu0 0.0
        %1800 = vmatpush1.msra.mxu0 0.0
        %1801 = vmatprep.subr.mxu0 0.0
        %1802 = vmatpush1.msra.mxu0 0.0
        %1803 = vmatprep.subr.mxu0 0.0
        %1804 = vmatpush1.msra.mxu0 0.0
        %1805 = vmatprep.subr.mxu0 0.0
        %1806 = vmatpush1.msra.mxu0 0.0
        %1807 = vmatprep.subr.mxu0 0.0
        %1808 = vmatpush1.msra.mxu0 0.0
        %1809 = vmatprep.subr.mxu0 0.0
        %1810 = vmatpush1.msra.mxu0 0.0
        %1811 = vmatprep.subr.mxu0 0.0
        %1812 = vmatpush1.msra.mxu0 0.0
        %1813 = vmatprep.mubr.f32.mxu0 0.0
        %1814 = vmatmul.mubr.f32.gmra.mrb[0].mxu0 %v1654
        %v1815 = vpop.f32.mrb[0].mxu0
        %v1816 = vadd.f32 0.0, %v1815
        %v1817 = vpop.f32.mrb[0].mxu0
        %1818 = vmatprep.mubr.f32.mxu0 0.0
        %1819 = vmatmul.mubr.f32.gmra.mrb[0].mxu0 %v1657
        %v1820 = vpop.f32.mrb[0].mxu0
        %v1821 = vadd.f32 0.0, %v1820
        %v1822 = vpop.f32.mrb[0].mxu0
        %1823 = vmatprep.mubr.f32.mxu0 0.0
        %1824 = vmatmul.mubr.f32.gmra.mrb[0].mxu0 %v1660
        %v1825 = vpop.f32.mrb[0].mxu0
        %v1826 = vadd.f32 0.0, %v1825
        %v1827 = vpop.f32.mrb[0].mxu0
        %1828 = vmatprep.mubr.f32.mxu0 0.0
        %1829 = vmatmul.mubr.f32.gmra.mrb[0].mxu0 %v1663
        %v1830 = vpop.f32.mrb[0].mxu0
        %v1831 = vadd.f32 0.0, %v1830
        %v1832 = vpop.f32.mrb[0].mxu0
        %1833 = vmatprep.mubr.f32.mxu0 0.0
        %1834 = vmatmul.mubr.f32.gmra.mrb[0].mxu0 %v1666
        %v1835 = vpop.f32.mrb[0].mxu0
        %v1836 = vadd.f32 0.0, %v1835
        %v1837 = vpop.f32.mrb[0].mxu0
        %1838 = vmatprep.mubr.f32.mxu0 0.0
        %1839 = vmatmul.mubr.f32.gmra.mrb[0].mxu0 %v1669
        %v1840 = vpop.f32.mrb[0].mxu0
        %v1841 = vadd.f32 0.0, %v1840
        %v1842 = vpop.f32.mrb[0].mxu0
        %1843 = vmatprep.mubr.f32.mxu0 0.0
        %1844 = vmatmul.mubr.f32.gmra.mrb[0].mxu0 %v1672
        %v1845 = vpop.f32.mrb[0].mxu0
        %v1846 = vadd.f32 0.0, %v1845
        %v1847 = vpop.f32.mrb[0].mxu0
        %1848 = vmatprep.mubr.f32.mxu0 0.0
        %1849 = vmatmul.mubr.f32.gmra.mrb[0].mxu0 %v1675
        %v1850 = vpop.f32.mrb[0].mxu0
        %v1851 = vadd.f32 0.0, %v1850
        %v1852 = vpop.f32.mrb[0].mxu0
        %1853 = vmatprep.mubr.f32.mxu0 0.0
        %1854 = vmatmul.mubr.f32.gmra.mrb[0].mxu0 %v1678
        %v1855 = vpop.f32.mrb[0].mxu0
        %v1856 = vadd.f32 0.0, %v1855
        %v1857 = vpop.f32.mrb[0].mxu0
        %1858 = vmatprep.mubr.f32.mxu0 0.0
        %1859 = vmatmul.mubr.f32.gmra.mrb[0].mxu0 %v1681
        %v1860 = vpop.f32.mrb[0].mxu0
        %v1861 = vadd.f32 0.0, %v1860
        %v1862 = vpop.f32.mrb[0].mxu0
        %1863 = vmatprep.mubr.f32.mxu0 0.0
        %1864 = vmatmul.mubr.f32.gmra.mrb[0].mxu0 %v1684
        %v1865 = vpop.f32.mrb[0].mxu0
        %v1866 = vadd.f32 0.0, %v1865
        %v1867 = vpop.f32.mrb[0].mxu0
        %1868 = vmatprep.mubr.f32.mxu0 0.0
        %1869 = vmatmul.mubr.f32.gmra.mrb[0].mxu0 %v1687
        %v1870 = vpop.f32.mrb[0].mxu0
        %v1871 = vadd.f32 0.0, %v1870
        %v1872 = vpop.f32.mrb[0].mxu0
        %1873 = vmatprep.mubr.f32.mxu0 0.0
        %1874 = vmatmul.mubr.f32.gmra.mrb[0].mxu0 %v1690
        %v1875 = vpop.f32.mrb[0].mxu0
        %v1876 = vadd.f32 0.0, %v1875
        %v1877 = vpop.f32.mrb[0].mxu0
        %1878 = vmatprep.mubr.f32.mxu0 0.0
        %1879 = vmatmul.mubr.f32.gmra.mrb[0].mxu0 %v1693
        %v1880 = vpop.f32.mrb[0].mxu0
        %v1881 = vadd.f32 0.0, %v1880
        %v1882 = vpop.f32.mrb[0].mxu0
        %1883 = vmatprep.mubr.f32.mxu0 0.0
        %1884 = vmatmul.mubr.f32.gmra.mrb[0].mxu0 %v1696
        %v1885 = vpop.f32.mrb[0].mxu0
        %v1886 = vadd.f32 0.0, %v1885
        %v1887 = vpop.f32.mrb[0].mxu0
        %1888 = vmatprep.mubr.f32.mxu0 0.0
        %1889 = vmatmul.mubr.f32.gmra.mrb[0].mxu0 %v1699
        %v1890 = vpop.f32.mrb[0].mxu0
        %v1891 = vadd.f32 0.0, %v1890
        %v1892 = vpop.f32.mrb[0].mxu0
        %1893 = vmatprep.mubr.f32.mxu0 0.0
        %1894 = vmatmul.mubr.f32.gmra.mrb[0].mxu0 %v1702
        %v1895 = vpop.f32.mrb[0].mxu0
        %v1896 = vadd.f32 0.0, %v1895
        %v1897 = vpop.f32.mrb[0].mxu0
        %1898 = vmatprep.mubr.f32.mxu0 0.0
        %1899 = vmatmul.mubr.f32.gmra.mrb[0].mxu0 %v1705
        %v1900 = vpop.f32.mrb[0].mxu0
        %v1901 = vadd.f32 0.0, %v1900
        %v1902 = vpop.f32.mrb[0].mxu0
        %1903 = vmatprep.mubr.f32.mxu0 0.0
        %1904 = vmatmul.mubr.f32.gmra.mrb[0].mxu0 %v1708
        %v1905 = vpop.f32.mrb[0].mxu0
        %v1906 = vadd.f32 0.0, %v1905
        %v1907 = vpop.f32.mrb[0].mxu0
        %1908 = vmatprep.mubr.f32.mxu0 0.0
        %1909 = vmatmul.mubr.f32.gmra.mrb[0].mxu0 %v1711
        %v1910 = vpop.f32.mrb[0].mxu0
        %v1911 = vadd.f32 0.0, %v1910
        %v1912 = vpop.f32.mrb[0].mxu0
        %1913 = vmatprep.mubr.f32.mxu0 0.0
        %1914 = vmatmul.mubr.f32.gmra.mrb[0].mxu0 %v1714
        %v1915 = vpop.f32.mrb[0].mxu0
        %v1916 = vadd.f32 0.0, %v1915
        %v1917 = vpop.f32.mrb[0].mxu0
        %1918 = vmatprep.mubr.f32.mxu0 0.0
        %1919 = vmatmul.mubr.f32.gmra.mrb[0].mxu0 %v1717
        %v1920 = vpop.f32.mrb[0].mxu0
        %v1921 = vadd.f32 0.0, %v1920
        %v1922 = vpop.f32.mrb[0].mxu0
        %1923 = vmatprep.mubr.f32.mxu0 0.0
        %1924 = vmatmul.mubr.f32.gmra.mrb[0].mxu0 %v1720
        %v1925 = vpop.f32.mrb[0].mxu0
        %v1926 = vadd.f32 0.0, %v1925
        %v1927 = vpop.f32.mrb[0].mxu0
        %1928 = vmatprep.mubr.f32.mxu0 0.0
        %1929 = vmatmul.mubr.f32.gmra.mrb[0].mxu0 %v1723
        %v1930 = vpop.f32.mrb[0].mxu0
        %v1931 = vadd.f32 0.0, %v1930
        %v1932 = vpop.f32.mrb[0].mxu0
        %1933 = vmatprep.mubr.f32.mxu0 0.0
        %1934 = vmatmul.mubr.f32.gmra.mrb[0].mxu0 %v1726
        %v1935 = vpop.f32.mrb[0].mxu0
        %v1936 = vadd.f32 0.0, %v1935
        %v1937 = vpop.f32.mrb[0].mxu0
        %1938 = vmatprep.mubr.f32.mxu0 0.0
        %1939 = vmatmul.mubr.f32.gmra.mrb[0].mxu0 %v1729
        %v1940 = vpop.f32.mrb[0].mxu0
        %v1941 = vadd.f32 0.0, %v1940
        %v1942 = vpop.f32.mrb[0].mxu0
        %1943 = vmatprep.mubr.f32.mxu0 0.0
        %1944 = vmatmul.mubr.f32.gmra.mrb[0].mxu0 %v1732
        %v1945 = vpop.f32.mrb[0].mxu0
        %v1946 = vadd.f32 0.0, %v1945
        %v1947 = vpop.f32.mrb[0].mxu0
        %1948 = vmatprep.mubr.f32.mxu0 0.0
        %1949 = vmatmul.mubr.f32.gmra.mrb[0].mxu0 %v1735
        %v1950 = vpop.f32.mrb[0].mxu0
        %v1951 = vadd.f32 0.0, %v1950
        %v1952 = vpop.f32.mrb[0].mxu0
        %1953 = vmatprep.mubr.f32.mxu0 0.0
        %1954 = vmatmul.mubr.f32.gmra.mrb[0].mxu0 %v1738
        %v1955 = vpop.f32.mrb[0].mxu0
        %v1956 = vadd.f32 0.0, %v1955
        %v1957 = vpop.f32.mrb[0].mxu0
        %1958 = vmatprep.mubr.f32.mxu0 0.0
        %1959 = vmatmul.mubr.f32.gmra.mrb[0].mxu0 %v1741
        %v1960 = vpop.f32.mrb[0].mxu0
        %v1961 = vadd.f32 0.0, %v1960
        %v1962 = vpop.f32.mrb[0].mxu0
        %1963 = vmatprep.mubr.f32.mxu0 0.0
        %1964 = vmatmul.mubr.f32.gmra.mrb[0].mxu0 %v1744
        %v1965 = vpop.f32.mrb[0].mxu0
        %v1966 = vadd.f32 0.0, %v1965
        %v1967 = vpop.f32.mrb[0].mxu0
        %1968 = vmatprep.mubr.f32.mxu0 0.0
        %1969 = vmatmul.mubr.f32.gmra.mrb[0].mxu0 %v1747
        %v1970 = vpop.f32.mrb[0].mxu0
        %v1971 = vadd.f32 0.0, %v1970
        %v1972 = vpop.f32.mrb[0].mxu0
        %1973 = vdwg.mxu0
        %v1975 = vsel %vm1249, %v1582, 0
        %v1978 = vsel %vm1249, %v1583, 0
        %v1981 = vsel %vm1249, %v1584, 0
        %v1984 = vsel %vm1249, %v1585, 0
        %v1987 = vsel %vm1249, %v1586, 0
        %v1990 = vsel %vm1249, %v1587, 0
        %v1993 = vsel %vm1249, %v1588, 0
        %v1996 = vsel %vm1249, %v1589, 0
        %v1999 = vsel %vm1249, %v1590, 0
        %v2002 = vsel %vm1249, %v1591, 0
        %v2005 = vsel %vm1249, %v1592, 0
        %v2008 = vsel %vm1249, %v1593, 0
        %v2011 = vsel %vm1249, %v1594, 0
        %v2014 = vsel %vm1249, %v1595, 0
        %v2017 = vsel %vm1249, %v1596, 0
        %v2020 = vsel %vm1249, %v1597, 0
        %v2023 = vsel %vm1249, %v1598, 0
        %v2026 = vsel %vm1249, %v1599, 0
        %v2029 = vsel %vm1249, %v1600, 0
        %v2032 = vsel %vm1249, %v1601, 0
        %v2035 = vsel %vm1249, %v1602, 0
        %v2038 = vsel %vm1249, %v1603, 0
        %v2041 = vsel %vm1249, %v1604, 0
        %v2044 = vsel %vm1249, %v1605, 0
        %v2047 = vsel %vm1249, %v1606, 0
        %v2050 = vsel %vm1249, %v1607, 0
        %v2053 = vsel %vm1249, %v1608, 0
        %v2056 = vsel %vm1249, %v1609, 0
        %v2059 = vsel %vm1249, %v1610, 0
        %v2062 = vsel %vm1249, %v1611, 0
        %v2065 = vsel %vm1249, %v1612, 0
        %v2068 = vsel %vm1249, %v1613, 0
        %2070 = vmatprep.subr.mxu0 0.0
        %2071 = vmatpush1.msra.mxu0 %v1614
        %2072 = vmatprep.subr.mxu0 0.0
        %2073 = vmatpush1.msra.mxu0 %v1615
        %2074 = vmatprep.subr.mxu0 0.0
        %2075 = vmatpush1.msra.mxu0 %v1616
        %2076 = vmatprep.subr.mxu0 0.0
        %2077 = vmatpush1.msra.mxu0 0.0
        %2078 = vmatprep.subr.mxu0 0.0
        %2079 = vmatpush1.msra.mxu0 0.0
        %2080 = vmatprep.subr.mxu0 0.0
        %2081 = vmatpush1.msra.mxu0 0.0
        %2082 = vmatprep.subr.mxu0 0.0
        %2083 = vmatpush1.msra.mxu0 0.0
        %2084 = vmatprep.subr.mxu0 0.0
        %2085 = vmatpush1.msra.mxu0 0.0
        %2086 = vmatprep.subr.mxu0 0.0
        %2087 = vmatpush1.msra.mxu0 0.0
        %2088 = vmatprep.subr.mxu0 0.0
        %2089 = vmatpush1.msra.mxu0 0.0
        %2090 = vmatprep.subr.mxu0 0.0
        %2091 = vmatpush1.msra.mxu0 0.0
        %2092 = vmatprep.subr.mxu0 0.0
        %2093 = vmatpush1.msra.mxu0 0.0
        %2094 = vmatprep.subr.mxu0 0.0
        %2095 = vmatpush1.msra.mxu0 0.0
        %2096 = vmatprep.subr.mxu0 0.0
        %2097 = vmatpush1.msra.mxu0 0.0
        %2098 = vmatprep.subr.mxu0 0.0
        %2099 = vmatpush1.msra.mxu0 0.0
        %2100 = vmatprep.subr.mxu0 0.0
        %2101 = vmatpush1.msra.mxu0 0.0
        %2102 = vmatprep.subr.mxu0 0.0
        %2103 = vmatpush1.msra.mxu0 0.0
        %2104 = vmatprep.subr.mxu0 0.0
        %2105 = vmatpush1.msra.mxu0 0.0
        %2106 = vmatprep.subr.mxu0 0.0
        %2107 = vmatpush1.msra.mxu0 0.0
        %2108 = vmatprep.subr.mxu0 0.0
        %2109 = vmatpush1.msra.mxu0 0.0
        %2110 = vmatprep.subr.mxu0 0.0
        %2111 = vmatpush1.msra.mxu0 0.0
        %2112 = vmatprep.subr.mxu0 0.0
        %2113 = vmatpush1.msra.mxu0 0.0
        %2114 = vmatprep.subr.mxu0 0.0
        %2115 = vmatpush1.msra.mxu0 0.0
        %2116 = vmatprep.subr.mxu0 0.0
        %2117 = vmatpush1.msra.mxu0 0.0
        %2118 = vmatprep.subr.mxu0 0.0
        %2119 = vmatpush1.msra.mxu0 0.0
        %2120 = vmatprep.subr.mxu0 0.0
        %2121 = vmatpush1.msra.mxu0 0.0
        %2122 = vmatprep.subr.mxu0 0.0
        %2123 = vmatpush1.msra.mxu0 0.0
        %2124 = vmatprep.subr.mxu0 0.0
        %2125 = vmatpush1.msra.mxu0 0.0
        %2126 = vmatprep.subr.mxu0 0.0
        %2127 = vmatpush1.msra.mxu0 0.0
        %2128 = vmatprep.subr.mxu0 0.0
        %2129 = vmatpush1.msra.mxu0 0.0
        %2130 = vmatprep.subr.mxu0 0.0
        %2131 = vmatpush1.msra.mxu0 0.0
        %2132 = vmatprep.subr.mxu0 0.0
        %2133 = vmatpush1.msra.mxu0 0.0
        %2134 = vmatprep.mubr.f32.mxu0 0.0
        %2135 = vmatmul.mubr.f32.gmra.mrb[0].mxu0 %v1975
        %v2136 = vpop.f32.mrb[0].mxu0
        %v2137 = vadd.f32 %v1816, %v2136
        %v2138 = vpop.f32.mrb[0].mxu0
        %2139 = vmatprep.mubr.f32.mxu0 0.0
        %2140 = vmatmul.mubr.f32.gmra.mrb[0].mxu0 %v1978
        %v2141 = vpop.f32.mrb[0].mxu0
        %v2142 = vadd.f32 %v1821, %v2141
        %v2143 = vpop.f32.mrb[0].mxu0
        %2144 = vmatprep.mubr.f32.mxu0 0.0
        %2145 = vmatmul.mubr.f32.gmra.mrb[0].mxu0 %v1981
        %v2146 = vpop.f32.mrb[0].mxu0
        %v2147 = vadd.f32 %v1826, %v2146
        %v2148 = vpop.f32.mrb[0].mxu0
        %2149 = vmatprep.mubr.f32.mxu0 0.0
        %2150 = vmatmul.mubr.f32.gmra.mrb[0].mxu0 %v1984
        %v2151 = vpop.f32.mrb[0].mxu0
        %v2152 = vadd.f32 %v1831, %v2151
        %v2153 = vpop.f32.mrb[0].mxu0
        %2154 = vmatprep.mubr.f32.mxu0 0.0
        %2155 = vmatmul.mubr.f32.gmra.mrb[0].mxu0 %v1987
        %v2156 = vpop.f32.mrb[0].mxu0
        %v2157 = vadd.f32 %v1836, %v2156
        %v2158 = vpop.f32.mrb[0].mxu0
        %2159 = vmatprep.mubr.f32.mxu0 0.0
        %2160 = vmatmul.mubr.f32.gmra.mrb[0].mxu0 %v1990
        %v2161 = vpop.f32.mrb[0].mxu0
        %v2162 = vadd.f32 %v1841, %v2161
        %v2163 = vpop.f32.mrb[0].mxu0
        %2164 = vmatprep.mubr.f32.mxu0 0.0
        %2165 = vmatmul.mubr.f32.gmra.mrb[0].mxu0 %v1993
        %v2166 = vpop.f32.mrb[0].mxu0
        %v2167 = vadd.f32 %v1846, %v2166
        %v2168 = vpop.f32.mrb[0].mxu0
        %2169 = vmatprep.mubr.f32.mxu0 0.0
        %2170 = vmatmul.mubr.f32.gmra.mrb[0].mxu0 %v1996
        %v2171 = vpop.f32.mrb[0].mxu0
        %v2172 = vadd.f32 %v1851, %v2171
        %v2173 = vpop.f32.mrb[0].mxu0
        %2174 = vmatprep.mubr.f32.mxu0 0.0
        %2175 = vmatmul.mubr.f32.gmra.mrb[0].mxu0 %v1999
        %v2176 = vpop.f32.mrb[0].mxu0
        %v2177 = vadd.f32 %v1856, %v2176
        %v2178 = vpop.f32.mrb[0].mxu0
        %2179 = vmatprep.mubr.f32.mxu0 0.0
        %2180 = vmatmul.mubr.f32.gmra.mrb[0].mxu0 %v2002
        %v2181 = vpop.f32.mrb[0].mxu0
        %v2182 = vadd.f32 %v1861, %v2181
        %v2183 = vpop.f32.mrb[0].mxu0
        %2184 = vmatprep.mubr.f32.mxu0 0.0
        %2185 = vmatmul.mubr.f32.gmra.mrb[0].mxu0 %v2005
        %v2186 = vpop.f32.mrb[0].mxu0
        %v2187 = vadd.f32 %v1866, %v2186
        %v2188 = vpop.f32.mrb[0].mxu0
        %2189 = vmatprep.mubr.f32.mxu0 0.0
        %2190 = vmatmul.mubr.f32.gmra.mrb[0].mxu0 %v2008
        %v2191 = vpop.f32.mrb[0].mxu0
        %v2192 = vadd.f32 %v1871, %v2191
        %v2193 = vpop.f32.mrb[0].mxu0
        %2194 = vmatprep.mubr.f32.mxu0 0.0
        %2195 = vmatmul.mubr.f32.gmra.mrb[0].mxu0 %v2011
        %v2196 = vpop.f32.mrb[0].mxu0
        %v2197 = vadd.f32 %v1876, %v2196
        %v2198 = vpop.f32.mrb[0].mxu0
        %2199 = vmatprep.mubr.f32.mxu0 0.0
        %2200 = vmatmul.mubr.f32.gmra.mrb[0].mxu0 %v2014
        %v2201 = vpop.f32.mrb[0].mxu0
        %v2202 = vadd.f32 %v1881, %v2201
        %v2203 = vpop.f32.mrb[0].mxu0
        %2204 = vmatprep.mubr.f32.mxu0 0.0
        %2205 = vmatmul.mubr.f32.gmra.mrb[0].mxu0 %v2017
        %v2206 = vpop.f32.mrb[0].mxu0
        %v2207 = vadd.f32 %v1886, %v2206
        %v2208 = vpop.f32.mrb[0].mxu0
        %2209 = vmatprep.mubr.f32.mxu0 0.0
        %2210 = vmatmul.mubr.f32.gmra.mrb[0].mxu0 %v2020
        %v2211 = vpop.f32.mrb[0].mxu0
        %v2212 = vadd.f32 %v1891, %v2211
        %v2213 = vpop.f32.mrb[0].mxu0
        %2214 = vmatprep.mubr.f32.mxu0 0.0
        %2215 = vmatmul.mubr.f32.gmra.mrb[0].mxu0 %v2023
        %v2216 = vpop.f32.mrb[0].mxu0
        %v2217 = vadd.f32 %v1896, %v2216
        %v2218 = vpop.f32.mrb[0].mxu0
        %2219 = vmatprep.mubr.f32.mxu0 0.0
        %2220 = vmatmul.mubr.f32.gmra.mrb[0].mxu0 %v2026
        %v2221 = vpop.f32.mrb[0].mxu0
        %v2222 = vadd.f32 %v1901, %v2221
        %v2223 = vpop.f32.mrb[0].mxu0
        %2224 = vmatprep.mubr.f32.mxu0 0.0
        %2225 = vmatmul.mubr.f32.gmra.mrb[0].mxu0 %v2029
        %v2226 = vpop.f32.mrb[0].mxu0
        %v2227 = vadd.f32 %v1906, %v2226
        %v2228 = vpop.f32.mrb[0].mxu0
        %2229 = vmatprep.mubr.f32.mxu0 0.0
        %2230 = vmatmul.mubr.f32.gmra.mrb[0].mxu0 %v2032
        %v2231 = vpop.f32.mrb[0].mxu0
        %v2232 = vadd.f32 %v1911, %v2231
        %v2233 = vpop.f32.mrb[0].mxu0
        %2234 = vmatprep.mubr.f32.mxu0 0.0
        %2235 = vmatmul.mubr.f32.gmra.mrb[0].mxu0 %v2035
        %v2236 = vpop.f32.mrb[0].mxu0
        %v2237 = vadd.f32 %v1916, %v2236
        %v2238 = vpop.f32.mrb[0].mxu0
        %2239 = vmatprep.mubr.f32.mxu0 0.0
        %2240 = vmatmul.mubr.f32.gmra.mrb[0].mxu0 %v2038
        %v2241 = vpop.f32.mrb[0].mxu0
        %v2242 = vadd.f32 %v1921, %v2241
        %v2243 = vpop.f32.mrb[0].mxu0
        %2244 = vmatprep.mubr.f32.mxu0 0.0
        %2245 = vmatmul.mubr.f32.gmra.mrb[0].mxu0 %v2041
        %v2246 = vpop.f32.mrb[0].mxu0
        %v2247 = vadd.f32 %v1926, %v2246
        %v2248 = vpop.f32.mrb[0].mxu0
        %2249 = vmatprep.mubr.f32.mxu0 0.0
        %2250 = vmatmul.mubr.f32.gmra.mrb[0].mxu0 %v2044
        %v2251 = vpop.f32.mrb[0].mxu0
        %v2252 = vadd.f32 %v1931, %v2251
        %v2253 = vpop.f32.mrb[0].mxu0
        %2254 = vmatprep.mubr.f32.mxu0 0.0
        %2255 = vmatmul.mubr.f32.gmra.mrb[0].mxu0 %v2047
        %v2256 = vpop.f32.mrb[0].mxu0
        %v2257 = vadd.f32 %v1936, %v2256
        %v2258 = vpop.f32.mrb[0].mxu0
        %2259 = vmatprep.mubr.f32.mxu0 0.0
        %2260 = vmatmul.mubr.f32.gmra.mrb[0].mxu0 %v2050
        %v2261 = vpop.f32.mrb[0].mxu0
        %v2262 = vadd.f32 %v1941, %v2261
        %v2263 = vpop.f32.mrb[0].mxu0
        %2264 = vmatprep.mubr.f32.mxu0 0.0
        %2265 = vmatmul.mubr.f32.gmra.mrb[0].mxu0 %v2053
        %v2266 = vpop.f32.mrb[0].mxu0
        %v2267 = vadd.f32 %v1946, %v2266
        %v2268 = vpop.f32.mrb[0].mxu0
        %2269 = vmatprep.mubr.f32.mxu0 0.0
        %2270 = vmatmul.mubr.f32.gmra.mrb[0].mxu0 %v2056
        %v2271 = vpop.f32.mrb[0].mxu0
        %v2272 = vadd.f32 %v1951, %v2271
        %v2273 = vpop.f32.mrb[0].mxu0
        %2274 = vmatprep.mubr.f32.mxu0 0.0
        %2275 = vmatmul.mubr.f32.gmra.mrb[0].mxu0 %v2059
        %v2276 = vpop.f32.mrb[0].mxu0
        %v2277 = vadd.f32 %v1956, %v2276
        %v2278 = vpop.f32.mrb[0].mxu0
        %2279 = vmatprep.mubr.f32.mxu0 0.0
        %2280 = vmatmul.mubr.f32.gmra.mrb[0].mxu0 %v2062
        %v2281 = vpop.f32.mrb[0].mxu0
        %v2282 = vadd.f32 %v1961, %v2281
        %v2283 = vpop.f32.mrb[0].mxu0
        %2284 = vmatprep.mubr.f32.mxu0 0.0
        %2285 = vmatmul.mubr.f32.gmra.mrb[0].mxu0 %v2065
        %v2286 = vpop.f32.mrb[0].mxu0
        %v2287 = vadd.f32 %v1966, %v2286
        %v2288 = vpop.f32.mrb[0].mxu0
        %2289 = vmatprep.mubr.f32.mxu0 0.0
        %2290 = vmatmul.mubr.f32.gmra.mrb[0].mxu0 %v2068
        %v2291 = vpop.f32.mrb[0].mxu0
        %v2292 = vadd.f32 %v1971, %v2291
        %v2293 = vpop.f32.mrb[0].mxu0
        %2294 = vdwg.mxu0
        %s2295 = scalar_lea.vmem [#allocation2], 32
        %v2296 = vld [vmem:[%s2295] sm:$0xff]
        %v2297 = vld [vmem:[%s2295 + $0x8] sm:$0xff]
        %v2298 = vld [vmem:[%s2295 + $0x10] sm:$0xff]
        %v2299 = vld [vmem:[%s2295 + $0x18] sm:$0xff]
        %v2300 = vld [vmem:[%s2295 + $0x20] sm:$0xff]
        %v2301 = vld [vmem:[%s2295 + $0x28] sm:$0xff]
        %v2302 = vld [vmem:[%s2295 + $0x30] sm:$0xff]
        %v2303 = vld [vmem:[%s2295 + $0x38] sm:$0xff]
        %v2304 = vld [vmem:[%s2295 + $0x40] sm:$0xff]
        %v2305 = vld [vmem:[%s2295 + $0x48] sm:$0xff]
        %v2306 = vld [vmem:[%s2295 + $0x50] sm:$0xff]
        %v2307 = vld [vmem:[%s2295 + $0x58] sm:$0xff]
        %v2308 = vld [vmem:[%s2295 + $0x60] sm:$0xff]
        %v2309 = vld [vmem:[%s2295 + $0x68] sm:$0xff]
        %v2310 = vld [vmem:[%s2295 + $0x70] sm:$0xff]
        %v2311 = vld [vmem:[%s2295 + $0x78] sm:$0xff]
        %v2312 = vld [vmem:[%s2295 + $0x80] sm:$0xff]
        %v2313 = vld [vmem:[%s2295 + $0x88] sm:$0xff]
        %v2314 = vld [vmem:[%s2295 + $0x90] sm:$0xff]
        %v2315 = vld [vmem:[%s2295 + $0x98] sm:$0xff]
        %v2316 = vld [vmem:[%s2295 + $0xa0] sm:$0xff]
        %v2317 = vld [vmem:[%s2295 + $0xa8] sm:$0xff]
        %v2318 = vld [vmem:[%s2295 + $0xb0] sm:$0xff]
        %v2319 = vld [vmem:[%s2295 + $0xb8] sm:$0xff]
        %v2320 = vld [vmem:[%s2295 + $0xc0] sm:$0xff]
        %v2321 = vld [vmem:[%s2295 + $0xc8] sm:$0xff]
        %v2322 = vld [vmem:[%s2295 + $0xd0] sm:$0xff]
        %v2323 = vld [vmem:[%s2295 + $0xd8] sm:$0xff]
        %v2324 = vld [vmem:[%s2295 + $0xe0] sm:$0xff]
        %v2325 = vld [vmem:[%s2295 + $0xe8] sm:$0xff]
        %v2326 = vld [vmem:[%s2295 + $0xf0] sm:$0xff]
        %v2327 = vld [vmem:[%s2295 + $0xf8] sm:$0xff]
        %s2328 = scalar_lea.vmem %s3, 48
        %v2329 = vld [vmem:[%s2328] sm:$0xff]
        %v2330 = vld [vmem:[%s2328 + $0x8] sm:$0xff]
        %v2331 = vld [vmem:[%s2328 + $0x10] sm:$0xff]
        %v2333 = vsel %vm1249, %v2296, 0
        %v2336 = vsel %vm1249, %v2297, 0
        %v2339 = vsel %vm1249, %v2298, 0
        %v2342 = vsel %vm1249, %v2299, 0
        %v2345 = vsel %vm1249, %v2300, 0
        %v2348 = vsel %vm1249, %v2301, 0
        %v2351 = vsel %vm1249, %v2302, 0
        %v2354 = vsel %vm1249, %v2303, 0
        %v2357 = vsel %vm1249, %v2304, 0
        %v2360 = vsel %vm1249, %v2305, 0
        %v2363 = vsel %vm1249, %v2306, 0
        %v2366 = vsel %vm1249, %v2307, 0
        %v2369 = vsel %vm1249, %v2308, 0
        %v2372 = vsel %vm1249, %v2309, 0
        %v2375 = vsel %vm1249, %v2310, 0
        %v2378 = vsel %vm1249, %v2311, 0
        %v2381 = vsel %vm1249, %v2312, 0
        %v2384 = vsel %vm1249, %v2313, 0
        %v2387 = vsel %vm1249, %v2314, 0
        %v2390 = vsel %vm1249, %v2315, 0
        %v2393 = vsel %vm1249, %v2316, 0
        %v2396 = vsel %vm1249, %v2317, 0
        %v2399 = vsel %vm1249, %v2318, 0
        %v2402 = vsel %vm1249, %v2319, 0
        %v2405 = vsel %vm1249, %v2320, 0
        %v2408 = vsel %vm1249, %v2321, 0
        %v2411 = vsel %vm1249, %v2322, 0
        %v2414 = vsel %vm1249, %v2323, 0
        %v2417 = vsel %vm1249, %v2324, 0
        %v2420 = vsel %vm1249, %v2325, 0
        %v2423 = vsel %vm1249, %v2326, 0
        %v2426 = vsel %vm1249, %v2327, 0
        %2428 = vmatprep.subr.mxu0 0.0
        %2429 = vmatpush1.msra.mxu0 %v2329
        %2430 = vmatprep.subr.mxu0 0.0
        %2431 = vmatpush1.msra.mxu0 %v2330
        %2432 = vmatprep.subr.mxu0 0.0
        %2433 = vmatpush1.msra.mxu0 %v2331
        %2434 = vmatprep.subr.mxu0 0.0
        %2435 = vmatpush1.msra.mxu0 0.0
        %2436 = vmatprep.subr.mxu0 0.0
        %2437 = vmatpush1.msra.mxu0 0.0
        %2438 = vmatprep.subr.mxu0 0.0
        %2439 = vmatpush1.msra.mxu0 0.0
        %2440 = vmatprep.subr.mxu0 0.0
        %2441 = vmatpush1.msra.mxu0 0.0
        %2442 = vmatprep.subr.mxu0 0.0
        %2443 = vmatpush1.msra.mxu0 0.0
        %2444 = vmatprep.subr.mxu0 0.0
        %2445 = vmatpush1.msra.mxu0 0.0
        %2446 = vmatprep.subr.mxu0 0.0
        %2447 = vmatpush1.msra.mxu0 0.0
        %2448 = vmatprep.subr.mxu0 0.0
        %2449 = vmatpush1.msra.mxu0 0.0
        %2450 = vmatprep.subr.mxu0 0.0
        %2451 = vmatpush1.msra.mxu0 0.0
        %2452 = vmatprep.subr.mxu0 0.0
        %2453 = vmatpush1.msra.mxu0 0.0
        %2454 = vmatprep.subr.mxu0 0.0
        %2455 = vmatpush1.msra.mxu0 0.0
        %2456 = vmatprep.subr.mxu0 0.0
        %2457 = vmatpush1.msra.mxu0 0.0
        %2458 = vmatprep.subr.mxu0 0.0
        %2459 = vmatpush1.msra.mxu0 0.0
        %2460 = vmatprep.subr.mxu0 0.0
        %2461 = vmatpush1.msra.mxu0 0.0
        %2462 = vmatprep.subr.mxu0 0.0
        %2463 = vmatpush1.msra.mxu0 0.0
        %2464 = vmatprep.subr.mxu0 0.0
        %2465 = vmatpush1.msra.mxu0 0.0
        %2466 = vmatprep.subr.mxu0 0.0
        %2467 = vmatpush1.msra.mxu0 0.0
        %2468 = vmatprep.subr.mxu0 0.0
        %2469 = vmatpush1.msra.mxu0 0.0
        %2470 = vmatprep.subr.mxu0 0.0
        %2471 = vmatpush1.msra.mxu0 0.0
        %2472 = vmatprep.subr.mxu0 0.0
        %2473 = vmatpush1.msra.mxu0 0.0
        %2474 = vmatprep.subr.mxu0 0.0
        %2475 = vmatpush1.msra.mxu0 0.0
        %2476 = vmatprep.subr.mxu0 0.0
        %2477 = vmatpush1.msra.mxu0 0.0
        %2478 = vmatprep.subr.mxu0 0.0
        %2479 = vmatpush1.msra.mxu0 0.0
        %2480 = vmatprep.subr.mxu0 0.0
        %2481 = vmatpush1.msra.mxu0 0.0
        %2482 = vmatprep.subr.mxu0 0.0
        %2483 = vmatpush1.msra.mxu0 0.0
        %2484 = vmatprep.subr.mxu0 0.0
        %2485 = vmatpush1.msra.mxu0 0.0
        %2486 = vmatprep.subr.mxu0 0.0
        %2487 = vmatpush1.msra.mxu0 0.0
        %2488 = vmatprep.subr.mxu0 0.0
        %2489 = vmatpush1.msra.mxu0 0.0
        %2490 = vmatprep.subr.mxu0 0.0
        %2491 = vmatpush1.msra.mxu0 0.0
        %2492 = vmatprep.mubr.f32.mxu0 0.0
        %2493 = vmatmul.mubr.f32.gmra.mrb[0].mxu0 %v2333
        %v2494 = vpop.f32.mrb[0].mxu0
        %v2495 = vadd.f32 0.0, %v2494
        %v2496 = vpop.f32.mrb[0].mxu0
        %2497 = vmatprep.mubr.f32.mxu0 0.0
        %2498 = vmatmul.mubr.f32.gmra.mrb[0].mxu0 %v2336
        %v2499 = vpop.f32.mrb[0].mxu0
        %v2500 = vadd.f32 0.0, %v2499
        %v2501 = vpop.f32.mrb[0].mxu0
        %2502 = vmatprep.mubr.f32.mxu0 0.0
        %2503 = vmatmul.mubr.f32.gmra.mrb[0].mxu0 %v2339
        %v2504 = vpop.f32.mrb[0].mxu0
        %v2505 = vadd.f32 0.0, %v2504
        %v2506 = vpop.f32.mrb[0].mxu0
        %2507 = vmatprep.mubr.f32.mxu0 0.0
        %2508 = vmatmul.mubr.f32.gmra.mrb[0].mxu0 %v2342
        %v2509 = vpop.f32.mrb[0].mxu0
        %v2510 = vadd.f32 0.0, %v2509
        %v2511 = vpop.f32.mrb[0].mxu0
        %2512 = vmatprep.mubr.f32.mxu0 0.0
        %2513 = vmatmul.mubr.f32.gmra.mrb[0].mxu0 %v2345
        %v2514 = vpop.f32.mrb[0].mxu0
        %v2515 = vadd.f32 0.0, %v2514
        %v2516 = vpop.f32.mrb[0].mxu0
        %2517 = vmatprep.mubr.f32.mxu0 0.0
        %2518 = vmatmul.mubr.f32.gmra.mrb[0].mxu0 %v2348
        %v2519 = vpop.f32.mrb[0].mxu0
        %v2520 = vadd.f32 0.0, %v2519
        %v2521 = vpop.f32.mrb[0].mxu0
        %2522 = vmatprep.mubr.f32.mxu0 0.0
        %2523 = vmatmul.mubr.f32.gmra.mrb[0].mxu0 %v2351
        %v2524 = vpop.f32.mrb[0].mxu0
        %v2525 = vadd.f32 0.0, %v2524
        %v2526 = vpop.f32.mrb[0].mxu0
        %2527 = vmatprep.mubr.f32.mxu0 0.0
        %2528 = vmatmul.mubr.f32.gmra.mrb[0].mxu0 %v2354
        %v2529 = vpop.f32.mrb[0].mxu0
        %v2530 = vadd.f32 0.0, %v2529
        %v2531 = vpop.f32.mrb[0].mxu0
        %2532 = vmatprep.mubr.f32.mxu0 0.0
        %2533 = vmatmul.mubr.f32.gmra.mrb[0].mxu0 %v2357
        %v2534 = vpop.f32.mrb[0].mxu0
        %v2535 = vadd.f32 0.0, %v2534
        %v2536 = vpop.f32.mrb[0].mxu0
        %2537 = vmatprep.mubr.f32.mxu0 0.0
        %2538 = vmatmul.mubr.f32.gmra.mrb[0].mxu0 %v2360
        %v2539 = vpop.f32.mrb[0].mxu0
        %v2540 = vadd.f32 0.0, %v2539
        %v2541 = vpop.f32.mrb[0].mxu0
        %2542 = vmatprep.mubr.f32.mxu0 0.0
        %2543 = vmatmul.mubr.f32.gmra.mrb[0].mxu0 %v2363
        %v2544 = vpop.f32.mrb[0].mxu0
        %v2545 = vadd.f32 0.0, %v2544
        %v2546 = vpop.f32.mrb[0].mxu0
        %2547 = vmatprep.mubr.f32.mxu0 0.0
        %2548 = vmatmul.mubr.f32.gmra.mrb[0].mxu0 %v2366
        %v2549 = vpop.f32.mrb[0].mxu0
        %v2550 = vadd.f32 0.0, %v2549
        %v2551 = vpop.f32.mrb[0].mxu0
        %2552 = vmatprep.mubr.f32.mxu0 0.0
        %2553 = vmatmul.mubr.f32.gmra.mrb[0].mxu0 %v2369
        %v2554 = vpop.f32.mrb[0].mxu0
        %v2555 = vadd.f32 0.0, %v2554
        %v2556 = vpop.f32.mrb[0].mxu0
        %2557 = vmatprep.mubr.f32.mxu0 0.0
        %2558 = vmatmul.mubr.f32.gmra.mrb[0].mxu0 %v2372
        %v2559 = vpop.f32.mrb[0].mxu0
        %v2560 = vadd.f32 0.0, %v2559
        %v2561 = vpop.f32.mrb[0].mxu0
        %2562 = vmatprep.mubr.f32.mxu0 0.0
        %2563 = vmatmul.mubr.f32.gmra.mrb[0].mxu0 %v2375
        %v2564 = vpop.f32.mrb[0].mxu0
        %v2565 = vadd.f32 0.0, %v2564
        %v2566 = vpop.f32.mrb[0].mxu0
        %2567 = vmatprep.mubr.f32.mxu0 0.0
        %2568 = vmatmul.mubr.f32.gmra.mrb[0].mxu0 %v2378
        %v2569 = vpop.f32.mrb[0].mxu0
        %v2570 = vadd.f32 0.0, %v2569
        %v2571 = vpop.f32.mrb[0].mxu0
        %2572 = vmatprep.mubr.f32.mxu0 0.0
        %2573 = vmatmul.mubr.f32.gmra.mrb[0].mxu0 %v2381
        %v2574 = vpop.f32.mrb[0].mxu0
        %v2575 = vadd.f32 0.0, %v2574
        %v2576 = vpop.f32.mrb[0].mxu0
        %2577 = vmatprep.mubr.f32.mxu0 0.0
        %2578 = vmatmul.mubr.f32.gmra.mrb[0].mxu0 %v2384
        %v2579 = vpop.f32.mrb[0].mxu0
        %v2580 = vadd.f32 0.0, %v2579
        %v2581 = vpop.f32.mrb[0].mxu0
        %2582 = vmatprep.mubr.f32.mxu0 0.0
        %2583 = vmatmul.mubr.f32.gmra.mrb[0].mxu0 %v2387
        %v2584 = vpop.f32.mrb[0].mxu0
        %v2585 = vadd.f32 0.0, %v2584
        %v2586 = vpop.f32.mrb[0].mxu0
        %2587 = vmatprep.mubr.f32.mxu0 0.0
        %2588 = vmatmul.mubr.f32.gmra.mrb[0].mxu0 %v2390
        %v2589 = vpop.f32.mrb[0].mxu0
        %v2590 = vadd.f32 0.0, %v2589
        %v2591 = vpop.f32.mrb[0].mxu0
        %2592 = vmatprep.mubr.f32.mxu0 0.0
        %2593 = vmatmul.mubr.f32.gmra.mrb[0].mxu0 %v2393
        %v2594 = vpop.f32.mrb[0].mxu0
        %v2595 = vadd.f32 0.0, %v2594
        %v2596 = vpop.f32.mrb[0].mxu0
        %2597 = vmatprep.mubr.f32.mxu0 0.0
        %2598 = vmatmul.mubr.f32.gmra.mrb[0].mxu0 %v2396
        %v2599 = vpop.f32.mrb[0].mxu0
        %v2600 = vadd.f32 0.0, %v2599
        %v2601 = vpop.f32.mrb[0].mxu0
        %2602 = vmatprep.mubr.f32.mxu0 0.0
        %2603 = vmatmul.mubr.f32.gmra.mrb[0].mxu0 %v2399
        %v2604 = vpop.f32.mrb[0].mxu0
        %v2605 = vadd.f32 0.0, %v2604
        %v2606 = vpop.f32.mrb[0].mxu0
        %2607 = vmatprep.mubr.f32.mxu0 0.0
        %2608 = vmatmul.mubr.f32.gmra.mrb[0].mxu0 %v2402
        %v2609 = vpop.f32.mrb[0].mxu0
        %v2610 = vadd.f32 0.0, %v2609
        %v2611 = vpop.f32.mrb[0].mxu0
        %2612 = vmatprep.mubr.f32.mxu0 0.0
        %2613 = vmatmul.mubr.f32.gmra.mrb[0].mxu0 %v2405
        %v2614 = vpop.f32.mrb[0].mxu0
        %v2615 = vadd.f32 0.0, %v2614
        %v2616 = vpop.f32.mrb[0].mxu0
        %2617 = vmatprep.mubr.f32.mxu0 0.0
        %2618 = vmatmul.mubr.f32.gmra.mrb[0].mxu0 %v2408
        %v2619 = vpop.f32.mrb[0].mxu0
        %v2620 = vadd.f32 0.0, %v2619
        %v2621 = vpop.f32.mrb[0].mxu0
        %2622 = vmatprep.mubr.f32.mxu0 0.0
        %2623 = vmatmul.mubr.f32.gmra.mrb[0].mxu0 %v2411
        %v2624 = vpop.f32.mrb[0].mxu0
        %v2625 = vadd.f32 0.0, %v2624
        %v2626 = vpop.f32.mrb[0].mxu0
        %2627 = vmatprep.mubr.f32.mxu0 0.0
        %2628 = vmatmul.mubr.f32.gmra.mrb[0].mxu0 %v2414
        %v2629 = vpop.f32.mrb[0].mxu0
        %v2630 = vadd.f32 0.0, %v2629
        %v2631 = vpop.f32.mrb[0].mxu0
        %2632 = vmatprep.mubr.f32.mxu0 0.0
        %2633 = vmatmul.mubr.f32.gmra.mrb[0].mxu0 %v2417
        %v2634 = vpop.f32.mrb[0].mxu0
        %v2635 = vadd.f32 0.0, %v2634
        %v2636 = vpop.f32.mrb[0].mxu0
        %2637 = vmatprep.mubr.f32.mxu0 0.0
        %2638 = vmatmul.mubr.f32.gmra.mrb[0].mxu0 %v2420
        %v2639 = vpop.f32.mrb[0].mxu0
        %v2640 = vadd.f32 0.0, %v2639
        %v2641 = vpop.f32.mrb[0].mxu0
        %2642 = vmatprep.mubr.f32.mxu0 0.0
        %2643 = vmatmul.mubr.f32.gmra.mrb[0].mxu0 %v2423
        %v2644 = vpop.f32.mrb[0].mxu0
        %v2645 = vadd.f32 0.0, %v2644
        %v2646 = vpop.f32.mrb[0].mxu0
        %2647 = vmatprep.mubr.f32.mxu0 0.0
        %2648 = vmatmul.mubr.f32.gmra.mrb[0].mxu0 %v2426
        %v2649 = vpop.f32.mrb[0].mxu0
        %v2650 = vadd.f32 0.0, %v2649
        %v2651 = vpop.f32.mrb[0].mxu0
        %2652 = vdwg.mxu0
        %v2653 = vadd.f32 %v2137, %v2495
        %v2654 = vadd.f32 %v2142, %v2500
        %v2655 = vadd.f32 %v2147, %v2505
        %v2656 = vadd.f32 %v2152, %v2510
        %v2657 = vadd.f32 %v2157, %v2515
        %v2658 = vadd.f32 %v2162, %v2520
        %v2659 = vadd.f32 %v2167, %v2525
        %v2660 = vadd.f32 %v2172, %v2530
        %v2661 = vadd.f32 %v2177, %v2535
        %v2662 = vadd.f32 %v2182, %v2540
        %v2663 = vadd.f32 %v2187, %v2545
        %v2664 = vadd.f32 %v2192, %v2550
        %v2665 = vadd.f32 %v2197, %v2555
        %v2666 = vadd.f32 %v2202, %v2560
        %v2667 = vadd.f32 %v2207, %v2565
        %v2668 = vadd.f32 %v2212, %v2570
        %v2669 = vadd.f32 %v2217, %v2575
        %v2670 = vadd.f32 %v2222, %v2580
        %v2671 = vadd.f32 %v2227, %v2585
        %v2672 = vadd.f32 %v2232, %v2590
        %v2673 = vadd.f32 %v2237, %v2595
        %v2674 = vadd.f32 %v2242, %v2600
        %v2675 = vadd.f32 %v2247, %v2605
        %v2676 = vadd.f32 %v2252, %v2610
        %v2677 = vadd.f32 %v2257, %v2615
        %v2678 = vadd.f32 %v2262, %v2620
        %v2679 = vadd.f32 %v2267, %v2625
        %v2680 = vadd.f32 %v2272, %v2630
        %v2681 = vadd.f32 %v2277, %v2635
        %v2682 = vadd.f32 %v2282, %v2640
        %v2683 = vadd.f32 %v2287, %v2645
        %v2684 = vadd.f32 %v2292, %v2650
        %v2685 = vld [vmem:[%s4] sm:$0x1]
        %v2687 = vlaneseq
        %v2688 = vshrl.u32 %v2687, 7
        %v2689 = vsub.s32 0, %v2688
        %v2690 = vrot.slane %v2685, %v2689
        %v2692 = vadd.f32 %v2653, %v2690
        %v2693 = vadd.f32 %v2654, %v2690
        %v2694 = vadd.f32 %v2655, %v2690
        %v2695 = vadd.f32 %v2656, %v2690
        %v2696 = vadd.f32 %v2657, %v2690
        %v2697 = vadd.f32 %v2658, %v2690
        %v2698 = vadd.f32 %v2659, %v2690
        %v2699 = vadd.f32 %v2660, %v2690
        %v2700 = vadd.f32 %v2661, %v2690
        %v2701 = vadd.f32 %v2662, %v2690
        %v2702 = vadd.f32 %v2663, %v2690
        %v2703 = vadd.f32 %v2664, %v2690
        %v2704 = vadd.f32 %v2665, %v2690
        %v2705 = vadd.f32 %v2666, %v2690
        %v2706 = vadd.f32 %v2667, %v2690
        %v2707 = vadd.f32 %v2668, %v2690
        %v2708 = vadd.f32 %v2669, %v2690
        %v2709 = vadd.f32 %v2670, %v2690
        %v2710 = vadd.f32 %v2671, %v2690
        %v2711 = vadd.f32 %v2672, %v2690
        %v2712 = vadd.f32 %v2673, %v2690
        %v2713 = vadd.f32 %v2674, %v2690
        %v2714 = vadd.f32 %v2675, %v2690
        %v2715 = vadd.f32 %v2676, %v2690
        %v2716 = vadd.f32 %v2677, %v2690
        %v2717 = vadd.f32 %v2678, %v2690
        %v2718 = vadd.f32 %v2679, %v2690
        %v2719 = vadd.f32 %v2680, %v2690
        %v2720 = vadd.f32 %v2681, %v2690
        %v2721 = vadd.f32 %v2682, %v2690
        %v2722 = vadd.f32 %v2683, %v2690
        %v2723 = vadd.f32 %v2684, %v2690
        %v2724 = vmul.f32 %v2692, 0.2
        %v2725 = vmul.f32 %v2693, 0.2
        %v2726 = vmul.f32 %v2694, 0.2
        %v2727 = vmul.f32 %v2695, 0.2
        %v2728 = vmul.f32 %v2696, 0.2
        %v2729 = vmul.f32 %v2697, 0.2
        %v2730 = vmul.f32 %v2698, 0.2
        %v2731 = vmul.f32 %v2699, 0.2
        %v2732 = vmul.f32 %v2700, 0.2
        %v2733 = vmul.f32 %v2701, 0.2
        %v2734 = vmul.f32 %v2702, 0.2
        %v2735 = vmul.f32 %v2703, 0.2
        %v2736 = vmul.f32 %v2704, 0.2
        %v2737 = vmul.f32 %v2705, 0.2
        %v2738 = vmul.f32 %v2706, 0.2
        %v2739 = vmul.f32 %v2707, 0.2
        %v2740 = vmul.f32 %v2708, 0.2
        %v2741 = vmul.f32 %v2709, 0.2
        %v2742 = vmul.f32 %v2710, 0.2
        %v2743 = vmul.f32 %v2711, 0.2
        %v2744 = vmul.f32 %v2712, 0.2
        %v2745 = vmul.f32 %v2713, 0.2
        %v2746 = vmul.f32 %v2714, 0.2
        %v2747 = vmul.f32 %v2715, 0.2
        %v2748 = vmul.f32 %v2716, 0.2
        %v2749 = vmul.f32 %v2717, 0.2
        %v2750 = vmul.f32 %v2718, 0.2
        %v2751 = vmul.f32 %v2719, 0.2
        %v2752 = vmul.f32 %v2720, 0.2
        %v2753 = vmul.f32 %v2721, 0.2
        %v2754 = vmul.f32 %v2722, 0.2
        %v2755 = vmul.f32 %v2723, 0.2
        %v2756 = vmax.f32 %v2692, %v2724
        %v2757 = vmax.f32 %v2693, %v2725
        %v2758 = vmax.f32 %v2694, %v2726
        %v2759 = vmax.f32 %v2695, %v2727
        %v2760 = vmax.f32 %v2696, %v2728
        %v2761 = vmax.f32 %v2697, %v2729
        %v2762 = vmax.f32 %v2698, %v2730
        %v2763 = vmax.f32 %v2699, %v2731
        %v2764 = vmax.f32 %v2700, %v2732
        %v2765 = vmax.f32 %v2701, %v2733
        %v2766 = vmax.f32 %v2702, %v2734
        %v2767 = vmax.f32 %v2703, %v2735
        %v2768 = vmax.f32 %v2704, %v2736
        %v2769 = vmax.f32 %v2705, %v2737
        %v2770 = vmax.f32 %v2706, %v2738
        %v2771 = vmax.f32 %v2707, %v2739
        %v2772 = vmax.f32 %v2708, %v2740
        %v2773 = vmax.f32 %v2709, %v2741
        %v2774 = vmax.f32 %v2710, %v2742
        %v2775 = vmax.f32 %v2711, %v2743
        %v2776 = vmax.f32 %v2712, %v2744
        %v2777 = vmax.f32 %v2713, %v2745
        %v2778 = vmax.f32 %v2714, %v2746
        %v2779 = vmax.f32 %v2715, %v2747
        %v2780 = vmax.f32 %v2716, %v2748
        %v2781 = vmax.f32 %v2717, %v2749
        %v2782 = vmax.f32 %v2718, %v2750
        %v2783 = vmax.f32 %v2719, %v2751
        %v2784 = vmax.f32 %v2720, %v2752
        %v2785 = vmax.f32 %v2721, %v2753
        %v2786 = vmax.f32 %v2722, %v2754
        %v2787 = vmax.f32 %v2723, %v2755
        %v2788 = vmul.f32 %v2756, 1.4142135
        %v2789 = vmul.f32 %v2757, 1.4142135
        %v2790 = vmul.f32 %v2758, 1.4142135
        %v2791 = vmul.f32 %v2759, 1.4142135
        %v2792 = vmul.f32 %v2760, 1.4142135
        %v2793 = vmul.f32 %v2761, 1.4142135
        %v2794 = vmul.f32 %v2762, 1.4142135
        %v2795 = vmul.f32 %v2763, 1.4142135
        %v2796 = vmul.f32 %v2764, 1.4142135
        %v2797 = vmul.f32 %v2765, 1.4142135
        %v2798 = vmul.f32 %v2766, 1.4142135
        %v2799 = vmul.f32 %v2767, 1.4142135
        %v2800 = vmul.f32 %v2768, 1.4142135
        %v2801 = vmul.f32 %v2769, 1.4142135
        %v2802 = vmul.f32 %v2770, 1.4142135
        %v2803 = vmul.f32 %v2771, 1.4142135
        %v2804 = vmul.f32 %v2772, 1.4142135
        %v2805 = vmul.f32 %v2773, 1.4142135
        %v2806 = vmul.f32 %v2774, 1.4142135
        %v2807 = vmul.f32 %v2775, 1.4142135
        %v2808 = vmul.f32 %v2776, 1.4142135
        %v2809 = vmul.f32 %v2777, 1.4142135
        %v2810 = vmul.f32 %v2778, 1.4142135
        %v2811 = vmul.f32 %v2779, 1.4142135
        %v2812 = vmul.f32 %v2780, 1.4142135
        %v2813 = vmul.f32 %v2781, 1.4142135
        %v2814 = vmul.f32 %v2782, 1.4142135
        %v2815 = vmul.f32 %v2783, 1.4142135
        %v2816 = vmul.f32 %v2784, 1.4142135
        %v2817 = vmul.f32 %v2785, 1.4142135
        %v2818 = vmul.f32 %v2786, 1.4142135
        %v2819 = vmul.f32 %v2787, 1.4142135
        %2820 = vst.msk [vmem:[#allocation3] sm:$0xff] %vm1249, 0.0
        %2821 = vst.msk [vmem:[#allocation3 + $0x8] sm:$0xff] %vm1249, 0.0
        %vm2822 = vcmask 189440
        %2823 = vst.msk [vmem:[#allocation3 + $0x10] sm:$0x3] %vm2822, 0.0
        %s2824 = scalar_lea.vmem [#allocation3], 24
        %2825 = vst.msk [vmem:[%s2824] sm:$0xff] %vm1249, 0.0
        %2826 = vst.msk [vmem:[%s2824 + $0x8] sm:$0xff] %vm1249, 0.0
        %2827 = vst.msk [vmem:[%s2824 + $0x10] sm:$0x3] %vm2822, 0.0
        %s2828 = scalar_lea.vmem [#allocation3], 432
        %2829 = vst.msk [vmem:[%s2828] sm:$0xff] %vm1249, 0.0
        %2830 = vst.msk [vmem:[%s2828 + $0x8] sm:$0xff] %vm1249, 0.0
        %2831 = vst.msk [vmem:[%s2828 + $0x10] sm:$0x3] %vm2822, 0.0
        %s2832 = scalar_lea.vmem [#allocation3], 456
        %2833 = vst.msk [vmem:[%s2832] sm:$0xff] %vm1249, 0.0
        %2834 = vst.msk [vmem:[%s2832 + $0x8] sm:$0xff] %vm1249, 0.0
        %2835 = vst.msk [vmem:[%s2832 + $0x10] sm:$0x3] %vm2822, 0.0
        %s2836 = scalar_lea.vmem [#allocation3], 48
        %vm2837 = vcmask 58368
        %2838 = vst.msk [vmem:[%s2836] sm:$0x3] %vm2837, 0.0
        %2839 = vst.msk [vmem:[%s2836 + $0x18] sm:$0x3] %vm2837, 0.0
        %2840 = vst.msk [vmem:[%s2836 + $0x30] sm:$0x3] %vm2837, 0.0
        %2841 = vst.msk [vmem:[%s2836 + $0x48] sm:$0x3] %vm2837, 0.0
        %2842 = vst.msk [vmem:[%s2836 + $0x60] sm:$0x3] %vm2837, 0.0
        %2843 = vst.msk [vmem:[%s2836 + $0x78] sm:$0x3] %vm2837, 0.0
        %2844 = vst.msk [vmem:[%s2836 + $0x90] sm:$0x3] %vm2837, 0.0
        %2845 = vst.msk [vmem:[%s2836 + $0xa8] sm:$0x3] %vm2837, 0.0
        %2846 = vst.msk [vmem:[%s2836 + $0xc0] sm:$0x3] %vm2837, 0.0
        %2847 = vst.msk [vmem:[%s2836 + $0xd8] sm:$0x3] %vm2837, 0.0
        %2848 = vst.msk [vmem:[%s2836 + $0xf0] sm:$0x3] %vm2837, 0.0
        %2849 = vst.msk [vmem:[%s2836 + $0x108] sm:$0x3] %vm2837, 0.0
        %2850 = vst.msk [vmem:[%s2836 + $0x120] sm:$0x3] %vm2837, 0.0
        %2851 = vst.msk [vmem:[%s2836 + $0x138] sm:$0x3] %vm2837, 0.0
        %2852 = vst.msk [vmem:[%s2836 + $0x150] sm:$0x3] %vm2837, 0.0
        %2853 = vst.msk [vmem:[%s2836 + $0x168] sm:$0x3] %vm2837, 0.0
        %vm2854 = vcmask 122944
        %2855 = vst.msk [vmem:[%s2836] sm:$0x1] %vm2854, 0.0
        %2856 = vst.msk [vmem:[%s2836 + $0x18] sm:$0x1] %vm2854, 0.0
        %2857 = vst.msk [vmem:[%s2836 + $0x30] sm:$0x1] %vm2854, 0.0
        %2858 = vst.msk [vmem:[%s2836 + $0x48] sm:$0x1] %vm2854, 0.0
        %2859 = vst.msk [vmem:[%s2836 + $0x60] sm:$0x1] %vm2854, 0.0
        %2860 = vst.msk [vmem:[%s2836 + $0x78] sm:$0x1] %vm2854, 0.0
        %2861 = vst.msk [vmem:[%s2836 + $0x90] sm:$0x1] %vm2854, 0.0
        %2862 = vst.msk [vmem:[%s2836 + $0xa8] sm:$0x1] %vm2854, 0.0
        %2863 = vst.msk [vmem:[%s2836 + $0xc0] sm:$0x1] %vm2854, 0.0
        %2864 = vst.msk [vmem:[%s2836 + $0xd8] sm:$0x1] %vm2854, 0.0
        %2865 = vst.msk [vmem:[%s2836 + $0xf0] sm:$0x1] %vm2854, 0.0
        %2866 = vst.msk [vmem:[%s2836 + $0x108] sm:$0x1] %vm2854, 0.0
        %2867 = vst.msk [vmem:[%s2836 + $0x120] sm:$0x1] %vm2854, 0.0
        %2868 = vst.msk [vmem:[%s2836 + $0x138] sm:$0x1] %vm2854, 0.0
        %2869 = vst.msk [vmem:[%s2836 + $0x150] sm:$0x1] %vm2854, 0.0
        %2870 = vst.msk [vmem:[%s2836 + $0x168] sm:$0x1] %vm2854, 0.0
        %2871 = vst.msk [vmem:[%s2836 + $0x11] sm:$0x1] %vm2854, 0.0
        %2872 = vst.msk [vmem:[%s2836 + $0x29] sm:$0x1] %vm2854, 0.0
        %2873 = vst.msk [vmem:[%s2836 + $0x41] sm:$0x1] %vm2854, 0.0
        %2874 = vst.msk [vmem:[%s2836 + $0x59] sm:$0x1] %vm2854, 0.0
        %2875 = vst.msk [vmem:[%s2836 + $0x71] sm:$0x1] %vm2854, 0.0
        %2876 = vst.msk [vmem:[%s2836 + $0x89] sm:$0x1] %vm2854, 0.0
        %2877 = vst.msk [vmem:[%s2836 + $0xa1] sm:$0x1] %vm2854, 0.0
        %2878 = vst.msk [vmem:[%s2836 + $0xb9] sm:$0x1] %vm2854, 0.0
        %2879 = vst.msk [vmem:[%s2836 + $0xd1] sm:$0x1] %vm2854, 0.0
        %2880 = vst.msk [vmem:[%s2836 + $0xe9] sm:$0x1] %vm2854, 0.0
        %2881 = vst.msk [vmem:[%s2836 + $0x101] sm:$0x1] %vm2854, 0.0
        %2882 = vst.msk [vmem:[%s2836 + $0x119] sm:$0x1] %vm2854, 0.0
        %2883 = vst.msk [vmem:[%s2836 + $0x131] sm:$0x1] %vm2854, 0.0
        %2884 = vst.msk [vmem:[%s2836 + $0x149] sm:$0x1] %vm2854, 0.0
        %2885 = vst.msk [vmem:[%s2836 + $0x161] sm:$0x1] %vm2854, 0.0
        %2886 = vst.msk [vmem:[%s2836 + $0x179] sm:$0x1] %vm2854, 0.0
        %vm2887 = vcmask 189568
        %2888 = vst.msk [vmem:[%s2836 + $0x10] sm:$0x3] %vm2887, 0.0
        %2889 = vst.msk [vmem:[%s2836 + $0x28] sm:$0x3] %vm2887, 0.0
        %2890 = vst.msk [vmem:[%s2836 + $0x40] sm:$0x3] %vm2887, 0.0
        %2891 = vst.msk [vmem:[%s2836 + $0x58] sm:$0x3] %vm2887, 0.0
        %2892 = vst.msk [vmem:[%s2836 + $0x70] sm:$0x3] %vm2887, 0.0
        %2893 = vst.msk [vmem:[%s2836 + $0x88] sm:$0x3] %vm2887, 0.0
        %2894 = vst.msk [vmem:[%s2836 + $0xa0] sm:$0x3] %vm2887, 0.0
        %2895 = vst.msk [vmem:[%s2836 + $0xb8] sm:$0x3] %vm2887, 0.0
        %2896 = vst.msk [vmem:[%s2836 + $0xd0] sm:$0x3] %vm2887, 0.0
        %2897 = vst.msk [vmem:[%s2836 + $0xe8] sm:$0x3] %vm2887, 0.0
        %2898 = vst.msk [vmem:[%s2836 + $0x100] sm:$0x3] %vm2887, 0.0
        %2899 = vst.msk [vmem:[%s2836 + $0x118] sm:$0x3] %vm2887, 0.0
        %2900 = vst.msk [vmem:[%s2836 + $0x130] sm:$0x3] %vm2887, 0.0
        %2901 = vst.msk [vmem:[%s2836 + $0x148] sm:$0x3] %vm2887, 0.0
        %2902 = vst.msk [vmem:[%s2836 + $0x160] sm:$0x3] %vm2887, 0.0
        %2903 = vst.msk [vmem:[%s2836 + $0x178] sm:$0x3] %vm2887, 0.0
        %2904 = vst.msk [vmem:[%s2836 + $0x2] sm:$0xff] %vm927, %v2788
        %2905 = vst.msk [vmem:[%s2836 + $0xa] sm:$0xff] %vm927, %v2789
        %2906 = vst.msk [vmem:[%s2836 + $0x1a] sm:$0xff] %vm927, %v2790
        %2907 = vst.msk [vmem:[%s2836 + $0x22] sm:$0xff] %vm927, %v2791
        %2908 = vst.msk [vmem:[%s2836 + $0x32] sm:$0xff] %vm927, %v2792
        %2909 = vst.msk [vmem:[%s2836 + $0x3a] sm:$0xff] %vm927, %v2793
        %2910 = vst.msk [vmem:[%s2836 + $0x4a] sm:$0xff] %vm927, %v2794
        %2911 = vst.msk [vmem:[%s2836 + $0x52] sm:$0xff] %vm927, %v2795
        %2912 = vst.msk [vmem:[%s2836 + $0x62] sm:$0xff] %vm927, %v2796
        %2913 = vst.msk [vmem:[%s2836 + $0x6a] sm:$0xff] %vm927, %v2797
        %2914 = vst.msk [vmem:[%s2836 + $0x7a] sm:$0xff] %vm927, %v2798
        %2915 = vst.msk [vmem:[%s2836 + $0x82] sm:$0xff] %vm927, %v2799
        %2916 = vst.msk [vmem:[%s2836 + $0x92] sm:$0xff] %vm927, %v2800
        %2917 = vst.msk [vmem:[%s2836 + $0x9a] sm:$0xff] %vm927, %v2801
        %2918 = vst.msk [vmem:[%s2836 + $0xaa] sm:$0xff] %vm927, %v2802
        %2919 = vst.msk [vmem:[%s2836 + $0xb2] sm:$0xff] %vm927, %v2803
        %2920 = vst.msk [vmem:[%s2836 + $0xc2] sm:$0xff] %vm927, %v2804
        %2921 = vst.msk [vmem:[%s2836 + $0xca] sm:$0xff] %vm927, %v2805
        %2922 = vst.msk [vmem:[%s2836 + $0xda] sm:$0xff] %vm927, %v2806
        %2923 = vst.msk [vmem:[%s2836 + $0xe2] sm:$0xff] %vm927, %v2807
        %2924 = vst.msk [vmem:[%s2836 + $0xf2] sm:$0xff] %vm927, %v2808
        %2925 = vst.msk [vmem:[%s2836 + $0xfa] sm:$0xff] %vm927, %v2809
        %2926 = vst.msk [vmem:[%s2836 + $0x10a] sm:$0xff] %vm927, %v2810
        %2927 = vst.msk [vmem:[%s2836 + $0x112] sm:$0xff] %vm927, %v2811
        %2928 = vst.msk [vmem:[%s2836 + $0x122] sm:$0xff] %vm927, %v2812
        %2929 = vst.msk [vmem:[%s2836 + $0x12a] sm:$0xff] %vm927, %v2813
        %2930 = vst.msk [vmem:[%s2836 + $0x13a] sm:$0xff] %vm927, %v2814
        %2931 = vst.msk [vmem:[%s2836 + $0x142] sm:$0xff] %vm927, %v2815
        %2932 = vst.msk [vmem:[%s2836 + $0x152] sm:$0xff] %vm927, %v2816
        %2933 = vst.msk [vmem:[%s2836 + $0x15a] sm:$0xff] %vm927, %v2817
        %2934 = vst.msk [vmem:[%s2836 + $0x16a] sm:$0xff] %vm927, %v2818
        %2935 = vst.msk [vmem:[%s2836 + $0x172] sm:$0xff] %vm927, %v2819
        %2968 = vrot.lane.b32.xlu0 %v2788, 8
        %v2969 = vpop.permute.xlu0 %2968
        %2970 = vrot.lane.b32.xlu0 %v2789, 8
        %v2971 = vpop.permute.xlu0 %2970
        %2972 = vrot.lane.b32.xlu0 %v2790, 8
        %v2973 = vpop.permute.xlu0 %2972
        %2974 = vrot.lane.b32.xlu0 %v2791, 8
        %v2975 = vpop.permute.xlu0 %2974
        %2976 = vrot.lane.b32.xlu0 %v2792, 8
        %v2977 = vpop.permute.xlu0 %2976
        %2978 = vrot.lane.b32.xlu0 %v2793, 8
        %v2979 = vpop.permute.xlu0 %2978
        %2980 = vrot.lane.b32.xlu0 %v2794, 8
        %v2981 = vpop.permute.xlu0 %2980
        %2982 = vrot.lane.b32.xlu0 %v2795, 8
        %v2983 = vpop.permute.xlu0 %2982
        %2984 = vrot.lane.b32.xlu0 %v2796, 8
        %v2985 = vpop.permute.xlu0 %2984
        %2986 = vrot.lane.b32.xlu0 %v2797, 8
        %v2987 = vpop.permute.xlu0 %2986
        %2988 = vrot.lane.b32.xlu0 %v2798, 8
        %v2989 = vpop.permute.xlu0 %2988
        %2990 = vrot.lane.b32.xlu0 %v2799, 8
        %v2991 = vpop.permute.xlu0 %2990
        %2992 = vrot.lane.b32.xlu0 %v2800, 8
        %v2993 = vpop.permute.xlu0 %2992
        %2994 = vrot.lane.b32.xlu0 %v2801, 8
        %v2995 = vpop.permute.xlu0 %2994
        %2996 = vrot.lane.b32.xlu0 %v2802, 8
        %v2997 = vpop.permute.xlu0 %2996
        %2998 = vrot.lane.b32.xlu0 %v2803, 8
        %v2999 = vpop.permute.xlu0 %2998
        %3000 = vrot.lane.b32.xlu0 %v2804, 8
        %v3001 = vpop.permute.xlu0 %3000
        %3002 = vrot.lane.b32.xlu0 %v2805, 8
        %v3003 = vpop.permute.xlu0 %3002
        %3004 = vrot.lane.b32.xlu0 %v2806, 8
        %v3005 = vpop.permute.xlu0 %3004
        %3006 = vrot.lane.b32.xlu0 %v2807, 8
        %v3007 = vpop.permute.xlu0 %3006
        %3008 = vrot.lane.b32.xlu0 %v2808, 8
        %v3009 = vpop.permute.xlu0 %3008
        %3010 = vrot.lane.b32.xlu0 %v2809, 8
        %v3011 = vpop.permute.xlu0 %3010
        %3012 = vrot.lane.b32.xlu0 %v2810, 8
        %v3013 = vpop.permute.xlu0 %3012
        %3014 = vrot.lane.b32.xlu0 %v2811, 8
        %v3015 = vpop.permute.xlu0 %3014
        %3016 = vrot.lane.b32.xlu0 %v2812, 8
        %v3017 = vpop.permute.xlu0 %3016
        %3018 = vrot.lane.b32.xlu0 %v2813, 8
        %v3019 = vpop.permute.xlu0 %3018
        %3020 = vrot.lane.b32.xlu0 %v2814, 8
        %v3021 = vpop.permute.xlu0 %3020
        %3022 = vrot.lane.b32.xlu0 %v2815, 8
        %v3023 = vpop.permute.xlu0 %3022
        %3024 = vrot.lane.b32.xlu0 %v2816, 8
        %v3025 = vpop.permute.xlu0 %3024
        %3026 = vrot.lane.b32.xlu0 %v2817, 8
        %v3027 = vpop.permute.xlu0 %3026
        %3028 = vrot.lane.b32.xlu0 %v2818, 8
        %v3029 = vpop.permute.xlu0 %3028
        %3030 = vrot.lane.b32.xlu0 %v2819, 8
        %v3031 = vpop.permute.xlu0 %3030
        %3064 = vst.msk [vmem:[%s2836 + $0x1] sm:$0xff] %vm1419, %v2969
        %3065 = vst.msk [vmem:[%s2836 + $0x9] sm:$0xff] %vm1419, %v2971
        %3066 = vst.msk [vmem:[%s2836 + $0x19] sm:$0xff] %vm1419, %v2973
        %3067 = vst.msk [vmem:[%s2836 + $0x21] sm:$0xff] %vm1419, %v2975
        %3068 = vst.msk [vmem:[%s2836 + $0x31] sm:$0xff] %vm1419, %v2977
        %3069 = vst.msk [vmem:[%s2836 + $0x39] sm:$0xff] %vm1419, %v2979
        %3070 = vst.msk [vmem:[%s2836 + $0x49] sm:$0xff] %vm1419, %v2981
        %3071 = vst.msk [vmem:[%s2836 + $0x51] sm:$0xff] %vm1419, %v2983
        %3072 = vst.msk [vmem:[%s2836 + $0x61] sm:$0xff] %vm1419, %v2985
        %3073 = vst.msk [vmem:[%s2836 + $0x69] sm:$0xff] %vm1419, %v2987
        %3074 = vst.msk [vmem:[%s2836 + $0x79] sm:$0xff] %vm1419, %v2989
        %3075 = vst.msk [vmem:[%s2836 + $0x81] sm:$0xff] %vm1419, %v2991
        %3076 = vst.msk [vmem:[%s2836 + $0x91] sm:$0xff] %vm1419, %v2993
        %3077 = vst.msk [vmem:[%s2836 + $0x99] sm:$0xff] %vm1419, %v2995
        %3078 = vst.msk [vmem:[%s2836 + $0xa9] sm:$0xff] %vm1419, %v2997
        %3079 = vst.msk [vmem:[%s2836 + $0xb1] sm:$0xff] %vm1419, %v2999
        %3080 = vst.msk [vmem:[%s2836 + $0xc1] sm:$0xff] %vm1419, %v3001
        %3081 = vst.msk [vmem:[%s2836 + $0xc9] sm:$0xff] %vm1419, %v3003
        %3082 = vst.msk [vmem:[%s2836 + $0xd9] sm:$0xff] %vm1419, %v3005
        %3083 = vst.msk [vmem:[%s2836 + $0xe1] sm:$0xff] %vm1419, %v3007
        %3084 = vst.msk [vmem:[%s2836 + $0xf1] sm:$0xff] %vm1419, %v3009
        %3085 = vst.msk [vmem:[%s2836 + $0xf9] sm:$0xff] %vm1419, %v3011
        %3086 = vst.msk [vmem:[%s2836 + $0x109] sm:$0xff] %vm1419, %v3013
        %3087 = vst.msk [vmem:[%s2836 + $0x111] sm:$0xff] %vm1419, %v3015
        %3088 = vst.msk [vmem:[%s2836 + $0x121] sm:$0xff] %vm1419, %v3017
        %3089 = vst.msk [vmem:[%s2836 + $0x129] sm:$0xff] %vm1419, %v3019
        %3090 = vst.msk [vmem:[%s2836 + $0x139] sm:$0xff] %vm1419, %v3021
        %3091 = vst.msk [vmem:[%s2836 + $0x141] sm:$0xff] %vm1419, %v3023
        %3092 = vst.msk [vmem:[%s2836 + $0x151] sm:$0xff] %vm1419, %v3025
        %3093 = vst.msk [vmem:[%s2836 + $0x159] sm:$0xff] %vm1419, %v3027
        %3094 = vst.msk [vmem:[%s2836 + $0x169] sm:$0xff] %vm1419, %v3029
        %3095 = vst.msk [vmem:[%s2836 + $0x171] sm:$0xff] %vm1419, %v3031
        %3096 = vrot.lane.b32.xlu0 %v2788, 16
        %v3097 = vpop.permute.xlu0 %3096
        %3098 = vrot.lane.b32.xlu0 %v2789, 16
        %v3099 = vpop.permute.xlu0 %3098
        %3100 = vrot.lane.b32.xlu0 %v2790, 16
        %v3101 = vpop.permute.xlu0 %3100
        %3102 = vrot.lane.b32.xlu0 %v2791, 16
        %v3103 = vpop.permute.xlu0 %3102
        %3104 = vrot.lane.b32.xlu0 %v2792, 16
        %v3105 = vpop.permute.xlu0 %3104
        %3106 = vrot.lane.b32.xlu0 %v2793, 16
        %v3107 = vpop.permute.xlu0 %3106
        %3108 = vrot.lane.b32.xlu0 %v2794, 16
        %v3109 = vpop.permute.xlu0 %3108
        %3110 = vrot.lane.b32.xlu0 %v2795, 16
        %v3111 = vpop.permute.xlu0 %3110
        %3112 = vrot.lane.b32.xlu0 %v2796, 16
        %v3113 = vpop.permute.xlu0 %3112
        %3114 = vrot.lane.b32.xlu0 %v2797, 16
        %v3115 = vpop.permute.xlu0 %3114
        %3116 = vrot.lane.b32.xlu0 %v2798, 16
        %v3117 = vpop.permute.xlu0 %3116
        %3118 = vrot.lane.b32.xlu0 %v2799, 16
        %v3119 = vpop.permute.xlu0 %3118
        %3120 = vrot.lane.b32.xlu0 %v2800, 16
        %v3121 = vpop.permute.xlu0 %3120
        %3122 = vrot.lane.b32.xlu0 %v2801, 16
        %v3123 = vpop.permute.xlu0 %3122
        %3124 = vrot.lane.b32.xlu0 %v2802, 16
        %v3125 = vpop.permute.xlu0 %3124
        %3126 = vrot.lane.b32.xlu0 %v2803, 16
        %v3127 = vpop.permute.xlu0 %3126
        %3128 = vrot.lane.b32.xlu0 %v2804, 16
        %v3129 = vpop.permute.xlu0 %3128
        %3130 = vrot.lane.b32.xlu0 %v2805, 16
        %v3131 = vpop.permute.xlu0 %3130
        %3132 = vrot.lane.b32.xlu0 %v2806, 16
        %v3133 = vpop.permute.xlu0 %3132
        %3134 = vrot.lane.b32.xlu0 %v2807, 16
        %v3135 = vpop.permute.xlu0 %3134
        %3136 = vrot.lane.b32.xlu0 %v2808, 16
        %v3137 = vpop.permute.xlu0 %3136
        %3138 = vrot.lane.b32.xlu0 %v2809, 16
        %v3139 = vpop.permute.xlu0 %3138
        %3140 = vrot.lane.b32.xlu0 %v2810, 16
        %v3141 = vpop.permute.xlu0 %3140
        %3142 = vrot.lane.b32.xlu0 %v2811, 16
        %v3143 = vpop.permute.xlu0 %3142
        %3144 = vrot.lane.b32.xlu0 %v2812, 16
        %v3145 = vpop.permute.xlu0 %3144
        %3146 = vrot.lane.b32.xlu0 %v2813, 16
        %v3147 = vpop.permute.xlu0 %3146
        %3148 = vrot.lane.b32.xlu0 %v2814, 16
        %v3149 = vpop.permute.xlu0 %3148
        %3150 = vrot.lane.b32.xlu0 %v2815, 16
        %v3151 = vpop.permute.xlu0 %3150
        %3152 = vrot.lane.b32.xlu0 %v2816, 16
        %v3153 = vpop.permute.xlu0 %3152
        %3154 = vrot.lane.b32.xlu0 %v2817, 16
        %v3155 = vpop.permute.xlu0 %3154
        %3156 = vrot.lane.b32.xlu0 %v2818, 16
        %v3157 = vpop.permute.xlu0 %3156
        %3158 = vrot.lane.b32.xlu0 %v2819, 16
        %v3159 = vpop.permute.xlu0 %3158
        %3192 = vst.msk [vmem:[%s2836] sm:$0xff] %vm1550, %v3097
        %3193 = vst.msk [vmem:[%s2836 + $0x8] sm:$0xff] %vm1550, %v3099
        %3194 = vst.msk [vmem:[%s2836 + $0x18] sm:$0xff] %vm1550, %v3101
        %3195 = vst.msk [vmem:[%s2836 + $0x20] sm:$0xff] %vm1550, %v3103
        %3196 = vst.msk [vmem:[%s2836 + $0x30] sm:$0xff] %vm1550, %v3105
        %3197 = vst.msk [vmem:[%s2836 + $0x38] sm:$0xff] %vm1550, %v3107
        %3198 = vst.msk [vmem:[%s2836 + $0x48] sm:$0xff] %vm1550, %v3109
        %3199 = vst.msk [vmem:[%s2836 + $0x50] sm:$0xff] %vm1550, %v3111
        %3200 = vst.msk [vmem:[%s2836 + $0x60] sm:$0xff] %vm1550, %v3113
        %3201 = vst.msk [vmem:[%s2836 + $0x68] sm:$0xff] %vm1550, %v3115
        %3202 = vst.msk [vmem:[%s2836 + $0x78] sm:$0xff] %vm1550, %v3117
        %3203 = vst.msk [vmem:[%s2836 + $0x80] sm:$0xff] %vm1550, %v3119
        %3204 = vst.msk [vmem:[%s2836 + $0x90] sm:$0xff] %vm1550, %v3121
        %3205 = vst.msk [vmem:[%s2836 + $0x98] sm:$0xff] %vm1550, %v3123
        %3206 = vst.msk [vmem:[%s2836 + $0xa8] sm:$0xff] %vm1550, %v3125
        %3207 = vst.msk [vmem:[%s2836 + $0xb0] sm:$0xff] %vm1550, %v3127
        %3208 = vst.msk [vmem:[%s2836 + $0xc0] sm:$0xff] %vm1550, %v3129
        %3209 = vst.msk [vmem:[%s2836 + $0xc8] sm:$0xff] %vm1550, %v3131
        %3210 = vst.msk [vmem:[%s2836 + $0xd8] sm:$0xff] %vm1550, %v3133
        %3211 = vst.msk [vmem:[%s2836 + $0xe0] sm:$0xff] %vm1550, %v3135
        %3212 = vst.msk [vmem:[%s2836 + $0xf0] sm:$0xff] %vm1550, %v3137
        %3213 = vst.msk [vmem:[%s2836 + $0xf8] sm:$0xff] %vm1550, %v3139
        %3214 = vst.msk [vmem:[%s2836 + $0x108] sm:$0xff] %vm1550, %v3141
        %3215 = vst.msk [vmem:[%s2836 + $0x110] sm:$0xff] %vm1550, %v3143
        %3216 = vst.msk [vmem:[%s2836 + $0x120] sm:$0xff] %vm1550, %v3145
        %3217 = vst.msk [vmem:[%s2836 + $0x128] sm:$0xff] %vm1550, %v3147
        %3218 = vst.msk [vmem:[%s2836 + $0x138] sm:$0xff] %vm1550, %v3149
        %3219 = vst.msk [vmem:[%s2836 + $0x140] sm:$0xff] %vm1550, %v3151
        %3220 = vst.msk [vmem:[%s2836 + $0x150] sm:$0xff] %vm1550, %v3153
        %3221 = vst.msk [vmem:[%s2836 + $0x158] sm:$0xff] %vm1550, %v3155
        %3222 = vst.msk [vmem:[%s2836 + $0x168] sm:$0xff] %vm1550, %v3157
        %3223 = vst.msk [vmem:[%s2836 + $0x170] sm:$0xff] %vm1550, %v3159
        %v3224 = vld [vmem:[#allocation3] sm:$0xff]
        %v3225 = vld [vmem:[#allocation3 + $0x8] sm:$0xff]
        %v3226 = vld [vmem:[#allocation3 + $0x10] sm:$0x3]
        %v3227 = vld [vmem:[#allocation3 + $0x18] sm:$0xff]
        %v3228 = vld [vmem:[#allocation3 + $0x20] sm:$0xff]
        %v3229 = vld [vmem:[#allocation3 + $0x28] sm:$0x3]
        %v3230 = vld [vmem:[#allocation3 + $0x30] sm:$0xff]
        %v3231 = vld [vmem:[#allocation3 + $0x38] sm:$0xff]
        %v3232 = vld [vmem:[#allocation3 + $0x40] sm:$0x3]
        %v3233 = vld [vmem:[#allocation3 + $0x48] sm:$0xff]
        %v3234 = vld [vmem:[#allocation3 + $0x50] sm:$0xff]
        %v3235 = vld [vmem:[#allocation3 + $0x58] sm:$0x3]
        %v3236 = vld [vmem:[#allocation3 + $0x60] sm:$0xff]
        %v3237 = vld [vmem:[#allocation3 + $0x68] sm:$0xff]
        %v3238 = vld [vmem:[#allocation3 + $0x70] sm:$0x3]
        %v3239 = vld [vmem:[#allocation3 + $0x78] sm:$0xff]
        %v3240 = vld [vmem:[#allocation3 + $0x80] sm:$0xff]
        %v3241 = vld [vmem:[#allocation3 + $0x88] sm:$0x3]
        %v3242 = vld [vmem:[#allocation3 + $0x90] sm:$0xff]
        %v3243 = vld [vmem:[#allocation3 + $0x98] sm:$0xff]
        %v3244 = vld [vmem:[#allocation3 + $0xa0] sm:$0x3]
        %v3245 = vld [vmem:[#allocation3 + $0xa8] sm:$0xff]
        %v3246 = vld [vmem:[#allocation3 + $0xb0] sm:$0xff]
        %v3247 = vld [vmem:[#allocation3 + $0xb8] sm:$0x3]
        %v3248 = vld [vmem:[#allocation3 + $0xc0] sm:$0xff]
        %v3249 = vld [vmem:[#allocation3 + $0xc8] sm:$0xff]
        %v3250 = vld [vmem:[#allocation3 + $0xd0] sm:$0x3]
        %v3251 = vld [vmem:[#allocation3 + $0xd8] sm:$0xff]
        %v3252 = vld [vmem:[#allocation3 + $0xe0] sm:$0xff]
        %v3253 = vld [vmem:[#allocation3 + $0xe8] sm:$0x3]
        %v3254 = vld [vmem:[#allocation3 + $0xf0] sm:$0xff]
        %v3255 = vld [vmem:[#allocation3 + $0xf8] sm:$0xff]
        %v3256 = vld [vmem:[#allocation3 + $0x100] sm:$0x3]
        %v3257 = vld [vmem:[#allocation3 + $0x108] sm:$0xff]
        %v3258 = vld [vmem:[#allocation3 + $0x110] sm:$0xff]
        %v3259 = vld [vmem:[#allocation3 + $0x118] sm:$0x3]
        %v3260 = vld [vmem:[#allocation3 + $0x120] sm:$0xff]
        %v3261 = vld [vmem:[#allocation3 + $0x128] sm:$0xff]
        %v3262 = vld [vmem:[#allocation3 + $0x130] sm:$0x3]
        %v3263 = vld [vmem:[#allocation3 + $0x138] sm:$0xff]
        %v3264 = vld [vmem:[#allocation3 + $0x140] sm:$0xff]
        %v3265 = vld [vmem:[#allocation3 + $0x148] sm:$0x3]
        %v3266 = vld [vmem:[#allocation3 + $0x150] sm:$0xff]
        %v3267 = vld [vmem:[#allocation3 + $0x158] sm:$0xff]
        %v3268 = vld [vmem:[#allocation3 + $0x160] sm:$0x3]
        %v3269 = vld [vmem:[#allocation3 + $0x168] sm:$0xff]
        %v3270 = vld [vmem:[#allocation3 + $0x170] sm:$0xff]
        %v3271 = vld [vmem:[#allocation3 + $0x178] sm:$0x3]
        %v3272 = vld [vmem:[#allocation3 + $0x180] sm:$0xff]
        %v3273 = vld [vmem:[#allocation3 + $0x188] sm:$0xff]
        %v3274 = vld [vmem:[#allocation3 + $0x190] sm:$0x3]
        %v3275 = vld [vmem:[#allocation3 + $0x198] sm:$0xff]
        %v3276 = vld [vmem:[#allocation3 + $0x1a0] sm:$0xff]
        %v3277 = vld [vmem:[#allocation3 + $0x1a8] sm:$0x3]
        %v3332 = vcombine.high %v3224, %v3224
        %v3334 = vunpack.c.l.s4 1983009808
        %v3335 = vunpack.c.0.s8 %v3334
        %v3336 = vlaneseq
        %v3337 = vshrl.u32 %v3336, 7
        %v3338 = vsub.s32 %v3335, %v3337
        %v3339 = vrot.slane %v3224, %v3338
        %v3341 = vunpack.c.l.s4 1983009808
        %v3342 = vunpack.c.0.s8 %v3341
        %v3343 = vlaneseq
        %v3344 = vshrl.u32 %v3343, 7
        %v3345 = vsub.s32 %v3342, %v3344
        %v3346 = vrot.slane %v3332, %v3345
        %v3347 = vcombine.high %v3339, %v3339
        %v3348 = vcombine.high %v3346, %v3346
        %v3349 = vcombine.high %v3225, %v3225
        %v3351 = vunpack.c.l.s4 1983009808
        %v3352 = vunpack.c.0.s8 %v3351
        %v3353 = vlaneseq
        %v3354 = vshrl.u32 %v3353, 7
        %v3355 = vsub.s32 %v3352, %v3354
        %v3356 = vrot.slane %v3225, %v3355
        %v3358 = vunpack.c.l.s4 1983009808
        %v3359 = vunpack.c.0.s8 %v3358
        %v3360 = vlaneseq
        %v3361 = vshrl.u32 %v3360, 7
        %v3362 = vsub.s32 %v3359, %v3361
        %v3363 = vrot.slane %v3349, %v3362
        %v3364 = vcombine.high %v3356, %v3356
        %v3365 = vcombine.high %v3363, %v3363
        %v3367 = vunpack.c.l.s4 1983009808
        %v3368 = vunpack.c.0.s8 %v3367
        %v3369 = vlaneseq
        %v3370 = vshrl.u32 %v3369, 7
        %v3371 = vsub.s32 %v3368, %v3370
        %v3372 = vrot.slane %v3226, %v3371
        %v3373 = vcombine.high %v3227, %v3227
        %v3375 = vunpack.c.l.s4 1983009808
        %v3376 = vunpack.c.0.s8 %v3375
        %v3377 = vlaneseq
        %v3378 = vshrl.u32 %v3377, 7
        %v3379 = vsub.s32 %v3376, %v3378
        %v3380 = vrot.slane %v3227, %v3379
        %v3382 = vunpack.c.l.s4 1983009808
        %v3383 = vunpack.c.0.s8 %v3382
        %v3384 = vlaneseq
        %v3385 = vshrl.u32 %v3384, 7
        %v3386 = vsub.s32 %v3383, %v3385
        %v3387 = vrot.slane %v3373, %v3386
        %v3388 = vcombine.high %v3380, %v3380
        %v3389 = vcombine.high %v3387, %v3387
        %v3390 = vcombine.high %v3228, %v3228
        %v3392 = vunpack.c.l.s4 1983009808
        %v3393 = vunpack.c.0.s8 %v3392
        %v3394 = vlaneseq
        %v3395 = vshrl.u32 %v3394, 7
        %v3396 = vsub.s32 %v3393, %v3395
        %v3397 = vrot.slane %v3228, %v3396
        %v3399 = vunpack.c.l.s4 1983009808
        %v3400 = vunpack.c.0.s8 %v3399
        %v3401 = vlaneseq
        %v3402 = vshrl.u32 %v3401, 7
        %v3403 = vsub.s32 %v3400, %v3402
        %v3404 = vrot.slane %v3390, %v3403
        %v3405 = vcombine.high %v3397, %v3397
        %v3406 = vcombine.high %v3404, %v3404
        %v3408 = vunpack.c.l.s4 1983009808
        %v3409 = vunpack.c.0.s8 %v3408
        %v3410 = vlaneseq
        %v3411 = vshrl.u32 %v3410, 7
        %v3412 = vsub.s32 %v3409, %v3411
        %v3413 = vrot.slane %v3229, %v3412
        %v3414 = vcombine.high %v3230, %v3230
        %v3416 = vunpack.c.l.s4 1983009808
        %v3417 = vunpack.c.0.s8 %v3416
        %v3418 = vlaneseq
        %v3419 = vshrl.u32 %v3418, 7
        %v3420 = vsub.s32 %v3417, %v3419
        %v3421 = vrot.slane %v3230, %v3420
        %v3423 = vunpack.c.l.s4 1983009808
        %v3424 = vunpack.c.0.s8 %v3423
        %v3425 = vlaneseq
        %v3426 = vshrl.u32 %v3425, 7
        %v3427 = vsub.s32 %v3424, %v3426
        %v3428 = vrot.slane %v3414, %v3427
        %v3429 = vcombine.high %v3421, %v3421
        %v3430 = vcombine.high %v3428, %v3428
        %v3431 = vcombine.high %v3231, %v3231
        %v3433 = vunpack.c.l.s4 1983009808
        %v3434 = vunpack.c.0.s8 %v3433
        %v3435 = vlaneseq
        %v3436 = vshrl.u32 %v3435, 7
        %v3437 = vsub.s32 %v3434, %v3436
        %v3438 = vrot.slane %v3231, %v3437
        %v3440 = vunpack.c.l.s4 1983009808
        %v3441 = vunpack.c.0.s8 %v3440
        %v3442 = vlaneseq
        %v3443 = vshrl.u32 %v3442, 7
        %v3444 = vsub.s32 %v3441, %v3443
        %v3445 = vrot.slane %v3431, %v3444
        %v3446 = vcombine.high %v3438, %v3438
        %v3447 = vcombine.high %v3445, %v3445
        %v3449 = vunpack.c.l.s4 1983009808
        %v3450 = vunpack.c.0.s8 %v3449
        %v3451 = vlaneseq
        %v3452 = vshrl.u32 %v3451, 7
        %v3453 = vsub.s32 %v3450, %v3452
        %v3454 = vrot.slane %v3232, %v3453
        %v3455 = vcombine.high %v3233, %v3233
        %v3457 = vunpack.c.l.s4 1983009808
        %v3458 = vunpack.c.0.s8 %v3457
        %v3459 = vlaneseq
        %v3460 = vshrl.u32 %v3459, 7
        %v3461 = vsub.s32 %v3458, %v3460
        %v3462 = vrot.slane %v3233, %v3461
        %v3464 = vunpack.c.l.s4 1983009808
        %v3465 = vunpack.c.0.s8 %v3464
        %v3466 = vlaneseq
        %v3467 = vshrl.u32 %v3466, 7
        %v3468 = vsub.s32 %v3465, %v3467
        %v3469 = vrot.slane %v3455, %v3468
        %v3470 = vcombine.high %v3462, %v3462
        %v3471 = vcombine.high %v3469, %v3469
        %v3472 = vcombine.high %v3234, %v3234
        %v3474 = vunpack.c.l.s4 1983009808
        %v3475 = vunpack.c.0.s8 %v3474
        %v3476 = vlaneseq
        %v3477 = vshrl.u32 %v3476, 7
        %v3478 = vsub.s32 %v3475, %v3477
        %v3479 = vrot.slane %v3234, %v3478
        %v3481 = vunpack.c.l.s4 1983009808
        %v3482 = vunpack.c.0.s8 %v3481
        %v3483 = vlaneseq
        %v3484 = vshrl.u32 %v3483, 7
        %v3485 = vsub.s32 %v3482, %v3484
        %v3486 = vrot.slane %v3472, %v3485
        %v3487 = vcombine.high %v3479, %v3479
        %v3488 = vcombine.high %v3486, %v3486
        %v3490 = vunpack.c.l.s4 1983009808
        %v3491 = vunpack.c.0.s8 %v3490
        %v3492 = vlaneseq
        %v3493 = vshrl.u32 %v3492, 7
        %v3494 = vsub.s32 %v3491, %v3493
        %v3495 = vrot.slane %v3235, %v3494
        %v3496 = vcombine.high %v3236, %v3236
        %v3498 = vunpack.c.l.s4 1983009808
        %v3499 = vunpack.c.0.s8 %v3498
        %v3500 = vlaneseq
        %v3501 = vshrl.u32 %v3500, 7
        %v3502 = vsub.s32 %v3499, %v3501
        %v3503 = vrot.slane %v3236, %v3502
        %v3505 = vunpack.c.l.s4 1983009808
        %v3506 = vunpack.c.0.s8 %v3505
        %v3507 = vlaneseq
        %v3508 = vshrl.u32 %v3507, 7
        %v3509 = vsub.s32 %v3506, %v3508
        %v3510 = vrot.slane %v3496, %v3509
        %v3511 = vcombine.high %v3503, %v3503
        %v3512 = vcombine.high %v3510, %v3510
        %v3513 = vcombine.high %v3237, %v3237
        %v3515 = vunpack.c.l.s4 1983009808
        %v3516 = vunpack.c.0.s8 %v3515
        %v3517 = vlaneseq
        %v3518 = vshrl.u32 %v3517, 7
        %v3519 = vsub.s32 %v3516, %v3518
        %v3520 = vrot.slane %v3237, %v3519
        %v3522 = vunpack.c.l.s4 1983009808
        %v3523 = vunpack.c.0.s8 %v3522
        %v3524 = vlaneseq
        %v3525 = vshrl.u32 %v3524, 7
        %v3526 = vsub.s32 %v3523, %v3525
        %v3527 = vrot.slane %v3513, %v3526
        %v3528 = vcombine.high %v3520, %v3520
        %v3529 = vcombine.high %v3527, %v3527
        %v3531 = vunpack.c.l.s4 1983009808
        %v3532 = vunpack.c.0.s8 %v3531
        %v3533 = vlaneseq
        %v3534 = vshrl.u32 %v3533, 7
        %v3535 = vsub.s32 %v3532, %v3534
        %v3536 = vrot.slane %v3238, %v3535
        %v3537 = vcombine.high %v3239, %v3239
        %v3539 = vunpack.c.l.s4 1983009808
        %v3540 = vunpack.c.0.s8 %v3539
        %v3541 = vlaneseq
        %v3542 = vshrl.u32 %v3541, 7
        %v3543 = vsub.s32 %v3540, %v3542
        %v3544 = vrot.slane %v3239, %v3543
        %v3546 = vunpack.c.l.s4 1983009808
        %v3547 = vunpack.c.0.s8 %v3546
        %v3548 = vlaneseq
        %v3549 = vshrl.u32 %v3548, 7
        %v3550 = vsub.s32 %v3547, %v3549
        %v3551 = vrot.slane %v3537, %v3550
        %v3552 = vcombine.high %v3544, %v3544
        %v3553 = vcombine.high %v3551, %v3551
        %v3554 = vcombine.high %v3240, %v3240
        %v3556 = vunpack.c.l.s4 1983009808
        %v3557 = vunpack.c.0.s8 %v3556
        %v3558 = vlaneseq
        %v3559 = vshrl.u32 %v3558, 7
        %v3560 = vsub.s32 %v3557, %v3559
        %v3561 = vrot.slane %v3240, %v3560
        %v3563 = vunpack.c.l.s4 1983009808
        %v3564 = vunpack.c.0.s8 %v3563
        %v3565 = vlaneseq
        %v3566 = vshrl.u32 %v3565, 7
        %v3567 = vsub.s32 %v3564, %v3566
        %v3568 = vrot.slane %v3554, %v3567
        %v3569 = vcombine.high %v3561, %v3561
        %v3570 = vcombine.high %v3568, %v3568
        %v3572 = vunpack.c.l.s4 1983009808
        %v3573 = vunpack.c.0.s8 %v3572
        %v3574 = vlaneseq
        %v3575 = vshrl.u32 %v3574, 7
        %v3576 = vsub.s32 %v3573, %v3575
        %v3577 = vrot.slane %v3241, %v3576
        %v3578 = vcombine.high %v3242, %v3242
        %v3580 = vunpack.c.l.s4 1983009808
        %v3581 = vunpack.c.0.s8 %v3580
        %v3582 = vlaneseq
        %v3583 = vshrl.u32 %v3582, 7
        %v3584 = vsub.s32 %v3581, %v3583
        %v3585 = vrot.slane %v3242, %v3584
        %v3587 = vunpack.c.l.s4 1983009808
        %v3588 = vunpack.c.0.s8 %v3587
        %v3589 = vlaneseq
        %v3590 = vshrl.u32 %v3589, 7
        %v3591 = vsub.s32 %v3588, %v3590
        %v3592 = vrot.slane %v3578, %v3591
        %v3593 = vcombine.high %v3585, %v3585
        %v3594 = vcombine.high %v3592, %v3592
        %v3595 = vcombine.high %v3243, %v3243
        %v3597 = vunpack.c.l.s4 1983009808
        %v3598 = vunpack.c.0.s8 %v3597
        %v3599 = vlaneseq
        %v3600 = vshrl.u32 %v3599, 7
        %v3601 = vsub.s32 %v3598, %v3600
        %v3602 = vrot.slane %v3243, %v3601
        %v3604 = vunpack.c.l.s4 1983009808
        %v3605 = vunpack.c.0.s8 %v3604
        %v3606 = vlaneseq
        %v3607 = vshrl.u32 %v3606, 7
        %v3608 = vsub.s32 %v3605, %v3607
        %v3609 = vrot.slane %v3595, %v3608
        %v3610 = vcombine.high %v3602, %v3602
        %v3611 = vcombine.high %v3609, %v3609
        %v3613 = vunpack.c.l.s4 1983009808
        %v3614 = vunpack.c.0.s8 %v3613
        %v3615 = vlaneseq
        %v3616 = vshrl.u32 %v3615, 7
        %v3617 = vsub.s32 %v3614, %v3616
        %v3618 = vrot.slane %v3244, %v3617
        %v3619 = vcombine.high %v3245, %v3245
        %v3621 = vunpack.c.l.s4 1983009808
        %v3622 = vunpack.c.0.s8 %v3621
        %v3623 = vlaneseq
        %v3624 = vshrl.u32 %v3623, 7
        %v3625 = vsub.s32 %v3622, %v3624
        %v3626 = vrot.slane %v3245, %v3625
        %v3628 = vunpack.c.l.s4 1983009808
        %v3629 = vunpack.c.0.s8 %v3628
        %v3630 = vlaneseq
        %v3631 = vshrl.u32 %v3630, 7
        %v3632 = vsub.s32 %v3629, %v3631
        %v3633 = vrot.slane %v3619, %v3632
        %v3634 = vcombine.high %v3626, %v3626
        %v3635 = vcombine.high %v3633, %v3633
        %v3636 = vcombine.high %v3246, %v3246
        %v3638 = vunpack.c.l.s4 1983009808
        %v3639 = vunpack.c.0.s8 %v3638
        %v3640 = vlaneseq
        %v3641 = vshrl.u32 %v3640, 7
        %v3642 = vsub.s32 %v3639, %v3641
        %v3643 = vrot.slane %v3246, %v3642
        %v3645 = vunpack.c.l.s4 1983009808
        %v3646 = vunpack.c.0.s8 %v3645
        %v3647 = vlaneseq
        %v3648 = vshrl.u32 %v3647, 7
        %v3649 = vsub.s32 %v3646, %v3648
        %v3650 = vrot.slane %v3636, %v3649
        %v3651 = vcombine.high %v3643, %v3643
        %v3652 = vcombine.high %v3650, %v3650
        %v3654 = vunpack.c.l.s4 1983009808
        %v3655 = vunpack.c.0.s8 %v3654
        %v3656 = vlaneseq
        %v3657 = vshrl.u32 %v3656, 7
        %v3658 = vsub.s32 %v3655, %v3657
        %v3659 = vrot.slane %v3247, %v3658
        %v3660 = vcombine.high %v3248, %v3248
        %v3662 = vunpack.c.l.s4 1983009808
        %v3663 = vunpack.c.0.s8 %v3662
        %v3664 = vlaneseq
        %v3665 = vshrl.u32 %v3664, 7
        %v3666 = vsub.s32 %v3663, %v3665
        %v3667 = vrot.slane %v3248, %v3666
        %v3669 = vunpack.c.l.s4 1983009808
        %v3670 = vunpack.c.0.s8 %v3669
        %v3671 = vlaneseq
        %v3672 = vshrl.u32 %v3671, 7
        %v3673 = vsub.s32 %v3670, %v3672
        %v3674 = vrot.slane %v3660, %v3673
        %v3675 = vcombine.high %v3667, %v3667
        %v3676 = vcombine.high %v3674, %v3674
        %v3677 = vcombine.high %v3249, %v3249
        %v3679 = vunpack.c.l.s4 1983009808
        %v3680 = vunpack.c.0.s8 %v3679
        %v3681 = vlaneseq
        %v3682 = vshrl.u32 %v3681, 7
        %v3683 = vsub.s32 %v3680, %v3682
        %v3684 = vrot.slane %v3249, %v3683
        %v3686 = vunpack.c.l.s4 1983009808
        %v3687 = vunpack.c.0.s8 %v3686
        %v3688 = vlaneseq
        %v3689 = vshrl.u32 %v3688, 7
        %v3690 = vsub.s32 %v3687, %v3689
        %v3691 = vrot.slane %v3677, %v3690
        %v3692 = vcombine.high %v3684, %v3684
        %v3693 = vcombine.high %v3691, %v3691
        %v3695 = vunpack.c.l.s4 1983009808
        %v3696 = vunpack.c.0.s8 %v3695
        %v3697 = vlaneseq
        %v3698 = vshrl.u32 %v3697, 7
        %v3699 = vsub.s32 %v3696, %v3698
        %v3700 = vrot.slane %v3250, %v3699
        %v3701 = vcombine.high %v3251, %v3251
        %v3703 = vunpack.c.l.s4 1983009808
        %v3704 = vunpack.c.0.s8 %v3703
        %v3705 = vlaneseq
        %v3706 = vshrl.u32 %v3705, 7
        %v3707 = vsub.s32 %v3704, %v3706
        %v3708 = vrot.slane %v3251, %v3707
        %v3710 = vunpack.c.l.s4 1983009808
        %v3711 = vunpack.c.0.s8 %v3710
        %v3712 = vlaneseq
        %v3713 = vshrl.u32 %v3712, 7
        %v3714 = vsub.s32 %v3711, %v3713
        %v3715 = vrot.slane %v3701, %v3714
        %v3716 = vcombine.high %v3708, %v3708
        %v3717 = vcombine.high %v3715, %v3715
        %v3718 = vcombine.high %v3252, %v3252
        %v3720 = vunpack.c.l.s4 1983009808
        %v3721 = vunpack.c.0.s8 %v3720
        %v3722 = vlaneseq
        %v3723 = vshrl.u32 %v3722, 7
        %v3724 = vsub.s32 %v3721, %v3723
        %v3725 = vrot.slane %v3252, %v3724
        %v3727 = vunpack.c.l.s4 1983009808
        %v3728 = vunpack.c.0.s8 %v3727
        %v3729 = vlaneseq
        %v3730 = vshrl.u32 %v3729, 7
        %v3731 = vsub.s32 %v3728, %v3730
        %v3732 = vrot.slane %v3718, %v3731
        %v3733 = vcombine.high %v3725, %v3725
        %v3734 = vcombine.high %v3732, %v3732
        %v3736 = vunpack.c.l.s4 1983009808
        %v3737 = vunpack.c.0.s8 %v3736
        %v3738 = vlaneseq
        %v3739 = vshrl.u32 %v3738, 7
        %v3740 = vsub.s32 %v3737, %v3739
        %v3741 = vrot.slane %v3253, %v3740
        %v3742 = vcombine.high %v3254, %v3254
        %v3744 = vunpack.c.l.s4 1983009808
        %v3745 = vunpack.c.0.s8 %v3744
        %v3746 = vlaneseq
        %v3747 = vshrl.u32 %v3746, 7
        %v3748 = vsub.s32 %v3745, %v3747
        %v3749 = vrot.slane %v3254, %v3748
        %v3751 = vunpack.c.l.s4 1983009808
        %v3752 = vunpack.c.0.s8 %v3751
        %v3753 = vlaneseq
        %v3754 = vshrl.u32 %v3753, 7
        %v3755 = vsub.s32 %v3752, %v3754
        %v3756 = vrot.slane %v3742, %v3755
        %v3757 = vcombine.high %v3749, %v3749
        %v3758 = vcombine.high %v3756, %v3756
        %v3759 = vcombine.high %v3255, %v3255
        %v3761 = vunpack.c.l.s4 1983009808
        %v3762 = vunpack.c.0.s8 %v3761
        %v3763 = vlaneseq
        %v3764 = vshrl.u32 %v3763, 7
        %v3765 = vsub.s32 %v3762, %v3764
        %v3766 = vrot.slane %v3255, %v3765
        %v3768 = vunpack.c.l.s4 1983009808
        %v3769 = vunpack.c.0.s8 %v3768
        %v3770 = vlaneseq
        %v3771 = vshrl.u32 %v3770, 7
        %v3772 = vsub.s32 %v3769, %v3771
        %v3773 = vrot.slane %v3759, %v3772
        %v3774 = vcombine.high %v3766, %v3766
        %v3775 = vcombine.high %v3773, %v3773
        %v3777 = vunpack.c.l.s4 1983009808
        %v3778 = vunpack.c.0.s8 %v3777
        %v3779 = vlaneseq
        %v3780 = vshrl.u32 %v3779, 7
        %v3781 = vsub.s32 %v3778, %v3780
        %v3782 = vrot.slane %v3256, %v3781
        %v3783 = vcombine.high %v3257, %v3257
        %v3785 = vunpack.c.l.s4 1983009808
        %v3786 = vunpack.c.0.s8 %v3785
        %v3787 = vlaneseq
        %v3788 = vshrl.u32 %v3787, 7
        %v3789 = vsub.s32 %v3786, %v3788
        %v3790 = vrot.slane %v3257, %v3789
        %v3792 = vunpack.c.l.s4 1983009808
        %v3793 = vunpack.c.0.s8 %v3792
        %v3794 = vlaneseq
        %v3795 = vshrl.u32 %v3794, 7
        %v3796 = vsub.s32 %v3793, %v3795
        %v3797 = vrot.slane %v3783, %v3796
        %v3798 = vcombine.high %v3790, %v3790
        %v3799 = vcombine.high %v3797, %v3797
        %v3800 = vcombine.high %v3258, %v3258
        %v3802 = vunpack.c.l.s4 1983009808
        %v3803 = vunpack.c.0.s8 %v3802
        %v3804 = vlaneseq
        %v3805 = vshrl.u32 %v3804, 7
        %v3806 = vsub.s32 %v3803, %v3805
        %v3807 = vrot.slane %v3258, %v3806
        %v3809 = vunpack.c.l.s4 1983009808
        %v3810 = vunpack.c.0.s8 %v3809
        %v3811 = vlaneseq
        %v3812 = vshrl.u32 %v3811, 7
        %v3813 = vsub.s32 %v3810, %v3812
        %v3814 = vrot.slane %v3800, %v3813
        %v3815 = vcombine.high %v3807, %v3807
        %v3816 = vcombine.high %v3814, %v3814
        %v3818 = vunpack.c.l.s4 1983009808
        %v3819 = vunpack.c.0.s8 %v3818
        %v3820 = vlaneseq
        %v3821 = vshrl.u32 %v3820, 7
        %v3822 = vsub.s32 %v3819, %v3821
        %v3823 = vrot.slane %v3259, %v3822
        %v3824 = vcombine.high %v3260, %v3260
        %v3826 = vunpack.c.l.s4 1983009808
        %v3827 = vunpack.c.0.s8 %v3826
        %v3828 = vlaneseq
        %v3829 = vshrl.u32 %v3828, 7
        %v3830 = vsub.s32 %v3827, %v3829
        %v3831 = vrot.slane %v3260, %v3830
        %v3833 = vunpack.c.l.s4 1983009808
        %v3834 = vunpack.c.0.s8 %v3833
        %v3835 = vlaneseq
        %v3836 = vshrl.u32 %v3835, 7
        %v3837 = vsub.s32 %v3834, %v3836
        %v3838 = vrot.slane %v3824, %v3837
        %v3839 = vcombine.high %v3831, %v3831
        %v3840 = vcombine.high %v3838, %v3838
        %v3841 = vcombine.high %v3261, %v3261
        %v3843 = vunpack.c.l.s4 1983009808
        %v3844 = vunpack.c.0.s8 %v3843
        %v3845 = vlaneseq
        %v3846 = vshrl.u32 %v3845, 7
        %v3847 = vsub.s32 %v3844, %v3846
        %v3848 = vrot.slane %v3261, %v3847
        %v3850 = vunpack.c.l.s4 1983009808
        %v3851 = vunpack.c.0.s8 %v3850
        %v3852 = vlaneseq
        %v3853 = vshrl.u32 %v3852, 7
        %v3854 = vsub.s32 %v3851, %v3853
        %v3855 = vrot.slane %v3841, %v3854
        %v3856 = vcombine.high %v3848, %v3848
        %v3857 = vcombine.high %v3855, %v3855
        %v3859 = vunpack.c.l.s4 1983009808
        %v3860 = vunpack.c.0.s8 %v3859
        %v3861 = vlaneseq
        %v3862 = vshrl.u32 %v3861, 7
        %v3863 = vsub.s32 %v3860, %v3862
        %v3864 = vrot.slane %v3262, %v3863
        %v3865 = vcombine.high %v3263, %v3263
        %v3867 = vunpack.c.l.s4 1983009808
        %v3868 = vunpack.c.0.s8 %v3867
        %v3869 = vlaneseq
        %v3870 = vshrl.u32 %v3869, 7
        %v3871 = vsub.s32 %v3868, %v3870
        %v3872 = vrot.slane %v3263, %v3871
        %v3874 = vunpack.c.l.s4 1983009808
        %v3875 = vunpack.c.0.s8 %v3874
        %v3876 = vlaneseq
        %v3877 = vshrl.u32 %v3876, 7
        %v3878 = vsub.s32 %v3875, %v3877
        %v3879 = vrot.slane %v3865, %v3878
        %v3880 = vcombine.high %v3872, %v3872
        %v3881 = vcombine.high %v3879, %v3879
        %v3882 = vcombine.high %v3264, %v3264
        %v3884 = vunpack.c.l.s4 1983009808
        %v3885 = vunpack.c.0.s8 %v3884
        %v3886 = vlaneseq
        %v3887 = vshrl.u32 %v3886, 7
        %v3888 = vsub.s32 %v3885, %v3887
        %v3889 = vrot.slane %v3264, %v3888
        %v3891 = vunpack.c.l.s4 1983009808
        %v3892 = vunpack.c.0.s8 %v3891
        %v3893 = vlaneseq
        %v3894 = vshrl.u32 %v3893, 7
        %v3895 = vsub.s32 %v3892, %v3894
        %v3896 = vrot.slane %v3882, %v3895
        %v3897 = vcombine.high %v3889, %v3889
        %v3898 = vcombine.high %v3896, %v3896
        %v3900 = vunpack.c.l.s4 1983009808
        %v3901 = vunpack.c.0.s8 %v3900
        %v3902 = vlaneseq
        %v3903 = vshrl.u32 %v3902, 7
        %v3904 = vsub.s32 %v3901, %v3903
        %v3905 = vrot.slane %v3265, %v3904
        %v3906 = vcombine.high %v3266, %v3266
        %v3908 = vunpack.c.l.s4 1983009808
        %v3909 = vunpack.c.0.s8 %v3908
        %v3910 = vlaneseq
        %v3911 = vshrl.u32 %v3910, 7
        %v3912 = vsub.s32 %v3909, %v3911
        %v3913 = vrot.slane %v3266, %v3912
        %v3915 = vunpack.c.l.s4 1983009808
        %v3916 = vunpack.c.0.s8 %v3915
        %v3917 = vlaneseq
        %v3918 = vshrl.u32 %v3917, 7
        %v3919 = vsub.s32 %v3916, %v3918
        %v3920 = vrot.slane %v3906, %v3919
        %v3921 = vcombine.high %v3913, %v3913
        %v3922 = vcombine.high %v3920, %v3920
        %v3923 = vcombine.high %v3267, %v3267
        %v3925 = vunpack.c.l.s4 1983009808
        %v3926 = vunpack.c.0.s8 %v3925
        %v3927 = vlaneseq
        %v3928 = vshrl.u32 %v3927, 7
        %v3929 = vsub.s32 %v3926, %v3928
        %v3930 = vrot.slane %v3267, %v3929
        %v3932 = vunpack.c.l.s4 1983009808
        %v3933 = vunpack.c.0.s8 %v3932
        %v3934 = vlaneseq
        %v3935 = vshrl.u32 %v3934, 7
        %v3936 = vsub.s32 %v3933, %v3935
        %v3937 = vrot.slane %v3923, %v3936
        %v3938 = vcombine.high %v3930, %v3930
        %v3939 = vcombine.high %v3937, %v3937
        %v3941 = vunpack.c.l.s4 1983009808
        %v3942 = vunpack.c.0.s8 %v3941
        %v3943 = vlaneseq
        %v3944 = vshrl.u32 %v3943, 7
        %v3945 = vsub.s32 %v3942, %v3944
        %v3946 = vrot.slane %v3268, %v3945
        %v3947 = vcombine.high %v3269, %v3269
        %v3949 = vunpack.c.l.s4 1983009808
        %v3950 = vunpack.c.0.s8 %v3949
        %v3951 = vlaneseq
        %v3952 = vshrl.u32 %v3951, 7
        %v3953 = vsub.s32 %v3950, %v3952
        %v3954 = vrot.slane %v3269, %v3953
        %v3956 = vunpack.c.l.s4 1983009808
        %v3957 = vunpack.c.0.s8 %v3956
        %v3958 = vlaneseq
        %v3959 = vshrl.u32 %v3958, 7
        %v3960 = vsub.s32 %v3957, %v3959
        %v3961 = vrot.slane %v3947, %v3960
        %v3962 = vcombine.high %v3954, %v3954
        %v3963 = vcombine.high %v3961, %v3961
        %v3964 = vcombine.high %v3270, %v3270
        %v3966 = vunpack.c.l.s4 1983009808
        %v3967 = vunpack.c.0.s8 %v3966
        %v3968 = vlaneseq
        %v3969 = vshrl.u32 %v3968, 7
        %v3970 = vsub.s32 %v3967, %v3969
        %v3971 = vrot.slane %v3270, %v3970
        %v3973 = vunpack.c.l.s4 1983009808
        %v3974 = vunpack.c.0.s8 %v3973
        %v3975 = vlaneseq
        %v3976 = vshrl.u32 %v3975, 7
        %v3977 = vsub.s32 %v3974, %v3976
        %v3978 = vrot.slane %v3964, %v3977
        %v3979 = vcombine.high %v3971, %v3971
        %v3980 = vcombine.high %v3978, %v3978
        %v3982 = vunpack.c.l.s4 1983009808
        %v3983 = vunpack.c.0.s8 %v3982
        %v3984 = vlaneseq
        %v3985 = vshrl.u32 %v3984, 7
        %v3986 = vsub.s32 %v3983, %v3985
        %v3987 = vrot.slane %v3271, %v3986
        %v3988 = vcombine.high %v3272, %v3272
        %v3990 = vunpack.c.l.s4 1983009808
        %v3991 = vunpack.c.0.s8 %v3990
        %v3992 = vlaneseq
        %v3993 = vshrl.u32 %v3992, 7
        %v3994 = vsub.s32 %v3991, %v3993
        %v3995 = vrot.slane %v3272, %v3994
        %v3997 = vunpack.c.l.s4 1983009808
        %v3998 = vunpack.c.0.s8 %v3997
        %v3999 = vlaneseq
        %v4000 = vshrl.u32 %v3999, 7
        %v4001 = vsub.s32 %v3998, %v4000
        %v4002 = vrot.slane %v3988, %v4001
        %v4003 = vcombine.high %v3995, %v3995
        %v4004 = vcombine.high %v4002, %v4002
        %v4005 = vcombine.high %v3273, %v3273
        %v4007 = vunpack.c.l.s4 1983009808
        %v4008 = vunpack.c.0.s8 %v4007
        %v4009 = vlaneseq
        %v4010 = vshrl.u32 %v4009, 7
        %v4011 = vsub.s32 %v4008, %v4010
        %v4012 = vrot.slane %v3273, %v4011
        %v4014 = vunpack.c.l.s4 1983009808
        %v4015 = vunpack.c.0.s8 %v4014
        %v4016 = vlaneseq
        %v4017 = vshrl.u32 %v4016, 7
        %v4018 = vsub.s32 %v4015, %v4017
        %v4019 = vrot.slane %v4005, %v4018
        %v4020 = vcombine.high %v4012, %v4012
        %v4021 = vcombine.high %v4019, %v4019
        %v4023 = vunpack.c.l.s4 1983009808
        %v4024 = vunpack.c.0.s8 %v4023
        %v4025 = vlaneseq
        %v4026 = vshrl.u32 %v4025, 7
        %v4027 = vsub.s32 %v4024, %v4026
        %v4028 = vrot.slane %v3274, %v4027
        %v4029 = vcombine.high %v3275, %v3275
        %v4031 = vunpack.c.l.s4 1983009808
        %v4032 = vunpack.c.0.s8 %v4031
        %v4033 = vlaneseq
        %v4034 = vshrl.u32 %v4033, 7
        %v4035 = vsub.s32 %v4032, %v4034
        %v4036 = vrot.slane %v3275, %v4035
        %v4038 = vunpack.c.l.s4 1983009808
        %v4039 = vunpack.c.0.s8 %v4038
        %v4040 = vlaneseq
        %v4041 = vshrl.u32 %v4040, 7
        %v4042 = vsub.s32 %v4039, %v4041
        %v4043 = vrot.slane %v4029, %v4042
        %v4044 = vcombine.high %v4036, %v4036
        %v4045 = vcombine.high %v4043, %v4043
        %v4046 = vcombine.high %v3276, %v3276
        %v4048 = vunpack.c.l.s4 1983009808
        %v4049 = vunpack.c.0.s8 %v4048
        %v4050 = vlaneseq
        %v4051 = vshrl.u32 %v4050, 7
        %v4052 = vsub.s32 %v4049, %v4051
        %v4053 = vrot.slane %v3276, %v4052
        %v4055 = vunpack.c.l.s4 1983009808
        %v4056 = vunpack.c.0.s8 %v4055
        %v4057 = vlaneseq
        %v4058 = vshrl.u32 %v4057, 7
        %v4059 = vsub.s32 %v4056, %v4058
        %v4060 = vrot.slane %v4046, %v4059
        %v4061 = vcombine.high %v4053, %v4053
        %v4062 = vcombine.high %v4060, %v4060
        %v4064 = vunpack.c.l.s4 1983009808
        %v4065 = vunpack.c.0.s8 %v4064
        %v4066 = vlaneseq
        %v4067 = vshrl.u32 %v4066, 7
        %v4068 = vsub.s32 %v4065, %v4067
        %v4069 = vrot.slane %v3277, %v4068
        %v4070 = vld [vmem:[%s5] sm:$0xff]
        %v4071 = vld [vmem:[%s5 + $0x8] sm:$0xff]
        %v4072 = vld [vmem:[%s5 + $0x10] sm:$0xff]
        %v4073 = vld [vmem:[%s2824] sm:$0xff]
        %v4074 = vld [vmem:[%s2824 + $0x8] sm:$0xff]
        %v4075 = vld [vmem:[%s2824 + $0x10] sm:$0x3]
        %v4076 = vld [vmem:[%s2824 + $0x18] sm:$0xff]
        %v4077 = vld [vmem:[%s2824 + $0x20] sm:$0xff]
        %v4078 = vld [vmem:[%s2824 + $0x28] sm:$0x3]
        %v4079 = vld [vmem:[%s2824 + $0x30] sm:$0xff]
        %v4080 = vld [vmem:[%s2824 + $0x38] sm:$0xff]
        %v4081 = vld [vmem:[%s2824 + $0x40] sm:$0x3]
        %v4082 = vld [vmem:[%s2824 + $0x48] sm:$0xff]
        %v4083 = vld [vmem:[%s2824 + $0x50] sm:$0xff]
        %v4084 = vld [vmem:[%s2824 + $0x58] sm:$0x3]
        %v4085 = vld [vmem:[%s2824 + $0x60] sm:$0xff]
        %v4086 = vld [vmem:[%s2824 + $0x68] sm:$0xff]
        %v4087 = vld [vmem:[%s2824 + $0x70] sm:$0x3]
        %v4088 = vld [vmem:[%s2824 + $0x78] sm:$0xff]
        %v4089 = vld [vmem:[%s2824 + $0x80] sm:$0xff]
        %v4090 = vld [vmem:[%s2824 + $0x88] sm:$0x3]
        %v4091 = vld [vmem:[%s2824 + $0x90] sm:$0xff]
        %v4092 = vld [vmem:[%s2824 + $0x98] sm:$0xff]
        %v4093 = vld [vmem:[%s2824 + $0xa0] sm:$0x3]
        %v4094 = vld [vmem:[%s2824 + $0xa8] sm:$0xff]
        %v4095 = vld [vmem:[%s2824 + $0xb0] sm:$0xff]
        %v4096 = vld [vmem:[%s2824 + $0xb8] sm:$0x3]
        %v4097 = vld [vmem:[%s2824 + $0xc0] sm:$0xff]
        %v4098 = vld [vmem:[%s2824 + $0xc8] sm:$0xff]
        %v4099 = vld [vmem:[%s2824 + $0xd0] sm:$0x3]
        %v4100 = vld [vmem:[%s2824 + $0xd8] sm:$0xff]
        %v4101 = vld [vmem:[%s2824 + $0xe0] sm:$0xff]
        %v4102 = vld [vmem:[%s2824 + $0xe8] sm:$0x3]
        %v4103 = vld [vmem:[%s2824 + $0xf0] sm:$0xff]
        %v4104 = vld [vmem:[%s2824 + $0xf8] sm:$0xff]
        %v4105 = vld [vmem:[%s2824 + $0x100] sm:$0x3]
        %v4106 = vld [vmem:[%s2824 + $0x108] sm:$0xff]
        %v4107 = vld [vmem:[%s2824 + $0x110] sm:$0xff]
        %v4108 = vld [vmem:[%s2824 + $0x118] sm:$0x3]
        %v4109 = vld [vmem:[%s2824 + $0x120] sm:$0xff]
        %v4110 = vld [vmem:[%s2824 + $0x128] sm:$0xff]
        %v4111 = vld [vmem:[%s2824 + $0x130] sm:$0x3]
        %v4112 = vld [vmem:[%s2824 + $0x138] sm:$0xff]
        %v4113 = vld [vmem:[%s2824 + $0x140] sm:$0xff]
        %v4114 = vld [vmem:[%s2824 + $0x148] sm:$0x3]
        %v4115 = vld [vmem:[%s2824 + $0x150] sm:$0xff]
        %v4116 = vld [vmem:[%s2824 + $0x158] sm:$0xff]
        %v4117 = vld [vmem:[%s2824 + $0x160] sm:$0x3]
        %v4118 = vld [vmem:[%s2824 + $0x168] sm:$0xff]
        %v4119 = vld [vmem:[%s2824 + $0x170] sm:$0xff]
        %v4120 = vld [vmem:[%s2824 + $0x178] sm:$0x3]
        %v4121 = vld [vmem:[%s2824 + $0x180] sm:$0xff]
        %v4122 = vld [vmem:[%s2824 + $0x188] sm:$0xff]
        %v4123 = vld [vmem:[%s2824 + $0x190] sm:$0x3]
        %v4124 = vld [vmem:[%s2824 + $0x198] sm:$0xff]
        %v4125 = vld [vmem:[%s2824 + $0x1a0] sm:$0xff]
        %v4126 = vld [vmem:[%s2824 + $0x1a8] sm:$0x3]
        %v4181 = vcombine.high %v4073, %v4073
        %v4183 = vunpack.c.l.s4 1983009808
        %v4184 = vunpack.c.0.s8 %v4183
        %v4185 = vlaneseq
        %v4186 = vshrl.u32 %v4185, 7
        %v4187 = vsub.s32 %v4184, %v4186
        %v4188 = vrot.slane %v4073, %v4187
        %v4190 = vunpack.c.l.s4 1983009808
        %v4191 = vunpack.c.0.s8 %v4190
        %v4192 = vlaneseq
        %v4193 = vshrl.u32 %v4192, 7
        %v4194 = vsub.s32 %v4191, %v4193
        %v4195 = vrot.slane %v4181, %v4194
        %v4196 = vcombine.high %v4188, %v4188
        %v4197 = vcombine.high %v4195, %v4195
        %v4198 = vcombine.high %v4074, %v4074
        %v4200 = vunpack.c.l.s4 1983009808
        %v4201 = vunpack.c.0.s8 %v4200
        %v4202 = vlaneseq
        %v4203 = vshrl.u32 %v4202, 7
        %v4204 = vsub.s32 %v4201, %v4203
        %v4205 = vrot.slane %v4074, %v4204
        %v4207 = vunpack.c.l.s4 1983009808
        %v4208 = vunpack.c.0.s8 %v4207
        %v4209 = vlaneseq
        %v4210 = vshrl.u32 %v4209, 7
        %v4211 = vsub.s32 %v4208, %v4210
        %v4212 = vrot.slane %v4198, %v4211
        %v4213 = vcombine.high %v4205, %v4205
        %v4214 = vcombine.high %v4212, %v4212
        %v4216 = vunpack.c.l.s4 1983009808
        %v4217 = vunpack.c.0.s8 %v4216
        %v4218 = vlaneseq
        %v4219 = vshrl.u32 %v4218, 7
        %v4220 = vsub.s32 %v4217, %v4219
        %v4221 = vrot.slane %v4075, %v4220
        %v4222 = vcombine.high %v4076, %v4076
        %v4224 = vunpack.c.l.s4 1983009808
        %v4225 = vunpack.c.0.s8 %v4224
        %v4226 = vlaneseq
        %v4227 = vshrl.u32 %v4226, 7
        %v4228 = vsub.s32 %v4225, %v4227
        %v4229 = vrot.slane %v4076, %v4228
        %v4231 = vunpack.c.l.s4 1983009808
        %v4232 = vunpack.c.0.s8 %v4231
        %v4233 = vlaneseq
        %v4234 = vshrl.u32 %v4233, 7
        %v4235 = vsub.s32 %v4232, %v4234
        %v4236 = vrot.slane %v4222, %v4235
        %v4237 = vcombine.high %v4229, %v4229
        %v4238 = vcombine.high %v4236, %v4236
        %v4239 = vcombine.high %v4077, %v4077
        %v4241 = vunpack.c.l.s4 1983009808
        %v4242 = vunpack.c.0.s8 %v4241
        %v4243 = vlaneseq
        %v4244 = vshrl.u32 %v4243, 7
        %v4245 = vsub.s32 %v4242, %v4244
        %v4246 = vrot.slane %v4077, %v4245
        %v4248 = vunpack.c.l.s4 1983009808
        %v4249 = vunpack.c.0.s8 %v4248
        %v4250 = vlaneseq
        %v4251 = vshrl.u32 %v4250, 7
        %v4252 = vsub.s32 %v4249, %v4251
        %v4253 = vrot.slane %v4239, %v4252
        %v4254 = vcombine.high %v4246, %v4246
        %v4255 = vcombine.high %v4253, %v4253
        %v4257 = vunpack.c.l.s4 1983009808
        %v4258 = vunpack.c.0.s8 %v4257
        %v4259 = vlaneseq
        %v4260 = vshrl.u32 %v4259, 7
        %v4261 = vsub.s32 %v4258, %v4260
        %v4262 = vrot.slane %v4078, %v4261
        %v4263 = vcombine.high %v4079, %v4079
        %v4265 = vunpack.c.l.s4 1983009808
        %v4266 = vunpack.c.0.s8 %v4265
        %v4267 = vlaneseq
        %v4268 = vshrl.u32 %v4267, 7
        %v4269 = vsub.s32 %v4266, %v4268
        %v4270 = vrot.slane %v4079, %v4269
        %v4272 = vunpack.c.l.s4 1983009808
        %v4273 = vunpack.c.0.s8 %v4272
        %v4274 = vlaneseq
        %v4275 = vshrl.u32 %v4274, 7
        %v4276 = vsub.s32 %v4273, %v4275
        %v4277 = vrot.slane %v4263, %v4276
        %v4278 = vcombine.high %v4270, %v4270
        %v4279 = vcombine.high %v4277, %v4277
        %v4280 = vcombine.high %v4080, %v4080
        %v4282 = vunpack.c.l.s4 1983009808
        %v4283 = vunpack.c.0.s8 %v4282
        %v4284 = vlaneseq
        %v4285 = vshrl.u32 %v4284, 7
        %v4286 = vsub.s32 %v4283, %v4285
        %v4287 = vrot.slane %v4080, %v4286
        %v4289 = vunpack.c.l.s4 1983009808
        %v4290 = vunpack.c.0.s8 %v4289
        %v4291 = vlaneseq
        %v4292 = vshrl.u32 %v4291, 7
        %v4293 = vsub.s32 %v4290, %v4292
        %v4294 = vrot.slane %v4280, %v4293
        %v4295 = vcombine.high %v4287, %v4287
        %v4296 = vcombine.high %v4294, %v4294
        %v4298 = vunpack.c.l.s4 1983009808
        %v4299 = vunpack.c.0.s8 %v4298
        %v4300 = vlaneseq
        %v4301 = vshrl.u32 %v4300, 7
        %v4302 = vsub.s32 %v4299, %v4301
        %v4303 = vrot.slane %v4081, %v4302
        %v4304 = vcombine.high %v4082, %v4082
        %v4306 = vunpack.c.l.s4 1983009808
        %v4307 = vunpack.c.0.s8 %v4306
        %v4308 = vlaneseq
        %v4309 = vshrl.u32 %v4308, 7
        %v4310 = vsub.s32 %v4307, %v4309
        %v4311 = vrot.slane %v4082, %v4310
        %v4313 = vunpack.c.l.s4 1983009808
        %v4314 = vunpack.c.0.s8 %v4313
        %v4315 = vlaneseq
        %v4316 = vshrl.u32 %v4315, 7
        %v4317 = vsub.s32 %v4314, %v4316
        %v4318 = vrot.slane %v4304, %v4317
        %v4319 = vcombine.high %v4311, %v4311
        %v4320 = vcombine.high %v4318, %v4318
        %v4321 = vcombine.high %v4083, %v4083
        %v4323 = vunpack.c.l.s4 1983009808
        %v4324 = vunpack.c.0.s8 %v4323
        %v4325 = vlaneseq
        %v4326 = vshrl.u32 %v4325, 7
        %v4327 = vsub.s32 %v4324, %v4326
        %v4328 = vrot.slane %v4083, %v4327
        %v4330 = vunpack.c.l.s4 1983009808
        %v4331 = vunpack.c.0.s8 %v4330
        %v4332 = vlaneseq
        %v4333 = vshrl.u32 %v4332, 7
        %v4334 = vsub.s32 %v4331, %v4333
        %v4335 = vrot.slane %v4321, %v4334
        %v4336 = vcombine.high %v4328, %v4328
        %v4337 = vcombine.high %v4335, %v4335
        %v4339 = vunpack.c.l.s4 1983009808
        %v4340 = vunpack.c.0.s8 %v4339
        %v4341 = vlaneseq
        %v4342 = vshrl.u32 %v4341, 7
        %v4343 = vsub.s32 %v4340, %v4342
        %v4344 = vrot.slane %v4084, %v4343
        %v4345 = vcombine.high %v4085, %v4085
        %v4347 = vunpack.c.l.s4 1983009808
        %v4348 = vunpack.c.0.s8 %v4347
        %v4349 = vlaneseq
        %v4350 = vshrl.u32 %v4349, 7
        %v4351 = vsub.s32 %v4348, %v4350
        %v4352 = vrot.slane %v4085, %v4351
        %v4354 = vunpack.c.l.s4 1983009808
        %v4355 = vunpack.c.0.s8 %v4354
        %v4356 = vlaneseq
        %v4357 = vshrl.u32 %v4356, 7
        %v4358 = vsub.s32 %v4355, %v4357
        %v4359 = vrot.slane %v4345, %v4358
        %v4360 = vcombine.high %v4352, %v4352
        %v4361 = vcombine.high %v4359, %v4359
        %v4362 = vcombine.high %v4086, %v4086
        %v4364 = vunpack.c.l.s4 1983009808
        %v4365 = vunpack.c.0.s8 %v4364
        %v4366 = vlaneseq
        %v4367 = vshrl.u32 %v4366, 7
        %v4368 = vsub.s32 %v4365, %v4367
        %v4369 = vrot.slane %v4086, %v4368
        %v4371 = vunpack.c.l.s4 1983009808
        %v4372 = vunpack.c.0.s8 %v4371
        %v4373 = vlaneseq
        %v4374 = vshrl.u32 %v4373, 7
        %v4375 = vsub.s32 %v4372, %v4374
        %v4376 = vrot.slane %v4362, %v4375
        %v4377 = vcombine.high %v4369, %v4369
        %v4378 = vcombine.high %v4376, %v4376
        %v4380 = vunpack.c.l.s4 1983009808
        %v4381 = vunpack.c.0.s8 %v4380
        %v4382 = vlaneseq
        %v4383 = vshrl.u32 %v4382, 7
        %v4384 = vsub.s32 %v4381, %v4383
        %v4385 = vrot.slane %v4087, %v4384
        %v4386 = vcombine.high %v4088, %v4088
        %v4388 = vunpack.c.l.s4 1983009808
        %v4389 = vunpack.c.0.s8 %v4388
        %v4390 = vlaneseq
        %v4391 = vshrl.u32 %v4390, 7
        %v4392 = vsub.s32 %v4389, %v4391
        %v4393 = vrot.slane %v4088, %v4392
        %v4395 = vunpack.c.l.s4 1983009808
        %v4396 = vunpack.c.0.s8 %v4395
        %v4397 = vlaneseq
        %v4398 = vshrl.u32 %v4397, 7
        %v4399 = vsub.s32 %v4396, %v4398
        %v4400 = vrot.slane %v4386, %v4399
        %v4401 = vcombine.high %v4393, %v4393
        %v4402 = vcombine.high %v4400, %v4400
        %v4403 = vcombine.high %v4089, %v4089
        %v4405 = vunpack.c.l.s4 1983009808
        %v4406 = vunpack.c.0.s8 %v4405
        %v4407 = vlaneseq
        %v4408 = vshrl.u32 %v4407, 7
        %v4409 = vsub.s32 %v4406, %v4408
        %v4410 = vrot.slane %v4089, %v4409
        %v4412 = vunpack.c.l.s4 1983009808
        %v4413 = vunpack.c.0.s8 %v4412
        %v4414 = vlaneseq
        %v4415 = vshrl.u32 %v4414, 7
        %v4416 = vsub.s32 %v4413, %v4415
        %v4417 = vrot.slane %v4403, %v4416
        %v4418 = vcombine.high %v4410, %v4410
        %v4419 = vcombine.high %v4417, %v4417
        %v4421 = vunpack.c.l.s4 1983009808
        %v4422 = vunpack.c.0.s8 %v4421
        %v4423 = vlaneseq
        %v4424 = vshrl.u32 %v4423, 7
        %v4425 = vsub.s32 %v4422, %v4424
        %v4426 = vrot.slane %v4090, %v4425
        %v4427 = vcombine.high %v4091, %v4091
        %v4429 = vunpack.c.l.s4 1983009808
        %v4430 = vunpack.c.0.s8 %v4429
        %v4431 = vlaneseq
        %v4432 = vshrl.u32 %v4431, 7
        %v4433 = vsub.s32 %v4430, %v4432
        %v4434 = vrot.slane %v4091, %v4433
        %v4436 = vunpack.c.l.s4 1983009808
        %v4437 = vunpack.c.0.s8 %v4436
        %v4438 = vlaneseq
        %v4439 = vshrl.u32 %v4438, 7
        %v4440 = vsub.s32 %v4437, %v4439
        %v4441 = vrot.slane %v4427, %v4440
        %v4442 = vcombine.high %v4434, %v4434
        %v4443 = vcombine.high %v4441, %v4441
        %v4444 = vcombine.high %v4092, %v4092
        %v4446 = vunpack.c.l.s4 1983009808
        %v4447 = vunpack.c.0.s8 %v4446
        %v4448 = vlaneseq
        %v4449 = vshrl.u32 %v4448, 7
        %v4450 = vsub.s32 %v4447, %v4449
        %v4451 = vrot.slane %v4092, %v4450
        %v4453 = vunpack.c.l.s4 1983009808
        %v4454 = vunpack.c.0.s8 %v4453
        %v4455 = vlaneseq
        %v4456 = vshrl.u32 %v4455, 7
        %v4457 = vsub.s32 %v4454, %v4456
        %v4458 = vrot.slane %v4444, %v4457
        %v4459 = vcombine.high %v4451, %v4451
        %v4460 = vcombine.high %v4458, %v4458
        %v4462 = vunpack.c.l.s4 1983009808
        %v4463 = vunpack.c.0.s8 %v4462
        %v4464 = vlaneseq
        %v4465 = vshrl.u32 %v4464, 7
        %v4466 = vsub.s32 %v4463, %v4465
        %v4467 = vrot.slane %v4093, %v4466
        %v4468 = vcombine.high %v4094, %v4094
        %v4470 = vunpack.c.l.s4 1983009808
        %v4471 = vunpack.c.0.s8 %v4470
        %v4472 = vlaneseq
        %v4473 = vshrl.u32 %v4472, 7
        %v4474 = vsub.s32 %v4471, %v4473
        %v4475 = vrot.slane %v4094, %v4474
        %v4477 = vunpack.c.l.s4 1983009808
        %v4478 = vunpack.c.0.s8 %v4477
        %v4479 = vlaneseq
        %v4480 = vshrl.u32 %v4479, 7
        %v4481 = vsub.s32 %v4478, %v4480
        %v4482 = vrot.slane %v4468, %v4481
        %v4483 = vcombine.high %v4475, %v4475
        %v4484 = vcombine.high %v4482, %v4482
        %v4485 = vcombine.high %v4095, %v4095
        %v4487 = vunpack.c.l.s4 1983009808
        %v4488 = vunpack.c.0.s8 %v4487
        %v4489 = vlaneseq
        %v4490 = vshrl.u32 %v4489, 7
        %v4491 = vsub.s32 %v4488, %v4490
        %v4492 = vrot.slane %v4095, %v4491
        %v4494 = vunpack.c.l.s4 1983009808
        %v4495 = vunpack.c.0.s8 %v4494
        %v4496 = vlaneseq
        %v4497 = vshrl.u32 %v4496, 7
        %v4498 = vsub.s32 %v4495, %v4497
        %v4499 = vrot.slane %v4485, %v4498
        %v4500 = vcombine.high %v4492, %v4492
        %v4501 = vcombine.high %v4499, %v4499
        %v4503 = vunpack.c.l.s4 1983009808
        %v4504 = vunpack.c.0.s8 %v4503
        %v4505 = vlaneseq
        %v4506 = vshrl.u32 %v4505, 7
        %v4507 = vsub.s32 %v4504, %v4506
        %v4508 = vrot.slane %v4096, %v4507
        %v4509 = vcombine.high %v4097, %v4097
        %v4511 = vunpack.c.l.s4 1983009808
        %v4512 = vunpack.c.0.s8 %v4511
        %v4513 = vlaneseq
        %v4514 = vshrl.u32 %v4513, 7
        %v4515 = vsub.s32 %v4512, %v4514
        %v4516 = vrot.slane %v4097, %v4515
        %v4518 = vunpack.c.l.s4 1983009808
        %v4519 = vunpack.c.0.s8 %v4518
        %v4520 = vlaneseq
        %v4521 = vshrl.u32 %v4520, 7
        %v4522 = vsub.s32 %v4519, %v4521
        %v4523 = vrot.slane %v4509, %v4522
        %v4524 = vcombine.high %v4516, %v4516
        %v4525 = vcombine.high %v4523, %v4523
        %v4526 = vcombine.high %v4098, %v4098
        %v4528 = vunpack.c.l.s4 1983009808
        %v4529 = vunpack.c.0.s8 %v4528
        %v4530 = vlaneseq
        %v4531 = vshrl.u32 %v4530, 7
        %v4532 = vsub.s32 %v4529, %v4531
        %v4533 = vrot.slane %v4098, %v4532
        %v4535 = vunpack.c.l.s4 1983009808
        %v4536 = vunpack.c.0.s8 %v4535
        %v4537 = vlaneseq
        %v4538 = vshrl.u32 %v4537, 7
        %v4539 = vsub.s32 %v4536, %v4538
        %v4540 = vrot.slane %v4526, %v4539
        %v4541 = vcombine.high %v4533, %v4533
        %v4542 = vcombine.high %v4540, %v4540
        %v4544 = vunpack.c.l.s4 1983009808
        %v4545 = vunpack.c.0.s8 %v4544
        %v4546 = vlaneseq
        %v4547 = vshrl.u32 %v4546, 7
        %v4548 = vsub.s32 %v4545, %v4547
        %v4549 = vrot.slane %v4099, %v4548
        %v4550 = vcombine.high %v4100, %v4100
        %v4552 = vunpack.c.l.s4 1983009808
        %v4553 = vunpack.c.0.s8 %v4552
        %v4554 = vlaneseq
        %v4555 = vshrl.u32 %v4554, 7
        %v4556 = vsub.s32 %v4553, %v4555
        %v4557 = vrot.slane %v4100, %v4556
        %v4559 = vunpack.c.l.s4 1983009808
        %v4560 = vunpack.c.0.s8 %v4559
        %v4561 = vlaneseq
        %v4562 = vshrl.u32 %v4561, 7
        %v4563 = vsub.s32 %v4560, %v4562
        %v4564 = vrot.slane %v4550, %v4563
        %v4565 = vcombine.high %v4557, %v4557
        %v4566 = vcombine.high %v4564, %v4564
        %v4567 = vcombine.high %v4101, %v4101
        %v4569 = vunpack.c.l.s4 1983009808
        %v4570 = vunpack.c.0.s8 %v4569
        %v4571 = vlaneseq
        %v4572 = vshrl.u32 %v4571, 7
        %v4573 = vsub.s32 %v4570, %v4572
        %v4574 = vrot.slane %v4101, %v4573
        %v4576 = vunpack.c.l.s4 1983009808
        %v4577 = vunpack.c.0.s8 %v4576
        %v4578 = vlaneseq
        %v4579 = vshrl.u32 %v4578, 7
        %v4580 = vsub.s32 %v4577, %v4579
        %v4581 = vrot.slane %v4567, %v4580
        %v4582 = vcombine.high %v4574, %v4574
        %v4583 = vcombine.high %v4581, %v4581
        %v4585 = vunpack.c.l.s4 1983009808
        %v4586 = vunpack.c.0.s8 %v4585
        %v4587 = vlaneseq
        %v4588 = vshrl.u32 %v4587, 7
        %v4589 = vsub.s32 %v4586, %v4588
        %v4590 = vrot.slane %v4102, %v4589
        %v4591 = vcombine.high %v4103, %v4103
        %v4593 = vunpack.c.l.s4 1983009808
        %v4594 = vunpack.c.0.s8 %v4593
        %v4595 = vlaneseq
        %v4596 = vshrl.u32 %v4595, 7
        %v4597 = vsub.s32 %v4594, %v4596
        %v4598 = vrot.slane %v4103, %v4597
        %v4600 = vunpack.c.l.s4 1983009808
        %v4601 = vunpack.c.0.s8 %v4600
        %v4602 = vlaneseq
        %v4603 = vshrl.u32 %v4602, 7
        %v4604 = vsub.s32 %v4601, %v4603
        %v4605 = vrot.slane %v4591, %v4604
        %v4606 = vcombine.high %v4598, %v4598
        %v4607 = vcombine.high %v4605, %v4605
        %v4608 = vcombine.high %v4104, %v4104
        %v4610 = vunpack.c.l.s4 1983009808
        %v4611 = vunpack.c.0.s8 %v4610
        %v4612 = vlaneseq
        %v4613 = vshrl.u32 %v4612, 7
        %v4614 = vsub.s32 %v4611, %v4613
        %v4615 = vrot.slane %v4104, %v4614
        %v4617 = vunpack.c.l.s4 1983009808
        %v4618 = vunpack.c.0.s8 %v4617
        %v4619 = vlaneseq
        %v4620 = vshrl.u32 %v4619, 7
        %v4621 = vsub.s32 %v4618, %v4620
        %v4622 = vrot.slane %v4608, %v4621
        %v4623 = vcombine.high %v4615, %v4615
        %v4624 = vcombine.high %v4622, %v4622
        %v4626 = vunpack.c.l.s4 1983009808
        %v4627 = vunpack.c.0.s8 %v4626
        %v4628 = vlaneseq
        %v4629 = vshrl.u32 %v4628, 7
        %v4630 = vsub.s32 %v4627, %v4629
        %v4631 = vrot.slane %v4105, %v4630
        %v4632 = vcombine.high %v4106, %v4106
        %v4634 = vunpack.c.l.s4 1983009808
        %v4635 = vunpack.c.0.s8 %v4634
        %v4636 = vlaneseq
        %v4637 = vshrl.u32 %v4636, 7
        %v4638 = vsub.s32 %v4635, %v4637
        %v4639 = vrot.slane %v4106, %v4638
        %v4641 = vunpack.c.l.s4 1983009808
        %v4642 = vunpack.c.0.s8 %v4641
        %v4643 = vlaneseq
        %v4644 = vshrl.u32 %v4643, 7
        %v4645 = vsub.s32 %v4642, %v4644
        %v4646 = vrot.slane %v4632, %v4645
        %v4647 = vcombine.high %v4639, %v4639
        %v4648 = vcombine.high %v4646, %v4646
        %v4649 = vcombine.high %v4107, %v4107
        %v4651 = vunpack.c.l.s4 1983009808
        %v4652 = vunpack.c.0.s8 %v4651
        %v4653 = vlaneseq
        %v4654 = vshrl.u32 %v4653, 7
        %v4655 = vsub.s32 %v4652, %v4654
        %v4656 = vrot.slane %v4107, %v4655
        %v4658 = vunpack.c.l.s4 1983009808
        %v4659 = vunpack.c.0.s8 %v4658
        %v4660 = vlaneseq
        %v4661 = vshrl.u32 %v4660, 7
        %v4662 = vsub.s32 %v4659, %v4661
        %v4663 = vrot.slane %v4649, %v4662
        %v4664 = vcombine.high %v4656, %v4656
        %v4665 = vcombine.high %v4663, %v4663
        %v4667 = vunpack.c.l.s4 1983009808
        %v4668 = vunpack.c.0.s8 %v4667
        %v4669 = vlaneseq
        %v4670 = vshrl.u32 %v4669, 7
        %v4671 = vsub.s32 %v4668, %v4670
        %v4672 = vrot.slane %v4108, %v4671
        %v4673 = vcombine.high %v4109, %v4109
        %v4675 = vunpack.c.l.s4 1983009808
        %v4676 = vunpack.c.0.s8 %v4675
        %v4677 = vlaneseq
        %v4678 = vshrl.u32 %v4677, 7
        %v4679 = vsub.s32 %v4676, %v4678
        %v4680 = vrot.slane %v4109, %v4679
        %v4682 = vunpack.c.l.s4 1983009808
        %v4683 = vunpack.c.0.s8 %v4682
        %v4684 = vlaneseq
        %v4685 = vshrl.u32 %v4684, 7
        %v4686 = vsub.s32 %v4683, %v4685
        %v4687 = vrot.slane %v4673, %v4686
        %v4688 = vcombine.high %v4680, %v4680
        %v4689 = vcombine.high %v4687, %v4687
        %v4690 = vcombine.high %v4110, %v4110
        %v4692 = vunpack.c.l.s4 1983009808
        %v4693 = vunpack.c.0.s8 %v4692
        %v4694 = vlaneseq
        %v4695 = vshrl.u32 %v4694, 7
        %v4696 = vsub.s32 %v4693, %v4695
        %v4697 = vrot.slane %v4110, %v4696
        %v4699 = vunpack.c.l.s4 1983009808
        %v4700 = vunpack.c.0.s8 %v4699
        %v4701 = vlaneseq
        %v4702 = vshrl.u32 %v4701, 7
        %v4703 = vsub.s32 %v4700, %v4702
        %v4704 = vrot.slane %v4690, %v4703
        %v4705 = vcombine.high %v4697, %v4697
        %v4706 = vcombine.high %v4704, %v4704
        %v4708 = vunpack.c.l.s4 1983009808
        %v4709 = vunpack.c.0.s8 %v4708
        %v4710 = vlaneseq
        %v4711 = vshrl.u32 %v4710, 7
        %v4712 = vsub.s32 %v4709, %v4711
        %v4713 = vrot.slane %v4111, %v4712
        %v4714 = vcombine.high %v4112, %v4112
        %v4716 = vunpack.c.l.s4 1983009808
        %v4717 = vunpack.c.0.s8 %v4716
        %v4718 = vlaneseq
        %v4719 = vshrl.u32 %v4718, 7
        %v4720 = vsub.s32 %v4717, %v4719
        %v4721 = vrot.slane %v4112, %v4720
        %v4723 = vunpack.c.l.s4 1983009808
        %v4724 = vunpack.c.0.s8 %v4723
        %v4725 = vlaneseq
        %v4726 = vshrl.u32 %v4725, 7
        %v4727 = vsub.s32 %v4724, %v4726
        %v4728 = vrot.slane %v4714, %v4727
        %v4729 = vcombine.high %v4721, %v4721
        %v4730 = vcombine.high %v4728, %v4728
        %v4731 = vcombine.high %v4113, %v4113
        %v4733 = vunpack.c.l.s4 1983009808
        %v4734 = vunpack.c.0.s8 %v4733
        %v4735 = vlaneseq
        %v4736 = vshrl.u32 %v4735, 7
        %v4737 = vsub.s32 %v4734, %v4736
        %v4738 = vrot.slane %v4113, %v4737
        %v4740 = vunpack.c.l.s4 1983009808
        %v4741 = vunpack.c.0.s8 %v4740
        %v4742 = vlaneseq
        %v4743 = vshrl.u32 %v4742, 7
        %v4744 = vsub.s32 %v4741, %v4743
        %v4745 = vrot.slane %v4731, %v4744
        %v4746 = vcombine.high %v4738, %v4738
        %v4747 = vcombine.high %v4745, %v4745
        %v4749 = vunpack.c.l.s4 1983009808
        %v4750 = vunpack.c.0.s8 %v4749
        %v4751 = vlaneseq
        %v4752 = vshrl.u32 %v4751, 7
        %v4753 = vsub.s32 %v4750, %v4752
        %v4754 = vrot.slane %v4114, %v4753
        %v4755 = vcombine.high %v4115, %v4115
        %v4757 = vunpack.c.l.s4 1983009808
        %v4758 = vunpack.c.0.s8 %v4757
        %v4759 = vlaneseq
        %v4760 = vshrl.u32 %v4759, 7
        %v4761 = vsub.s32 %v4758, %v4760
        %v4762 = vrot.slane %v4115, %v4761
        %v4764 = vunpack.c.l.s4 1983009808
        %v4765 = vunpack.c.0.s8 %v4764
        %v4766 = vlaneseq
        %v4767 = vshrl.u32 %v4766, 7
        %v4768 = vsub.s32 %v4765, %v4767
        %v4769 = vrot.slane %v4755, %v4768
        %v4770 = vcombine.high %v4762, %v4762
        %v4771 = vcombine.high %v4769, %v4769
        %v4772 = vcombine.high %v4116, %v4116
        %v4774 = vunpack.c.l.s4 1983009808
        %v4775 = vunpack.c.0.s8 %v4774
        %v4776 = vlaneseq
        %v4777 = vshrl.u32 %v4776, 7
        %v4778 = vsub.s32 %v4775, %v4777
        %v4779 = vrot.slane %v4116, %v4778
        %v4781 = vunpack.c.l.s4 1983009808
        %v4782 = vunpack.c.0.s8 %v4781
        %v4783 = vlaneseq
        %v4784 = vshrl.u32 %v4783, 7
        %v4785 = vsub.s32 %v4782, %v4784
        %v4786 = vrot.slane %v4772, %v4785
        %v4787 = vcombine.high %v4779, %v4779
        %v4788 = vcombine.high %v4786, %v4786
        %v4790 = vunpack.c.l.s4 1983009808
        %v4791 = vunpack.c.0.s8 %v4790
        %v4792 = vlaneseq
        %v4793 = vshrl.u32 %v4792, 7
        %v4794 = vsub.s32 %v4791, %v4793
        %v4795 = vrot.slane %v4117, %v4794
        %v4796 = vcombine.high %v4118, %v4118
        %v4798 = vunpack.c.l.s4 1983009808
        %v4799 = vunpack.c.0.s8 %v4798
        %v4800 = vlaneseq
        %v4801 = vshrl.u32 %v4800, 7
        %v4802 = vsub.s32 %v4799, %v4801
        %v4803 = vrot.slane %v4118, %v4802
        %v4805 = vunpack.c.l.s4 1983009808
        %v4806 = vunpack.c.0.s8 %v4805
        %v4807 = vlaneseq
        %v4808 = vshrl.u32 %v4807, 7
        %v4809 = vsub.s32 %v4806, %v4808
        %v4810 = vrot.slane %v4796, %v4809
        %v4811 = vcombine.high %v4803, %v4803
        %v4812 = vcombine.high %v4810, %v4810
        %v4813 = vcombine.high %v4119, %v4119
        %v4815 = vunpack.c.l.s4 1983009808
        %v4816 = vunpack.c.0.s8 %v4815
        %v4817 = vlaneseq
        %v4818 = vshrl.u32 %v4817, 7
        %v4819 = vsub.s32 %v4816, %v4818
        %v4820 = vrot.slane %v4119, %v4819
        %v4822 = vunpack.c.l.s4 1983009808
        %v4823 = vunpack.c.0.s8 %v4822
        %v4824 = vlaneseq
        %v4825 = vshrl.u32 %v4824, 7
        %v4826 = vsub.s32 %v4823, %v4825
        %v4827 = vrot.slane %v4813, %v4826
        %v4828 = vcombine.high %v4820, %v4820
        %v4829 = vcombine.high %v4827, %v4827
        %v4831 = vunpack.c.l.s4 1983009808
        %v4832 = vunpack.c.0.s8 %v4831
        %v4833 = vlaneseq
        %v4834 = vshrl.u32 %v4833, 7
        %v4835 = vsub.s32 %v4832, %v4834
        %v4836 = vrot.slane %v4120, %v4835
        %v4837 = vcombine.high %v4121, %v4121
        %v4839 = vunpack.c.l.s4 1983009808
        %v4840 = vunpack.c.0.s8 %v4839
        %v4841 = vlaneseq
        %v4842 = vshrl.u32 %v4841, 7
        %v4843 = vsub.s32 %v4840, %v4842
        %v4844 = vrot.slane %v4121, %v4843
        %v4846 = vunpack.c.l.s4 1983009808
        %v4847 = vunpack.c.0.s8 %v4846
        %v4848 = vlaneseq
        %v4849 = vshrl.u32 %v4848, 7
        %v4850 = vsub.s32 %v4847, %v4849
        %v4851 = vrot.slane %v4837, %v4850
        %v4852 = vcombine.high %v4844, %v4844
        %v4853 = vcombine.high %v4851, %v4851
        %v4854 = vcombine.high %v4122, %v4122
        %v4856 = vunpack.c.l.s4 1983009808
        %v4857 = vunpack.c.0.s8 %v4856
        %v4858 = vlaneseq
        %v4859 = vshrl.u32 %v4858, 7
        %v4860 = vsub.s32 %v4857, %v4859
        %v4861 = vrot.slane %v4122, %v4860
        %v4863 = vunpack.c.l.s4 1983009808
        %v4864 = vunpack.c.0.s8 %v4863
        %v4865 = vlaneseq
        %v4866 = vshrl.u32 %v4865, 7
        %v4867 = vsub.s32 %v4864, %v4866
        %v4868 = vrot.slane %v4854, %v4867
        %v4869 = vcombine.high %v4861, %v4861
        %v4870 = vcombine.high %v4868, %v4868
        %v4872 = vunpack.c.l.s4 1983009808
        %v4873 = vunpack.c.0.s8 %v4872
        %v4874 = vlaneseq
        %v4875 = vshrl.u32 %v4874, 7
        %v4876 = vsub.s32 %v4873, %v4875
        %v4877 = vrot.slane %v4123, %v4876
        %v4878 = vcombine.high %v4124, %v4124
        %v4880 = vunpack.c.l.s4 1983009808
        %v4881 = vunpack.c.0.s8 %v4880
        %v4882 = vlaneseq
        %v4883 = vshrl.u32 %v4882, 7
        %v4884 = vsub.s32 %v4881, %v4883
        %v4885 = vrot.slane %v4124, %v4884
        %v4887 = vunpack.c.l.s4 1983009808
        %v4888 = vunpack.c.0.s8 %v4887
        %v4889 = vlaneseq
        %v4890 = vshrl.u32 %v4889, 7
        %v4891 = vsub.s32 %v4888, %v4890
        %v4892 = vrot.slane %v4878, %v4891
        %v4893 = vcombine.high %v4885, %v4885
        %v4894 = vcombine.high %v4892, %v4892
        %v4895 = vcombine.high %v4125, %v4125
        %v4897 = vunpack.c.l.s4 1983009808
        %v4898 = vunpack.c.0.s8 %v4897
        %v4899 = vlaneseq
        %v4900 = vshrl.u32 %v4899, 7
        %v4901 = vsub.s32 %v4898, %v4900
        %v4902 = vrot.slane %v4125, %v4901
        %v4904 = vunpack.c.l.s4 1983009808
        %v4905 = vunpack.c.0.s8 %v4904
        %v4906 = vlaneseq
        %v4907 = vshrl.u32 %v4906, 7
        %v4908 = vsub.s32 %v4905, %v4907
        %v4909 = vrot.slane %v4895, %v4908
        %v4910 = vcombine.high %v4902, %v4902
        %v4911 = vcombine.high %v4909, %v4909
        %v4913 = vunpack.c.l.s4 1983009808
        %v4914 = vunpack.c.0.s8 %v4913
        %v4915 = vlaneseq
        %v4916 = vshrl.u32 %v4915, 7
        %v4917 = vsub.s32 %v4914, %v4916
        %v4918 = vrot.slane %v4126, %v4917
        %s4919 = scalar_lea.vmem %s5, 24
        %v4920 = vld [vmem:[%s4919] sm:$0xff]
        %v4921 = vld [vmem:[%s4919 + $0x8] sm:$0xff]
        %v4922 = vld [vmem:[%s4919 + $0x10] sm:$0xff]
        %v4923 = vcombine.low %v4188, %v4196
        %v4924 = vcombine.low %v4195, %v4197
        %v4926 = vunpack.c.l.s4 1983009808
        %v4927 = vunpack.c.0.s8 %v4926
        %v4928 = vlaneseq
        %v4929 = vshrl.u32 %v4928, 7
        %v4930 = vsub.s32 %v4927, %v4929
        %v4931 = vrot.slane %v4923, %v4930
        %v4933 = vunpack.c.l.s4 1983009808
        %v4934 = vunpack.c.0.s8 %v4933
        %v4935 = vlaneseq
        %v4936 = vshrl.u32 %v4935, 7
        %v4937 = vsub.s32 %v4934, %v4936
        %v4938 = vrot.slane %v4924, %v4937
        %v4939 = vcombine.low %v4931, %v4938
        %v4940 = vcombine.low %v4205, %v4213
        %v4941 = vcombine.low %v4212, %v4214
        %v4943 = vunpack.c.l.s4 1983009808
        %v4944 = vunpack.c.0.s8 %v4943
        %v4945 = vlaneseq
        %v4946 = vshrl.u32 %v4945, 7
        %v4947 = vsub.s32 %v4944, %v4946
        %v4948 = vrot.slane %v4940, %v4947
        %v4950 = vunpack.c.l.s4 1983009808
        %v4951 = vunpack.c.0.s8 %v4950
        %v4952 = vlaneseq
        %v4953 = vshrl.u32 %v4952, 7
        %v4954 = vsub.s32 %v4951, %v4953
        %v4955 = vrot.slane %v4941, %v4954
        %v4956 = vcombine.low %v4948, %v4955
        %v4957 = vcombine.low %v4221, %v4229
        %v4958 = vcombine.low %v4237, %v4236
        %v4960 = vunpack.c.l.s4 1983009808
        %v4961 = vunpack.c.0.s8 %v4960
        %v4962 = vlaneseq
        %v4963 = vshrl.u32 %v4962, 7
        %v4964 = vsub.s32 %v4961, %v4963
        %v4965 = vrot.slane %v4957, %v4964
        %v4967 = vunpack.c.l.s4 1983009808
        %v4968 = vunpack.c.0.s8 %v4967
        %v4969 = vlaneseq
        %v4970 = vshrl.u32 %v4969, 7
        %v4971 = vsub.s32 %v4968, %v4970
        %v4972 = vrot.slane %v4958, %v4971
        %v4973 = vcombine.low %v4965, %v4972
        %v4974 = vcombine.low %v4238, %v4246
        %v4975 = vcombine.low %v4254, %v4253
        %v4977 = vunpack.c.l.s4 1983009808
        %v4978 = vunpack.c.0.s8 %v4977
        %v4979 = vlaneseq
        %v4980 = vshrl.u32 %v4979, 7
        %v4981 = vsub.s32 %v4978, %v4980
        %v4982 = vrot.slane %v4974, %v4981
        %v4984 = vunpack.c.l.s4 1983009808
        %v4985 = vunpack.c.0.s8 %v4984
        %v4986 = vlaneseq
        %v4987 = vshrl.u32 %v4986, 7
        %v4988 = vsub.s32 %v4985, %v4987
        %v4989 = vrot.slane %v4975, %v4988
        %v4990 = vcombine.low %v4982, %v4989
        %v4991 = vcombine.low %v4255, %v4262
        %v4992 = vcombine.low %v4270, %v4278
        %v4994 = vunpack.c.l.s4 1983009808
        %v4995 = vunpack.c.0.s8 %v4994
        %v4996 = vlaneseq
        %v4997 = vshrl.u32 %v4996, 7
        %v4998 = vsub.s32 %v4995, %v4997
        %v4999 = vrot.slane %v4991, %v4998
        %v5001 = vunpack.c.l.s4 1983009808
        %v5002 = vunpack.c.0.s8 %v5001
        %v5003 = vlaneseq
        %v5004 = vshrl.u32 %v5003, 7
        %v5005 = vsub.s32 %v5002, %v5004
        %v5006 = vrot.slane %v4992, %v5005
        %v5007 = vcombine.low %v4999, %v5006
        %v5008 = vcombine.low %v4277, %v4279
        %v5009 = vcombine.low %v4287, %v4295
        %v5011 = vunpack.c.l.s4 1983009808
        %v5012 = vunpack.c.0.s8 %v5011
        %v5013 = vlaneseq
        %v5014 = vshrl.u32 %v5013, 7
        %v5015 = vsub.s32 %v5012, %v5014
        %v5016 = vrot.slane %v5008, %v5015
        %v5018 = vunpack.c.l.s4 1983009808
        %v5019 = vunpack.c.0.s8 %v5018
        %v5020 = vlaneseq
        %v5021 = vshrl.u32 %v5020, 7
        %v5022 = vsub.s32 %v5019, %v5021
        %v5023 = vrot.slane %v5009, %v5022
        %v5024 = vcombine.low %v5016, %v5023
        %v5025 = vcombine.low %v4294, %v4296
        %v5026 = vcombine.low %v4303, %v4311
        %v5028 = vunpack.c.l.s4 1983009808
        %v5029 = vunpack.c.0.s8 %v5028
        %v5030 = vlaneseq
        %v5031 = vshrl.u32 %v5030, 7
        %v5032 = vsub.s32 %v5029, %v5031
        %v5033 = vrot.slane %v5025, %v5032
        %v5035 = vunpack.c.l.s4 1983009808
        %v5036 = vunpack.c.0.s8 %v5035
        %v5037 = vlaneseq
        %v5038 = vshrl.u32 %v5037, 7
        %v5039 = vsub.s32 %v5036, %v5038
        %v5040 = vrot.slane %v5026, %v5039
        %v5041 = vcombine.low %v5033, %v5040
        %v5042 = vcombine.low %v4319, %v4318
        %v5043 = vcombine.low %v4320, %v4328
        %v5045 = vunpack.c.l.s4 1983009808
        %v5046 = vunpack.c.0.s8 %v5045
        %v5047 = vlaneseq
        %v5048 = vshrl.u32 %v5047, 7
        %v5049 = vsub.s32 %v5046, %v5048
        %v5050 = vrot.slane %v5042, %v5049
        %v5052 = vunpack.c.l.s4 1983009808
        %v5053 = vunpack.c.0.s8 %v5052
        %v5054 = vlaneseq
        %v5055 = vshrl.u32 %v5054, 7
        %v5056 = vsub.s32 %v5053, %v5055
        %v5057 = vrot.slane %v5043, %v5056
        %v5058 = vcombine.low %v5050, %v5057
        %v5059 = vcombine.low %v4336, %v4335
        %v5060 = vcombine.low %v4337, %v4344
        %v5062 = vunpack.c.l.s4 1983009808
        %v5063 = vunpack.c.0.s8 %v5062
        %v5064 = vlaneseq
        %v5065 = vshrl.u32 %v5064, 7
        %v5066 = vsub.s32 %v5063, %v5065
        %v5067 = vrot.slane %v5059, %v5066
        %v5069 = vunpack.c.l.s4 1983009808
        %v5070 = vunpack.c.0.s8 %v5069
        %v5071 = vlaneseq
        %v5072 = vshrl.u32 %v5071, 7
        %v5073 = vsub.s32 %v5070, %v5072
        %v5074 = vrot.slane %v5060, %v5073
        %v5075 = vcombine.low %v5067, %v5074
        %v5076 = vcombine.low %v4352, %v4360
        %v5077 = vcombine.low %v4359, %v4361
        %v5079 = vunpack.c.l.s4 1983009808
        %v5080 = vunpack.c.0.s8 %v5079
        %v5081 = vlaneseq
        %v5082 = vshrl.u32 %v5081, 7
        %v5083 = vsub.s32 %v5080, %v5082
        %v5084 = vrot.slane %v5076, %v5083
        %v5086 = vunpack.c.l.s4 1983009808
        %v5087 = vunpack.c.0.s8 %v5086
        %v5088 = vlaneseq
        %v5089 = vshrl.u32 %v5088, 7
        %v5090 = vsub.s32 %v5087, %v5089
        %v5091 = vrot.slane %v5077, %v5090
        %v5092 = vcombine.low %v5084, %v5091
        %v5093 = vcombine.low %v4369, %v4377
        %v5094 = vcombine.low %v4376, %v4378
        %v5096 = vunpack.c.l.s4 1983009808
        %v5097 = vunpack.c.0.s8 %v5096
        %v5098 = vlaneseq
        %v5099 = vshrl.u32 %v5098, 7
        %v5100 = vsub.s32 %v5097, %v5099
        %v5101 = vrot.slane %v5093, %v5100
        %v5103 = vunpack.c.l.s4 1983009808
        %v5104 = vunpack.c.0.s8 %v5103
        %v5105 = vlaneseq
        %v5106 = vshrl.u32 %v5105, 7
        %v5107 = vsub.s32 %v5104, %v5106
        %v5108 = vrot.slane %v5094, %v5107
        %v5109 = vcombine.low %v5101, %v5108
        %v5110 = vcombine.low %v4385, %v4393
        %v5111 = vcombine.low %v4401, %v4400
        %v5113 = vunpack.c.l.s4 1983009808
        %v5114 = vunpack.c.0.s8 %v5113
        %v5115 = vlaneseq
        %v5116 = vshrl.u32 %v5115, 7
        %v5117 = vsub.s32 %v5114, %v5116
        %v5118 = vrot.slane %v5110, %v5117
        %v5120 = vunpack.c.l.s4 1983009808
        %v5121 = vunpack.c.0.s8 %v5120
        %v5122 = vlaneseq
        %v5123 = vshrl.u32 %v5122, 7
        %v5124 = vsub.s32 %v5121, %v5123
        %v5125 = vrot.slane %v5111, %v5124
        %v5126 = vcombine.low %v5118, %v5125
        %v5127 = vcombine.low %v4402, %v4410
        %v5128 = vcombine.low %v4418, %v4417
        %v5130 = vunpack.c.l.s4 1983009808
        %v5131 = vunpack.c.0.s8 %v5130
        %v5132 = vlaneseq
        %v5133 = vshrl.u32 %v5132, 7
        %v5134 = vsub.s32 %v5131, %v5133
        %v5135 = vrot.slane %v5127, %v5134
        %v5137 = vunpack.c.l.s4 1983009808
        %v5138 = vunpack.c.0.s8 %v5137
        %v5139 = vlaneseq
        %v5140 = vshrl.u32 %v5139, 7
        %v5141 = vsub.s32 %v5138, %v5140
        %v5142 = vrot.slane %v5128, %v5141
        %v5143 = vcombine.low %v5135, %v5142
        %v5144 = vcombine.low %v4419, %v4426
        %v5145 = vcombine.low %v4434, %v4442
        %v5147 = vunpack.c.l.s4 1983009808
        %v5148 = vunpack.c.0.s8 %v5147
        %v5149 = vlaneseq
        %v5150 = vshrl.u32 %v5149, 7
        %v5151 = vsub.s32 %v5148, %v5150
        %v5152 = vrot.slane %v5144, %v5151
        %v5154 = vunpack.c.l.s4 1983009808
        %v5155 = vunpack.c.0.s8 %v5154
        %v5156 = vlaneseq
        %v5157 = vshrl.u32 %v5156, 7
        %v5158 = vsub.s32 %v5155, %v5157
        %v5159 = vrot.slane %v5145, %v5158
        %v5160 = vcombine.low %v5152, %v5159
        %v5161 = vcombine.low %v4441, %v4443
        %v5162 = vcombine.low %v4451, %v4459
        %v5164 = vunpack.c.l.s4 1983009808
        %v5165 = vunpack.c.0.s8 %v5164
        %v5166 = vlaneseq
        %v5167 = vshrl.u32 %v5166, 7
        %v5168 = vsub.s32 %v5165, %v5167
        %v5169 = vrot.slane %v5161, %v5168
        %v5171 = vunpack.c.l.s4 1983009808
        %v5172 = vunpack.c.0.s8 %v5171
        %v5173 = vlaneseq
        %v5174 = vshrl.u32 %v5173, 7
        %v5175 = vsub.s32 %v5172, %v5174
        %v5176 = vrot.slane %v5162, %v5175
        %v5177 = vcombine.low %v5169, %v5176
        %v5178 = vcombine.low %v4458, %v4460
        %v5179 = vcombine.low %v4467, %v4475
        %v5181 = vunpack.c.l.s4 1983009808
        %v5182 = vunpack.c.0.s8 %v5181
        %v5183 = vlaneseq
        %v5184 = vshrl.u32 %v5183, 7
        %v5185 = vsub.s32 %v5182, %v5184
        %v5186 = vrot.slane %v5178, %v5185
        %v5188 = vunpack.c.l.s4 1983009808
        %v5189 = vunpack.c.0.s8 %v5188
        %v5190 = vlaneseq
        %v5191 = vshrl.u32 %v5190, 7
        %v5192 = vsub.s32 %v5189, %v5191
        %v5193 = vrot.slane %v5179, %v5192
        %v5194 = vcombine.low %v5186, %v5193
        %v5195 = vcombine.low %v4483, %v4482
        %v5196 = vcombine.low %v4484, %v4492
        %v5198 = vunpack.c.l.s4 1983009808
        %v5199 = vunpack.c.0.s8 %v5198
        %v5200 = vlaneseq
        %v5201 = vshrl.u32 %v5200, 7
        %v5202 = vsub.s32 %v5199, %v5201
        %v5203 = vrot.slane %v5195, %v5202
        %v5205 = vunpack.c.l.s4 1983009808
        %v5206 = vunpack.c.0.s8 %v5205
        %v5207 = vlaneseq
        %v5208 = vshrl.u32 %v5207, 7
        %v5209 = vsub.s32 %v5206, %v5208
        %v5210 = vrot.slane %v5196, %v5209
        %v5211 = vcombine.low %v5203, %v5210
        %v5212 = vcombine.low %v4500, %v4499
        %v5213 = vcombine.low %v4501, %v4508
        %v5215 = vunpack.c.l.s4 1983009808
        %v5216 = vunpack.c.0.s8 %v5215
        %v5217 = vlaneseq
        %v5218 = vshrl.u32 %v5217, 7
        %v5219 = vsub.s32 %v5216, %v5218
        %v5220 = vrot.slane %v5212, %v5219
        %v5222 = vunpack.c.l.s4 1983009808
        %v5223 = vunpack.c.0.s8 %v5222
        %v5224 = vlaneseq
        %v5225 = vshrl.u32 %v5224, 7
        %v5226 = vsub.s32 %v5223, %v5225
        %v5227 = vrot.slane %v5213, %v5226
        %v5228 = vcombine.low %v5220, %v5227
        %v5229 = vcombine.low %v4516, %v4524
        %v5230 = vcombine.low %v4523, %v4525
        %v5232 = vunpack.c.l.s4 1983009808
        %v5233 = vunpack.c.0.s8 %v5232
        %v5234 = vlaneseq
        %v5235 = vshrl.u32 %v5234, 7
        %v5236 = vsub.s32 %v5233, %v5235
        %v5237 = vrot.slane %v5229, %v5236
        %v5239 = vunpack.c.l.s4 1983009808
        %v5240 = vunpack.c.0.s8 %v5239
        %v5241 = vlaneseq
        %v5242 = vshrl.u32 %v5241, 7
        %v5243 = vsub.s32 %v5240, %v5242
        %v5244 = vrot.slane %v5230, %v5243
        %v5245 = vcombine.low %v5237, %v5244
        %v5246 = vcombine.low %v4533, %v4541
        %v5247 = vcombine.low %v4540, %v4542
        %v5249 = vunpack.c.l.s4 1983009808
        %v5250 = vunpack.c.0.s8 %v5249
        %v5251 = vlaneseq
        %v5252 = vshrl.u32 %v5251, 7
        %v5253 = vsub.s32 %v5250, %v5252
        %v5254 = vrot.slane %v5246, %v5253
        %v5256 = vunpack.c.l.s4 1983009808
        %v5257 = vunpack.c.0.s8 %v5256
        %v5258 = vlaneseq
        %v5259 = vshrl.u32 %v5258, 7
        %v5260 = vsub.s32 %v5257, %v5259
        %v5261 = vrot.slane %v5247, %v5260
        %v5262 = vcombine.low %v5254, %v5261
        %v5263 = vcombine.low %v4549, %v4557
        %v5264 = vcombine.low %v4565, %v4564
        %v5266 = vunpack.c.l.s4 1983009808
        %v5267 = vunpack.c.0.s8 %v5266
        %v5268 = vlaneseq
        %v5269 = vshrl.u32 %v5268, 7
        %v5270 = vsub.s32 %v5267, %v5269
        %v5271 = vrot.slane %v5263, %v5270
        %v5273 = vunpack.c.l.s4 1983009808
        %v5274 = vunpack.c.0.s8 %v5273
        %v5275 = vlaneseq
        %v5276 = vshrl.u32 %v5275, 7
        %v5277 = vsub.s32 %v5274, %v5276
        %v5278 = vrot.slane %v5264, %v5277
        %v5279 = vcombine.low %v5271, %v5278
        %v5280 = vcombine.low %v4566, %v4574
        %v5281 = vcombine.low %v4582, %v4581
        %v5283 = vunpack.c.l.s4 1983009808
        %v5284 = vunpack.c.0.s8 %v5283
        %v5285 = vlaneseq
        %v5286 = vshrl.u32 %v5285, 7
        %v5287 = vsub.s32 %v5284, %v5286
        %v5288 = vrot.slane %v5280, %v5287
        %v5290 = vunpack.c.l.s4 1983009808
        %v5291 = vunpack.c.0.s8 %v5290
        %v5292 = vlaneseq
        %v5293 = vshrl.u32 %v5292, 7
        %v5294 = vsub.s32 %v5291, %v5293
        %v5295 = vrot.slane %v5281, %v5294
        %v5296 = vcombine.low %v5288, %v5295
        %v5297 = vcombine.low %v4583, %v4590
        %v5298 = vcombine.low %v4598, %v4606
        %v5300 = vunpack.c.l.s4 1983009808
        %v5301 = vunpack.c.0.s8 %v5300
        %v5302 = vlaneseq
        %v5303 = vshrl.u32 %v5302, 7
        %v5304 = vsub.s32 %v5301, %v5303
        %v5305 = vrot.slane %v5297, %v5304
        %v5307 = vunpack.c.l.s4 1983009808
        %v5308 = vunpack.c.0.s8 %v5307
        %v5309 = vlaneseq
        %v5310 = vshrl.u32 %v5309, 7
        %v5311 = vsub.s32 %v5308, %v5310
        %v5312 = vrot.slane %v5298, %v5311
        %v5313 = vcombine.low %v5305, %v5312
        %v5314 = vcombine.low %v4605, %v4607
        %v5315 = vcombine.low %v4615, %v4623
        %v5317 = vunpack.c.l.s4 1983009808
        %v5318 = vunpack.c.0.s8 %v5317
        %v5319 = vlaneseq
        %v5320 = vshrl.u32 %v5319, 7
        %v5321 = vsub.s32 %v5318, %v5320
        %v5322 = vrot.slane %v5314, %v5321
        %v5324 = vunpack.c.l.s4 1983009808
        %v5325 = vunpack.c.0.s8 %v5324
        %v5326 = vlaneseq
        %v5327 = vshrl.u32 %v5326, 7
        %v5328 = vsub.s32 %v5325, %v5327
        %v5329 = vrot.slane %v5315, %v5328
        %v5330 = vcombine.low %v5322, %v5329
        %v5331 = vcombine.low %v4622, %v4624
        %v5332 = vcombine.low %v4631, %v4639
        %v5334 = vunpack.c.l.s4 1983009808
        %v5335 = vunpack.c.0.s8 %v5334
        %v5336 = vlaneseq
        %v5337 = vshrl.u32 %v5336, 7
        %v5338 = vsub.s32 %v5335, %v5337
        %v5339 = vrot.slane %v5331, %v5338
        %v5341 = vunpack.c.l.s4 1983009808
        %v5342 = vunpack.c.0.s8 %v5341
        %v5343 = vlaneseq
        %v5344 = vshrl.u32 %v5343, 7
        %v5345 = vsub.s32 %v5342, %v5344
        %v5346 = vrot.slane %v5332, %v5345
        %v5347 = vcombine.low %v5339, %v5346
        %v5348 = vcombine.low %v4647, %v4646
        %v5349 = vcombine.low %v4648, %v4656
        %v5351 = vunpack.c.l.s4 1983009808
        %v5352 = vunpack.c.0.s8 %v5351
        %v5353 = vlaneseq
        %v5354 = vshrl.u32 %v5353, 7
        %v5355 = vsub.s32 %v5352, %v5354
        %v5356 = vrot.slane %v5348, %v5355
        %v5358 = vunpack.c.l.s4 1983009808
        %v5359 = vunpack.c.0.s8 %v5358
        %v5360 = vlaneseq
        %v5361 = vshrl.u32 %v5360, 7
        %v5362 = vsub.s32 %v5359, %v5361
        %v5363 = vrot.slane %v5349, %v5362
        %v5364 = vcombine.low %v5356, %v5363
        %v5365 = vcombine.low %v4664, %v4663
        %v5366 = vcombine.low %v4665, %v4672
        %v5368 = vunpack.c.l.s4 1983009808
        %v5369 = vunpack.c.0.s8 %v5368
        %v5370 = vlaneseq
        %v5371 = vshrl.u32 %v5370, 7
        %v5372 = vsub.s32 %v5369, %v5371
        %v5373 = vrot.slane %v5365, %v5372
        %v5375 = vunpack.c.l.s4 1983009808
        %v5376 = vunpack.c.0.s8 %v5375
        %v5377 = vlaneseq
        %v5378 = vshrl.u32 %v5377, 7
        %v5379 = vsub.s32 %v5376, %v5378
        %v5380 = vrot.slane %v5366, %v5379
        %v5381 = vcombine.low %v5373, %v5380
        %v5382 = vcombine.low %v4680, %v4688
        %v5383 = vcombine.low %v4687, %v4689
        %v5385 = vunpack.c.l.s4 1983009808
        %v5386 = vunpack.c.0.s8 %v5385
        %v5387 = vlaneseq
        %v5388 = vshrl.u32 %v5387, 7
        %v5389 = vsub.s32 %v5386, %v5388
        %v5390 = vrot.slane %v5382, %v5389
        %v5392 = vunpack.c.l.s4 1983009808
        %v5393 = vunpack.c.0.s8 %v5392
        %v5394 = vlaneseq
        %v5395 = vshrl.u32 %v5394, 7
        %v5396 = vsub.s32 %v5393, %v5395
        %v5397 = vrot.slane %v5383, %v5396
        %v5398 = vcombine.low %v5390, %v5397
        %v5399 = vcombine.low %v4697, %v4705
        %v5400 = vcombine.low %v4704, %v4706
        %v5402 = vunpack.c.l.s4 1983009808
        %v5403 = vunpack.c.0.s8 %v5402
        %v5404 = vlaneseq
        %v5405 = vshrl.u32 %v5404, 7
        %v5406 = vsub.s32 %v5403, %v5405
        %v5407 = vrot.slane %v5399, %v5406
        %v5409 = vunpack.c.l.s4 1983009808
        %v5410 = vunpack.c.0.s8 %v5409
        %v5411 = vlaneseq
        %v5412 = vshrl.u32 %v5411, 7
        %v5413 = vsub.s32 %v5410, %v5412
        %v5414 = vrot.slane %v5400, %v5413
        %v5415 = vcombine.low %v5407, %v5414
        %v5416 = vcombine.low %v4713, %v4721
        %v5417 = vcombine.low %v4729, %v4728
        %v5419 = vunpack.c.l.s4 1983009808
        %v5420 = vunpack.c.0.s8 %v5419
        %v5421 = vlaneseq
        %v5422 = vshrl.u32 %v5421, 7
        %v5423 = vsub.s32 %v5420, %v5422
        %v5424 = vrot.slane %v5416, %v5423
        %v5426 = vunpack.c.l.s4 1983009808
        %v5427 = vunpack.c.0.s8 %v5426
        %v5428 = vlaneseq
        %v5429 = vshrl.u32 %v5428, 7
        %v5430 = vsub.s32 %v5427, %v5429
        %v5431 = vrot.slane %v5417, %v5430
        %v5432 = vcombine.low %v5424, %v5431
        %v5433 = vcombine.low %v4730, %v4738
        %v5434 = vcombine.low %v4746, %v4745
        %v5436 = vunpack.c.l.s4 1983009808
        %v5437 = vunpack.c.0.s8 %v5436
        %v5438 = vlaneseq
        %v5439 = vshrl.u32 %v5438, 7
        %v5440 = vsub.s32 %v5437, %v5439
        %v5441 = vrot.slane %v5433, %v5440
        %v5443 = vunpack.c.l.s4 1983009808
        %v5444 = vunpack.c.0.s8 %v5443
        %v5445 = vlaneseq
        %v5446 = vshrl.u32 %v5445, 7
        %v5447 = vsub.s32 %v5444, %v5446
        %v5448 = vrot.slane %v5434, %v5447
        %v5449 = vcombine.low %v5441, %v5448
        %v5450 = vcombine.low %v4747, %v4754
        %v5451 = vcombine.low %v4762, %v4770
        %v5453 = vunpack.c.l.s4 1983009808
        %v5454 = vunpack.c.0.s8 %v5453
        %v5455 = vlaneseq
        %v5456 = vshrl.u32 %v5455, 7
        %v5457 = vsub.s32 %v5454, %v5456
        %v5458 = vrot.slane %v5450, %v5457
        %v5460 = vunpack.c.l.s4 1983009808
        %v5461 = vunpack.c.0.s8 %v5460
        %v5462 = vlaneseq
        %v5463 = vshrl.u32 %v5462, 7
        %v5464 = vsub.s32 %v5461, %v5463
        %v5465 = vrot.slane %v5451, %v5464
        %v5466 = vcombine.low %v5458, %v5465
        %v5467 = vcombine.low %v4769, %v4771
        %v5468 = vcombine.low %v4779, %v4787
        %v5470 = vunpack.c.l.s4 1983009808
        %v5471 = vunpack.c.0.s8 %v5470
        %v5472 = vlaneseq
        %v5473 = vshrl.u32 %v5472, 7
        %v5474 = vsub.s32 %v5471, %v5473
        %v5475 = vrot.slane %v5467, %v5474
        %v5477 = vunpack.c.l.s4 1983009808
        %v5478 = vunpack.c.0.s8 %v5477
        %v5479 = vlaneseq
        %v5480 = vshrl.u32 %v5479, 7
        %v5481 = vsub.s32 %v5478, %v5480
        %v5482 = vrot.slane %v5468, %v5481
        %v5483 = vcombine.low %v5475, %v5482
        %v5484 = vcombine.low %v4786, %v4788
        %v5485 = vcombine.low %v4795, %v4803
        %v5487 = vunpack.c.l.s4 1983009808
        %v5488 = vunpack.c.0.s8 %v5487
        %v5489 = vlaneseq
        %v5490 = vshrl.u32 %v5489, 7
        %v5491 = vsub.s32 %v5488, %v5490
        %v5492 = vrot.slane %v5484, %v5491
        %v5494 = vunpack.c.l.s4 1983009808
        %v5495 = vunpack.c.0.s8 %v5494
        %v5496 = vlaneseq
        %v5497 = vshrl.u32 %v5496, 7
        %v5498 = vsub.s32 %v5495, %v5497
        %v5499 = vrot.slane %v5485, %v5498
        %v5500 = vcombine.low %v5492, %v5499
        %v5501 = vcombine.low %v4811, %v4810
        %v5502 = vcombine.low %v4812, %v4820
        %v5504 = vunpack.c.l.s4 1983009808
        %v5505 = vunpack.c.0.s8 %v5504
        %v5506 = vlaneseq
        %v5507 = vshrl.u32 %v5506, 7
        %v5508 = vsub.s32 %v5505, %v5507
        %v5509 = vrot.slane %v5501, %v5508
        %v5511 = vunpack.c.l.s4 1983009808
        %v5512 = vunpack.c.0.s8 %v5511
        %v5513 = vlaneseq
        %v5514 = vshrl.u32 %v5513, 7
        %v5515 = vsub.s32 %v5512, %v5514
        %v5516 = vrot.slane %v5502, %v5515
        %v5517 = vcombine.low %v5509, %v5516
        %v5518 = vcombine.low %v4828, %v4827
        %v5519 = vcombine.low %v4829, %v4836
        %v5521 = vunpack.c.l.s4 1983009808
        %v5522 = vunpack.c.0.s8 %v5521
        %v5523 = vlaneseq
        %v5524 = vshrl.u32 %v5523, 7
        %v5525 = vsub.s32 %v5522, %v5524
        %v5526 = vrot.slane %v5518, %v5525
        %v5528 = vunpack.c.l.s4 1983009808
        %v5529 = vunpack.c.0.s8 %v5528
        %v5530 = vlaneseq
        %v5531 = vshrl.u32 %v5530, 7
        %v5532 = vsub.s32 %v5529, %v5531
        %v5533 = vrot.slane %v5519, %v5532
        %v5534 = vcombine.low %v5526, %v5533
        %v5535 = vcombine.low %v4844, %v4852
        %v5536 = vcombine.low %v4851, %v4853
        %v5538 = vunpack.c.l.s4 1983009808
        %v5539 = vunpack.c.0.s8 %v5538
        %v5540 = vlaneseq
        %v5541 = vshrl.u32 %v5540, 7
        %v5542 = vsub.s32 %v5539, %v5541
        %v5543 = vrot.slane %v5535, %v5542
        %v5545 = vunpack.c.l.s4 1983009808
        %v5546 = vunpack.c.0.s8 %v5545
        %v5547 = vlaneseq
        %v5548 = vshrl.u32 %v5547, 7
        %v5549 = vsub.s32 %v5546, %v5548
        %v5550 = vrot.slane %v5536, %v5549
        %v5551 = vcombine.low %v5543, %v5550
        %v5552 = vcombine.low %v4861, %v4869
        %v5553 = vcombine.low %v4868, %v4870
        %v5555 = vunpack.c.l.s4 1983009808
        %v5556 = vunpack.c.0.s8 %v5555
        %v5557 = vlaneseq
        %v5558 = vshrl.u32 %v5557, 7
        %v5559 = vsub.s32 %v5556, %v5558
        %v5560 = vrot.slane %v5552, %v5559
        %v5562 = vunpack.c.l.s4 1983009808
        %v5563 = vunpack.c.0.s8 %v5562
        %v5564 = vlaneseq
        %v5565 = vshrl.u32 %v5564, 7
        %v5566 = vsub.s32 %v5563, %v5565
        %v5567 = vrot.slane %v5553, %v5566
        %v5568 = vcombine.low %v5560, %v5567
        %v5569 = vcombine.low %v4877, %v4885
        %v5570 = vcombine.low %v4893, %v4892
        %v5572 = vunpack.c.l.s4 1983009808
        %v5573 = vunpack.c.0.s8 %v5572
        %v5574 = vlaneseq
        %v5575 = vshrl.u32 %v5574, 7
        %v5576 = vsub.s32 %v5573, %v5575
        %v5577 = vrot.slane %v5569, %v5576
        %v5579 = vunpack.c.l.s4 1983009808
        %v5580 = vunpack.c.0.s8 %v5579
        %v5581 = vlaneseq
        %v5582 = vshrl.u32 %v5581, 7
        %v5583 = vsub.s32 %v5580, %v5582
        %v5584 = vrot.slane %v5570, %v5583
        %v5585 = vcombine.low %v5577, %v5584
        %v5586 = vcombine.low %v4894, %v4902
        %v5587 = vcombine.low %v4910, %v4909
        %v5589 = vunpack.c.l.s4 1983009808
        %v5590 = vunpack.c.0.s8 %v5589
        %v5591 = vlaneseq
        %v5592 = vshrl.u32 %v5591, 7
        %v5593 = vsub.s32 %v5590, %v5592
        %v5594 = vrot.slane %v5586, %v5593
        %v5596 = vunpack.c.l.s4 1983009808
        %v5597 = vunpack.c.0.s8 %v5596
        %v5598 = vlaneseq
        %v5599 = vshrl.u32 %v5598, 7
        %v5600 = vsub.s32 %v5597, %v5599
        %v5601 = vrot.slane %v5587, %v5600
        %v5602 = vcombine.low %v5594, %v5601
        %v5603 = vcombine.low %v4911, %v4918
        %v5605 = vunpack.c.l.s4 1983009808
        %v5606 = vunpack.c.0.s8 %v5605
        %v5607 = vlaneseq
        %v5608 = vshrl.u32 %v5607, 7
        %v5609 = vsub.s32 %v5606, %v5608
        %v5610 = vrot.slane %v5603, %v5609
        %v5611 = vsel %vm1249, %v4939, 0
        %v5613 = vsel %vm1249, %v4956, 0
        %v5615 = vsel %vm1249, %v4973, 0
        %v5617 = vsel %vm1249, %v4990, 0
        %v5619 = vsel %vm1249, %v5007, 0
        %v5621 = vsel %vm1249, %v5024, 0
        %v5623 = vsel %vm1249, %v5041, 0
        %v5625 = vsel %vm1249, %v5058, 0
        %v5627 = vsel %vm1249, %v5075, 0
        %v5629 = vsel %vm1249, %v5092, 0
        %v5631 = vsel %vm1249, %v5109, 0
        %v5633 = vsel %vm1249, %v5126, 0
        %v5635 = vsel %vm1249, %v5143, 0
        %v5637 = vsel %vm1249, %v5160, 0
        %v5639 = vsel %vm1249, %v5177, 0
        %v5641 = vsel %vm1249, %v5194, 0
        %v5643 = vsel %vm1249, %v5211, 0
        %v5645 = vsel %vm1249, %v5228, 0
        %v5647 = vsel %vm1249, %v5245, 0
        %v5649 = vsel %vm1249, %v5262, 0
        %v5651 = vsel %vm1249, %v5279, 0
        %v5653 = vsel %vm1249, %v5296, 0
        %v5655 = vsel %vm1249, %v5313, 0
        %v5657 = vsel %vm1249, %v5330, 0
        %v5659 = vsel %vm1249, %v5347, 0
        %v5661 = vsel %vm1249, %v5364, 0
        %v5663 = vsel %vm1249, %v5381, 0
        %v5665 = vsel %vm1249, %v5398, 0
        %v5667 = vsel %vm1249, %v5415, 0
        %v5669 = vsel %vm1249, %v5432, 0
        %v5671 = vsel %vm1249, %v5449, 0
        %v5673 = vsel %vm1249, %v5466, 0
        %v5675 = vsel %vm1249, %v5483, 0
        %v5677 = vsel %vm1249, %v5500, 0
        %v5679 = vsel %vm1249, %v5517, 0
        %v5681 = vsel %vm1249, %v5534, 0
        %v5683 = vsel %vm1249, %v5551, 0
        %v5685 = vsel %vm1249, %v5568, 0
        %v5687 = vsel %vm1249, %v5585, 0
        %v5689 = vsel %vm1249, %v5602, 0
        %v5691 = vsel %vm1249, %v5610, 0
        %5693 = vmatprep.subr.mxu0 0.0
        %5694 = vmatpush1.msra.mxu0 %v4920
        %5695 = vmatprep.subr.mxu0 0.0
        %5696 = vmatpush1.msra.mxu0 %v4921
        %5697 = vmatprep.subr.mxu0 0.0
        %5698 = vmatpush1.msra.mxu0 %v4922
        %5699 = vmatprep.subr.mxu0 0.0
        %5700 = vmatpush1.msra.mxu0 0.0
        %5701 = vmatprep.subr.mxu0 0.0
        %5702 = vmatpush1.msra.mxu0 0.0
        %5703 = vmatprep.subr.mxu0 0.0
        %5704 = vmatpush1.msra.mxu0 0.0
        %5705 = vmatprep.subr.mxu0 0.0
        %5706 = vmatpush1.msra.mxu0 0.0
        %5707 = vmatprep.subr.mxu0 0.0
        %5708 = vmatpush1.msra.mxu0 0.0
        %5709 = vmatprep.subr.mxu0 0.0
        %5710 = vmatpush1.msra.mxu0 0.0
        %5711 = vmatprep.subr.mxu0 0.0
        %5712 = vmatpush1.msra.mxu0 0.0
        %5713 = vmatprep.subr.mxu0 0.0
        %5714 = vmatpush1.msra.mxu0 0.0
        %5715 = vmatprep.subr.mxu0 0.0
        %5716 = vmatpush1.msra.mxu0 0.0
        %5717 = vmatprep.subr.mxu0 0.0
        %5718 = vmatpush1.msra.mxu0 0.0
        %5719 = vmatprep.subr.mxu0 0.0
        %5720 = vmatpush1.msra.mxu0 0.0
        %5721 = vmatprep.subr.mxu0 0.0
        %5722 = vmatpush1.msra.mxu0 0.0
        %5723 = vmatprep.subr.mxu0 0.0
        %5724 = vmatpush1.msra.mxu0 0.0
        %5725 = vmatprep.subr.mxu0 0.0
        %5726 = vmatpush1.msra.mxu0 0.0
        %5727 = vmatprep.subr.mxu0 0.0
        %5728 = vmatpush1.msra.mxu0 0.0
        %5729 = vmatprep.subr.mxu0 0.0
        %5730 = vmatpush1.msra.mxu0 0.0
        %5731 = vmatprep.subr.mxu0 0.0
        %5732 = vmatpush1.msra.mxu0 0.0
        %5733 = vmatprep.subr.mxu0 0.0
        %5734 = vmatpush1.msra.mxu0 0.0
        %5735 = vmatprep.subr.mxu0 0.0
        %5736 = vmatpush1.msra.mxu0 0.0
        %5737 = vmatprep.subr.mxu0 0.0
        %5738 = vmatpush1.msra.mxu0 0.0
        %5739 = vmatprep.subr.mxu0 0.0
        %5740 = vmatpush1.msra.mxu0 0.0
        %5741 = vmatprep.subr.mxu0 0.0
        %5742 = vmatpush1.msra.mxu0 0.0
        %5743 = vmatprep.subr.mxu0 0.0
        %5744 = vmatpush1.msra.mxu0 0.0
        %5745 = vmatprep.subr.mxu0 0.0
        %5746 = vmatpush1.msra.mxu0 0.0
        %5747 = vmatprep.subr.mxu0 0.0
        %5748 = vmatpush1.msra.mxu0 0.0
        %5749 = vmatprep.subr.mxu0 0.0
        %5750 = vmatpush1.msra.mxu0 0.0
        %5751 = vmatprep.subr.mxu0 0.0
        %5752 = vmatpush1.msra.mxu0 0.0
        %5753 = vmatprep.subr.mxu0 0.0
        %5754 = vmatpush1.msra.mxu0 0.0
        %5755 = vmatprep.subr.mxu0 0.0
        %5756 = vmatpush1.msra.mxu0 0.0
        %5757 = vmatprep.mubr.f32.mxu0 0.0
        %5758 = vmatmul.mubr.f32.gmra.mrb[0].mxu0 %v5611
        %v5759 = vpop.f32.mrb[0].mxu0
        %v5760 = vadd.f32 0.0, %v5759
        %v5761 = vpop.f32.mrb[0].mxu0
        %5762 = vmatprep.mubr.f32.mxu0 0.0
        %5763 = vmatmul.mubr.f32.gmra.mrb[0].mxu0 %v5613
        %v5764 = vpop.f32.mrb[0].mxu0
        %v5765 = vadd.f32 0.0, %v5764
        %v5766 = vpop.f32.mrb[0].mxu0
        %5767 = vmatprep.mubr.f32.mxu0 0.0
        %5768 = vmatmul.mubr.f32.gmra.mrb[0].mxu0 %v5615
        %v5769 = vpop.f32.mrb[0].mxu0
        %v5770 = vadd.f32 0.0, %v5769
        %v5771 = vpop.f32.mrb[0].mxu0
        %5772 = vmatprep.mubr.f32.mxu0 0.0
        %5773 = vmatmul.mubr.f32.gmra.mrb[0].mxu0 %v5617
        %v5774 = vpop.f32.mrb[0].mxu0
        %v5775 = vadd.f32 0.0, %v5774
        %v5776 = vpop.f32.mrb[0].mxu0
        %5777 = vmatprep.mubr.f32.mxu0 0.0
        %5778 = vmatmul.mubr.f32.gmra.mrb[0].mxu0 %v5619
        %v5779 = vpop.f32.mrb[0].mxu0
        %v5780 = vadd.f32 0.0, %v5779
        %v5781 = vpop.f32.mrb[0].mxu0
        %5782 = vmatprep.mubr.f32.mxu0 0.0
        %5783 = vmatmul.mubr.f32.gmra.mrb[0].mxu0 %v5621
        %v5784 = vpop.f32.mrb[0].mxu0
        %v5785 = vadd.f32 0.0, %v5784
        %v5786 = vpop.f32.mrb[0].mxu0
        %5787 = vmatprep.mubr.f32.mxu0 0.0
        %5788 = vmatmul.mubr.f32.gmra.mrb[0].mxu0 %v5623
        %v5789 = vpop.f32.mrb[0].mxu0
        %v5790 = vadd.f32 0.0, %v5789
        %v5791 = vpop.f32.mrb[0].mxu0
        %5792 = vmatprep.mubr.f32.mxu0 0.0
        %5793 = vmatmul.mubr.f32.gmra.mrb[0].mxu0 %v5625
        %v5794 = vpop.f32.mrb[0].mxu0
        %v5795 = vadd.f32 0.0, %v5794
        %v5796 = vpop.f32.mrb[0].mxu0
        %5797 = vmatprep.mubr.f32.mxu0 0.0
        %5798 = vmatmul.mubr.f32.gmra.mrb[0].mxu0 %v5627
        %v5799 = vpop.f32.mrb[0].mxu0
        %v5800 = vadd.f32 0.0, %v5799
        %v5801 = vpop.f32.mrb[0].mxu0
        %5802 = vmatprep.mubr.f32.mxu0 0.0
        %5803 = vmatmul.mubr.f32.gmra.mrb[0].mxu0 %v5629
        %v5804 = vpop.f32.mrb[0].mxu0
        %v5805 = vadd.f32 0.0, %v5804
        %v5806 = vpop.f32.mrb[0].mxu0
        %5807 = vmatprep.mubr.f32.mxu0 0.0
        %5808 = vmatmul.mubr.f32.gmra.mrb[0].mxu0 %v5631
        %v5809 = vpop.f32.mrb[0].mxu0
        %v5810 = vadd.f32 0.0, %v5809
        %v5811 = vpop.f32.mrb[0].mxu0
        %5812 = vmatprep.mubr.f32.mxu0 0.0
        %5813 = vmatmul.mubr.f32.gmra.mrb[0].mxu0 %v5633
        %v5814 = vpop.f32.mrb[0].mxu0
        %v5815 = vadd.f32 0.0, %v5814
        %v5816 = vpop.f32.mrb[0].mxu0
        %5817 = vmatprep.mubr.f32.mxu0 0.0
        %5818 = vmatmul.mubr.f32.gmra.mrb[0].mxu0 %v5635
        %v5819 = vpop.f32.mrb[0].mxu0
        %v5820 = vadd.f32 0.0, %v5819
        %v5821 = vpop.f32.mrb[0].mxu0
        %5822 = vmatprep.mubr.f32.mxu0 0.0
        %5823 = vmatmul.mubr.f32.gmra.mrb[0].mxu0 %v5637
        %v5824 = vpop.f32.mrb[0].mxu0
        %v5825 = vadd.f32 0.0, %v5824
        %v5826 = vpop.f32.mrb[0].mxu0
        %5827 = vmatprep.mubr.f32.mxu0 0.0
        %5828 = vmatmul.mubr.f32.gmra.mrb[0].mxu0 %v5639
        %v5829 = vpop.f32.mrb[0].mxu0
        %v5830 = vadd.f32 0.0, %v5829
        %v5831 = vpop.f32.mrb[0].mxu0
        %5832 = vmatprep.mubr.f32.mxu0 0.0
        %5833 = vmatmul.mubr.f32.gmra.mrb[0].mxu0 %v5641
        %v5834 = vpop.f32.mrb[0].mxu0
        %v5835 = vadd.f32 0.0, %v5834
        %v5836 = vpop.f32.mrb[0].mxu0
        %5837 = vmatprep.mubr.f32.mxu0 0.0
        %5838 = vmatmul.mubr.f32.gmra.mrb[0].mxu0 %v5643
        %v5839 = vpop.f32.mrb[0].mxu0
        %v5840 = vadd.f32 0.0, %v5839
        %v5841 = vpop.f32.mrb[0].mxu0
        %5842 = vmatprep.mubr.f32.mxu0 0.0
        %5843 = vmatmul.mubr.f32.gmra.mrb[0].mxu0 %v5645
        %v5844 = vpop.f32.mrb[0].mxu0
        %v5845 = vadd.f32 0.0, %v5844
        %v5846 = vpop.f32.mrb[0].mxu0
        %5847 = vmatprep.mubr.f32.mxu0 0.0
        %5848 = vmatmul.mubr.f32.gmra.mrb[0].mxu0 %v5647
        %v5849 = vpop.f32.mrb[0].mxu0
        %v5850 = vadd.f32 0.0, %v5849
        %v5851 = vpop.f32.mrb[0].mxu0
        %5852 = vmatprep.mubr.f32.mxu0 0.0
        %5853 = vmatmul.mubr.f32.gmra.mrb[0].mxu0 %v5649
        %v5854 = vpop.f32.mrb[0].mxu0
        %v5855 = vadd.f32 0.0, %v5854
        %v5856 = vpop.f32.mrb[0].mxu0
        %5857 = vmatprep.mubr.f32.mxu0 0.0
        %5858 = vmatmul.mubr.f32.gmra.mrb[0].mxu0 %v5651
        %v5859 = vpop.f32.mrb[0].mxu0
        %v5860 = vadd.f32 0.0, %v5859
        %v5861 = vpop.f32.mrb[0].mxu0
        %5862 = vmatprep.mubr.f32.mxu0 0.0
        %5863 = vmatmul.mubr.f32.gmra.mrb[0].mxu0 %v5653
        %v5864 = vpop.f32.mrb[0].mxu0
        %v5865 = vadd.f32 0.0, %v5864
        %v5866 = vpop.f32.mrb[0].mxu0
        %5867 = vmatprep.mubr.f32.mxu0 0.0
        %5868 = vmatmul.mubr.f32.gmra.mrb[0].mxu0 %v5655
        %v5869 = vpop.f32.mrb[0].mxu0
        %v5870 = vadd.f32 0.0, %v5869
        %v5871 = vpop.f32.mrb[0].mxu0
        %5872 = vmatprep.mubr.f32.mxu0 0.0
        %5873 = vmatmul.mubr.f32.gmra.mrb[0].mxu0 %v5657
        %v5874 = vpop.f32.mrb[0].mxu0
        %v5875 = vadd.f32 0.0, %v5874
        %v5876 = vpop.f32.mrb[0].mxu0
        %5877 = vmatprep.mubr.f32.mxu0 0.0
        %5878 = vmatmul.mubr.f32.gmra.mrb[0].mxu0 %v5659
        %v5879 = vpop.f32.mrb[0].mxu0
        %v5880 = vadd.f32 0.0, %v5879
        %v5881 = vpop.f32.mrb[0].mxu0
        %5882 = vmatprep.mubr.f32.mxu0 0.0
        %5883 = vmatmul.mubr.f32.gmra.mrb[0].mxu0 %v5661
        %v5884 = vpop.f32.mrb[0].mxu0
        %v5885 = vadd.f32 0.0, %v5884
        %v5886 = vpop.f32.mrb[0].mxu0
        %5887 = vmatprep.mubr.f32.mxu0 0.0
        %5888 = vmatmul.mubr.f32.gmra.mrb[0].mxu0 %v5663
        %v5889 = vpop.f32.mrb[0].mxu0
        %v5890 = vadd.f32 0.0, %v5889
        %v5891 = vpop.f32.mrb[0].mxu0
        %5892 = vmatprep.mubr.f32.mxu0 0.0
        %5893 = vmatmul.mubr.f32.gmra.mrb[0].mxu0 %v5665
        %v5894 = vpop.f32.mrb[0].mxu0
        %v5895 = vadd.f32 0.0, %v5894
        %v5896 = vpop.f32.mrb[0].mxu0
        %5897 = vmatprep.mubr.f32.mxu0 0.0
        %5898 = vmatmul.mubr.f32.gmra.mrb[0].mxu0 %v5667
        %v5899 = vpop.f32.mrb[0].mxu0
        %v5900 = vadd.f32 0.0, %v5899
        %v5901 = vpop.f32.mrb[0].mxu0
        %5902 = vmatprep.mubr.f32.mxu0 0.0
        %5903 = vmatmul.mubr.f32.gmra.mrb[0].mxu0 %v5669
        %v5904 = vpop.f32.mrb[0].mxu0
        %v5905 = vadd.f32 0.0, %v5904
        %v5906 = vpop.f32.mrb[0].mxu0
        %5907 = vmatprep.mubr.f32.mxu0 0.0
        %5908 = vmatmul.mubr.f32.gmra.mrb[0].mxu0 %v5671
        %v5909 = vpop.f32.mrb[0].mxu0
        %v5910 = vadd.f32 0.0, %v5909
        %v5911 = vpop.f32.mrb[0].mxu0
        %5912 = vmatprep.mubr.f32.mxu0 0.0
        %5913 = vmatmul.mubr.f32.gmra.mrb[0].mxu0 %v5673
        %v5914 = vpop.f32.mrb[0].mxu0
        %v5915 = vadd.f32 0.0, %v5914
        %v5916 = vpop.f32.mrb[0].mxu0
        %5917 = vmatprep.mubr.f32.mxu0 0.0
        %5918 = vmatmul.mubr.f32.gmra.mrb[0].mxu0 %v5675
        %v5919 = vpop.f32.mrb[0].mxu0
        %v5920 = vadd.f32 0.0, %v5919
        %v5921 = vpop.f32.mrb[0].mxu0
        %5922 = vmatprep.mubr.f32.mxu0 0.0
        %5923 = vmatmul.mubr.f32.gmra.mrb[0].mxu0 %v5677
        %v5924 = vpop.f32.mrb[0].mxu0
        %v5925 = vadd.f32 0.0, %v5924
        %v5926 = vpop.f32.mrb[0].mxu0
        %5927 = vmatprep.mubr.f32.mxu0 0.0
        %5928 = vmatmul.mubr.f32.gmra.mrb[0].mxu0 %v5679
        %v5929 = vpop.f32.mrb[0].mxu0
        %v5930 = vadd.f32 0.0, %v5929
        %v5931 = vpop.f32.mrb[0].mxu0
        %5932 = vmatprep.mubr.f32.mxu0 0.0
        %5933 = vmatmul.mubr.f32.gmra.mrb[0].mxu0 %v5681
        %v5934 = vpop.f32.mrb[0].mxu0
        %v5935 = vadd.f32 0.0, %v5934
        %v5936 = vpop.f32.mrb[0].mxu0
        %5937 = vmatprep.mubr.f32.mxu0 0.0
        %5938 = vmatmul.mubr.f32.gmra.mrb[0].mxu0 %v5683
        %v5939 = vpop.f32.mrb[0].mxu0
        %v5940 = vadd.f32 0.0, %v5939
        %v5941 = vpop.f32.mrb[0].mxu0
        %5942 = vmatprep.mubr.f32.mxu0 0.0
        %5943 = vmatmul.mubr.f32.gmra.mrb[0].mxu0 %v5685
        %v5944 = vpop.f32.mrb[0].mxu0
        %v5945 = vadd.f32 0.0, %v5944
        %v5946 = vpop.f32.mrb[0].mxu0
        %5947 = vmatprep.mubr.f32.mxu0 0.0
        %5948 = vmatmul.mubr.f32.gmra.mrb[0].mxu0 %v5687
        %v5949 = vpop.f32.mrb[0].mxu0
        %v5950 = vadd.f32 0.0, %v5949
        %v5951 = vpop.f32.mrb[0].mxu0
        %5952 = vmatprep.mubr.f32.mxu0 0.0
        %5953 = vmatmul.mubr.f32.gmra.mrb[0].mxu0 %v5689
        %v5954 = vpop.f32.mrb[0].mxu0
        %v5955 = vadd.f32 0.0, %v5954
        %v5956 = vpop.f32.mrb[0].mxu0
        %5957 = vmatprep.mubr.f32.mxu0 0.0
        %5958 = vmatmul.mubr.f32.gmra.mrb[0].mxu0 %v5691
        %v5959 = vpop.f32.mrb[0].mxu0
        %v5960 = vadd.f32 0.0, %v5959
        %v5961 = vpop.f32.mrb[0].mxu0
        %5962 = vdwg.mxu0
        %v5963 = vcombine.low %v3339, %v3347
        %v5964 = vcombine.low %v3346, %v3348
        %v5966 = vunpack.c.l.s4 1983009808
        %v5967 = vunpack.c.0.s8 %v5966
        %v5968 = vlaneseq
        %v5969 = vshrl.u32 %v5968, 7
        %v5970 = vsub.s32 %v5967, %v5969
        %v5971 = vrot.slane %v5963, %v5970
        %v5973 = vunpack.c.l.s4 1983009808
        %v5974 = vunpack.c.0.s8 %v5973
        %v5975 = vlaneseq
        %v5976 = vshrl.u32 %v5975, 7
        %v5977 = vsub.s32 %v5974, %v5976
        %v5978 = vrot.slane %v5964, %v5977
        %v5979 = vcombine.low %v5971, %v5978
        %v5980 = vcombine.low %v3356, %v3364
        %v5981 = vcombine.low %v3363, %v3365
        %v5983 = vunpack.c.l.s4 1983009808
        %v5984 = vunpack.c.0.s8 %v5983
        %v5985 = vlaneseq
        %v5986 = vshrl.u32 %v5985, 7
        %v5987 = vsub.s32 %v5984, %v5986
        %v5988 = vrot.slane %v5980, %v5987
        %v5990 = vunpack.c.l.s4 1983009808
        %v5991 = vunpack.c.0.s8 %v5990
        %v5992 = vlaneseq
        %v5993 = vshrl.u32 %v5992, 7
        %v5994 = vsub.s32 %v5991, %v5993
        %v5995 = vrot.slane %v5981, %v5994
        %v5996 = vcombine.low %v5988, %v5995
        %v5997 = vcombine.low %v3372, %v3380
        %v5998 = vcombine.low %v3388, %v3387
        %v6000 = vunpack.c.l.s4 1983009808
        %v6001 = vunpack.c.0.s8 %v6000
        %v6002 = vlaneseq
        %v6003 = vshrl.u32 %v6002, 7
        %v6004 = vsub.s32 %v6001, %v6003
        %v6005 = vrot.slane %v5997, %v6004
        %v6007 = vunpack.c.l.s4 1983009808
        %v6008 = vunpack.c.0.s8 %v6007
        %v6009 = vlaneseq
        %v6010 = vshrl.u32 %v6009, 7
        %v6011 = vsub.s32 %v6008, %v6010
        %v6012 = vrot.slane %v5998, %v6011
        %v6013 = vcombine.low %v6005, %v6012
        %v6014 = vcombine.low %v3389, %v3397
        %v6015 = vcombine.low %v3405, %v3404
        %v6017 = vunpack.c.l.s4 1983009808
        %v6018 = vunpack.c.0.s8 %v6017
        %v6019 = vlaneseq
        %v6020 = vshrl.u32 %v6019, 7
        %v6021 = vsub.s32 %v6018, %v6020
        %v6022 = vrot.slane %v6014, %v6021
        %v6024 = vunpack.c.l.s4 1983009808
        %v6025 = vunpack.c.0.s8 %v6024
        %v6026 = vlaneseq
        %v6027 = vshrl.u32 %v6026, 7
        %v6028 = vsub.s32 %v6025, %v6027
        %v6029 = vrot.slane %v6015, %v6028
        %v6030 = vcombine.low %v6022, %v6029
        %v6031 = vcombine.low %v3406, %v3413
        %v6032 = vcombine.low %v3421, %v3429
        %v6034 = vunpack.c.l.s4 1983009808
        %v6035 = vunpack.c.0.s8 %v6034
        %v6036 = vlaneseq
        %v6037 = vshrl.u32 %v6036, 7
        %v6038 = vsub.s32 %v6035, %v6037
        %v6039 = vrot.slane %v6031, %v6038
        %v6041 = vunpack.c.l.s4 1983009808
        %v6042 = vunpack.c.0.s8 %v6041
        %v6043 = vlaneseq
        %v6044 = vshrl.u32 %v6043, 7
        %v6045 = vsub.s32 %v6042, %v6044
        %v6046 = vrot.slane %v6032, %v6045
        %v6047 = vcombine.low %v6039, %v6046
        %v6048 = vcombine.low %v3428, %v3430
        %v6049 = vcombine.low %v3438, %v3446
        %v6051 = vunpack.c.l.s4 1983009808
        %v6052 = vunpack.c.0.s8 %v6051
        %v6053 = vlaneseq
        %v6054 = vshrl.u32 %v6053, 7
        %v6055 = vsub.s32 %v6052, %v6054
        %v6056 = vrot.slane %v6048, %v6055
        %v6058 = vunpack.c.l.s4 1983009808
        %v6059 = vunpack.c.0.s8 %v6058
        %v6060 = vlaneseq
        %v6061 = vshrl.u32 %v6060, 7
        %v6062 = vsub.s32 %v6059, %v6061
        %v6063 = vrot.slane %v6049, %v6062
        %v6064 = vcombine.low %v6056, %v6063
        %v6065 = vcombine.low %v3445, %v3447
        %v6066 = vcombine.low %v3454, %v3462
        %v6068 = vunpack.c.l.s4 1983009808
        %v6069 = vunpack.c.0.s8 %v6068
        %v6070 = vlaneseq
        %v6071 = vshrl.u32 %v6070, 7
        %v6072 = vsub.s32 %v6069, %v6071
        %v6073 = vrot.slane %v6065, %v6072
        %v6075 = vunpack.c.l.s4 1983009808
        %v6076 = vunpack.c.0.s8 %v6075
        %v6077 = vlaneseq
        %v6078 = vshrl.u32 %v6077, 7
        %v6079 = vsub.s32 %v6076, %v6078
        %v6080 = vrot.slane %v6066, %v6079
        %v6081 = vcombine.low %v6073, %v6080
        %v6082 = vcombine.low %v3470, %v3469
        %v6083 = vcombine.low %v3471, %v3479
        %v6085 = vunpack.c.l.s4 1983009808
        %v6086 = vunpack.c.0.s8 %v6085
        %v6087 = vlaneseq
        %v6088 = vshrl.u32 %v6087, 7
        %v6089 = vsub.s32 %v6086, %v6088
        %v6090 = vrot.slane %v6082, %v6089
        %v6092 = vunpack.c.l.s4 1983009808
        %v6093 = vunpack.c.0.s8 %v6092
        %v6094 = vlaneseq
        %v6095 = vshrl.u32 %v6094, 7
        %v6096 = vsub.s32 %v6093, %v6095
        %v6097 = vrot.slane %v6083, %v6096
        %v6098 = vcombine.low %v6090, %v6097
        %v6099 = vcombine.low %v3487, %v3486
        %v6100 = vcombine.low %v3488, %v3495
        %v6102 = vunpack.c.l.s4 1983009808
        %v6103 = vunpack.c.0.s8 %v6102
        %v6104 = vlaneseq
        %v6105 = vshrl.u32 %v6104, 7
        %v6106 = vsub.s32 %v6103, %v6105
        %v6107 = vrot.slane %v6099, %v6106
        %v6109 = vunpack.c.l.s4 1983009808
        %v6110 = vunpack.c.0.s8 %v6109
        %v6111 = vlaneseq
        %v6112 = vshrl.u32 %v6111, 7
        %v6113 = vsub.s32 %v6110, %v6112
        %v6114 = vrot.slane %v6100, %v6113
        %v6115 = vcombine.low %v6107, %v6114
        %v6116 = vcombine.low %v3503, %v3511
        %v6117 = vcombine.low %v3510, %v3512
        %v6119 = vunpack.c.l.s4 1983009808
        %v6120 = vunpack.c.0.s8 %v6119
        %v6121 = vlaneseq
        %v6122 = vshrl.u32 %v6121, 7
        %v6123 = vsub.s32 %v6120, %v6122
        %v6124 = vrot.slane %v6116, %v6123
        %v6126 = vunpack.c.l.s4 1983009808
        %v6127 = vunpack.c.0.s8 %v6126
        %v6128 = vlaneseq
        %v6129 = vshrl.u32 %v6128, 7
        %v6130 = vsub.s32 %v6127, %v6129
        %v6131 = vrot.slane %v6117, %v6130
        %v6132 = vcombine.low %v6124, %v6131
        %v6133 = vcombine.low %v3520, %v3528
        %v6134 = vcombine.low %v3527, %v3529
        %v6136 = vunpack.c.l.s4 1983009808
        %v6137 = vunpack.c.0.s8 %v6136
        %v6138 = vlaneseq
        %v6139 = vshrl.u32 %v6138, 7
        %v6140 = vsub.s32 %v6137, %v6139
        %v6141 = vrot.slane %v6133, %v6140
        %v6143 = vunpack.c.l.s4 1983009808
        %v6144 = vunpack.c.0.s8 %v6143
        %v6145 = vlaneseq
        %v6146 = vshrl.u32 %v6145, 7
        %v6147 = vsub.s32 %v6144, %v6146
        %v6148 = vrot.slane %v6134, %v6147
        %v6149 = vcombine.low %v6141, %v6148
        %v6150 = vcombine.low %v3536, %v3544
        %v6151 = vcombine.low %v3552, %v3551
        %v6153 = vunpack.c.l.s4 1983009808
        %v6154 = vunpack.c.0.s8 %v6153
        %v6155 = vlaneseq
        %v6156 = vshrl.u32 %v6155, 7
        %v6157 = vsub.s32 %v6154, %v6156
        %v6158 = vrot.slane %v6150, %v6157
        %v6160 = vunpack.c.l.s4 1983009808
        %v6161 = vunpack.c.0.s8 %v6160
        %v6162 = vlaneseq
        %v6163 = vshrl.u32 %v6162, 7
        %v6164 = vsub.s32 %v6161, %v6163
        %v6165 = vrot.slane %v6151, %v6164
        %v6166 = vcombine.low %v6158, %v6165
        %v6167 = vcombine.low %v3553, %v3561
        %v6168 = vcombine.low %v3569, %v3568
        %v6170 = vunpack.c.l.s4 1983009808
        %v6171 = vunpack.c.0.s8 %v6170
        %v6172 = vlaneseq
        %v6173 = vshrl.u32 %v6172, 7
        %v6174 = vsub.s32 %v6171, %v6173
        %v6175 = vrot.slane %v6167, %v6174
        %v6177 = vunpack.c.l.s4 1983009808
        %v6178 = vunpack.c.0.s8 %v6177
        %v6179 = vlaneseq
        %v6180 = vshrl.u32 %v6179, 7
        %v6181 = vsub.s32 %v6178, %v6180
        %v6182 = vrot.slane %v6168, %v6181
        %v6183 = vcombine.low %v6175, %v6182
        %v6184 = vcombine.low %v3570, %v3577
        %v6185 = vcombine.low %v3585, %v3593
        %v6187 = vunpack.c.l.s4 1983009808
        %v6188 = vunpack.c.0.s8 %v6187
        %v6189 = vlaneseq
        %v6190 = vshrl.u32 %v6189, 7
        %v6191 = vsub.s32 %v6188, %v6190
        %v6192 = vrot.slane %v6184, %v6191
        %v6194 = vunpack.c.l.s4 1983009808
        %v6195 = vunpack.c.0.s8 %v6194
        %v6196 = vlaneseq
        %v6197 = vshrl.u32 %v6196, 7
        %v6198 = vsub.s32 %v6195, %v6197
        %v6199 = vrot.slane %v6185, %v6198
        %v6200 = vcombine.low %v6192, %v6199
        %v6201 = vcombine.low %v3592, %v3594
        %v6202 = vcombine.low %v3602, %v3610
        %v6204 = vunpack.c.l.s4 1983009808
        %v6205 = vunpack.c.0.s8 %v6204
        %v6206 = vlaneseq
        %v6207 = vshrl.u32 %v6206, 7
        %v6208 = vsub.s32 %v6205, %v6207
        %v6209 = vrot.slane %v6201, %v6208
        %v6211 = vunpack.c.l.s4 1983009808
        %v6212 = vunpack.c.0.s8 %v6211
        %v6213 = vlaneseq
        %v6214 = vshrl.u32 %v6213, 7
        %v6215 = vsub.s32 %v6212, %v6214
        %v6216 = vrot.slane %v6202, %v6215
        %v6217 = vcombine.low %v6209, %v6216
        %v6218 = vcombine.low %v3609, %v3611
        %v6219 = vcombine.low %v3618, %v3626
        %v6221 = vunpack.c.l.s4 1983009808
        %v6222 = vunpack.c.0.s8 %v6221
        %v6223 = vlaneseq
        %v6224 = vshrl.u32 %v6223, 7
        %v6225 = vsub.s32 %v6222, %v6224
        %v6226 = vrot.slane %v6218, %v6225
        %v6228 = vunpack.c.l.s4 1983009808
        %v6229 = vunpack.c.0.s8 %v6228
        %v6230 = vlaneseq
        %v6231 = vshrl.u32 %v6230, 7
        %v6232 = vsub.s32 %v6229, %v6231
        %v6233 = vrot.slane %v6219, %v6232
        %v6234 = vcombine.low %v6226, %v6233
        %v6235 = vcombine.low %v3634, %v3633
        %v6236 = vcombine.low %v3635, %v3643
        %v6238 = vunpack.c.l.s4 1983009808
        %v6239 = vunpack.c.0.s8 %v6238
        %v6240 = vlaneseq
        %v6241 = vshrl.u32 %v6240, 7
        %v6242 = vsub.s32 %v6239, %v6241
        %v6243 = vrot.slane %v6235, %v6242
        %v6245 = vunpack.c.l.s4 1983009808
        %v6246 = vunpack.c.0.s8 %v6245
        %v6247 = vlaneseq
        %v6248 = vshrl.u32 %v6247, 7
        %v6249 = vsub.s32 %v6246, %v6248
        %v6250 = vrot.slane %v6236, %v6249
        %v6251 = vcombine.low %v6243, %v6250
        %v6252 = vcombine.low %v3651, %v3650
        %v6253 = vcombine.low %v3652, %v3659
        %v6255 = vunpack.c.l.s4 1983009808
        %v6256 = vunpack.c.0.s8 %v6255
        %v6257 = vlaneseq
        %v6258 = vshrl.u32 %v6257, 7
        %v6259 = vsub.s32 %v6256, %v6258
        %v6260 = vrot.slane %v6252, %v6259
        %v6262 = vunpack.c.l.s4 1983009808
        %v6263 = vunpack.c.0.s8 %v6262
        %v6264 = vlaneseq
        %v6265 = vshrl.u32 %v6264, 7
        %v6266 = vsub.s32 %v6263, %v6265
        %v6267 = vrot.slane %v6253, %v6266
        %v6268 = vcombine.low %v6260, %v6267
        %v6269 = vcombine.low %v3667, %v3675
        %v6270 = vcombine.low %v3674, %v3676
        %v6272 = vunpack.c.l.s4 1983009808
        %v6273 = vunpack.c.0.s8 %v6272
        %v6274 = vlaneseq
        %v6275 = vshrl.u32 %v6274, 7
        %v6276 = vsub.s32 %v6273, %v6275
        %v6277 = vrot.slane %v6269, %v6276
        %v6279 = vunpack.c.l.s4 1983009808
        %v6280 = vunpack.c.0.s8 %v6279
        %v6281 = vlaneseq
        %v6282 = vshrl.u32 %v6281, 7
        %v6283 = vsub.s32 %v6280, %v6282
        %v6284 = vrot.slane %v6270, %v6283
        %v6285 = vcombine.low %v6277, %v6284
        %v6286 = vcombine.low %v3684, %v3692
        %v6287 = vcombine.low %v3691, %v3693
        %v6289 = vunpack.c.l.s4 1983009808
        %v6290 = vunpack.c.0.s8 %v6289
        %v6291 = vlaneseq
        %v6292 = vshrl.u32 %v6291, 7
        %v6293 = vsub.s32 %v6290, %v6292
        %v6294 = vrot.slane %v6286, %v6293
        %v6296 = vunpack.c.l.s4 1983009808
        %v6297 = vunpack.c.0.s8 %v6296
        %v6298 = vlaneseq
        %v6299 = vshrl.u32 %v6298, 7
        %v6300 = vsub.s32 %v6297, %v6299
        %v6301 = vrot.slane %v6287, %v6300
        %v6302 = vcombine.low %v6294, %v6301
        %v6303 = vcombine.low %v3700, %v3708
        %v6304 = vcombine.low %v3716, %v3715
        %v6306 = vunpack.c.l.s4 1983009808
        %v6307 = vunpack.c.0.s8 %v6306
        %v6308 = vlaneseq
        %v6309 = vshrl.u32 %v6308, 7
        %v6310 = vsub.s32 %v6307, %v6309
        %v6311 = vrot.slane %v6303, %v6310
        %v6313 = vunpack.c.l.s4 1983009808
        %v6314 = vunpack.c.0.s8 %v6313
        %v6315 = vlaneseq
        %v6316 = vshrl.u32 %v6315, 7
        %v6317 = vsub.s32 %v6314, %v6316
        %v6318 = vrot.slane %v6304, %v6317
        %v6319 = vcombine.low %v6311, %v6318
        %v6320 = vcombine.low %v3717, %v3725
        %v6321 = vcombine.low %v3733, %v3732
        %v6323 = vunpack.c.l.s4 1983009808
        %v6324 = vunpack.c.0.s8 %v6323
        %v6325 = vlaneseq
        %v6326 = vshrl.u32 %v6325, 7
        %v6327 = vsub.s32 %v6324, %v6326
        %v6328 = vrot.slane %v6320, %v6327
        %v6330 = vunpack.c.l.s4 1983009808
        %v6331 = vunpack.c.0.s8 %v6330
        %v6332 = vlaneseq
        %v6333 = vshrl.u32 %v6332, 7
        %v6334 = vsub.s32 %v6331, %v6333
        %v6335 = vrot.slane %v6321, %v6334
        %v6336 = vcombine.low %v6328, %v6335
        %v6337 = vcombine.low %v3734, %v3741
        %v6338 = vcombine.low %v3749, %v3757
        %v6340 = vunpack.c.l.s4 1983009808
        %v6341 = vunpack.c.0.s8 %v6340
        %v6342 = vlaneseq
        %v6343 = vshrl.u32 %v6342, 7
        %v6344 = vsub.s32 %v6341, %v6343
        %v6345 = vrot.slane %v6337, %v6344
        %v6347 = vunpack.c.l.s4 1983009808
        %v6348 = vunpack.c.0.s8 %v6347
        %v6349 = vlaneseq
        %v6350 = vshrl.u32 %v6349, 7
        %v6351 = vsub.s32 %v6348, %v6350
        %v6352 = vrot.slane %v6338, %v6351
        %v6353 = vcombine.low %v6345, %v6352
        %v6354 = vcombine.low %v3756, %v3758
        %v6355 = vcombine.low %v3766, %v3774
        %v6357 = vunpack.c.l.s4 1983009808
        %v6358 = vunpack.c.0.s8 %v6357
        %v6359 = vlaneseq
        %v6360 = vshrl.u32 %v6359, 7
        %v6361 = vsub.s32 %v6358, %v6360
        %v6362 = vrot.slane %v6354, %v6361
        %v6364 = vunpack.c.l.s4 1983009808
        %v6365 = vunpack.c.0.s8 %v6364
        %v6366 = vlaneseq
        %v6367 = vshrl.u32 %v6366, 7
        %v6368 = vsub.s32 %v6365, %v6367
        %v6369 = vrot.slane %v6355, %v6368
        %v6370 = vcombine.low %v6362, %v6369
        %v6371 = vcombine.low %v3773, %v3775
        %v6372 = vcombine.low %v3782, %v3790
        %v6374 = vunpack.c.l.s4 1983009808
        %v6375 = vunpack.c.0.s8 %v6374
        %v6376 = vlaneseq
        %v6377 = vshrl.u32 %v6376, 7
        %v6378 = vsub.s32 %v6375, %v6377
        %v6379 = vrot.slane %v6371, %v6378
        %v6381 = vunpack.c.l.s4 1983009808
        %v6382 = vunpack.c.0.s8 %v6381
        %v6383 = vlaneseq
        %v6384 = vshrl.u32 %v6383, 7
        %v6385 = vsub.s32 %v6382, %v6384
        %v6386 = vrot.slane %v6372, %v6385
        %v6387 = vcombine.low %v6379, %v6386
        %v6388 = vcombine.low %v3798, %v3797
        %v6389 = vcombine.low %v3799, %v3807
        %v6391 = vunpack.c.l.s4 1983009808
        %v6392 = vunpack.c.0.s8 %v6391
        %v6393 = vlaneseq
        %v6394 = vshrl.u32 %v6393, 7
        %v6395 = vsub.s32 %v6392, %v6394
        %v6396 = vrot.slane %v6388, %v6395
        %v6398 = vunpack.c.l.s4 1983009808
        %v6399 = vunpack.c.0.s8 %v6398
        %v6400 = vlaneseq
        %v6401 = vshrl.u32 %v6400, 7
        %v6402 = vsub.s32 %v6399, %v6401
        %v6403 = vrot.slane %v6389, %v6402
        %v6404 = vcombine.low %v6396, %v6403
        %v6405 = vcombine.low %v3815, %v3814
        %v6406 = vcombine.low %v3816, %v3823
        %v6408 = vunpack.c.l.s4 1983009808
        %v6409 = vunpack.c.0.s8 %v6408
        %v6410 = vlaneseq
        %v6411 = vshrl.u32 %v6410, 7
        %v6412 = vsub.s32 %v6409, %v6411
        %v6413 = vrot.slane %v6405, %v6412
        %v6415 = vunpack.c.l.s4 1983009808
        %v6416 = vunpack.c.0.s8 %v6415
        %v6417 = vlaneseq
        %v6418 = vshrl.u32 %v6417, 7
        %v6419 = vsub.s32 %v6416, %v6418
        %v6420 = vrot.slane %v6406, %v6419
        %v6421 = vcombine.low %v6413, %v6420
        %v6422 = vcombine.low %v3831, %v3839
        %v6423 = vcombine.low %v3838, %v3840
        %v6425 = vunpack.c.l.s4 1983009808
        %v6426 = vunpack.c.0.s8 %v6425
        %v6427 = vlaneseq
        %v6428 = vshrl.u32 %v6427, 7
        %v6429 = vsub.s32 %v6426, %v6428
        %v6430 = vrot.slane %v6422, %v6429
        %v6432 = vunpack.c.l.s4 1983009808
        %v6433 = vunpack.c.0.s8 %v6432
        %v6434 = vlaneseq
        %v6435 = vshrl.u32 %v6434, 7
        %v6436 = vsub.s32 %v6433, %v6435
        %v6437 = vrot.slane %v6423, %v6436
        %v6438 = vcombine.low %v6430, %v6437
        %v6439 = vcombine.low %v3848, %v3856
        %v6440 = vcombine.low %v3855, %v3857
        %v6442 = vunpack.c.l.s4 1983009808
        %v6443 = vunpack.c.0.s8 %v6442
        %v6444 = vlaneseq
        %v6445 = vshrl.u32 %v6444, 7
        %v6446 = vsub.s32 %v6443, %v6445
        %v6447 = vrot.slane %v6439, %v6446
        %v6449 = vunpack.c.l.s4 1983009808
        %v6450 = vunpack.c.0.s8 %v6449
        %v6451 = vlaneseq
        %v6452 = vshrl.u32 %v6451, 7
        %v6453 = vsub.s32 %v6450, %v6452
        %v6454 = vrot.slane %v6440, %v6453
        %v6455 = vcombine.low %v6447, %v6454
        %v6456 = vcombine.low %v3864, %v3872
        %v6457 = vcombine.low %v3880, %v3879
        %v6459 = vunpack.c.l.s4 1983009808
        %v6460 = vunpack.c.0.s8 %v6459
        %v6461 = vlaneseq
        %v6462 = vshrl.u32 %v6461, 7
        %v6463 = vsub.s32 %v6460, %v6462
        %v6464 = vrot.slane %v6456, %v6463
        %v6466 = vunpack.c.l.s4 1983009808
        %v6467 = vunpack.c.0.s8 %v6466
        %v6468 = vlaneseq
        %v6469 = vshrl.u32 %v6468, 7
        %v6470 = vsub.s32 %v6467, %v6469
        %v6471 = vrot.slane %v6457, %v6470
        %v6472 = vcombine.low %v6464, %v6471
        %v6473 = vcombine.low %v3881, %v3889
        %v6474 = vcombine.low %v3897, %v3896
        %v6476 = vunpack.c.l.s4 1983009808
        %v6477 = vunpack.c.0.s8 %v6476
        %v6478 = vlaneseq
        %v6479 = vshrl.u32 %v6478, 7
        %v6480 = vsub.s32 %v6477, %v6479
        %v6481 = vrot.slane %v6473, %v6480
        %v6483 = vunpack.c.l.s4 1983009808
        %v6484 = vunpack.c.0.s8 %v6483
        %v6485 = vlaneseq
        %v6486 = vshrl.u32 %v6485, 7
        %v6487 = vsub.s32 %v6484, %v6486
        %v6488 = vrot.slane %v6474, %v6487
        %v6489 = vcombine.low %v6481, %v6488
        %v6490 = vcombine.low %v3898, %v3905
        %v6491 = vcombine.low %v3913, %v3921
        %v6493 = vunpack.c.l.s4 1983009808
        %v6494 = vunpack.c.0.s8 %v6493
        %v6495 = vlaneseq
        %v6496 = vshrl.u32 %v6495, 7
        %v6497 = vsub.s32 %v6494, %v6496
        %v6498 = vrot.slane %v6490, %v6497
        %v6500 = vunpack.c.l.s4 1983009808
        %v6501 = vunpack.c.0.s8 %v6500
        %v6502 = vlaneseq
        %v6503 = vshrl.u32 %v6502, 7
        %v6504 = vsub.s32 %v6501, %v6503
        %v6505 = vrot.slane %v6491, %v6504
        %v6506 = vcombine.low %v6498, %v6505
        %v6507 = vcombine.low %v3920, %v3922
        %v6508 = vcombine.low %v3930, %v3938
        %v6510 = vunpack.c.l.s4 1983009808
        %v6511 = vunpack.c.0.s8 %v6510
        %v6512 = vlaneseq
        %v6513 = vshrl.u32 %v6512, 7
        %v6514 = vsub.s32 %v6511, %v6513
        %v6515 = vrot.slane %v6507, %v6514
        %v6517 = vunpack.c.l.s4 1983009808
        %v6518 = vunpack.c.0.s8 %v6517
        %v6519 = vlaneseq
        %v6520 = vshrl.u32 %v6519, 7
        %v6521 = vsub.s32 %v6518, %v6520
        %v6522 = vrot.slane %v6508, %v6521
        %v6523 = vcombine.low %v6515, %v6522
        %v6524 = vcombine.low %v3937, %v3939
        %v6525 = vcombine.low %v3946, %v3954
        %v6527 = vunpack.c.l.s4 1983009808
        %v6528 = vunpack.c.0.s8 %v6527
        %v6529 = vlaneseq
        %v6530 = vshrl.u32 %v6529, 7
        %v6531 = vsub.s32 %v6528, %v6530
        %v6532 = vrot.slane %v6524, %v6531
        %v6534 = vunpack.c.l.s4 1983009808
        %v6535 = vunpack.c.0.s8 %v6534
        %v6536 = vlaneseq
        %v6537 = vshrl.u32 %v6536, 7
        %v6538 = vsub.s32 %v6535, %v6537
        %v6539 = vrot.slane %v6525, %v6538
        %v6540 = vcombine.low %v6532, %v6539
        %v6541 = vcombine.low %v3962, %v3961
        %v6542 = vcombine.low %v3963, %v3971
        %v6544 = vunpack.c.l.s4 1983009808
        %v6545 = vunpack.c.0.s8 %v6544
        %v6546 = vlaneseq
        %v6547 = vshrl.u32 %v6546, 7
        %v6548 = vsub.s32 %v6545, %v6547
        %v6549 = vrot.slane %v6541, %v6548
        %v6551 = vunpack.c.l.s4 1983009808
        %v6552 = vunpack.c.0.s8 %v6551
        %v6553 = vlaneseq
        %v6554 = vshrl.u32 %v6553, 7
        %v6555 = vsub.s32 %v6552, %v6554
        %v6556 = vrot.slane %v6542, %v6555
        %v6557 = vcombine.low %v6549, %v6556
        %v6558 = vcombine.low %v3979, %v3978
        %v6559 = vcombine.low %v3980, %v3987
        %v6561 = vunpack.c.l.s4 1983009808
        %v6562 = vunpack.c.0.s8 %v6561
        %v6563 = vlaneseq
        %v6564 = vshrl.u32 %v6563, 7
        %v6565 = vsub.s32 %v6562, %v6564
        %v6566 = vrot.slane %v6558, %v6565
        %v6568 = vunpack.c.l.s4 1983009808
        %v6569 = vunpack.c.0.s8 %v6568
        %v6570 = vlaneseq
        %v6571 = vshrl.u32 %v6570, 7
        %v6572 = vsub.s32 %v6569, %v6571
        %v6573 = vrot.slane %v6559, %v6572
        %v6574 = vcombine.low %v6566, %v6573
        %v6575 = vcombine.low %v3995, %v4003
        %v6576 = vcombine.low %v4002, %v4004
        %v6578 = vunpack.c.l.s4 1983009808
        %v6579 = vunpack.c.0.s8 %v6578
        %v6580 = vlaneseq
        %v6581 = vshrl.u32 %v6580, 7
        %v6582 = vsub.s32 %v6579, %v6581
        %v6583 = vrot.slane %v6575, %v6582
        %v6585 = vunpack.c.l.s4 1983009808
        %v6586 = vunpack.c.0.s8 %v6585
        %v6587 = vlaneseq
        %v6588 = vshrl.u32 %v6587, 7
        %v6589 = vsub.s32 %v6586, %v6588
        %v6590 = vrot.slane %v6576, %v6589
        %v6591 = vcombine.low %v6583, %v6590
        %v6592 = vcombine.low %v4012, %v4020
        %v6593 = vcombine.low %v4019, %v4021
        %v6595 = vunpack.c.l.s4 1983009808
        %v6596 = vunpack.c.0.s8 %v6595
        %v6597 = vlaneseq
        %v6598 = vshrl.u32 %v6597, 7
        %v6599 = vsub.s32 %v6596, %v6598
        %v6600 = vrot.slane %v6592, %v6599
        %v6602 = vunpack.c.l.s4 1983009808
        %v6603 = vunpack.c.0.s8 %v6602
        %v6604 = vlaneseq
        %v6605 = vshrl.u32 %v6604, 7
        %v6606 = vsub.s32 %v6603, %v6605
        %v6607 = vrot.slane %v6593, %v6606
        %v6608 = vcombine.low %v6600, %v6607
        %v6609 = vcombine.low %v4028, %v4036
        %v6610 = vcombine.low %v4044, %v4043
        %v6612 = vunpack.c.l.s4 1983009808
        %v6613 = vunpack.c.0.s8 %v6612
        %v6614 = vlaneseq
        %v6615 = vshrl.u32 %v6614, 7
        %v6616 = vsub.s32 %v6613, %v6615
        %v6617 = vrot.slane %v6609, %v6616
        %v6619 = vunpack.c.l.s4 1983009808
        %v6620 = vunpack.c.0.s8 %v6619
        %v6621 = vlaneseq
        %v6622 = vshrl.u32 %v6621, 7
        %v6623 = vsub.s32 %v6620, %v6622
        %v6624 = vrot.slane %v6610, %v6623
        %v6625 = vcombine.low %v6617, %v6624
        %v6626 = vcombine.low %v4045, %v4053
        %v6627 = vcombine.low %v4061, %v4060
        %v6629 = vunpack.c.l.s4 1983009808
        %v6630 = vunpack.c.0.s8 %v6629
        %v6631 = vlaneseq
        %v6632 = vshrl.u32 %v6631, 7
        %v6633 = vsub.s32 %v6630, %v6632
        %v6634 = vrot.slane %v6626, %v6633
        %v6636 = vunpack.c.l.s4 1983009808
        %v6637 = vunpack.c.0.s8 %v6636
        %v6638 = vlaneseq
        %v6639 = vshrl.u32 %v6638, 7
        %v6640 = vsub.s32 %v6637, %v6639
        %v6641 = vrot.slane %v6627, %v6640
        %v6642 = vcombine.low %v6634, %v6641
        %v6643 = vcombine.low %v4062, %v4069
        %v6645 = vunpack.c.l.s4 1983009808
        %v6646 = vunpack.c.0.s8 %v6645
        %v6647 = vlaneseq
        %v6648 = vshrl.u32 %v6647, 7
        %v6649 = vsub.s32 %v6646, %v6648
        %v6650 = vrot.slane %v6643, %v6649
        %v6651 = vsel %vm1249, %v5979, 0
        %v6653 = vsel %vm1249, %v5996, 0
        %v6655 = vsel %vm1249, %v6013, 0
        %v6657 = vsel %vm1249, %v6030, 0
        %v6659 = vsel %vm1249, %v6047, 0
        %v6661 = vsel %vm1249, %v6064, 0
        %v6663 = vsel %vm1249, %v6081, 0
        %v6665 = vsel %vm1249, %v6098, 0
        %v6667 = vsel %vm1249, %v6115, 0
        %v6669 = vsel %vm1249, %v6132, 0
        %v6671 = vsel %vm1249, %v6149, 0
        %v6673 = vsel %vm1249, %v6166, 0
        %v6675 = vsel %vm1249, %v6183, 0
        %v6677 = vsel %vm1249, %v6200, 0
        %v6679 = vsel %vm1249, %v6217, 0
        %v6681 = vsel %vm1249, %v6234, 0
        %v6683 = vsel %vm1249, %v6251, 0
        %v6685 = vsel %vm1249, %v6268, 0
        %v6687 = vsel %vm1249, %v6285, 0
        %v6689 = vsel %vm1249, %v6302, 0
        %v6691 = vsel %vm1249, %v6319, 0
        %v6693 = vsel %vm1249, %v6336, 0
        %v6695 = vsel %vm1249, %v6353, 0
        %v6697 = vsel %vm1249, %v6370, 0
        %v6699 = vsel %vm1249, %v6387, 0
        %v6701 = vsel %vm1249, %v6404, 0
        %v6703 = vsel %vm1249, %v6421, 0
        %v6705 = vsel %vm1249, %v6438, 0
        %v6707 = vsel %vm1249, %v6455, 0
        %v6709 = vsel %vm1249, %v6472, 0
        %v6711 = vsel %vm1249, %v6489, 0
        %v6713 = vsel %vm1249, %v6506, 0
        %v6715 = vsel %vm1249, %v6523, 0
        %v6717 = vsel %vm1249, %v6540, 0
        %v6719 = vsel %vm1249, %v6557, 0
        %v6721 = vsel %vm1249, %v6574, 0
        %v6723 = vsel %vm1249, %v6591, 0
        %v6725 = vsel %vm1249, %v6608, 0
        %v6727 = vsel %vm1249, %v6625, 0
        %v6729 = vsel %vm1249, %v6642, 0
        %v6731 = vsel %vm1249, %v6650, 0
        %6733 = vmatprep.subr.mxu0 0.0
        %6734 = vmatpush1.msra.mxu0 %v4070
        %6735 = vmatprep.subr.mxu0 0.0
        %6736 = vmatpush1.msra.mxu0 %v4071
        %6737 = vmatprep.subr.mxu0 0.0
        %6738 = vmatpush1.msra.mxu0 %v4072
        %6739 = vmatprep.subr.mxu0 0.0
        %6740 = vmatpush1.msra.mxu0 0.0
        %6741 = vmatprep.subr.mxu0 0.0
        %6742 = vmatpush1.msra.mxu0 0.0
        %6743 = vmatprep.subr.mxu0 0.0
        %6744 = vmatpush1.msra.mxu0 0.0
        %6745 = vmatprep.subr.mxu0 0.0
        %6746 = vmatpush1.msra.mxu0 0.0
        %6747 = vmatprep.subr.mxu0 0.0
        %6748 = vmatpush1.msra.mxu0 0.0
        %6749 = vmatprep.subr.mxu0 0.0
        %6750 = vmatpush1.msra.mxu0 0.0
        %6751 = vmatprep.subr.mxu0 0.0
        %6752 = vmatpush1.msra.mxu0 0.0
        %6753 = vmatprep.subr.mxu0 0.0
        %6754 = vmatpush1.msra.mxu0 0.0
        %6755 = vmatprep.subr.mxu0 0.0
        %6756 = vmatpush1.msra.mxu0 0.0
        %6757 = vmatprep.subr.mxu0 0.0
        %6758 = vmatpush1.msra.mxu0 0.0
        %6759 = vmatprep.subr.mxu0 0.0
        %6760 = vmatpush1.msra.mxu0 0.0
        %6761 = vmatprep.subr.mxu0 0.0
        %6762 = vmatpush1.msra.mxu0 0.0
        %6763 = vmatprep.subr.mxu0 0.0
        %6764 = vmatpush1.msra.mxu0 0.0
        %6765 = vmatprep.subr.mxu0 0.0
        %6766 = vmatpush1.msra.mxu0 0.0
        %6767 = vmatprep.subr.mxu0 0.0
        %6768 = vmatpush1.msra.mxu0 0.0
        %6769 = vmatprep.subr.mxu0 0.0
        %6770 = vmatpush1.msra.mxu0 0.0
        %6771 = vmatprep.subr.mxu0 0.0
        %6772 = vmatpush1.msra.mxu0 0.0
        %6773 = vmatprep.subr.mxu0 0.0
        %6774 = vmatpush1.msra.mxu0 0.0
        %6775 = vmatprep.subr.mxu0 0.0
        %6776 = vmatpush1.msra.mxu0 0.0
        %6777 = vmatprep.subr.mxu0 0.0
        %6778 = vmatpush1.msra.mxu0 0.0
        %6779 = vmatprep.subr.mxu0 0.0
        %6780 = vmatpush1.msra.mxu0 0.0
        %6781 = vmatprep.subr.mxu0 0.0
        %6782 = vmatpush1.msra.mxu0 0.0
        %6783 = vmatprep.subr.mxu0 0.0
        %6784 = vmatpush1.msra.mxu0 0.0
        %6785 = vmatprep.subr.mxu0 0.0
        %6786 = vmatpush1.msra.mxu0 0.0
        %6787 = vmatprep.subr.mxu0 0.0
        %6788 = vmatpush1.msra.mxu0 0.0
        %6789 = vmatprep.subr.mxu0 0.0
        %6790 = vmatpush1.msra.mxu0 0.0
        %6791 = vmatprep.subr.mxu0 0.0
        %6792 = vmatpush1.msra.mxu0 0.0
        %6793 = vmatprep.subr.mxu0 0.0
        %6794 = vmatpush1.msra.mxu0 0.0
        %6795 = vmatprep.subr.mxu0 0.0
        %6796 = vmatpush1.msra.mxu0 0.0
        %6797 = vmatprep.mubr.f32.mxu0 0.0
        %6798 = vmatmul.mubr.f32.gmra.mrb[0].mxu0 %v6651
        %v6799 = vpop.f32.mrb[0].mxu0
        %v6800 = vadd.f32 %v5760, %v6799
        %v6801 = vpop.f32.mrb[0].mxu0
        %6802 = vmatprep.mubr.f32.mxu0 0.0
        %6803 = vmatmul.mubr.f32.gmra.mrb[0].mxu0 %v6653
        %v6804 = vpop.f32.mrb[0].mxu0
        %v6805 = vadd.f32 %v5765, %v6804
        %v6806 = vpop.f32.mrb[0].mxu0
        %6807 = vmatprep.mubr.f32.mxu0 0.0
        %6808 = vmatmul.mubr.f32.gmra.mrb[0].mxu0 %v6655
        %v6809 = vpop.f32.mrb[0].mxu0
        %v6810 = vadd.f32 %v5770, %v6809
        %v6811 = vpop.f32.mrb[0].mxu0
        %6812 = vmatprep.mubr.f32.mxu0 0.0
        %6813 = vmatmul.mubr.f32.gmra.mrb[0].mxu0 %v6657
        %v6814 = vpop.f32.mrb[0].mxu0
        %v6815 = vadd.f32 %v5775, %v6814
        %v6816 = vpop.f32.mrb[0].mxu0
        %6817 = vmatprep.mubr.f32.mxu0 0.0
        %6818 = vmatmul.mubr.f32.gmra.mrb[0].mxu0 %v6659
        %v6819 = vpop.f32.mrb[0].mxu0
        %v6820 = vadd.f32 %v5780, %v6819
        %v6821 = vpop.f32.mrb[0].mxu0
        %6822 = vmatprep.mubr.f32.mxu0 0.0
        %6823 = vmatmul.mubr.f32.gmra.mrb[0].mxu0 %v6661
        %v6824 = vpop.f32.mrb[0].mxu0
        %v6825 = vadd.f32 %v5785, %v6824
        %v6826 = vpop.f32.mrb[0].mxu0
        %6827 = vmatprep.mubr.f32.mxu0 0.0
        %6828 = vmatmul.mubr.f32.gmra.mrb[0].mxu0 %v6663
        %v6829 = vpop.f32.mrb[0].mxu0
        %v6830 = vadd.f32 %v5790, %v6829
        %v6831 = vpop.f32.mrb[0].mxu0
        %6832 = vmatprep.mubr.f32.mxu0 0.0
        %6833 = vmatmul.mubr.f32.gmra.mrb[0].mxu0 %v6665
        %v6834 = vpop.f32.mrb[0].mxu0
        %v6835 = vadd.f32 %v5795, %v6834
        %v6836 = vpop.f32.mrb[0].mxu0
        %6837 = vmatprep.mubr.f32.mxu0 0.0
        %6838 = vmatmul.mubr.f32.gmra.mrb[0].mxu0 %v6667
        %v6839 = vpop.f32.mrb[0].mxu0
        %v6840 = vadd.f32 %v5800, %v6839
        %v6841 = vpop.f32.mrb[0].mxu0
        %6842 = vmatprep.mubr.f32.mxu0 0.0
        %6843 = vmatmul.mubr.f32.gmra.mrb[0].mxu0 %v6669
        %v6844 = vpop.f32.mrb[0].mxu0
        %v6845 = vadd.f32 %v5805, %v6844
        %v6846 = vpop.f32.mrb[0].mxu0
        %6847 = vmatprep.mubr.f32.mxu0 0.0
        %6848 = vmatmul.mubr.f32.gmra.mrb[0].mxu0 %v6671
        %v6849 = vpop.f32.mrb[0].mxu0
        %v6850 = vadd.f32 %v5810, %v6849
        %v6851 = vpop.f32.mrb[0].mxu0
        %6852 = vmatprep.mubr.f32.mxu0 0.0
        %6853 = vmatmul.mubr.f32.gmra.mrb[0].mxu0 %v6673
        %v6854 = vpop.f32.mrb[0].mxu0
        %v6855 = vadd.f32 %v5815, %v6854
        %v6856 = vpop.f32.mrb[0].mxu0
        %6857 = vmatprep.mubr.f32.mxu0 0.0
        %6858 = vmatmul.mubr.f32.gmra.mrb[0].mxu0 %v6675
        %v6859 = vpop.f32.mrb[0].mxu0
        %v6860 = vadd.f32 %v5820, %v6859
        %v6861 = vpop.f32.mrb[0].mxu0
        %6862 = vmatprep.mubr.f32.mxu0 0.0
        %6863 = vmatmul.mubr.f32.gmra.mrb[0].mxu0 %v6677
        %v6864 = vpop.f32.mrb[0].mxu0
        %v6865 = vadd.f32 %v5825, %v6864
        %v6866 = vpop.f32.mrb[0].mxu0
        %6867 = vmatprep.mubr.f32.mxu0 0.0
        %6868 = vmatmul.mubr.f32.gmra.mrb[0].mxu0 %v6679
        %v6869 = vpop.f32.mrb[0].mxu0
        %v6870 = vadd.f32 %v5830, %v6869
        %v6871 = vpop.f32.mrb[0].mxu0
        %6872 = vmatprep.mubr.f32.mxu0 0.0
        %6873 = vmatmul.mubr.f32.gmra.mrb[0].mxu0 %v6681
        %v6874 = vpop.f32.mrb[0].mxu0
        %v6875 = vadd.f32 %v5835, %v6874
        %v6876 = vpop.f32.mrb[0].mxu0
        %6877 = vmatprep.mubr.f32.mxu0 0.0
        %6878 = vmatmul.mubr.f32.gmra.mrb[0].mxu0 %v6683
        %v6879 = vpop.f32.mrb[0].mxu0
        %v6880 = vadd.f32 %v5840, %v6879
        %v6881 = vpop.f32.mrb[0].mxu0
        %6882 = vmatprep.mubr.f32.mxu0 0.0
        %6883 = vmatmul.mubr.f32.gmra.mrb[0].mxu0 %v6685
        %v6884 = vpop.f32.mrb[0].mxu0
        %v6885 = vadd.f32 %v5845, %v6884
        %v6886 = vpop.f32.mrb[0].mxu0
        %6887 = vmatprep.mubr.f32.mxu0 0.0
        %6888 = vmatmul.mubr.f32.gmra.mrb[0].mxu0 %v6687
        %v6889 = vpop.f32.mrb[0].mxu0
        %v6890 = vadd.f32 %v5850, %v6889
        %v6891 = vpop.f32.mrb[0].mxu0
        %6892 = vmatprep.mubr.f32.mxu0 0.0
        %6893 = vmatmul.mubr.f32.gmra.mrb[0].mxu0 %v6689
        %v6894 = vpop.f32.mrb[0].mxu0
        %v6895 = vadd.f32 %v5855, %v6894
        %v6896 = vpop.f32.mrb[0].mxu0
        %6897 = vmatprep.mubr.f32.mxu0 0.0
        %6898 = vmatmul.mubr.f32.gmra.mrb[0].mxu0 %v6691
        %v6899 = vpop.f32.mrb[0].mxu0
        %v6900 = vadd.f32 %v5860, %v6899
        %v6901 = vpop.f32.mrb[0].mxu0
        %6902 = vmatprep.mubr.f32.mxu0 0.0
        %6903 = vmatmul.mubr.f32.gmra.mrb[0].mxu0 %v6693
        %v6904 = vpop.f32.mrb[0].mxu0
        %v6905 = vadd.f32 %v5865, %v6904
        %v6906 = vpop.f32.mrb[0].mxu0
        %6907 = vmatprep.mubr.f32.mxu0 0.0
        %6908 = vmatmul.mubr.f32.gmra.mrb[0].mxu0 %v6695
        %v6909 = vpop.f32.mrb[0].mxu0
        %v6910 = vadd.f32 %v5870, %v6909
        %v6911 = vpop.f32.mrb[0].mxu0
        %6912 = vmatprep.mubr.f32.mxu0 0.0
        %6913 = vmatmul.mubr.f32.gmra.mrb[0].mxu0 %v6697
        %v6914 = vpop.f32.mrb[0].mxu0
        %v6915 = vadd.f32 %v5875, %v6914
        %v6916 = vpop.f32.mrb[0].mxu0
        %6917 = vmatprep.mubr.f32.mxu0 0.0
        %6918 = vmatmul.mubr.f32.gmra.mrb[0].mxu0 %v6699
        %v6919 = vpop.f32.mrb[0].mxu0
        %v6920 = vadd.f32 %v5880, %v6919
        %v6921 = vpop.f32.mrb[0].mxu0
        %6922 = vmatprep.mubr.f32.mxu0 0.0
        %6923 = vmatmul.mubr.f32.gmra.mrb[0].mxu0 %v6701
        %v6924 = vpop.f32.mrb[0].mxu0
        %v6925 = vadd.f32 %v5885, %v6924
        %v6926 = vpop.f32.mrb[0].mxu0
        %6927 = vmatprep.mubr.f32.mxu0 0.0
        %6928 = vmatmul.mubr.f32.gmra.mrb[0].mxu0 %v6703
        %v6929 = vpop.f32.mrb[0].mxu0
        %v6930 = vadd.f32 %v5890, %v6929
        %v6931 = vpop.f32.mrb[0].mxu0
        %6932 = vmatprep.mubr.f32.mxu0 0.0
        %6933 = vmatmul.mubr.f32.gmra.mrb[0].mxu0 %v6705
        %v6934 = vpop.f32.mrb[0].mxu0
        %v6935 = vadd.f32 %v5895, %v6934
        %v6936 = vpop.f32.mrb[0].mxu0
        %6937 = vmatprep.mubr.f32.mxu0 0.0
        %6938 = vmatmul.mubr.f32.gmra.mrb[0].mxu0 %v6707
        %v6939 = vpop.f32.mrb[0].mxu0
        %v6940 = vadd.f32 %v5900, %v6939
        %v6941 = vpop.f32.mrb[0].mxu0
        %6942 = vmatprep.mubr.f32.mxu0 0.0
        %6943 = vmatmul.mubr.f32.gmra.mrb[0].mxu0 %v6709
        %v6944 = vpop.f32.mrb[0].mxu0
        %v6945 = vadd.f32 %v5905, %v6944
        %v6946 = vpop.f32.mrb[0].mxu0
        %6947 = vmatprep.mubr.f32.mxu0 0.0
        %6948 = vmatmul.mubr.f32.gmra.mrb[0].mxu0 %v6711
        %v6949 = vpop.f32.mrb[0].mxu0
        %v6950 = vadd.f32 %v5910, %v6949
        %v6951 = vpop.f32.mrb[0].mxu0
        %6952 = vmatprep.mubr.f32.mxu0 0.0
        %6953 = vmatmul.mubr.f32.gmra.mrb[0].mxu0 %v6713
        %v6954 = vpop.f32.mrb[0].mxu0
        %v6955 = vadd.f32 %v5915, %v6954
        %v6956 = vpop.f32.mrb[0].mxu0
        %6957 = vmatprep.mubr.f32.mxu0 0.0
        %6958 = vmatmul.mubr.f32.gmra.mrb[0].mxu0 %v6715
        %v6959 = vpop.f32.mrb[0].mxu0
        %v6960 = vadd.f32 %v5920, %v6959
        %v6961 = vpop.f32.mrb[0].mxu0
        %6962 = vmatprep.mubr.f32.mxu0 0.0
        %6963 = vmatmul.mubr.f32.gmra.mrb[0].mxu0 %v6717
        %v6964 = vpop.f32.mrb[0].mxu0
        %v6965 = vadd.f32 %v5925, %v6964
        %v6966 = vpop.f32.mrb[0].mxu0
        %6967 = vmatprep.mubr.f32.mxu0 0.0
        %6968 = vmatmul.mubr.f32.gmra.mrb[0].mxu0 %v6719
        %v6969 = vpop.f32.mrb[0].mxu0
        %v6970 = vadd.f32 %v5930, %v6969
        %v6971 = vpop.f32.mrb[0].mxu0
        %6972 = vmatprep.mubr.f32.mxu0 0.0
        %6973 = vmatmul.mubr.f32.gmra.mrb[0].mxu0 %v6721
        %v6974 = vpop.f32.mrb[0].mxu0
        %v6975 = vadd.f32 %v5935, %v6974
        %v6976 = vpop.f32.mrb[0].mxu0
        %6977 = vmatprep.mubr.f32.mxu0 0.0
        %6978 = vmatmul.mubr.f32.gmra.mrb[0].mxu0 %v6723
        %v6979 = vpop.f32.mrb[0].mxu0
        %v6980 = vadd.f32 %v5940, %v6979
        %v6981 = vpop.f32.mrb[0].mxu0
        %6982 = vmatprep.mubr.f32.mxu0 0.0
        %6983 = vmatmul.mubr.f32.gmra.mrb[0].mxu0 %v6725
        %v6984 = vpop.f32.mrb[0].mxu0
        %v6985 = vadd.f32 %v5945, %v6984
        %v6986 = vpop.f32.mrb[0].mxu0
        %6987 = vmatprep.mubr.f32.mxu0 0.0
        %6988 = vmatmul.mubr.f32.gmra.mrb[0].mxu0 %v6727
        %v6989 = vpop.f32.mrb[0].mxu0
        %v6990 = vadd.f32 %v5950, %v6989
        %v6991 = vpop.f32.mrb[0].mxu0
        %6992 = vmatprep.mubr.f32.mxu0 0.0
        %6993 = vmatmul.mubr.f32.gmra.mrb[0].mxu0 %v6729
        %v6994 = vpop.f32.mrb[0].mxu0
        %v6995 = vadd.f32 %v5955, %v6994
        %v6996 = vpop.f32.mrb[0].mxu0
        %6997 = vmatprep.mubr.f32.mxu0 0.0
        %6998 = vmatmul.mubr.f32.gmra.mrb[0].mxu0 %v6731
        %v6999 = vpop.f32.mrb[0].mxu0
        %v7000 = vadd.f32 %v5960, %v6999
        %v7001 = vpop.f32.mrb[0].mxu0
        %7002 = vdwg.mxu0
        %v7003 = vld [vmem:[%s2836] sm:$0xff]
        %v7004 = vld [vmem:[%s2836 + $0x8] sm:$0xff]
        %v7005 = vld [vmem:[%s2836 + $0x10] sm:$0x3]
        %v7006 = vld [vmem:[%s2836 + $0x18] sm:$0xff]
        %v7007 = vld [vmem:[%s2836 + $0x20] sm:$0xff]
        %v7008 = vld [vmem:[%s2836 + $0x28] sm:$0x3]
        %v7009 = vld [vmem:[%s2836 + $0x30] sm:$0xff]
        %v7010 = vld [vmem:[%s2836 + $0x38] sm:$0xff]
        %v7011 = vld [vmem:[%s2836 + $0x40] sm:$0x3]
        %v7012 = vld [vmem:[%s2836 + $0x48] sm:$0xff]
        %v7013 = vld [vmem:[%s2836 + $0x50] sm:$0xff]
        %v7014 = vld [vmem:[%s2836 + $0x58] sm:$0x3]
        %v7015 = vld [vmem:[%s2836 + $0x60] sm:$0xff]
        %v7016 = vld [vmem:[%s2836 + $0x68] sm:$0xff]
        %v7017 = vld [vmem:[%s2836 + $0x70] sm:$0x3]
        %v7018 = vld [vmem:[%s2836 + $0x78] sm:$0xff]
        %v7019 = vld [vmem:[%s2836 + $0x80] sm:$0xff]
        %v7020 = vld [vmem:[%s2836 + $0x88] sm:$0x3]
        %v7021 = vld [vmem:[%s2836 + $0x90] sm:$0xff]
        %v7022 = vld [vmem:[%s2836 + $0x98] sm:$0xff]
        %v7023 = vld [vmem:[%s2836 + $0xa0] sm:$0x3]
        %v7024 = vld [vmem:[%s2836 + $0xa8] sm:$0xff]
        %v7025 = vld [vmem:[%s2836 + $0xb0] sm:$0xff]
        %v7026 = vld [vmem:[%s2836 + $0xb8] sm:$0x3]
        %v7027 = vld [vmem:[%s2836 + $0xc0] sm:$0xff]
        %v7028 = vld [vmem:[%s2836 + $0xc8] sm:$0xff]
        %v7029 = vld [vmem:[%s2836 + $0xd0] sm:$0x3]
        %v7030 = vld [vmem:[%s2836 + $0xd8] sm:$0xff]
        %v7031 = vld [vmem:[%s2836 + $0xe0] sm:$0xff]
        %v7032 = vld [vmem:[%s2836 + $0xe8] sm:$0x3]
        %v7033 = vld [vmem:[%s2836 + $0xf0] sm:$0xff]
        %v7034 = vld [vmem:[%s2836 + $0xf8] sm:$0xff]
        %v7035 = vld [vmem:[%s2836 + $0x100] sm:$0x3]
        %v7036 = vld [vmem:[%s2836 + $0x108] sm:$0xff]
        %v7037 = vld [vmem:[%s2836 + $0x110] sm:$0xff]
        %v7038 = vld [vmem:[%s2836 + $0x118] sm:$0x3]
        %v7039 = vld [vmem:[%s2836 + $0x120] sm:$0xff]
        %v7040 = vld [vmem:[%s2836 + $0x128] sm:$0xff]
        %v7041 = vld [vmem:[%s2836 + $0x130] sm:$0x3]
        %v7042 = vld [vmem:[%s2836 + $0x138] sm:$0xff]
        %v7043 = vld [vmem:[%s2836 + $0x140] sm:$0xff]
        %v7044 = vld [vmem:[%s2836 + $0x148] sm:$0x3]
        %v7045 = vld [vmem:[%s2836 + $0x150] sm:$0xff]
        %v7046 = vld [vmem:[%s2836 + $0x158] sm:$0xff]
        %v7047 = vld [vmem:[%s2836 + $0x160] sm:$0x3]
        %v7048 = vld [vmem:[%s2836 + $0x168] sm:$0xff]
        %v7049 = vld [vmem:[%s2836 + $0x170] sm:$0xff]
        %v7050 = vld [vmem:[%s2836 + $0x178] sm:$0x3]
        %v7051 = vld [vmem:[%s2836 + $0x180] sm:$0xff]
        %v7052 = vld [vmem:[%s2836 + $0x188] sm:$0xff]
        %v7053 = vld [vmem:[%s2836 + $0x190] sm:$0x3]
        %v7054 = vld [vmem:[%s2836 + $0x198] sm:$0xff]
        %v7055 = vld [vmem:[%s2836 + $0x1a0] sm:$0xff]
        %v7056 = vld [vmem:[%s2836 + $0x1a8] sm:$0x3]
        %v7111 = vcombine.high %v7003, %v7003
        %v7113 = vunpack.c.l.s4 1983009808
        %v7114 = vunpack.c.0.s8 %v7113
        %v7115 = vlaneseq
        %v7116 = vshrl.u32 %v7115, 7
        %v7117 = vsub.s32 %v7114, %v7116
        %v7118 = vrot.slane %v7003, %v7117
        %v7120 = vunpack.c.l.s4 1983009808
        %v7121 = vunpack.c.0.s8 %v7120
        %v7122 = vlaneseq
        %v7123 = vshrl.u32 %v7122, 7
        %v7124 = vsub.s32 %v7121, %v7123
        %v7125 = vrot.slane %v7111, %v7124
        %v7126 = vcombine.high %v7118, %v7118
        %v7127 = vcombine.high %v7125, %v7125
        %v7128 = vcombine.high %v7004, %v7004
        %v7130 = vunpack.c.l.s4 1983009808
        %v7131 = vunpack.c.0.s8 %v7130
        %v7132 = vlaneseq
        %v7133 = vshrl.u32 %v7132, 7
        %v7134 = vsub.s32 %v7131, %v7133
        %v7135 = vrot.slane %v7004, %v7134
        %v7137 = vunpack.c.l.s4 1983009808
        %v7138 = vunpack.c.0.s8 %v7137
        %v7139 = vlaneseq
        %v7140 = vshrl.u32 %v7139, 7
        %v7141 = vsub.s32 %v7138, %v7140
        %v7142 = vrot.slane %v7128, %v7141
        %v7143 = vcombine.high %v7135, %v7135
        %v7144 = vcombine.high %v7142, %v7142
        %v7146 = vunpack.c.l.s4 1983009808
        %v7147 = vunpack.c.0.s8 %v7146
        %v7148 = vlaneseq
        %v7149 = vshrl.u32 %v7148, 7
        %v7150 = vsub.s32 %v7147, %v7149
        %v7151 = vrot.slane %v7005, %v7150
        %v7152 = vcombine.high %v7006, %v7006
        %v7154 = vunpack.c.l.s4 1983009808
        %v7155 = vunpack.c.0.s8 %v7154
        %v7156 = vlaneseq
        %v7157 = vshrl.u32 %v7156, 7
        %v7158 = vsub.s32 %v7155, %v7157
        %v7159 = vrot.slane %v7006, %v7158
        %v7161 = vunpack.c.l.s4 1983009808
        %v7162 = vunpack.c.0.s8 %v7161
        %v7163 = vlaneseq
        %v7164 = vshrl.u32 %v7163, 7
        %v7165 = vsub.s32 %v7162, %v7164
        %v7166 = vrot.slane %v7152, %v7165
        %v7167 = vcombine.high %v7159, %v7159
        %v7168 = vcombine.high %v7166, %v7166
        %v7169 = vcombine.high %v7007, %v7007
        %v7171 = vunpack.c.l.s4 1983009808
        %v7172 = vunpack.c.0.s8 %v7171
        %v7173 = vlaneseq
        %v7174 = vshrl.u32 %v7173, 7
        %v7175 = vsub.s32 %v7172, %v7174
        %v7176 = vrot.slane %v7007, %v7175
        %v7178 = vunpack.c.l.s4 1983009808
        %v7179 = vunpack.c.0.s8 %v7178
        %v7180 = vlaneseq
        %v7181 = vshrl.u32 %v7180, 7
        %v7182 = vsub.s32 %v7179, %v7181
        %v7183 = vrot.slane %v7169, %v7182
        %v7184 = vcombine.high %v7176, %v7176
        %v7185 = vcombine.high %v7183, %v7183
        %v7187 = vunpack.c.l.s4 1983009808
        %v7188 = vunpack.c.0.s8 %v7187
        %v7189 = vlaneseq
        %v7190 = vshrl.u32 %v7189, 7
        %v7191 = vsub.s32 %v7188, %v7190
        %v7192 = vrot.slane %v7008, %v7191
        %v7193 = vcombine.high %v7009, %v7009
        %v7195 = vunpack.c.l.s4 1983009808
        %v7196 = vunpack.c.0.s8 %v7195
        %v7197 = vlaneseq
        %v7198 = vshrl.u32 %v7197, 7
        %v7199 = vsub.s32 %v7196, %v7198
        %v7200 = vrot.slane %v7009, %v7199
        %v7202 = vunpack.c.l.s4 1983009808
        %v7203 = vunpack.c.0.s8 %v7202
        %v7204 = vlaneseq
        %v7205 = vshrl.u32 %v7204, 7
        %v7206 = vsub.s32 %v7203, %v7205
        %v7207 = vrot.slane %v7193, %v7206
        %v7208 = vcombine.high %v7200, %v7200
        %v7209 = vcombine.high %v7207, %v7207
        %v7210 = vcombine.high %v7010, %v7010
        %v7212 = vunpack.c.l.s4 1983009808
        %v7213 = vunpack.c.0.s8 %v7212
        %v7214 = vlaneseq
        %v7215 = vshrl.u32 %v7214, 7
        %v7216 = vsub.s32 %v7213, %v7215
        %v7217 = vrot.slane %v7010, %v7216
        %v7219 = vunpack.c.l.s4 1983009808
        %v7220 = vunpack.c.0.s8 %v7219
        %v7221 = vlaneseq
        %v7222 = vshrl.u32 %v7221, 7
        %v7223 = vsub.s32 %v7220, %v7222
        %v7224 = vrot.slane %v7210, %v7223
        %v7225 = vcombine.high %v7217, %v7217
        %v7226 = vcombine.high %v7224, %v7224
        %v7228 = vunpack.c.l.s4 1983009808
        %v7229 = vunpack.c.0.s8 %v7228
        %v7230 = vlaneseq
        %v7231 = vshrl.u32 %v7230, 7
        %v7232 = vsub.s32 %v7229, %v7231
        %v7233 = vrot.slane %v7011, %v7232
        %v7234 = vcombine.high %v7012, %v7012
        %v7236 = vunpack.c.l.s4 1983009808
        %v7237 = vunpack.c.0.s8 %v7236
        %v7238 = vlaneseq
        %v7239 = vshrl.u32 %v7238, 7
        %v7240 = vsub.s32 %v7237, %v7239
        %v7241 = vrot.slane %v7012, %v7240
        %v7243 = vunpack.c.l.s4 1983009808
        %v7244 = vunpack.c.0.s8 %v7243
        %v7245 = vlaneseq
        %v7246 = vshrl.u32 %v7245, 7
        %v7247 = vsub.s32 %v7244, %v7246
        %v7248 = vrot.slane %v7234, %v7247
        %v7249 = vcombine.high %v7241, %v7241
        %v7250 = vcombine.high %v7248, %v7248
        %v7251 = vcombine.high %v7013, %v7013
        %v7253 = vunpack.c.l.s4 1983009808
        %v7254 = vunpack.c.0.s8 %v7253
        %v7255 = vlaneseq
        %v7256 = vshrl.u32 %v7255, 7
        %v7257 = vsub.s32 %v7254, %v7256
        %v7258 = vrot.slane %v7013, %v7257
        %v7260 = vunpack.c.l.s4 1983009808
        %v7261 = vunpack.c.0.s8 %v7260
        %v7262 = vlaneseq
        %v7263 = vshrl.u32 %v7262, 7
        %v7264 = vsub.s32 %v7261, %v7263
        %v7265 = vrot.slane %v7251, %v7264
        %v7266 = vcombine.high %v7258, %v7258
        %v7267 = vcombine.high %v7265, %v7265
        %v7269 = vunpack.c.l.s4 1983009808
        %v7270 = vunpack.c.0.s8 %v7269
        %v7271 = vlaneseq
        %v7272 = vshrl.u32 %v7271, 7
        %v7273 = vsub.s32 %v7270, %v7272
        %v7274 = vrot.slane %v7014, %v7273
        %v7275 = vcombine.high %v7015, %v7015
        %v7277 = vunpack.c.l.s4 1983009808
        %v7278 = vunpack.c.0.s8 %v7277
        %v7279 = vlaneseq
        %v7280 = vshrl.u32 %v7279, 7
        %v7281 = vsub.s32 %v7278, %v7280
        %v7282 = vrot.slane %v7015, %v7281
        %v7284 = vunpack.c.l.s4 1983009808
        %v7285 = vunpack.c.0.s8 %v7284
        %v7286 = vlaneseq
        %v7287 = vshrl.u32 %v7286, 7
        %v7288 = vsub.s32 %v7285, %v7287
        %v7289 = vrot.slane %v7275, %v7288
        %v7290 = vcombine.high %v7282, %v7282
        %v7291 = vcombine.high %v7289, %v7289
        %v7292 = vcombine.high %v7016, %v7016
        %v7294 = vunpack.c.l.s4 1983009808
        %v7295 = vunpack.c.0.s8 %v7294
        %v7296 = vlaneseq
        %v7297 = vshrl.u32 %v7296, 7
        %v7298 = vsub.s32 %v7295, %v7297
        %v7299 = vrot.slane %v7016, %v7298
        %v7301 = vunpack.c.l.s4 1983009808
        %v7302 = vunpack.c.0.s8 %v7301
        %v7303 = vlaneseq
        %v7304 = vshrl.u32 %v7303, 7
        %v7305 = vsub.s32 %v7302, %v7304
        %v7306 = vrot.slane %v7292, %v7305
        %v7307 = vcombine.high %v7299, %v7299
        %v7308 = vcombine.high %v7306, %v7306
        %v7310 = vunpack.c.l.s4 1983009808
        %v7311 = vunpack.c.0.s8 %v7310
        %v7312 = vlaneseq
        %v7313 = vshrl.u32 %v7312, 7
        %v7314 = vsub.s32 %v7311, %v7313
        %v7315 = vrot.slane %v7017, %v7314
        %v7316 = vcombine.high %v7018, %v7018
        %v7318 = vunpack.c.l.s4 1983009808
        %v7319 = vunpack.c.0.s8 %v7318
        %v7320 = vlaneseq
        %v7321 = vshrl.u32 %v7320, 7
        %v7322 = vsub.s32 %v7319, %v7321
        %v7323 = vrot.slane %v7018, %v7322
        %v7325 = vunpack.c.l.s4 1983009808
        %v7326 = vunpack.c.0.s8 %v7325
        %v7327 = vlaneseq
        %v7328 = vshrl.u32 %v7327, 7
        %v7329 = vsub.s32 %v7326, %v7328
        %v7330 = vrot.slane %v7316, %v7329
        %v7331 = vcombine.high %v7323, %v7323
        %v7332 = vcombine.high %v7330, %v7330
        %v7333 = vcombine.high %v7019, %v7019
        %v7335 = vunpack.c.l.s4 1983009808
        %v7336 = vunpack.c.0.s8 %v7335
        %v7337 = vlaneseq
        %v7338 = vshrl.u32 %v7337, 7
        %v7339 = vsub.s32 %v7336, %v7338
        %v7340 = vrot.slane %v7019, %v7339
        %v7342 = vunpack.c.l.s4 1983009808
        %v7343 = vunpack.c.0.s8 %v7342
        %v7344 = vlaneseq
        %v7345 = vshrl.u32 %v7344, 7
        %v7346 = vsub.s32 %v7343, %v7345
        %v7347 = vrot.slane %v7333, %v7346
        %v7348 = vcombine.high %v7340, %v7340
        %v7349 = vcombine.high %v7347, %v7347
        %v7351 = vunpack.c.l.s4 1983009808
        %v7352 = vunpack.c.0.s8 %v7351
        %v7353 = vlaneseq
        %v7354 = vshrl.u32 %v7353, 7
        %v7355 = vsub.s32 %v7352, %v7354
        %v7356 = vrot.slane %v7020, %v7355
        %v7357 = vcombine.high %v7021, %v7021
        %v7359 = vunpack.c.l.s4 1983009808
        %v7360 = vunpack.c.0.s8 %v7359
        %v7361 = vlaneseq
        %v7362 = vshrl.u32 %v7361, 7
        %v7363 = vsub.s32 %v7360, %v7362
        %v7364 = vrot.slane %v7021, %v7363
        %v7366 = vunpack.c.l.s4 1983009808
        %v7367 = vunpack.c.0.s8 %v7366
        %v7368 = vlaneseq
        %v7369 = vshrl.u32 %v7368, 7
        %v7370 = vsub.s32 %v7367, %v7369
        %v7371 = vrot.slane %v7357, %v7370
        %v7372 = vcombine.high %v7364, %v7364
        %v7373 = vcombine.high %v7371, %v7371
        %v7374 = vcombine.high %v7022, %v7022
        %v7376 = vunpack.c.l.s4 1983009808
        %v7377 = vunpack.c.0.s8 %v7376
        %v7378 = vlaneseq
        %v7379 = vshrl.u32 %v7378, 7
        %v7380 = vsub.s32 %v7377, %v7379
        %v7381 = vrot.slane %v7022, %v7380
        %v7383 = vunpack.c.l.s4 1983009808
        %v7384 = vunpack.c.0.s8 %v7383
        %v7385 = vlaneseq
        %v7386 = vshrl.u32 %v7385, 7
        %v7387 = vsub.s32 %v7384, %v7386
        %v7388 = vrot.slane %v7374, %v7387
        %v7389 = vcombine.high %v7381, %v7381
        %v7390 = vcombine.high %v7388, %v7388
        %v7392 = vunpack.c.l.s4 1983009808
        %v7393 = vunpack.c.0.s8 %v7392
        %v7394 = vlaneseq
        %v7395 = vshrl.u32 %v7394, 7
        %v7396 = vsub.s32 %v7393, %v7395
        %v7397 = vrot.slane %v7023, %v7396
        %v7398 = vcombine.high %v7024, %v7024
        %v7400 = vunpack.c.l.s4 1983009808
        %v7401 = vunpack.c.0.s8 %v7400
        %v7402 = vlaneseq
        %v7403 = vshrl.u32 %v7402, 7
        %v7404 = vsub.s32 %v7401, %v7403
        %v7405 = vrot.slane %v7024, %v7404
        %v7407 = vunpack.c.l.s4 1983009808
        %v7408 = vunpack.c.0.s8 %v7407
        %v7409 = vlaneseq
        %v7410 = vshrl.u32 %v7409, 7
        %v7411 = vsub.s32 %v7408, %v7410
        %v7412 = vrot.slane %v7398, %v7411
        %v7413 = vcombine.high %v7405, %v7405
        %v7414 = vcombine.high %v7412, %v7412
        %v7415 = vcombine.high %v7025, %v7025
        %v7417 = vunpack.c.l.s4 1983009808
        %v7418 = vunpack.c.0.s8 %v7417
        %v7419 = vlaneseq
        %v7420 = vshrl.u32 %v7419, 7
        %v7421 = vsub.s32 %v7418, %v7420
        %v7422 = vrot.slane %v7025, %v7421
        %v7424 = vunpack.c.l.s4 1983009808
        %v7425 = vunpack.c.0.s8 %v7424
        %v7426 = vlaneseq
        %v7427 = vshrl.u32 %v7426, 7
        %v7428 = vsub.s32 %v7425, %v7427
        %v7429 = vrot.slane %v7415, %v7428
        %v7430 = vcombine.high %v7422, %v7422
        %v7431 = vcombine.high %v7429, %v7429
        %v7433 = vunpack.c.l.s4 1983009808
        %v7434 = vunpack.c.0.s8 %v7433
        %v7435 = vlaneseq
        %v7436 = vshrl.u32 %v7435, 7
        %v7437 = vsub.s32 %v7434, %v7436
        %v7438 = vrot.slane %v7026, %v7437
        %v7439 = vcombine.high %v7027, %v7027
        %v7441 = vunpack.c.l.s4 1983009808
        %v7442 = vunpack.c.0.s8 %v7441
        %v7443 = vlaneseq
        %v7444 = vshrl.u32 %v7443, 7
        %v7445 = vsub.s32 %v7442, %v7444
        %v7446 = vrot.slane %v7027, %v7445
        %v7448 = vunpack.c.l.s4 1983009808
        %v7449 = vunpack.c.0.s8 %v7448
        %v7450 = vlaneseq
        %v7451 = vshrl.u32 %v7450, 7
        %v7452 = vsub.s32 %v7449, %v7451
        %v7453 = vrot.slane %v7439, %v7452
        %v7454 = vcombine.high %v7446, %v7446
        %v7455 = vcombine.high %v7453, %v7453
        %v7456 = vcombine.high %v7028, %v7028
        %v7458 = vunpack.c.l.s4 1983009808
        %v7459 = vunpack.c.0.s8 %v7458
        %v7460 = vlaneseq
        %v7461 = vshrl.u32 %v7460, 7
        %v7462 = vsub.s32 %v7459, %v7461
        %v7463 = vrot.slane %v7028, %v7462
        %v7465 = vunpack.c.l.s4 1983009808
        %v7466 = vunpack.c.0.s8 %v7465
        %v7467 = vlaneseq
        %v7468 = vshrl.u32 %v7467, 7
        %v7469 = vsub.s32 %v7466, %v7468
        %v7470 = vrot.slane %v7456, %v7469
        %v7471 = vcombine.high %v7463, %v7463
        %v7472 = vcombine.high %v7470, %v7470
        %v7474 = vunpack.c.l.s4 1983009808
        %v7475 = vunpack.c.0.s8 %v7474
        %v7476 = vlaneseq
        %v7477 = vshrl.u32 %v7476, 7
        %v7478 = vsub.s32 %v7475, %v7477
        %v7479 = vrot.slane %v7029, %v7478
        %v7480 = vcombine.high %v7030, %v7030
        %v7482 = vunpack.c.l.s4 1983009808
        %v7483 = vunpack.c.0.s8 %v7482
        %v7484 = vlaneseq
        %v7485 = vshrl.u32 %v7484, 7
        %v7486 = vsub.s32 %v7483, %v7485
        %v7487 = vrot.slane %v7030, %v7486
        %v7489 = vunpack.c.l.s4 1983009808
        %v7490 = vunpack.c.0.s8 %v7489
        %v7491 = vlaneseq
        %v7492 = vshrl.u32 %v7491, 7
        %v7493 = vsub.s32 %v7490, %v7492
        %v7494 = vrot.slane %v7480, %v7493
        %v7495 = vcombine.high %v7487, %v7487
        %v7496 = vcombine.high %v7494, %v7494
        %v7497 = vcombine.high %v7031, %v7031
        %v7499 = vunpack.c.l.s4 1983009808
        %v7500 = vunpack.c.0.s8 %v7499
        %v7501 = vlaneseq
        %v7502 = vshrl.u32 %v7501, 7
        %v7503 = vsub.s32 %v7500, %v7502
        %v7504 = vrot.slane %v7031, %v7503
        %v7506 = vunpack.c.l.s4 1983009808
        %v7507 = vunpack.c.0.s8 %v7506
        %v7508 = vlaneseq
        %v7509 = vshrl.u32 %v7508, 7
        %v7510 = vsub.s32 %v7507, %v7509
        %v7511 = vrot.slane %v7497, %v7510
        %v7512 = vcombine.high %v7504, %v7504
        %v7513 = vcombine.high %v7511, %v7511
        %v7515 = vunpack.c.l.s4 1983009808
        %v7516 = vunpack.c.0.s8 %v7515
        %v7517 = vlaneseq
        %v7518 = vshrl.u32 %v7517, 7
        %v7519 = vsub.s32 %v7516, %v7518
        %v7520 = vrot.slane %v7032, %v7519
        %v7521 = vcombine.high %v7033, %v7033
        %v7523 = vunpack.c.l.s4 1983009808
        %v7524 = vunpack.c.0.s8 %v7523
        %v7525 = vlaneseq
        %v7526 = vshrl.u32 %v7525, 7
        %v7527 = vsub.s32 %v7524, %v7526
        %v7528 = vrot.slane %v7033, %v7527
        %v7530 = vunpack.c.l.s4 1983009808
        %v7531 = vunpack.c.0.s8 %v7530
        %v7532 = vlaneseq
        %v7533 = vshrl.u32 %v7532, 7
        %v7534 = vsub.s32 %v7531, %v7533
        %v7535 = vrot.slane %v7521, %v7534
        %v7536 = vcombine.high %v7528, %v7528
        %v7537 = vcombine.high %v7535, %v7535
        %v7538 = vcombine.high %v7034, %v7034
        %v7540 = vunpack.c.l.s4 1983009808
        %v7541 = vunpack.c.0.s8 %v7540
        %v7542 = vlaneseq
        %v7543 = vshrl.u32 %v7542, 7
        %v7544 = vsub.s32 %v7541, %v7543
        %v7545 = vrot.slane %v7034, %v7544
        %v7547 = vunpack.c.l.s4 1983009808
        %v7548 = vunpack.c.0.s8 %v7547
        %v7549 = vlaneseq
        %v7550 = vshrl.u32 %v7549, 7
        %v7551 = vsub.s32 %v7548, %v7550
        %v7552 = vrot.slane %v7538, %v7551
        %v7553 = vcombine.high %v7545, %v7545
        %v7554 = vcombine.high %v7552, %v7552
        %v7556 = vunpack.c.l.s4 1983009808
        %v7557 = vunpack.c.0.s8 %v7556
        %v7558 = vlaneseq
        %v7559 = vshrl.u32 %v7558, 7
        %v7560 = vsub.s32 %v7557, %v7559
        %v7561 = vrot.slane %v7035, %v7560
        %v7562 = vcombine.high %v7036, %v7036
        %v7564 = vunpack.c.l.s4 1983009808
        %v7565 = vunpack.c.0.s8 %v7564
        %v7566 = vlaneseq
        %v7567 = vshrl.u32 %v7566, 7
        %v7568 = vsub.s32 %v7565, %v7567
        %v7569 = vrot.slane %v7036, %v7568
        %v7571 = vunpack.c.l.s4 1983009808
        %v7572 = vunpack.c.0.s8 %v7571
        %v7573 = vlaneseq
        %v7574 = vshrl.u32 %v7573, 7
        %v7575 = vsub.s32 %v7572, %v7574
        %v7576 = vrot.slane %v7562, %v7575
        %v7577 = vcombine.high %v7569, %v7569
        %v7578 = vcombine.high %v7576, %v7576
        %v7579 = vcombine.high %v7037, %v7037
        %v7581 = vunpack.c.l.s4 1983009808
        %v7582 = vunpack.c.0.s8 %v7581
        %v7583 = vlaneseq
        %v7584 = vshrl.u32 %v7583, 7
        %v7585 = vsub.s32 %v7582, %v7584
        %v7586 = vrot.slane %v7037, %v7585
        %v7588 = vunpack.c.l.s4 1983009808
        %v7589 = vunpack.c.0.s8 %v7588
        %v7590 = vlaneseq
        %v7591 = vshrl.u32 %v7590, 7
        %v7592 = vsub.s32 %v7589, %v7591
        %v7593 = vrot.slane %v7579, %v7592
        %v7594 = vcombine.high %v7586, %v7586
        %v7595 = vcombine.high %v7593, %v7593
        %v7597 = vunpack.c.l.s4 1983009808
        %v7598 = vunpack.c.0.s8 %v7597
        %v7599 = vlaneseq
        %v7600 = vshrl.u32 %v7599, 7
        %v7601 = vsub.s32 %v7598, %v7600
        %v7602 = vrot.slane %v7038, %v7601
        %v7603 = vcombine.high %v7039, %v7039
        %v7605 = vunpack.c.l.s4 1983009808
        %v7606 = vunpack.c.0.s8 %v7605
        %v7607 = vlaneseq
        %v7608 = vshrl.u32 %v7607, 7
        %v7609 = vsub.s32 %v7606, %v7608
        %v7610 = vrot.slane %v7039, %v7609
        %v7612 = vunpack.c.l.s4 1983009808
        %v7613 = vunpack.c.0.s8 %v7612
        %v7614 = vlaneseq
        %v7615 = vshrl.u32 %v7614, 7
        %v7616 = vsub.s32 %v7613, %v7615
        %v7617 = vrot.slane %v7603, %v7616
        %v7618 = vcombine.high %v7610, %v7610
        %v7619 = vcombine.high %v7617, %v7617
        %v7620 = vcombine.high %v7040, %v7040
        %v7622 = vunpack.c.l.s4 1983009808
        %v7623 = vunpack.c.0.s8 %v7622
        %v7624 = vlaneseq
        %v7625 = vshrl.u32 %v7624, 7
        %v7626 = vsub.s32 %v7623, %v7625
        %v7627 = vrot.slane %v7040, %v7626
        %v7629 = vunpack.c.l.s4 1983009808
        %v7630 = vunpack.c.0.s8 %v7629
        %v7631 = vlaneseq
        %v7632 = vshrl.u32 %v7631, 7
        %v7633 = vsub.s32 %v7630, %v7632
        %v7634 = vrot.slane %v7620, %v7633
        %v7635 = vcombine.high %v7627, %v7627
        %v7636 = vcombine.high %v7634, %v7634
        %v7638 = vunpack.c.l.s4 1983009808
        %v7639 = vunpack.c.0.s8 %v7638
        %v7640 = vlaneseq
        %v7641 = vshrl.u32 %v7640, 7
        %v7642 = vsub.s32 %v7639, %v7641
        %v7643 = vrot.slane %v7041, %v7642
        %v7644 = vcombine.high %v7042, %v7042
        %v7646 = vunpack.c.l.s4 1983009808
        %v7647 = vunpack.c.0.s8 %v7646
        %v7648 = vlaneseq
        %v7649 = vshrl.u32 %v7648, 7
        %v7650 = vsub.s32 %v7647, %v7649
        %v7651 = vrot.slane %v7042, %v7650
        %v7653 = vunpack.c.l.s4 1983009808
        %v7654 = vunpack.c.0.s8 %v7653
        %v7655 = vlaneseq
        %v7656 = vshrl.u32 %v7655, 7
        %v7657 = vsub.s32 %v7654, %v7656
        %v7658 = vrot.slane %v7644, %v7657
        %v7659 = vcombine.high %v7651, %v7651
        %v7660 = vcombine.high %v7658, %v7658
        %v7661 = vcombine.high %v7043, %v7043
        %v7663 = vunpack.c.l.s4 1983009808
        %v7664 = vunpack.c.0.s8 %v7663
        %v7665 = vlaneseq
        %v7666 = vshrl.u32 %v7665, 7
        %v7667 = vsub.s32 %v7664, %v7666
        %v7668 = vrot.slane %v7043, %v7667
        %v7670 = vunpack.c.l.s4 1983009808
        %v7671 = vunpack.c.0.s8 %v7670
        %v7672 = vlaneseq
        %v7673 = vshrl.u32 %v7672, 7
        %v7674 = vsub.s32 %v7671, %v7673
        %v7675 = vrot.slane %v7661, %v7674
        %v7676 = vcombine.high %v7668, %v7668
        %v7677 = vcombine.high %v7675, %v7675
        %v7679 = vunpack.c.l.s4 1983009808
        %v7680 = vunpack.c.0.s8 %v7679
        %v7681 = vlaneseq
        %v7682 = vshrl.u32 %v7681, 7
        %v7683 = vsub.s32 %v7680, %v7682
        %v7684 = vrot.slane %v7044, %v7683
        %v7685 = vcombine.high %v7045, %v7045
        %v7687 = vunpack.c.l.s4 1983009808
        %v7688 = vunpack.c.0.s8 %v7687
        %v7689 = vlaneseq
        %v7690 = vshrl.u32 %v7689, 7
        %v7691 = vsub.s32 %v7688, %v7690
        %v7692 = vrot.slane %v7045, %v7691
        %v7694 = vunpack.c.l.s4 1983009808
        %v7695 = vunpack.c.0.s8 %v7694
        %v7696 = vlaneseq
        %v7697 = vshrl.u32 %v7696, 7
        %v7698 = vsub.s32 %v7695, %v7697
        %v7699 = vrot.slane %v7685, %v7698
        %v7700 = vcombine.high %v7692, %v7692
        %v7701 = vcombine.high %v7699, %v7699
        %v7702 = vcombine.high %v7046, %v7046
        %v7704 = vunpack.c.l.s4 1983009808
        %v7705 = vunpack.c.0.s8 %v7704
        %v7706 = vlaneseq
        %v7707 = vshrl.u32 %v7706, 7
        %v7708 = vsub.s32 %v7705, %v7707
        %v7709 = vrot.slane %v7046, %v7708
        %v7711 = vunpack.c.l.s4 1983009808
        %v7712 = vunpack.c.0.s8 %v7711
        %v7713 = vlaneseq
        %v7714 = vshrl.u32 %v7713, 7
        %v7715 = vsub.s32 %v7712, %v7714
        %v7716 = vrot.slane %v7702, %v7715
        %v7717 = vcombine.high %v7709, %v7709
        %v7718 = vcombine.high %v7716, %v7716
        %v7720 = vunpack.c.l.s4 1983009808
        %v7721 = vunpack.c.0.s8 %v7720
        %v7722 = vlaneseq
        %v7723 = vshrl.u32 %v7722, 7
        %v7724 = vsub.s32 %v7721, %v7723
        %v7725 = vrot.slane %v7047, %v7724
        %v7726 = vcombine.high %v7048, %v7048
        %v7728 = vunpack.c.l.s4 1983009808
        %v7729 = vunpack.c.0.s8 %v7728
        %v7730 = vlaneseq
        %v7731 = vshrl.u32 %v7730, 7
        %v7732 = vsub.s32 %v7729, %v7731
        %v7733 = vrot.slane %v7048, %v7732
        %v7735 = vunpack.c.l.s4 1983009808
        %v7736 = vunpack.c.0.s8 %v7735
        %v7737 = vlaneseq
        %v7738 = vshrl.u32 %v7737, 7
        %v7739 = vsub.s32 %v7736, %v7738
        %v7740 = vrot.slane %v7726, %v7739
        %v7741 = vcombine.high %v7733, %v7733
        %v7742 = vcombine.high %v7740, %v7740
        %v7743 = vcombine.high %v7049, %v7049
        %v7745 = vunpack.c.l.s4 1983009808
        %v7746 = vunpack.c.0.s8 %v7745
        %v7747 = vlaneseq
        %v7748 = vshrl.u32 %v7747, 7
        %v7749 = vsub.s32 %v7746, %v7748
        %v7750 = vrot.slane %v7049, %v7749
        %v7752 = vunpack.c.l.s4 1983009808
        %v7753 = vunpack.c.0.s8 %v7752
        %v7754 = vlaneseq
        %v7755 = vshrl.u32 %v7754, 7
        %v7756 = vsub.s32 %v7753, %v7755
        %v7757 = vrot.slane %v7743, %v7756
        %v7758 = vcombine.high %v7750, %v7750
        %v7759 = vcombine.high %v7757, %v7757
        %v7761 = vunpack.c.l.s4 1983009808
        %v7762 = vunpack.c.0.s8 %v7761
        %v7763 = vlaneseq
        %v7764 = vshrl.u32 %v7763, 7
        %v7765 = vsub.s32 %v7762, %v7764
        %v7766 = vrot.slane %v7050, %v7765
        %v7767 = vcombine.high %v7051, %v7051
        %v7769 = vunpack.c.l.s4 1983009808
        %v7770 = vunpack.c.0.s8 %v7769
        %v7771 = vlaneseq
        %v7772 = vshrl.u32 %v7771, 7
        %v7773 = vsub.s32 %v7770, %v7772
        %v7774 = vrot.slane %v7051, %v7773
        %v7776 = vunpack.c.l.s4 1983009808
        %v7777 = vunpack.c.0.s8 %v7776
        %v7778 = vlaneseq
        %v7779 = vshrl.u32 %v7778, 7
        %v7780 = vsub.s32 %v7777, %v7779
        %v7781 = vrot.slane %v7767, %v7780
        %v7782 = vcombine.high %v7774, %v7774
        %v7783 = vcombine.high %v7781, %v7781
        %v7784 = vcombine.high %v7052, %v7052
        %v7786 = vunpack.c.l.s4 1983009808
        %v7787 = vunpack.c.0.s8 %v7786
        %v7788 = vlaneseq
        %v7789 = vshrl.u32 %v7788, 7
        %v7790 = vsub.s32 %v7787, %v7789
        %v7791 = vrot.slane %v7052, %v7790
        %v7793 = vunpack.c.l.s4 1983009808
        %v7794 = vunpack.c.0.s8 %v7793
        %v7795 = vlaneseq
        %v7796 = vshrl.u32 %v7795, 7
        %v7797 = vsub.s32 %v7794, %v7796
        %v7798 = vrot.slane %v7784, %v7797
        %v7799 = vcombine.high %v7791, %v7791
        %v7800 = vcombine.high %v7798, %v7798
        %v7802 = vunpack.c.l.s4 1983009808
        %v7803 = vunpack.c.0.s8 %v7802
        %v7804 = vlaneseq
        %v7805 = vshrl.u32 %v7804, 7
        %v7806 = vsub.s32 %v7803, %v7805
        %v7807 = vrot.slane %v7053, %v7806
        %v7808 = vcombine.high %v7054, %v7054
        %v7810 = vunpack.c.l.s4 1983009808
        %v7811 = vunpack.c.0.s8 %v7810
        %v7812 = vlaneseq
        %v7813 = vshrl.u32 %v7812, 7
        %v7814 = vsub.s32 %v7811, %v7813
        %v7815 = vrot.slane %v7054, %v7814
        %v7817 = vunpack.c.l.s4 1983009808
        %v7818 = vunpack.c.0.s8 %v7817
        %v7819 = vlaneseq
        %v7820 = vshrl.u32 %v7819, 7
        %v7821 = vsub.s32 %v7818, %v7820
        %v7822 = vrot.slane %v7808, %v7821
        %v7823 = vcombine.high %v7815, %v7815
        %v7824 = vcombine.high %v7822, %v7822
        %v7825 = vcombine.high %v7055, %v7055
        %v7827 = vunpack.c.l.s4 1983009808
        %v7828 = vunpack.c.0.s8 %v7827
        %v7829 = vlaneseq
        %v7830 = vshrl.u32 %v7829, 7
        %v7831 = vsub.s32 %v7828, %v7830
        %v7832 = vrot.slane %v7055, %v7831
        %v7834 = vunpack.c.l.s4 1983009808
        %v7835 = vunpack.c.0.s8 %v7834
        %v7836 = vlaneseq
        %v7837 = vshrl.u32 %v7836, 7
        %v7838 = vsub.s32 %v7835, %v7837
        %v7839 = vrot.slane %v7825, %v7838
        %v7840 = vcombine.high %v7832, %v7832
        %v7841 = vcombine.high %v7839, %v7839
        %v7843 = vunpack.c.l.s4 1983009808
        %v7844 = vunpack.c.0.s8 %v7843
        %v7845 = vlaneseq
        %v7846 = vshrl.u32 %v7845, 7
        %v7847 = vsub.s32 %v7844, %v7846
        %v7848 = vrot.slane %v7056, %v7847
        %s7849 = scalar_lea.vmem %s5, 48
        %v7850 = vld [vmem:[%s7849] sm:$0xff]
        %v7851 = vld [vmem:[%s7849 + $0x8] sm:$0xff]
        %v7852 = vld [vmem:[%s7849 + $0x10] sm:$0xff]
        %v7853 = vcombine.low %v7118, %v7126
        %v7854 = vcombine.low %v7125, %v7127
        %v7856 = vunpack.c.l.s4 1983009808
        %v7857 = vunpack.c.0.s8 %v7856
        %v7858 = vlaneseq
        %v7859 = vshrl.u32 %v7858, 7
        %v7860 = vsub.s32 %v7857, %v7859
        %v7861 = vrot.slane %v7853, %v7860
        %v7863 = vunpack.c.l.s4 1983009808
        %v7864 = vunpack.c.0.s8 %v7863
        %v7865 = vlaneseq
        %v7866 = vshrl.u32 %v7865, 7
        %v7867 = vsub.s32 %v7864, %v7866
        %v7868 = vrot.slane %v7854, %v7867
        %v7869 = vcombine.low %v7861, %v7868
        %v7870 = vcombine.low %v7135, %v7143
        %v7871 = vcombine.low %v7142, %v7144
        %v7873 = vunpack.c.l.s4 1983009808
        %v7874 = vunpack.c.0.s8 %v7873
        %v7875 = vlaneseq
        %v7876 = vshrl.u32 %v7875, 7
        %v7877 = vsub.s32 %v7874, %v7876
        %v7878 = vrot.slane %v7870, %v7877
        %v7880 = vunpack.c.l.s4 1983009808
        %v7881 = vunpack.c.0.s8 %v7880
        %v7882 = vlaneseq
        %v7883 = vshrl.u32 %v7882, 7
        %v7884 = vsub.s32 %v7881, %v7883
        %v7885 = vrot.slane %v7871, %v7884
        %v7886 = vcombine.low %v7878, %v7885
        %v7887 = vcombine.low %v7151, %v7159
        %v7888 = vcombine.low %v7167, %v7166
        %v7890 = vunpack.c.l.s4 1983009808
        %v7891 = vunpack.c.0.s8 %v7890
        %v7892 = vlaneseq
        %v7893 = vshrl.u32 %v7892, 7
        %v7894 = vsub.s32 %v7891, %v7893
        %v7895 = vrot.slane %v7887, %v7894
        %v7897 = vunpack.c.l.s4 1983009808
        %v7898 = vunpack.c.0.s8 %v7897
        %v7899 = vlaneseq
        %v7900 = vshrl.u32 %v7899, 7
        %v7901 = vsub.s32 %v7898, %v7900
        %v7902 = vrot.slane %v7888, %v7901
        %v7903 = vcombine.low %v7895, %v7902
        %v7904 = vcombine.low %v7168, %v7176
        %v7905 = vcombine.low %v7184, %v7183
        %v7907 = vunpack.c.l.s4 1983009808
        %v7908 = vunpack.c.0.s8 %v7907
        %v7909 = vlaneseq
        %v7910 = vshrl.u32 %v7909, 7
        %v7911 = vsub.s32 %v7908, %v7910
        %v7912 = vrot.slane %v7904, %v7911
        %v7914 = vunpack.c.l.s4 1983009808
        %v7915 = vunpack.c.0.s8 %v7914
        %v7916 = vlaneseq
        %v7917 = vshrl.u32 %v7916, 7
        %v7918 = vsub.s32 %v7915, %v7917
        %v7919 = vrot.slane %v7905, %v7918
        %v7920 = vcombine.low %v7912, %v7919
        %v7921 = vcombine.low %v7185, %v7192
        %v7922 = vcombine.low %v7200, %v7208
        %v7924 = vunpack.c.l.s4 1983009808
        %v7925 = vunpack.c.0.s8 %v7924
        %v7926 = vlaneseq
        %v7927 = vshrl.u32 %v7926, 7
        %v7928 = vsub.s32 %v7925, %v7927
        %v7929 = vrot.slane %v7921, %v7928
        %v7931 = vunpack.c.l.s4 1983009808
        %v7932 = vunpack.c.0.s8 %v7931
        %v7933 = vlaneseq
        %v7934 = vshrl.u32 %v7933, 7
        %v7935 = vsub.s32 %v7932, %v7934
        %v7936 = vrot.slane %v7922, %v7935
        %v7937 = vcombine.low %v7929, %v7936
        %v7938 = vcombine.low %v7207, %v7209
        %v7939 = vcombine.low %v7217, %v7225
        %v7941 = vunpack.c.l.s4 1983009808
        %v7942 = vunpack.c.0.s8 %v7941
        %v7943 = vlaneseq
        %v7944 = vshrl.u32 %v7943, 7
        %v7945 = vsub.s32 %v7942, %v7944
        %v7946 = vrot.slane %v7938, %v7945
        %v7948 = vunpack.c.l.s4 1983009808
        %v7949 = vunpack.c.0.s8 %v7948
        %v7950 = vlaneseq
        %v7951 = vshrl.u32 %v7950, 7
        %v7952 = vsub.s32 %v7949, %v7951
        %v7953 = vrot.slane %v7939, %v7952
        %v7954 = vcombine.low %v7946, %v7953
        %v7955 = vcombine.low %v7224, %v7226
        %v7956 = vcombine.low %v7233, %v7241
        %v7958 = vunpack.c.l.s4 1983009808
        %v7959 = vunpack.c.0.s8 %v7958
        %v7960 = vlaneseq
        %v7961 = vshrl.u32 %v7960, 7
        %v7962 = vsub.s32 %v7959, %v7961
        %v7963 = vrot.slane %v7955, %v7962
        %v7965 = vunpack.c.l.s4 1983009808
        %v7966 = vunpack.c.0.s8 %v7965
        %v7967 = vlaneseq
        %v7968 = vshrl.u32 %v7967, 7
        %v7969 = vsub.s32 %v7966, %v7968
        %v7970 = vrot.slane %v7956, %v7969
        %v7971 = vcombine.low %v7963, %v7970
        %v7972 = vcombine.low %v7249, %v7248
        %v7973 = vcombine.low %v7250, %v7258
        %v7975 = vunpack.c.l.s4 1983009808
        %v7976 = vunpack.c.0.s8 %v7975
        %v7977 = vlaneseq
        %v7978 = vshrl.u32 %v7977, 7
        %v7979 = vsub.s32 %v7976, %v7978
        %v7980 = vrot.slane %v7972, %v7979
        %v7982 = vunpack.c.l.s4 1983009808
        %v7983 = vunpack.c.0.s8 %v7982
        %v7984 = vlaneseq
        %v7985 = vshrl.u32 %v7984, 7
        %v7986 = vsub.s32 %v7983, %v7985
        %v7987 = vrot.slane %v7973, %v7986
        %v7988 = vcombine.low %v7980, %v7987
        %v7989 = vcombine.low %v7266, %v7265
        %v7990 = vcombine.low %v7267, %v7274
        %v7992 = vunpack.c.l.s4 1983009808
        %v7993 = vunpack.c.0.s8 %v7992
        %v7994 = vlaneseq
        %v7995 = vshrl.u32 %v7994, 7
        %v7996 = vsub.s32 %v7993, %v7995
        %v7997 = vrot.slane %v7989, %v7996
        %v7999 = vunpack.c.l.s4 1983009808
        %v8000 = vunpack.c.0.s8 %v7999
        %v8001 = vlaneseq
        %v8002 = vshrl.u32 %v8001, 7
        %v8003 = vsub.s32 %v8000, %v8002
        %v8004 = vrot.slane %v7990, %v8003
        %v8005 = vcombine.low %v7997, %v8004
        %v8006 = vcombine.low %v7282, %v7290
        %v8007 = vcombine.low %v7289, %v7291
        %v8009 = vunpack.c.l.s4 1983009808
        %v8010 = vunpack.c.0.s8 %v8009
        %v8011 = vlaneseq
        %v8012 = vshrl.u32 %v8011, 7
        %v8013 = vsub.s32 %v8010, %v8012
        %v8014 = vrot.slane %v8006, %v8013
        %v8016 = vunpack.c.l.s4 1983009808
        %v8017 = vunpack.c.0.s8 %v8016
        %v8018 = vlaneseq
        %v8019 = vshrl.u32 %v8018, 7
        %v8020 = vsub.s32 %v8017, %v8019
        %v8021 = vrot.slane %v8007, %v8020
        %v8022 = vcombine.low %v8014, %v8021
        %v8023 = vcombine.low %v7299, %v7307
        %v8024 = vcombine.low %v7306, %v7308
        %v8026 = vunpack.c.l.s4 1983009808
        %v8027 = vunpack.c.0.s8 %v8026
        %v8028 = vlaneseq
        %v8029 = vshrl.u32 %v8028, 7
        %v8030 = vsub.s32 %v8027, %v8029
        %v8031 = vrot.slane %v8023, %v8030
        %v8033 = vunpack.c.l.s4 1983009808
        %v8034 = vunpack.c.0.s8 %v8033
        %v8035 = vlaneseq
        %v8036 = vshrl.u32 %v8035, 7
        %v8037 = vsub.s32 %v8034, %v8036
        %v8038 = vrot.slane %v8024, %v8037
        %v8039 = vcombine.low %v8031, %v8038
        %v8040 = vcombine.low %v7315, %v7323
        %v8041 = vcombine.low %v7331, %v7330
        %v8043 = vunpack.c.l.s4 1983009808
        %v8044 = vunpack.c.0.s8 %v8043
        %v8045 = vlaneseq
        %v8046 = vshrl.u32 %v8045, 7
        %v8047 = vsub.s32 %v8044, %v8046
        %v8048 = vrot.slane %v8040, %v8047
        %v8050 = vunpack.c.l.s4 1983009808
        %v8051 = vunpack.c.0.s8 %v8050
        %v8052 = vlaneseq
        %v8053 = vshrl.u32 %v8052, 7
        %v8054 = vsub.s32 %v8051, %v8053
        %v8055 = vrot.slane %v8041, %v8054
        %v8056 = vcombine.low %v8048, %v8055
        %v8057 = vcombine.low %v7332, %v7340
        %v8058 = vcombine.low %v7348, %v7347
        %v8060 = vunpack.c.l.s4 1983009808
        %v8061 = vunpack.c.0.s8 %v8060
        %v8062 = vlaneseq
        %v8063 = vshrl.u32 %v8062, 7
        %v8064 = vsub.s32 %v8061, %v8063
        %v8065 = vrot.slane %v8057, %v8064
        %v8067 = vunpack.c.l.s4 1983009808
        %v8068 = vunpack.c.0.s8 %v8067
        %v8069 = vlaneseq
        %v8070 = vshrl.u32 %v8069, 7
        %v8071 = vsub.s32 %v8068, %v8070
        %v8072 = vrot.slane %v8058, %v8071
        %v8073 = vcombine.low %v8065, %v8072
        %v8074 = vcombine.low %v7349, %v7356
        %v8075 = vcombine.low %v7364, %v7372
        %v8077 = vunpack.c.l.s4 1983009808
        %v8078 = vunpack.c.0.s8 %v8077
        %v8079 = vlaneseq
        %v8080 = vshrl.u32 %v8079, 7
        %v8081 = vsub.s32 %v8078, %v8080
        %v8082 = vrot.slane %v8074, %v8081
        %v8084 = vunpack.c.l.s4 1983009808
        %v8085 = vunpack.c.0.s8 %v8084
        %v8086 = vlaneseq
        %v8087 = vshrl.u32 %v8086, 7
        %v8088 = vsub.s32 %v8085, %v8087
        %v8089 = vrot.slane %v8075, %v8088
        %v8090 = vcombine.low %v8082, %v8089
        %v8091 = vcombine.low %v7371, %v7373
        %v8092 = vcombine.low %v7381, %v7389
        %v8094 = vunpack.c.l.s4 1983009808
        %v8095 = vunpack.c.0.s8 %v8094
        %v8096 = vlaneseq
        %v8097 = vshrl.u32 %v8096, 7
        %v8098 = vsub.s32 %v8095, %v8097
        %v8099 = vrot.slane %v8091, %v8098
        %v8101 = vunpack.c.l.s4 1983009808
        %v8102 = vunpack.c.0.s8 %v8101
        %v8103 = vlaneseq
        %v8104 = vshrl.u32 %v8103, 7
        %v8105 = vsub.s32 %v8102, %v8104
        %v8106 = vrot.slane %v8092, %v8105
        %v8107 = vcombine.low %v8099, %v8106
        %v8108 = vcombine.low %v7388, %v7390
        %v8109 = vcombine.low %v7397, %v7405
        %v8111 = vunpack.c.l.s4 1983009808
        %v8112 = vunpack.c.0.s8 %v8111
        %v8113 = vlaneseq
        %v8114 = vshrl.u32 %v8113, 7
        %v8115 = vsub.s32 %v8112, %v8114
        %v8116 = vrot.slane %v8108, %v8115
        %v8118 = vunpack.c.l.s4 1983009808
        %v8119 = vunpack.c.0.s8 %v8118
        %v8120 = vlaneseq
        %v8121 = vshrl.u32 %v8120, 7
        %v8122 = vsub.s32 %v8119, %v8121
        %v8123 = vrot.slane %v8109, %v8122
        %v8124 = vcombine.low %v8116, %v8123
        %v8125 = vcombine.low %v7413, %v7412
        %v8126 = vcombine.low %v7414, %v7422
        %v8128 = vunpack.c.l.s4 1983009808
        %v8129 = vunpack.c.0.s8 %v8128
        %v8130 = vlaneseq
        %v8131 = vshrl.u32 %v8130, 7
        %v8132 = vsub.s32 %v8129, %v8131
        %v8133 = vrot.slane %v8125, %v8132
        %v8135 = vunpack.c.l.s4 1983009808
        %v8136 = vunpack.c.0.s8 %v8135
        %v8137 = vlaneseq
        %v8138 = vshrl.u32 %v8137, 7
        %v8139 = vsub.s32 %v8136, %v8138
        %v8140 = vrot.slane %v8126, %v8139
        %v8141 = vcombine.low %v8133, %v8140
        %v8142 = vcombine.low %v7430, %v7429
        %v8143 = vcombine.low %v7431, %v7438
        %v8145 = vunpack.c.l.s4 1983009808
        %v8146 = vunpack.c.0.s8 %v8145
        %v8147 = vlaneseq
        %v8148 = vshrl.u32 %v8147, 7
        %v8149 = vsub.s32 %v8146, %v8148
        %v8150 = vrot.slane %v8142, %v8149
        %v8152 = vunpack.c.l.s4 1983009808
        %v8153 = vunpack.c.0.s8 %v8152
        %v8154 = vlaneseq
        %v8155 = vshrl.u32 %v8154, 7
        %v8156 = vsub.s32 %v8153, %v8155
        %v8157 = vrot.slane %v8143, %v8156
        %v8158 = vcombine.low %v8150, %v8157
        %v8159 = vcombine.low %v7446, %v7454
        %v8160 = vcombine.low %v7453, %v7455
        %v8162 = vunpack.c.l.s4 1983009808
        %v8163 = vunpack.c.0.s8 %v8162
        %v8164 = vlaneseq
        %v8165 = vshrl.u32 %v8164, 7
        %v8166 = vsub.s32 %v8163, %v8165
        %v8167 = vrot.slane %v8159, %v8166
        %v8169 = vunpack.c.l.s4 1983009808
        %v8170 = vunpack.c.0.s8 %v8169
        %v8171 = vlaneseq
        %v8172 = vshrl.u32 %v8171, 7
        %v8173 = vsub.s32 %v8170, %v8172
        %v8174 = vrot.slane %v8160, %v8173
        %v8175 = vcombine.low %v8167, %v8174
        %v8176 = vcombine.low %v7463, %v7471
        %v8177 = vcombine.low %v7470, %v7472
        %v8179 = vunpack.c.l.s4 1983009808
        %v8180 = vunpack.c.0.s8 %v8179
        %v8181 = vlaneseq
        %v8182 = vshrl.u32 %v8181, 7
        %v8183 = vsub.s32 %v8180, %v8182
        %v8184 = vrot.slane %v8176, %v8183
        %v8186 = vunpack.c.l.s4 1983009808
        %v8187 = vunpack.c.0.s8 %v8186
        %v8188 = vlaneseq
        %v8189 = vshrl.u32 %v8188, 7
        %v8190 = vsub.s32 %v8187, %v8189
        %v8191 = vrot.slane %v8177, %v8190
        %v8192 = vcombine.low %v8184, %v8191
        %v8193 = vcombine.low %v7479, %v7487
        %v8194 = vcombine.low %v7495, %v7494
        %v8196 = vunpack.c.l.s4 1983009808
        %v8197 = vunpack.c.0.s8 %v8196
        %v8198 = vlaneseq
        %v8199 = vshrl.u32 %v8198, 7
        %v8200 = vsub.s32 %v8197, %v8199
        %v8201 = vrot.slane %v8193, %v8200
        %v8203 = vunpack.c.l.s4 1983009808
        %v8204 = vunpack.c.0.s8 %v8203
        %v8205 = vlaneseq
        %v8206 = vshrl.u32 %v8205, 7
        %v8207 = vsub.s32 %v8204, %v8206
        %v8208 = vrot.slane %v8194, %v8207
        %v8209 = vcombine.low %v8201, %v8208
        %v8210 = vcombine.low %v7496, %v7504
        %v8211 = vcombine.low %v7512, %v7511
        %v8213 = vunpack.c.l.s4 1983009808
        %v8214 = vunpack.c.0.s8 %v8213
        %v8215 = vlaneseq
        %v8216 = vshrl.u32 %v8215, 7
        %v8217 = vsub.s32 %v8214, %v8216
        %v8218 = vrot.slane %v8210, %v8217
        %v8220 = vunpack.c.l.s4 1983009808
        %v8221 = vunpack.c.0.s8 %v8220
        %v8222 = vlaneseq
        %v8223 = vshrl.u32 %v8222, 7
        %v8224 = vsub.s32 %v8221, %v8223
        %v8225 = vrot.slane %v8211, %v8224
        %v8226 = vcombine.low %v8218, %v8225
        %v8227 = vcombine.low %v7513, %v7520
        %v8228 = vcombine.low %v7528, %v7536
        %v8230 = vunpack.c.l.s4 1983009808
        %v8231 = vunpack.c.0.s8 %v8230
        %v8232 = vlaneseq
        %v8233 = vshrl.u32 %v8232, 7
        %v8234 = vsub.s32 %v8231, %v8233
        %v8235 = vrot.slane %v8227, %v8234
        %v8237 = vunpack.c.l.s4 1983009808
        %v8238 = vunpack.c.0.s8 %v8237
        %v8239 = vlaneseq
        %v8240 = vshrl.u32 %v8239, 7
        %v8241 = vsub.s32 %v8238, %v8240
        %v8242 = vrot.slane %v8228, %v8241
        %v8243 = vcombine.low %v8235, %v8242
        %v8244 = vcombine.low %v7535, %v7537
        %v8245 = vcombine.low %v7545, %v7553
        %v8247 = vunpack.c.l.s4 1983009808
        %v8248 = vunpack.c.0.s8 %v8247
        %v8249 = vlaneseq
        %v8250 = vshrl.u32 %v8249, 7
        %v8251 = vsub.s32 %v8248, %v8250
        %v8252 = vrot.slane %v8244, %v8251
        %v8254 = vunpack.c.l.s4 1983009808
        %v8255 = vunpack.c.0.s8 %v8254
        %v8256 = vlaneseq
        %v8257 = vshrl.u32 %v8256, 7
        %v8258 = vsub.s32 %v8255, %v8257
        %v8259 = vrot.slane %v8245, %v8258
        %v8260 = vcombine.low %v8252, %v8259
        %v8261 = vcombine.low %v7552, %v7554
        %v8262 = vcombine.low %v7561, %v7569
        %v8264 = vunpack.c.l.s4 1983009808
        %v8265 = vunpack.c.0.s8 %v8264
        %v8266 = vlaneseq
        %v8267 = vshrl.u32 %v8266, 7
        %v8268 = vsub.s32 %v8265, %v8267
        %v8269 = vrot.slane %v8261, %v8268
        %v8271 = vunpack.c.l.s4 1983009808
        %v8272 = vunpack.c.0.s8 %v8271
        %v8273 = vlaneseq
        %v8274 = vshrl.u32 %v8273, 7
        %v8275 = vsub.s32 %v8272, %v8274
        %v8276 = vrot.slane %v8262, %v8275
        %v8277 = vcombine.low %v8269, %v8276
        %v8278 = vcombine.low %v7577, %v7576
        %v8279 = vcombine.low %v7578, %v7586
        %v8281 = vunpack.c.l.s4 1983009808
        %v8282 = vunpack.c.0.s8 %v8281
        %v8283 = vlaneseq
        %v8284 = vshrl.u32 %v8283, 7
        %v8285 = vsub.s32 %v8282, %v8284
        %v8286 = vrot.slane %v8278, %v8285
        %v8288 = vunpack.c.l.s4 1983009808
        %v8289 = vunpack.c.0.s8 %v8288
        %v8290 = vlaneseq
        %v8291 = vshrl.u32 %v8290, 7
        %v8292 = vsub.s32 %v8289, %v8291
        %v8293 = vrot.slane %v8279, %v8292
        %v8294 = vcombine.low %v8286, %v8293
        %v8295 = vcombine.low %v7594, %v7593
        %v8296 = vcombine.low %v7595, %v7602
        %v8298 = vunpack.c.l.s4 1983009808
        %v8299 = vunpack.c.0.s8 %v8298
        %v8300 = vlaneseq
        %v8301 = vshrl.u32 %v8300, 7
        %v8302 = vsub.s32 %v8299, %v8301
        %v8303 = vrot.slane %v8295, %v8302
        %v8305 = vunpack.c.l.s4 1983009808
        %v8306 = vunpack.c.0.s8 %v8305
        %v8307 = vlaneseq
        %v8308 = vshrl.u32 %v8307, 7
        %v8309 = vsub.s32 %v8306, %v8308
        %v8310 = vrot.slane %v8296, %v8309
        %v8311 = vcombine.low %v8303, %v8310
        %v8312 = vcombine.low %v7610, %v7618
        %v8313 = vcombine.low %v7617, %v7619
        %v8315 = vunpack.c.l.s4 1983009808
        %v8316 = vunpack.c.0.s8 %v8315
        %v8317 = vlaneseq
        %v8318 = vshrl.u32 %v8317, 7
        %v8319 = vsub.s32 %v8316, %v8318
        %v8320 = vrot.slane %v8312, %v8319
        %v8322 = vunpack.c.l.s4 1983009808
        %v8323 = vunpack.c.0.s8 %v8322
        %v8324 = vlaneseq
        %v8325 = vshrl.u32 %v8324, 7
        %v8326 = vsub.s32 %v8323, %v8325
        %v8327 = vrot.slane %v8313, %v8326
        %v8328 = vcombine.low %v8320, %v8327
        %v8329 = vcombine.low %v7627, %v7635
        %v8330 = vcombine.low %v7634, %v7636
        %v8332 = vunpack.c.l.s4 1983009808
        %v8333 = vunpack.c.0.s8 %v8332
        %v8334 = vlaneseq
        %v8335 = vshrl.u32 %v8334, 7
        %v8336 = vsub.s32 %v8333, %v8335
        %v8337 = vrot.slane %v8329, %v8336
        %v8339 = vunpack.c.l.s4 1983009808
        %v8340 = vunpack.c.0.s8 %v8339
        %v8341 = vlaneseq
        %v8342 = vshrl.u32 %v8341, 7
        %v8343 = vsub.s32 %v8340, %v8342
        %v8344 = vrot.slane %v8330, %v8343
        %v8345 = vcombine.low %v8337, %v8344
        %v8346 = vcombine.low %v7643, %v7651
        %v8347 = vcombine.low %v7659, %v7658
        %v8349 = vunpack.c.l.s4 1983009808
        %v8350 = vunpack.c.0.s8 %v8349
        %v8351 = vlaneseq
        %v8352 = vshrl.u32 %v8351, 7
        %v8353 = vsub.s32 %v8350, %v8352
        %v8354 = vrot.slane %v8346, %v8353
        %v8356 = vunpack.c.l.s4 1983009808
        %v8357 = vunpack.c.0.s8 %v8356
        %v8358 = vlaneseq
        %v8359 = vshrl.u32 %v8358, 7
        %v8360 = vsub.s32 %v8357, %v8359
        %v8361 = vrot.slane %v8347, %v8360
        %v8362 = vcombine.low %v8354, %v8361
        %v8363 = vcombine.low %v7660, %v7668
        %v8364 = vcombine.low %v7676, %v7675
        %v8366 = vunpack.c.l.s4 1983009808
        %v8367 = vunpack.c.0.s8 %v8366
        %v8368 = vlaneseq
        %v8369 = vshrl.u32 %v8368, 7
        %v8370 = vsub.s32 %v8367, %v8369
        %v8371 = vrot.slane %v8363, %v8370
        %v8373 = vunpack.c.l.s4 1983009808
        %v8374 = vunpack.c.0.s8 %v8373
        %v8375 = vlaneseq
        %v8376 = vshrl.u32 %v8375, 7
        %v8377 = vsub.s32 %v8374, %v8376
        %v8378 = vrot.slane %v8364, %v8377
        %v8379 = vcombine.low %v8371, %v8378
        %v8380 = vcombine.low %v7677, %v7684
        %v8381 = vcombine.low %v7692, %v7700
        %v8383 = vunpack.c.l.s4 1983009808
        %v8384 = vunpack.c.0.s8 %v8383
        %v8385 = vlaneseq
        %v8386 = vshrl.u32 %v8385, 7
        %v8387 = vsub.s32 %v8384, %v8386
        %v8388 = vrot.slane %v8380, %v8387
        %v8390 = vunpack.c.l.s4 1983009808
        %v8391 = vunpack.c.0.s8 %v8390
        %v8392 = vlaneseq
        %v8393 = vshrl.u32 %v8392, 7
        %v8394 = vsub.s32 %v8391, %v8393
        %v8395 = vrot.slane %v8381, %v8394
        %v8396 = vcombine.low %v8388, %v8395
        %v8397 = vcombine.low %v7699, %v7701
        %v8398 = vcombine.low %v7709, %v7717
        %v8400 = vunpack.c.l.s4 1983009808
        %v8401 = vunpack.c.0.s8 %v8400
        %v8402 = vlaneseq
        %v8403 = vshrl.u32 %v8402, 7
        %v8404 = vsub.s32 %v8401, %v8403
        %v8405 = vrot.slane %v8397, %v8404
        %v8407 = vunpack.c.l.s4 1983009808
        %v8408 = vunpack.c.0.s8 %v8407
        %v8409 = vlaneseq
        %v8410 = vshrl.u32 %v8409, 7
        %v8411 = vsub.s32 %v8408, %v8410
        %v8412 = vrot.slane %v8398, %v8411
        %v8413 = vcombine.low %v8405, %v8412
        %v8414 = vcombine.low %v7716, %v7718
        %v8415 = vcombine.low %v7725, %v7733
        %v8417 = vunpack.c.l.s4 1983009808
        %v8418 = vunpack.c.0.s8 %v8417
        %v8419 = vlaneseq
        %v8420 = vshrl.u32 %v8419, 7
        %v8421 = vsub.s32 %v8418, %v8420
        %v8422 = vrot.slane %v8414, %v8421
        %v8424 = vunpack.c.l.s4 1983009808
        %v8425 = vunpack.c.0.s8 %v8424
        %v8426 = vlaneseq
        %v8427 = vshrl.u32 %v8426, 7
        %v8428 = vsub.s32 %v8425, %v8427
        %v8429 = vrot.slane %v8415, %v8428
        %v8430 = vcombine.low %v8422, %v8429
        %v8431 = vcombine.low %v7741, %v7740
        %v8432 = vcombine.low %v7742, %v7750
        %v8434 = vunpack.c.l.s4 1983009808
        %v8435 = vunpack.c.0.s8 %v8434
        %v8436 = vlaneseq
        %v8437 = vshrl.u32 %v8436, 7
        %v8438 = vsub.s32 %v8435, %v8437
        %v8439 = vrot.slane %v8431, %v8438
        %v8441 = vunpack.c.l.s4 1983009808
        %v8442 = vunpack.c.0.s8 %v8441
        %v8443 = vlaneseq
        %v8444 = vshrl.u32 %v8443, 7
        %v8445 = vsub.s32 %v8442, %v8444
        %v8446 = vrot.slane %v8432, %v8445
        %v8447 = vcombine.low %v8439, %v8446
        %v8448 = vcombine.low %v7758, %v7757
        %v8449 = vcombine.low %v7759, %v7766
        %v8451 = vunpack.c.l.s4 1983009808
        %v8452 = vunpack.c.0.s8 %v8451
        %v8453 = vlaneseq
        %v8454 = vshrl.u32 %v8453, 7
        %v8455 = vsub.s32 %v8452, %v8454
        %v8456 = vrot.slane %v8448, %v8455
        %v8458 = vunpack.c.l.s4 1983009808
        %v8459 = vunpack.c.0.s8 %v8458
        %v8460 = vlaneseq
        %v8461 = vshrl.u32 %v8460, 7
        %v8462 = vsub.s32 %v8459, %v8461
        %v8463 = vrot.slane %v8449, %v8462
        %v8464 = vcombine.low %v8456, %v8463
        %v8465 = vcombine.low %v7774, %v7782
        %v8466 = vcombine.low %v7781, %v7783
        %v8468 = vunpack.c.l.s4 1983009808
        %v8469 = vunpack.c.0.s8 %v8468
        %v8470 = vlaneseq
        %v8471 = vshrl.u32 %v8470, 7
        %v8472 = vsub.s32 %v8469, %v8471
        %v8473 = vrot.slane %v8465, %v8472
        %v8475 = vunpack.c.l.s4 1983009808
        %v8476 = vunpack.c.0.s8 %v8475
        %v8477 = vlaneseq
        %v8478 = vshrl.u32 %v8477, 7
        %v8479 = vsub.s32 %v8476, %v8478
        %v8480 = vrot.slane %v8466, %v8479
        %v8481 = vcombine.low %v8473, %v8480
        %v8482 = vcombine.low %v7791, %v7799
        %v8483 = vcombine.low %v7798, %v7800
        %v8485 = vunpack.c.l.s4 1983009808
        %v8486 = vunpack.c.0.s8 %v8485
        %v8487 = vlaneseq
        %v8488 = vshrl.u32 %v8487, 7
        %v8489 = vsub.s32 %v8486, %v8488
        %v8490 = vrot.slane %v8482, %v8489
        %v8492 = vunpack.c.l.s4 1983009808
        %v8493 = vunpack.c.0.s8 %v8492
        %v8494 = vlaneseq
        %v8495 = vshrl.u32 %v8494, 7
        %v8496 = vsub.s32 %v8493, %v8495
        %v8497 = vrot.slane %v8483, %v8496
        %v8498 = vcombine.low %v8490, %v8497
        %v8499 = vcombine.low %v7807, %v7815
        %v8500 = vcombine.low %v7823, %v7822
        %v8502 = vunpack.c.l.s4 1983009808
        %v8503 = vunpack.c.0.s8 %v8502
        %v8504 = vlaneseq
        %v8505 = vshrl.u32 %v8504, 7
        %v8506 = vsub.s32 %v8503, %v8505
        %v8507 = vrot.slane %v8499, %v8506
        %v8509 = vunpack.c.l.s4 1983009808
        %v8510 = vunpack.c.0.s8 %v8509
        %v8511 = vlaneseq
        %v8512 = vshrl.u32 %v8511, 7
        %v8513 = vsub.s32 %v8510, %v8512
        %v8514 = vrot.slane %v8500, %v8513
        %v8515 = vcombine.low %v8507, %v8514
        %v8516 = vcombine.low %v7824, %v7832
        %v8517 = vcombine.low %v7840, %v7839
        %v8519 = vunpack.c.l.s4 1983009808
        %v8520 = vunpack.c.0.s8 %v8519
        %v8521 = vlaneseq
        %v8522 = vshrl.u32 %v8521, 7
        %v8523 = vsub.s32 %v8520, %v8522
        %v8524 = vrot.slane %v8516, %v8523
        %v8526 = vunpack.c.l.s4 1983009808
        %v8527 = vunpack.c.0.s8 %v8526
        %v8528 = vlaneseq
        %v8529 = vshrl.u32 %v8528, 7
        %v8530 = vsub.s32 %v8527, %v8529
        %v8531 = vrot.slane %v8517, %v8530
        %v8532 = vcombine.low %v8524, %v8531
        %v8533 = vcombine.low %v7841, %v7848
        %v8535 = vunpack.c.l.s4 1983009808
        %v8536 = vunpack.c.0.s8 %v8535
        %v8537 = vlaneseq
        %v8538 = vshrl.u32 %v8537, 7
        %v8539 = vsub.s32 %v8536, %v8538
        %v8540 = vrot.slane %v8533, %v8539
        %v8541 = vsel %vm1249, %v7869, 0
        %v8543 = vsel %vm1249, %v7886, 0
        %v8545 = vsel %vm1249, %v7903, 0
        %v8547 = vsel %vm1249, %v7920, 0
        %v8549 = vsel %vm1249, %v7937, 0
        %v8551 = vsel %vm1249, %v7954, 0
        %v8553 = vsel %vm1249, %v7971, 0
        %v8555 = vsel %vm1249, %v7988, 0
        %v8557 = vsel %vm1249, %v8005, 0
        %v8559 = vsel %vm1249, %v8022, 0
        %v8561 = vsel %vm1249, %v8039, 0
        %v8563 = vsel %vm1249, %v8056, 0
        %v8565 = vsel %vm1249, %v8073, 0
        %v8567 = vsel %vm1249, %v8090, 0
        %v8569 = vsel %vm1249, %v8107, 0
        %v8571 = vsel %vm1249, %v8124, 0
        %v8573 = vsel %vm1249, %v8141, 0
        %v8575 = vsel %vm1249, %v8158, 0
        %v8577 = vsel %vm1249, %v8175, 0
        %v8579 = vsel %vm1249, %v8192, 0
        %v8581 = vsel %vm1249, %v8209, 0
        %v8583 = vsel %vm1249, %v8226, 0
        %v8585 = vsel %vm1249, %v8243, 0
        %v8587 = vsel %vm1249, %v8260, 0
        %v8589 = vsel %vm1249, %v8277, 0
        %v8591 = vsel %vm1249, %v8294, 0
        %v8593 = vsel %vm1249, %v8311, 0
        %v8595 = vsel %vm1249, %v8328, 0
        %v8597 = vsel %vm1249, %v8345, 0
        %v8599 = vsel %vm1249, %v8362, 0
        %v8601 = vsel %vm1249, %v8379, 0
        %v8603 = vsel %vm1249, %v8396, 0
        %v8605 = vsel %vm1249, %v8413, 0
        %v8607 = vsel %vm1249, %v8430, 0
        %v8609 = vsel %vm1249, %v8447, 0
        %v8611 = vsel %vm1249, %v8464, 0
        %v8613 = vsel %vm1249, %v8481, 0
        %v8615 = vsel %vm1249, %v8498, 0
        %v8617 = vsel %vm1249, %v8515, 0
        %v8619 = vsel %vm1249, %v8532, 0
        %v8621 = vsel %vm1249, %v8540, 0
        %8623 = vmatprep.subr.mxu0 0.0
        %8624 = vmatpush1.msra.mxu0 %v7850
        %8625 = vmatprep.subr.mxu0 0.0
        %8626 = vmatpush1.msra.mxu0 %v7851
        %8627 = vmatprep.subr.mxu0 0.0
        %8628 = vmatpush1.msra.mxu0 %v7852
        %8629 = vmatprep.subr.mxu0 0.0
        %8630 = vmatpush1.msra.mxu0 0.0
        %8631 = vmatprep.subr.mxu0 0.0
        %8632 = vmatpush1.msra.mxu0 0.0
        %8633 = vmatprep.subr.mxu0 0.0
        %8634 = vmatpush1.msra.mxu0 0.0
        %8635 = vmatprep.subr.mxu0 0.0
        %8636 = vmatpush1.msra.mxu0 0.0
        %8637 = vmatprep.subr.mxu0 0.0
        %8638 = vmatpush1.msra.mxu0 0.0
        %8639 = vmatprep.subr.mxu0 0.0
        %8640 = vmatpush1.msra.mxu0 0.0
        %8641 = vmatprep.subr.mxu0 0.0
        %8642 = vmatpush1.msra.mxu0 0.0
        %8643 = vmatprep.subr.mxu0 0.0
        %8644 = vmatpush1.msra.mxu0 0.0
        %8645 = vmatprep.subr.mxu0 0.0
        %8646 = vmatpush1.msra.mxu0 0.0
        %8647 = vmatprep.subr.mxu0 0.0
        %8648 = vmatpush1.msra.mxu0 0.0
        %8649 = vmatprep.subr.mxu0 0.0
        %8650 = vmatpush1.msra.mxu0 0.0
        %8651 = vmatprep.subr.mxu0 0.0
        %8652 = vmatpush1.msra.mxu0 0.0
        %8653 = vmatprep.subr.mxu0 0.0
        %8654 = vmatpush1.msra.mxu0 0.0
        %8655 = vmatprep.subr.mxu0 0.0
        %8656 = vmatpush1.msra.mxu0 0.0
        %8657 = vmatprep.subr.mxu0 0.0
        %8658 = vmatpush1.msra.mxu0 0.0
        %8659 = vmatprep.subr.mxu0 0.0
        %8660 = vmatpush1.msra.mxu0 0.0
        %8661 = vmatprep.subr.mxu0 0.0
        %8662 = vmatpush1.msra.mxu0 0.0
        %8663 = vmatprep.subr.mxu0 0.0
        %8664 = vmatpush1.msra.mxu0 0.0
        %8665 = vmatprep.subr.mxu0 0.0
        %8666 = vmatpush1.msra.mxu0 0.0
        %8667 = vmatprep.subr.mxu0 0.0
        %8668 = vmatpush1.msra.mxu0 0.0
        %8669 = vmatprep.subr.mxu0 0.0
        %8670 = vmatpush1.msra.mxu0 0.0
        %8671 = vmatprep.subr.mxu0 0.0
        %8672 = vmatpush1.msra.mxu0 0.0
        %8673 = vmatprep.subr.mxu0 0.0
        %8674 = vmatpush1.msra.mxu0 0.0
        %8675 = vmatprep.subr.mxu0 0.0
        %8676 = vmatpush1.msra.mxu0 0.0
        %8677 = vmatprep.subr.mxu0 0.0
        %8678 = vmatpush1.msra.mxu0 0.0
        %8679 = vmatprep.subr.mxu0 0.0
        %8680 = vmatpush1.msra.mxu0 0.0
        %8681 = vmatprep.subr.mxu0 0.0
        %8682 = vmatpush1.msra.mxu0 0.0
        %8683 = vmatprep.subr.mxu0 0.0
        %8684 = vmatpush1.msra.mxu0 0.0
        %8685 = vmatprep.subr.mxu0 0.0
        %8686 = vmatpush1.msra.mxu0 0.0
        %8687 = vmatprep.mubr.f32.mxu0 0.0
        %8688 = vmatmul.mubr.f32.gmra.mrb[0].mxu0 %v8541
        %v8689 = vpop.f32.mrb[0].mxu0
        %v8690 = vadd.f32 0.0, %v8689
        %v8691 = vpop.f32.mrb[0].mxu0
        %8692 = vmatprep.mubr.f32.mxu0 0.0
        %8693 = vmatmul.mubr.f32.gmra.mrb[0].mxu0 %v8543
        %v8694 = vpop.f32.mrb[0].mxu0
        %v8695 = vadd.f32 0.0, %v8694
        %v8696 = vpop.f32.mrb[0].mxu0
        %8697 = vmatprep.mubr.f32.mxu0 0.0
        %8698 = vmatmul.mubr.f32.gmra.mrb[0].mxu0 %v8545
        %v8699 = vpop.f32.mrb[0].mxu0
        %v8700 = vadd.f32 0.0, %v8699
        %v8701 = vpop.f32.mrb[0].mxu0
        %8702 = vmatprep.mubr.f32.mxu0 0.0
        %8703 = vmatmul.mubr.f32.gmra.mrb[0].mxu0 %v8547
        %v8704 = vpop.f32.mrb[0].mxu0
        %v8705 = vadd.f32 0.0, %v8704
        %v8706 = vpop.f32.mrb[0].mxu0
        %8707 = vmatprep.mubr.f32.mxu0 0.0
        %8708 = vmatmul.mubr.f32.gmra.mrb[0].mxu0 %v8549
        %v8709 = vpop.f32.mrb[0].mxu0
        %v8710 = vadd.f32 0.0, %v8709
        %v8711 = vpop.f32.mrb[0].mxu0
        %8712 = vmatprep.mubr.f32.mxu0 0.0
        %8713 = vmatmul.mubr.f32.gmra.mrb[0].mxu0 %v8551
        %v8714 = vpop.f32.mrb[0].mxu0
        %v8715 = vadd.f32 0.0, %v8714
        %v8716 = vpop.f32.mrb[0].mxu0
        %8717 = vmatprep.mubr.f32.mxu0 0.0
        %8718 = vmatmul.mubr.f32.gmra.mrb[0].mxu0 %v8553
        %v8719 = vpop.f32.mrb[0].mxu0
        %v8720 = vadd.f32 0.0, %v8719
        %v8721 = vpop.f32.mrb[0].mxu0
        %8722 = vmatprep.mubr.f32.mxu0 0.0
        %8723 = vmatmul.mubr.f32.gmra.mrb[0].mxu0 %v8555
        %v8724 = vpop.f32.mrb[0].mxu0
        %v8725 = vadd.f32 0.0, %v8724
        %v8726 = vpop.f32.mrb[0].mxu0
        %8727 = vmatprep.mubr.f32.mxu0 0.0
        %8728 = vmatmul.mubr.f32.gmra.mrb[0].mxu0 %v8557
        %v8729 = vpop.f32.mrb[0].mxu0
        %v8730 = vadd.f32 0.0, %v8729
        %v8731 = vpop.f32.mrb[0].mxu0
        %8732 = vmatprep.mubr.f32.mxu0 0.0
        %8733 = vmatmul.mubr.f32.gmra.mrb[0].mxu0 %v8559
        %v8734 = vpop.f32.mrb[0].mxu0
        %v8735 = vadd.f32 0.0, %v8734
        %v8736 = vpop.f32.mrb[0].mxu0
        %8737 = vmatprep.mubr.f32.mxu0 0.0
        %8738 = vmatmul.mubr.f32.gmra.mrb[0].mxu0 %v8561
        %v8739 = vpop.f32.mrb[0].mxu0
        %v8740 = vadd.f32 0.0, %v8739
        %v8741 = vpop.f32.mrb[0].mxu0
        %8742 = vmatprep.mubr.f32.mxu0 0.0
        %8743 = vmatmul.mubr.f32.gmra.mrb[0].mxu0 %v8563
        %v8744 = vpop.f32.mrb[0].mxu0
        %v8745 = vadd.f32 0.0, %v8744
        %v8746 = vpop.f32.mrb[0].mxu0
        %8747 = vmatprep.mubr.f32.mxu0 0.0
        %8748 = vmatmul.mubr.f32.gmra.mrb[0].mxu0 %v8565
        %v8749 = vpop.f32.mrb[0].mxu0
        %v8750 = vadd.f32 0.0, %v8749
        %v8751 = vpop.f32.mrb[0].mxu0
        %8752 = vmatprep.mubr.f32.mxu0 0.0
        %8753 = vmatmul.mubr.f32.gmra.mrb[0].mxu0 %v8567
        %v8754 = vpop.f32.mrb[0].mxu0
        %v8755 = vadd.f32 0.0, %v8754
        %v8756 = vpop.f32.mrb[0].mxu0
        %8757 = vmatprep.mubr.f32.mxu0 0.0
        %8758 = vmatmul.mubr.f32.gmra.mrb[0].mxu0 %v8569
        %v8759 = vpop.f32.mrb[0].mxu0
        %v8760 = vadd.f32 0.0, %v8759
        %v8761 = vpop.f32.mrb[0].mxu0
        %8762 = vmatprep.mubr.f32.mxu0 0.0
        %8763 = vmatmul.mubr.f32.gmra.mrb[0].mxu0 %v8571
        %v8764 = vpop.f32.mrb[0].mxu0
        %v8765 = vadd.f32 0.0, %v8764
        %v8766 = vpop.f32.mrb[0].mxu0
        %8767 = vmatprep.mubr.f32.mxu0 0.0
        %8768 = vmatmul.mubr.f32.gmra.mrb[0].mxu0 %v8573
        %v8769 = vpop.f32.mrb[0].mxu0
        %v8770 = vadd.f32 0.0, %v8769
        %v8771 = vpop.f32.mrb[0].mxu0
        %8772 = vmatprep.mubr.f32.mxu0 0.0
        %8773 = vmatmul.mubr.f32.gmra.mrb[0].mxu0 %v8575
        %v8774 = vpop.f32.mrb[0].mxu0
        %v8775 = vadd.f32 0.0, %v8774
        %v8776 = vpop.f32.mrb[0].mxu0
        %8777 = vmatprep.mubr.f32.mxu0 0.0
        %8778 = vmatmul.mubr.f32.gmra.mrb[0].mxu0 %v8577
        %v8779 = vpop.f32.mrb[0].mxu0
        %v8780 = vadd.f32 0.0, %v8779
        %v8781 = vpop.f32.mrb[0].mxu0
        %8782 = vmatprep.mubr.f32.mxu0 0.0
        %8783 = vmatmul.mubr.f32.gmra.mrb[0].mxu0 %v8579
        %v8784 = vpop.f32.mrb[0].mxu0
        %v8785 = vadd.f32 0.0, %v8784
        %v8786 = vpop.f32.mrb[0].mxu0
        %8787 = vmatprep.mubr.f32.mxu0 0.0
        %8788 = vmatmul.mubr.f32.gmra.mrb[0].mxu0 %v8581
        %v8789 = vpop.f32.mrb[0].mxu0
        %v8790 = vadd.f32 0.0, %v8789
        %v8791 = vpop.f32.mrb[0].mxu0
        %8792 = vmatprep.mubr.f32.mxu0 0.0
        %8793 = vmatmul.mubr.f32.gmra.mrb[0].mxu0 %v8583
        %v8794 = vpop.f32.mrb[0].mxu0
        %v8795 = vadd.f32 0.0, %v8794
        %v8796 = vpop.f32.mrb[0].mxu0
        %8797 = vmatprep.mubr.f32.mxu0 0.0
        %8798 = vmatmul.mubr.f32.gmra.mrb[0].mxu0 %v8585
        %v8799 = vpop.f32.mrb[0].mxu0
        %v8800 = vadd.f32 0.0, %v8799
        %v8801 = vpop.f32.mrb[0].mxu0
        %8802 = vmatprep.mubr.f32.mxu0 0.0
        %8803 = vmatmul.mubr.f32.gmra.mrb[0].mxu0 %v8587
        %v8804 = vpop.f32.mrb[0].mxu0
        %v8805 = vadd.f32 0.0, %v8804
        %v8806 = vpop.f32.mrb[0].mxu0
        %8807 = vmatprep.mubr.f32.mxu0 0.0
        %8808 = vmatmul.mubr.f32.gmra.mrb[0].mxu0 %v8589
        %v8809 = vpop.f32.mrb[0].mxu0
        %v8810 = vadd.f32 0.0, %v8809
        %v8811 = vpop.f32.mrb[0].mxu0
        %8812 = vmatprep.mubr.f32.mxu0 0.0
        %8813 = vmatmul.mubr.f32.gmra.mrb[0].mxu0 %v8591
        %v8814 = vpop.f32.mrb[0].mxu0
        %v8815 = vadd.f32 0.0, %v8814
        %v8816 = vpop.f32.mrb[0].mxu0
        %8817 = vmatprep.mubr.f32.mxu0 0.0
        %8818 = vmatmul.mubr.f32.gmra.mrb[0].mxu0 %v8593
        %v8819 = vpop.f32.mrb[0].mxu0
        %v8820 = vadd.f32 0.0, %v8819
        %v8821 = vpop.f32.mrb[0].mxu0
        %8822 = vmatprep.mubr.f32.mxu0 0.0
        %8823 = vmatmul.mubr.f32.gmra.mrb[0].mxu0 %v8595
        %v8824 = vpop.f32.mrb[0].mxu0
        %v8825 = vadd.f32 0.0, %v8824
        %v8826 = vpop.f32.mrb[0].mxu0
        %8827 = vmatprep.mubr.f32.mxu0 0.0
        %8828 = vmatmul.mubr.f32.gmra.mrb[0].mxu0 %v8597
        %v8829 = vpop.f32.mrb[0].mxu0
        %v8830 = vadd.f32 0.0, %v8829
        %v8831 = vpop.f32.mrb[0].mxu0
        %8832 = vmatprep.mubr.f32.mxu0 0.0
        %8833 = vmatmul.mubr.f32.gmra.mrb[0].mxu0 %v8599
        %v8834 = vpop.f32.mrb[0].mxu0
        %v8835 = vadd.f32 0.0, %v8834
        %v8836 = vpop.f32.mrb[0].mxu0
        %8837 = vmatprep.mubr.f32.mxu0 0.0
        %8838 = vmatmul.mubr.f32.gmra.mrb[0].mxu0 %v8601
        %v8839 = vpop.f32.mrb[0].mxu0
        %v8840 = vadd.f32 0.0, %v8839
        %v8841 = vpop.f32.mrb[0].mxu0
        %8842 = vmatprep.mubr.f32.mxu0 0.0
        %8843 = vmatmul.mubr.f32.gmra.mrb[0].mxu0 %v8603
        %v8844 = vpop.f32.mrb[0].mxu0
        %v8845 = vadd.f32 0.0, %v8844
        %v8846 = vpop.f32.mrb[0].mxu0
        %8847 = vmatprep.mubr.f32.mxu0 0.0
        %8848 = vmatmul.mubr.f32.gmra.mrb[0].mxu0 %v8605
        %v8849 = vpop.f32.mrb[0].mxu0
        %v8850 = vadd.f32 0.0, %v8849
        %v8851 = vpop.f32.mrb[0].mxu0
        %8852 = vmatprep.mubr.f32.mxu0 0.0
        %8853 = vmatmul.mubr.f32.gmra.mrb[0].mxu0 %v8607
        %v8854 = vpop.f32.mrb[0].mxu0
        %v8855 = vadd.f32 0.0, %v8854
        %v8856 = vpop.f32.mrb[0].mxu0
        %8857 = vmatprep.mubr.f32.mxu0 0.0
        %8858 = vmatmul.mubr.f32.gmra.mrb[0].mxu0 %v8609
        %v8859 = vpop.f32.mrb[0].mxu0
        %v8860 = vadd.f32 0.0, %v8859
        %v8861 = vpop.f32.mrb[0].mxu0
        %8862 = vmatprep.mubr.f32.mxu0 0.0
        %8863 = vmatmul.mubr.f32.gmra.mrb[0].mxu0 %v8611
        %v8864 = vpop.f32.mrb[0].mxu0
        %v8865 = vadd.f32 0.0, %v8864
        %v8866 = vpop.f32.mrb[0].mxu0
        %8867 = vmatprep.mubr.f32.mxu0 0.0
        %8868 = vmatmul.mubr.f32.gmra.mrb[0].mxu0 %v8613
        %v8869 = vpop.f32.mrb[0].mxu0
        %v8870 = vadd.f32 0.0, %v8869
        %v8871 = vpop.f32.mrb[0].mxu0
        %8872 = vmatprep.mubr.f32.mxu0 0.0
        %8873 = vmatmul.mubr.f32.gmra.mrb[0].mxu0 %v8615
        %v8874 = vpop.f32.mrb[0].mxu0
        %v8875 = vadd.f32 0.0, %v8874
        %v8876 = vpop.f32.mrb[0].mxu0
        %8877 = vmatprep.mubr.f32.mxu0 0.0
        %8878 = vmatmul.mubr.f32.gmra.mrb[0].mxu0 %v8617
        %v8879 = vpop.f32.mrb[0].mxu0
        %v8880 = vadd.f32 0.0, %v8879
        %v8881 = vpop.f32.mrb[0].mxu0
        %8882 = vmatprep.mubr.f32.mxu0 0.0
        %8883 = vmatmul.mubr.f32.gmra.mrb[0].mxu0 %v8619
        %v8884 = vpop.f32.mrb[0].mxu0
        %v8885 = vadd.f32 0.0, %v8884
        %v8886 = vpop.f32.mrb[0].mxu0
        %8887 = vmatprep.mubr.f32.mxu0 0.0
        %8888 = vmatmul.mubr.f32.gmra.mrb[0].mxu0 %v8621
        %v8889 = vpop.f32.mrb[0].mxu0
        %v8890 = vadd.f32 0.0, %v8889
        %v8891 = vpop.f32.mrb[0].mxu0
        %8892 = vdwg.mxu0
        %v8893 = vadd.f32 %v6800, %v8690
        %v8894 = vadd.f32 %v6805, %v8695
        %v8895 = vadd.f32 %v6810, %v8700
        %v8896 = vadd.f32 %v6815, %v8705
        %v8897 = vadd.f32 %v6820, %v8710
        %v8898 = vadd.f32 %v6825, %v8715
        %v8899 = vadd.f32 %v6830, %v8720
        %v8900 = vadd.f32 %v6835, %v8725
        %v8901 = vadd.f32 %v6840, %v8730
        %v8902 = vadd.f32 %v6845, %v8735
        %v8903 = vadd.f32 %v6850, %v8740
        %v8904 = vadd.f32 %v6855, %v8745
        %v8905 = vadd.f32 %v6860, %v8750
        %v8906 = vadd.f32 %v6865, %v8755
        %v8907 = vadd.f32 %v6870, %v8760
        %v8908 = vadd.f32 %v6875, %v8765
        %v8909 = vadd.f32 %v6880, %v8770
        %v8910 = vadd.f32 %v6885, %v8775
        %v8911 = vadd.f32 %v6890, %v8780
        %v8912 = vadd.f32 %v6895, %v8785
        %v8913 = vadd.f32 %v6900, %v8790
        %v8914 = vadd.f32 %v6905, %v8795
        %v8915 = vadd.f32 %v6910, %v8800
        %v8916 = vadd.f32 %v6915, %v8805
        %v8917 = vadd.f32 %v6920, %v8810
        %v8918 = vadd.f32 %v6925, %v8815
        %v8919 = vadd.f32 %v6930, %v8820
        %v8920 = vadd.f32 %v6935, %v8825
        %v8921 = vadd.f32 %v6940, %v8830
        %v8922 = vadd.f32 %v6945, %v8835
        %v8923 = vadd.f32 %v6950, %v8840
        %v8924 = vadd.f32 %v6955, %v8845
        %v8925 = vadd.f32 %v6960, %v8850
        %v8926 = vadd.f32 %v6965, %v8855
        %v8927 = vadd.f32 %v6970, %v8860
        %v8928 = vadd.f32 %v6975, %v8865
        %v8929 = vadd.f32 %v6980, %v8870
        %v8930 = vadd.f32 %v6985, %v8875
        %v8931 = vadd.f32 %v6990, %v8880
        %v8932 = vadd.f32 %v6995, %v8885
        %v8933 = vadd.f32 %v7000, %v8890
        %v8975 = vcombine.high %v8893, %v8893
        %v8977 = vunpack.c.l.s4 1983009808
        %v8978 = vunpack.c.0.s8 %v8977
        %v8979 = vlaneseq
        %v8980 = vshrl.u32 %v8979, 7
        %v8981 = vsub.s32 %v8978, %v8980
        %v8982 = vrot.slane %v8893, %v8981
        %v8984 = vunpack.c.l.s4 1983009808
        %v8985 = vunpack.c.0.s8 %v8984
        %v8986 = vlaneseq
        %v8987 = vshrl.u32 %v8986, 7
        %v8988 = vsub.s32 %v8985, %v8987
        %v8989 = vrot.slane %v8975, %v8988
        %v8990 = vcombine.high %v8982, %v8982
        %v8991 = vcombine.high %v8989, %v8989
        %v8992 = vcombine.high %v8894, %v8894
        %v8994 = vunpack.c.l.s4 1983009808
        %v8995 = vunpack.c.0.s8 %v8994
        %v8996 = vlaneseq
        %v8997 = vshrl.u32 %v8996, 7
        %v8998 = vsub.s32 %v8995, %v8997
        %v8999 = vrot.slane %v8894, %v8998
        %v9001 = vunpack.c.l.s4 1983009808
        %v9002 = vunpack.c.0.s8 %v9001
        %v9003 = vlaneseq
        %v9004 = vshrl.u32 %v9003, 7
        %v9005 = vsub.s32 %v9002, %v9004
        %v9006 = vrot.slane %v8992, %v9005
        %v9007 = vcombine.high %v8999, %v8999
        %v9008 = vcombine.high %v9006, %v9006
        %v9009 = vcombine.high %v8895, %v8895
        %v9011 = vunpack.c.l.s4 1983009808
        %v9012 = vunpack.c.0.s8 %v9011
        %v9013 = vlaneseq
        %v9014 = vshrl.u32 %v9013, 7
        %v9015 = vsub.s32 %v9012, %v9014
        %v9016 = vrot.slane %v8895, %v9015
        %v9018 = vunpack.c.l.s4 1983009808
        %v9019 = vunpack.c.0.s8 %v9018
        %v9020 = vlaneseq
        %v9021 = vshrl.u32 %v9020, 7
        %v9022 = vsub.s32 %v9019, %v9021
        %v9023 = vrot.slane %v9009, %v9022
        %v9024 = vcombine.high %v9016, %v9016
        %v9025 = vcombine.high %v9023, %v9023
        %v9026 = vcombine.high %v8896, %v8896
        %v9028 = vunpack.c.l.s4 1983009808
        %v9029 = vunpack.c.0.s8 %v9028
        %v9030 = vlaneseq
        %v9031 = vshrl.u32 %v9030, 7
        %v9032 = vsub.s32 %v9029, %v9031
        %v9033 = vrot.slane %v8896, %v9032
        %v9035 = vunpack.c.l.s4 1983009808
        %v9036 = vunpack.c.0.s8 %v9035
        %v9037 = vlaneseq
        %v9038 = vshrl.u32 %v9037, 7
        %v9039 = vsub.s32 %v9036, %v9038
        %v9040 = vrot.slane %v9026, %v9039
        %v9041 = vcombine.high %v9033, %v9033
        %v9042 = vcombine.high %v9040, %v9040
        %v9043 = vcombine.high %v8897, %v8897
        %v9045 = vunpack.c.l.s4 1983009808
        %v9046 = vunpack.c.0.s8 %v9045
        %v9047 = vlaneseq
        %v9048 = vshrl.u32 %v9047, 7
        %v9049 = vsub.s32 %v9046, %v9048
        %v9050 = vrot.slane %v8897, %v9049
        %v9052 = vunpack.c.l.s4 1983009808
        %v9053 = vunpack.c.0.s8 %v9052
        %v9054 = vlaneseq
        %v9055 = vshrl.u32 %v9054, 7
        %v9056 = vsub.s32 %v9053, %v9055
        %v9057 = vrot.slane %v9043, %v9056
        %v9058 = vcombine.high %v9050, %v9050
        %v9059 = vcombine.high %v9057, %v9057
        %v9060 = vcombine.high %v8898, %v8898
        %v9062 = vunpack.c.l.s4 1983009808
        %v9063 = vunpack.c.0.s8 %v9062
        %v9064 = vlaneseq
        %v9065 = vshrl.u32 %v9064, 7
        %v9066 = vsub.s32 %v9063, %v9065
        %v9067 = vrot.slane %v8898, %v9066
        %v9069 = vunpack.c.l.s4 1983009808
        %v9070 = vunpack.c.0.s8 %v9069
        %v9071 = vlaneseq
        %v9072 = vshrl.u32 %v9071, 7
        %v9073 = vsub.s32 %v9070, %v9072
        %v9074 = vrot.slane %v9060, %v9073
        %v9075 = vcombine.high %v9067, %v9067
        %v9076 = vcombine.high %v9074, %v9074
        %v9077 = vcombine.high %v8899, %v8899
        %v9079 = vunpack.c.l.s4 1983009808
        %v9080 = vunpack.c.0.s8 %v9079
        %v9081 = vlaneseq
        %v9082 = vshrl.u32 %v9081, 7
        %v9083 = vsub.s32 %v9080, %v9082
        %v9084 = vrot.slane %v8899, %v9083
        %v9086 = vunpack.c.l.s4 1983009808
        %v9087 = vunpack.c.0.s8 %v9086
        %v9088 = vlaneseq
        %v9089 = vshrl.u32 %v9088, 7
        %v9090 = vsub.s32 %v9087, %v9089
        %v9091 = vrot.slane %v9077, %v9090
        %v9092 = vcombine.high %v9084, %v9084
        %v9093 = vcombine.high %v9091, %v9091
        %v9094 = vcombine.high %v8900, %v8900
        %v9096 = vunpack.c.l.s4 1983009808
        %v9097 = vunpack.c.0.s8 %v9096
        %v9098 = vlaneseq
        %v9099 = vshrl.u32 %v9098, 7
        %v9100 = vsub.s32 %v9097, %v9099
        %v9101 = vrot.slane %v8900, %v9100
        %v9103 = vunpack.c.l.s4 1983009808
        %v9104 = vunpack.c.0.s8 %v9103
        %v9105 = vlaneseq
        %v9106 = vshrl.u32 %v9105, 7
        %v9107 = vsub.s32 %v9104, %v9106
        %v9108 = vrot.slane %v9094, %v9107
        %v9109 = vcombine.high %v9101, %v9101
        %v9110 = vcombine.high %v9108, %v9108
        %v9111 = vcombine.high %v8901, %v8901
        %v9113 = vunpack.c.l.s4 1983009808
        %v9114 = vunpack.c.0.s8 %v9113
        %v9115 = vlaneseq
        %v9116 = vshrl.u32 %v9115, 7
        %v9117 = vsub.s32 %v9114, %v9116
        %v9118 = vrot.slane %v8901, %v9117
        %v9120 = vunpack.c.l.s4 1983009808
        %v9121 = vunpack.c.0.s8 %v9120
        %v9122 = vlaneseq
        %v9123 = vshrl.u32 %v9122, 7
        %v9124 = vsub.s32 %v9121, %v9123
        %v9125 = vrot.slane %v9111, %v9124
        %v9126 = vcombine.high %v9118, %v9118
        %v9127 = vcombine.high %v9125, %v9125
        %v9128 = vcombine.high %v8902, %v8902
        %v9130 = vunpack.c.l.s4 1983009808
        %v9131 = vunpack.c.0.s8 %v9130
        %v9132 = vlaneseq
        %v9133 = vshrl.u32 %v9132, 7
        %v9134 = vsub.s32 %v9131, %v9133
        %v9135 = vrot.slane %v8902, %v9134
        %v9137 = vunpack.c.l.s4 1983009808
        %v9138 = vunpack.c.0.s8 %v9137
        %v9139 = vlaneseq
        %v9140 = vshrl.u32 %v9139, 7
        %v9141 = vsub.s32 %v9138, %v9140
        %v9142 = vrot.slane %v9128, %v9141
        %v9143 = vcombine.high %v9135, %v9135
        %v9144 = vcombine.high %v9142, %v9142
        %v9145 = vcombine.high %v8903, %v8903
        %v9147 = vunpack.c.l.s4 1983009808
        %v9148 = vunpack.c.0.s8 %v9147
        %v9149 = vlaneseq
        %v9150 = vshrl.u32 %v9149, 7
        %v9151 = vsub.s32 %v9148, %v9150
        %v9152 = vrot.slane %v8903, %v9151
        %v9154 = vunpack.c.l.s4 1983009808
        %v9155 = vunpack.c.0.s8 %v9154
        %v9156 = vlaneseq
        %v9157 = vshrl.u32 %v9156, 7
        %v9158 = vsub.s32 %v9155, %v9157
        %v9159 = vrot.slane %v9145, %v9158
        %v9160 = vcombine.high %v9152, %v9152
        %v9161 = vcombine.high %v9159, %v9159
        %v9162 = vcombine.high %v8904, %v8904
        %v9164 = vunpack.c.l.s4 1983009808
        %v9165 = vunpack.c.0.s8 %v9164
        %v9166 = vlaneseq
        %v9167 = vshrl.u32 %v9166, 7
        %v9168 = vsub.s32 %v9165, %v9167
        %v9169 = vrot.slane %v8904, %v9168
        %v9171 = vunpack.c.l.s4 1983009808
        %v9172 = vunpack.c.0.s8 %v9171
        %v9173 = vlaneseq
        %v9174 = vshrl.u32 %v9173, 7
        %v9175 = vsub.s32 %v9172, %v9174
        %v9176 = vrot.slane %v9162, %v9175
        %v9177 = vcombine.high %v9169, %v9169
        %v9178 = vcombine.high %v9176, %v9176
        %v9179 = vcombine.high %v8905, %v8905
        %v9181 = vunpack.c.l.s4 1983009808
        %v9182 = vunpack.c.0.s8 %v9181
        %v9183 = vlaneseq
        %v9184 = vshrl.u32 %v9183, 7
        %v9185 = vsub.s32 %v9182, %v9184
        %v9186 = vrot.slane %v8905, %v9185
        %v9188 = vunpack.c.l.s4 1983009808
        %v9189 = vunpack.c.0.s8 %v9188
        %v9190 = vlaneseq
        %v9191 = vshrl.u32 %v9190, 7
        %v9192 = vsub.s32 %v9189, %v9191
        %v9193 = vrot.slane %v9179, %v9192
        %v9194 = vcombine.high %v9186, %v9186
        %v9195 = vcombine.high %v9193, %v9193
        %v9196 = vcombine.high %v8906, %v8906
        %v9198 = vunpack.c.l.s4 1983009808
        %v9199 = vunpack.c.0.s8 %v9198
        %v9200 = vlaneseq
        %v9201 = vshrl.u32 %v9200, 7
        %v9202 = vsub.s32 %v9199, %v9201
        %v9203 = vrot.slane %v8906, %v9202
        %v9205 = vunpack.c.l.s4 1983009808
        %v9206 = vunpack.c.0.s8 %v9205
        %v9207 = vlaneseq
        %v9208 = vshrl.u32 %v9207, 7
        %v9209 = vsub.s32 %v9206, %v9208
        %v9210 = vrot.slane %v9196, %v9209
        %v9211 = vcombine.high %v9203, %v9203
        %v9212 = vcombine.high %v9210, %v9210
        %v9213 = vcombine.high %v8907, %v8907
        %v9215 = vunpack.c.l.s4 1983009808
        %v9216 = vunpack.c.0.s8 %v9215
        %v9217 = vlaneseq
        %v9218 = vshrl.u32 %v9217, 7
        %v9219 = vsub.s32 %v9216, %v9218
        %v9220 = vrot.slane %v8907, %v9219
        %v9222 = vunpack.c.l.s4 1983009808
        %v9223 = vunpack.c.0.s8 %v9222
        %v9224 = vlaneseq
        %v9225 = vshrl.u32 %v9224, 7
        %v9226 = vsub.s32 %v9223, %v9225
        %v9227 = vrot.slane %v9213, %v9226
        %v9228 = vcombine.high %v9220, %v9220
        %v9229 = vcombine.high %v9227, %v9227
        %v9230 = vcombine.high %v8908, %v8908
        %v9232 = vunpack.c.l.s4 1983009808
        %v9233 = vunpack.c.0.s8 %v9232
        %v9234 = vlaneseq
        %v9235 = vshrl.u32 %v9234, 7
        %v9236 = vsub.s32 %v9233, %v9235
        %v9237 = vrot.slane %v8908, %v9236
        %v9239 = vunpack.c.l.s4 1983009808
        %v9240 = vunpack.c.0.s8 %v9239
        %v9241 = vlaneseq
        %v9242 = vshrl.u32 %v9241, 7
        %v9243 = vsub.s32 %v9240, %v9242
        %v9244 = vrot.slane %v9230, %v9243
        %v9245 = vcombine.high %v9237, %v9237
        %v9246 = vcombine.high %v9244, %v9244
        %v9247 = vcombine.high %v8909, %v8909
        %v9249 = vunpack.c.l.s4 1983009808
        %v9250 = vunpack.c.0.s8 %v9249
        %v9251 = vlaneseq
        %v9252 = vshrl.u32 %v9251, 7
        %v9253 = vsub.s32 %v9250, %v9252
        %v9254 = vrot.slane %v8909, %v9253
        %v9256 = vunpack.c.l.s4 1983009808
        %v9257 = vunpack.c.0.s8 %v9256
        %v9258 = vlaneseq
        %v9259 = vshrl.u32 %v9258, 7
        %v9260 = vsub.s32 %v9257, %v9259
        %v9261 = vrot.slane %v9247, %v9260
        %v9262 = vcombine.high %v9254, %v9254
        %v9263 = vcombine.high %v9261, %v9261
        %v9264 = vcombine.high %v8910, %v8910
        %v9266 = vunpack.c.l.s4 1983009808
        %v9267 = vunpack.c.0.s8 %v9266
        %v9268 = vlaneseq
        %v9269 = vshrl.u32 %v9268, 7
        %v9270 = vsub.s32 %v9267, %v9269
        %v9271 = vrot.slane %v8910, %v9270
        %v9273 = vunpack.c.l.s4 1983009808
        %v9274 = vunpack.c.0.s8 %v9273
        %v9275 = vlaneseq
        %v9276 = vshrl.u32 %v9275, 7
        %v9277 = vsub.s32 %v9274, %v9276
        %v9278 = vrot.slane %v9264, %v9277
        %v9279 = vcombine.high %v9271, %v9271
        %v9280 = vcombine.high %v9278, %v9278
        %v9281 = vcombine.high %v8911, %v8911
        %v9283 = vunpack.c.l.s4 1983009808
        %v9284 = vunpack.c.0.s8 %v9283
        %v9285 = vlaneseq
        %v9286 = vshrl.u32 %v9285, 7
        %v9287 = vsub.s32 %v9284, %v9286
        %v9288 = vrot.slane %v8911, %v9287
        %v9290 = vunpack.c.l.s4 1983009808
        %v9291 = vunpack.c.0.s8 %v9290
        %v9292 = vlaneseq
        %v9293 = vshrl.u32 %v9292, 7
        %v9294 = vsub.s32 %v9291, %v9293
        %v9295 = vrot.slane %v9281, %v9294
        %v9296 = vcombine.high %v9288, %v9288
        %v9297 = vcombine.high %v9295, %v9295
        %v9298 = vcombine.high %v8912, %v8912
        %v9300 = vunpack.c.l.s4 1983009808
        %v9301 = vunpack.c.0.s8 %v9300
        %v9302 = vlaneseq
        %v9303 = vshrl.u32 %v9302, 7
        %v9304 = vsub.s32 %v9301, %v9303
        %v9305 = vrot.slane %v8912, %v9304
        %v9307 = vunpack.c.l.s4 1983009808
        %v9308 = vunpack.c.0.s8 %v9307
        %v9309 = vlaneseq
        %v9310 = vshrl.u32 %v9309, 7
        %v9311 = vsub.s32 %v9308, %v9310
        %v9312 = vrot.slane %v9298, %v9311
        %v9313 = vcombine.high %v9305, %v9305
        %v9314 = vcombine.high %v9312, %v9312
        %v9315 = vcombine.high %v8913, %v8913
        %v9317 = vunpack.c.l.s4 1983009808
        %v9318 = vunpack.c.0.s8 %v9317
        %v9319 = vlaneseq
        %v9320 = vshrl.u32 %v9319, 7
        %v9321 = vsub.s32 %v9318, %v9320
        %v9322 = vrot.slane %v8913, %v9321
        %v9324 = vunpack.c.l.s4 1983009808
        %v9325 = vunpack.c.0.s8 %v9324
        %v9326 = vlaneseq
        %v9327 = vshrl.u32 %v9326, 7
        %v9328 = vsub.s32 %v9325, %v9327
        %v9329 = vrot.slane %v9315, %v9328
        %v9330 = vcombine.high %v9322, %v9322
        %v9331 = vcombine.high %v9329, %v9329
        %v9332 = vcombine.high %v8914, %v8914
        %v9334 = vunpack.c.l.s4 1983009808
        %v9335 = vunpack.c.0.s8 %v9334
        %v9336 = vlaneseq
        %v9337 = vshrl.u32 %v9336, 7
        %v9338 = vsub.s32 %v9335, %v9337
        %v9339 = vrot.slane %v8914, %v9338
        %v9341 = vunpack.c.l.s4 1983009808
        %v9342 = vunpack.c.0.s8 %v9341
        %v9343 = vlaneseq
        %v9344 = vshrl.u32 %v9343, 7
        %v9345 = vsub.s32 %v9342, %v9344
        %v9346 = vrot.slane %v9332, %v9345
        %v9347 = vcombine.high %v9339, %v9339
        %v9348 = vcombine.high %v9346, %v9346
        %v9349 = vcombine.high %v8915, %v8915
        %v9351 = vunpack.c.l.s4 1983009808
        %v9352 = vunpack.c.0.s8 %v9351
        %v9353 = vlaneseq
        %v9354 = vshrl.u32 %v9353, 7
        %v9355 = vsub.s32 %v9352, %v9354
        %v9356 = vrot.slane %v8915, %v9355
        %v9358 = vunpack.c.l.s4 1983009808
        %v9359 = vunpack.c.0.s8 %v9358
        %v9360 = vlaneseq
        %v9361 = vshrl.u32 %v9360, 7
        %v9362 = vsub.s32 %v9359, %v9361
        %v9363 = vrot.slane %v9349, %v9362
        %v9364 = vcombine.high %v9356, %v9356
        %v9365 = vcombine.high %v9363, %v9363
        %v9366 = vcombine.high %v8916, %v8916
        %v9368 = vunpack.c.l.s4 1983009808
        %v9369 = vunpack.c.0.s8 %v9368
        %v9370 = vlaneseq
        %v9371 = vshrl.u32 %v9370, 7
        %v9372 = vsub.s32 %v9369, %v9371
        %v9373 = vrot.slane %v8916, %v9372
        %v9375 = vunpack.c.l.s4 1983009808
        %v9376 = vunpack.c.0.s8 %v9375
        %v9377 = vlaneseq
        %v9378 = vshrl.u32 %v9377, 7
        %v9379 = vsub.s32 %v9376, %v9378
        %v9380 = vrot.slane %v9366, %v9379
        %v9381 = vcombine.high %v9373, %v9373
        %v9382 = vcombine.high %v9380, %v9380
        %v9383 = vcombine.high %v8917, %v8917
        %v9385 = vunpack.c.l.s4 1983009808
        %v9386 = vunpack.c.0.s8 %v9385
        %v9387 = vlaneseq
        %v9388 = vshrl.u32 %v9387, 7
        %v9389 = vsub.s32 %v9386, %v9388
        %v9390 = vrot.slane %v8917, %v9389
        %v9392 = vunpack.c.l.s4 1983009808
        %v9393 = vunpack.c.0.s8 %v9392
        %v9394 = vlaneseq
        %v9395 = vshrl.u32 %v9394, 7
        %v9396 = vsub.s32 %v9393, %v9395
        %v9397 = vrot.slane %v9383, %v9396
        %v9398 = vcombine.high %v9390, %v9390
        %v9399 = vcombine.high %v9397, %v9397
        %v9400 = vcombine.high %v8918, %v8918
        %v9402 = vunpack.c.l.s4 1983009808
        %v9403 = vunpack.c.0.s8 %v9402
        %v9404 = vlaneseq
        %v9405 = vshrl.u32 %v9404, 7
        %v9406 = vsub.s32 %v9403, %v9405
        %v9407 = vrot.slane %v8918, %v9406
        %v9409 = vunpack.c.l.s4 1983009808
        %v9410 = vunpack.c.0.s8 %v9409
        %v9411 = vlaneseq
        %v9412 = vshrl.u32 %v9411, 7
        %v9413 = vsub.s32 %v9410, %v9412
        %v9414 = vrot.slane %v9400, %v9413
        %v9415 = vcombine.high %v9407, %v9407
        %v9416 = vcombine.high %v9414, %v9414
        %v9417 = vcombine.high %v8919, %v8919
        %v9419 = vunpack.c.l.s4 1983009808
        %v9420 = vunpack.c.0.s8 %v9419
        %v9421 = vlaneseq
        %v9422 = vshrl.u32 %v9421, 7
        %v9423 = vsub.s32 %v9420, %v9422
        %v9424 = vrot.slane %v8919, %v9423
        %v9426 = vunpack.c.l.s4 1983009808
        %v9427 = vunpack.c.0.s8 %v9426
        %v9428 = vlaneseq
        %v9429 = vshrl.u32 %v9428, 7
        %v9430 = vsub.s32 %v9427, %v9429
        %v9431 = vrot.slane %v9417, %v9430
        %v9432 = vcombine.high %v9424, %v9424
        %v9433 = vcombine.high %v9431, %v9431
        %v9434 = vcombine.high %v8920, %v8920
        %v9436 = vunpack.c.l.s4 1983009808
        %v9437 = vunpack.c.0.s8 %v9436
        %v9438 = vlaneseq
        %v9439 = vshrl.u32 %v9438, 7
        %v9440 = vsub.s32 %v9437, %v9439
        %v9441 = vrot.slane %v8920, %v9440
        %v9443 = vunpack.c.l.s4 1983009808
        %v9444 = vunpack.c.0.s8 %v9443
        %v9445 = vlaneseq
        %v9446 = vshrl.u32 %v9445, 7
        %v9447 = vsub.s32 %v9444, %v9446
        %v9448 = vrot.slane %v9434, %v9447
        %v9449 = vcombine.high %v9441, %v9441
        %v9450 = vcombine.high %v9448, %v9448
        %v9451 = vcombine.high %v8921, %v8921
        %v9453 = vunpack.c.l.s4 1983009808
        %v9454 = vunpack.c.0.s8 %v9453
        %v9455 = vlaneseq
        %v9456 = vshrl.u32 %v9455, 7
        %v9457 = vsub.s32 %v9454, %v9456
        %v9458 = vrot.slane %v8921, %v9457
        %v9460 = vunpack.c.l.s4 1983009808
        %v9461 = vunpack.c.0.s8 %v9460
        %v9462 = vlaneseq
        %v9463 = vshrl.u32 %v9462, 7
        %v9464 = vsub.s32 %v9461, %v9463
        %v9465 = vrot.slane %v9451, %v9464
        %v9466 = vcombine.high %v9458, %v9458
        %v9467 = vcombine.high %v9465, %v9465
        %v9468 = vcombine.high %v8922, %v8922
        %v9470 = vunpack.c.l.s4 1983009808
        %v9471 = vunpack.c.0.s8 %v9470
        %v9472 = vlaneseq
        %v9473 = vshrl.u32 %v9472, 7
        %v9474 = vsub.s32 %v9471, %v9473
        %v9475 = vrot.slane %v8922, %v9474
        %v9477 = vunpack.c.l.s4 1983009808
        %v9478 = vunpack.c.0.s8 %v9477
        %v9479 = vlaneseq
        %v9480 = vshrl.u32 %v9479, 7
        %v9481 = vsub.s32 %v9478, %v9480
        %v9482 = vrot.slane %v9468, %v9481
        %v9483 = vcombine.high %v9475, %v9475
        %v9484 = vcombine.high %v9482, %v9482
        %v9485 = vcombine.high %v8923, %v8923
        %v9487 = vunpack.c.l.s4 1983009808
        %v9488 = vunpack.c.0.s8 %v9487
        %v9489 = vlaneseq
        %v9490 = vshrl.u32 %v9489, 7
        %v9491 = vsub.s32 %v9488, %v9490
        %v9492 = vrot.slane %v8923, %v9491
        %v9494 = vunpack.c.l.s4 1983009808
        %v9495 = vunpack.c.0.s8 %v9494
        %v9496 = vlaneseq
        %v9497 = vshrl.u32 %v9496, 7
        %v9498 = vsub.s32 %v9495, %v9497
        %v9499 = vrot.slane %v9485, %v9498
        %v9500 = vcombine.high %v9492, %v9492
        %v9501 = vcombine.high %v9499, %v9499
        %v9502 = vcombine.high %v8924, %v8924
        %v9504 = vunpack.c.l.s4 1983009808
        %v9505 = vunpack.c.0.s8 %v9504
        %v9506 = vlaneseq
        %v9507 = vshrl.u32 %v9506, 7
        %v9508 = vsub.s32 %v9505, %v9507
        %v9509 = vrot.slane %v8924, %v9508
        %v9511 = vunpack.c.l.s4 1983009808
        %v9512 = vunpack.c.0.s8 %v9511
        %v9513 = vlaneseq
        %v9514 = vshrl.u32 %v9513, 7
        %v9515 = vsub.s32 %v9512, %v9514
        %v9516 = vrot.slane %v9502, %v9515
        %v9517 = vcombine.high %v9509, %v9509
        %v9518 = vcombine.high %v9516, %v9516
        %v9519 = vcombine.high %v8925, %v8925
        %v9521 = vunpack.c.l.s4 1983009808
        %v9522 = vunpack.c.0.s8 %v9521
        %v9523 = vlaneseq
        %v9524 = vshrl.u32 %v9523, 7
        %v9525 = vsub.s32 %v9522, %v9524
        %v9526 = vrot.slane %v8925, %v9525
        %v9528 = vunpack.c.l.s4 1983009808
        %v9529 = vunpack.c.0.s8 %v9528
        %v9530 = vlaneseq
        %v9531 = vshrl.u32 %v9530, 7
        %v9532 = vsub.s32 %v9529, %v9531
        %v9533 = vrot.slane %v9519, %v9532
        %v9534 = vcombine.high %v9526, %v9526
        %v9535 = vcombine.high %v9533, %v9533
        %v9536 = vcombine.high %v8926, %v8926
        %v9538 = vunpack.c.l.s4 1983009808
        %v9539 = vunpack.c.0.s8 %v9538
        %v9540 = vlaneseq
        %v9541 = vshrl.u32 %v9540, 7
        %v9542 = vsub.s32 %v9539, %v9541
        %v9543 = vrot.slane %v8926, %v9542
        %v9545 = vunpack.c.l.s4 1983009808
        %v9546 = vunpack.c.0.s8 %v9545
        %v9547 = vlaneseq
        %v9548 = vshrl.u32 %v9547, 7
        %v9549 = vsub.s32 %v9546, %v9548
        %v9550 = vrot.slane %v9536, %v9549
        %v9551 = vcombine.high %v9543, %v9543
        %v9552 = vcombine.high %v9550, %v9550
        %v9553 = vcombine.high %v8927, %v8927
        %v9555 = vunpack.c.l.s4 1983009808
        %v9556 = vunpack.c.0.s8 %v9555
        %v9557 = vlaneseq
        %v9558 = vshrl.u32 %v9557, 7
        %v9559 = vsub.s32 %v9556, %v9558
        %v9560 = vrot.slane %v8927, %v9559
        %v9562 = vunpack.c.l.s4 1983009808
        %v9563 = vunpack.c.0.s8 %v9562
        %v9564 = vlaneseq
        %v9565 = vshrl.u32 %v9564, 7
        %v9566 = vsub.s32 %v9563, %v9565
        %v9567 = vrot.slane %v9553, %v9566
        %v9568 = vcombine.high %v9560, %v9560
        %v9569 = vcombine.high %v9567, %v9567
        %v9570 = vcombine.high %v8928, %v8928
        %v9572 = vunpack.c.l.s4 1983009808
        %v9573 = vunpack.c.0.s8 %v9572
        %v9574 = vlaneseq
        %v9575 = vshrl.u32 %v9574, 7
        %v9576 = vsub.s32 %v9573, %v9575
        %v9577 = vrot.slane %v8928, %v9576
        %v9579 = vunpack.c.l.s4 1983009808
        %v9580 = vunpack.c.0.s8 %v9579
        %v9581 = vlaneseq
        %v9582 = vshrl.u32 %v9581, 7
        %v9583 = vsub.s32 %v9580, %v9582
        %v9584 = vrot.slane %v9570, %v9583
        %v9585 = vcombine.high %v9577, %v9577
        %v9586 = vcombine.high %v9584, %v9584
        %v9587 = vcombine.high %v8929, %v8929
        %v9589 = vunpack.c.l.s4 1983009808
        %v9590 = vunpack.c.0.s8 %v9589
        %v9591 = vlaneseq
        %v9592 = vshrl.u32 %v9591, 7
        %v9593 = vsub.s32 %v9590, %v9592
        %v9594 = vrot.slane %v8929, %v9593
        %v9596 = vunpack.c.l.s4 1983009808
        %v9597 = vunpack.c.0.s8 %v9596
        %v9598 = vlaneseq
        %v9599 = vshrl.u32 %v9598, 7
        %v9600 = vsub.s32 %v9597, %v9599
        %v9601 = vrot.slane %v9587, %v9600
        %v9602 = vcombine.high %v9594, %v9594
        %v9603 = vcombine.high %v9601, %v9601
        %v9604 = vcombine.high %v8930, %v8930
        %v9606 = vunpack.c.l.s4 1983009808
        %v9607 = vunpack.c.0.s8 %v9606
        %v9608 = vlaneseq
        %v9609 = vshrl.u32 %v9608, 7
        %v9610 = vsub.s32 %v9607, %v9609
        %v9611 = vrot.slane %v8930, %v9610
        %v9613 = vunpack.c.l.s4 1983009808
        %v9614 = vunpack.c.0.s8 %v9613
        %v9615 = vlaneseq
        %v9616 = vshrl.u32 %v9615, 7
        %v9617 = vsub.s32 %v9614, %v9616
        %v9618 = vrot.slane %v9604, %v9617
        %v9619 = vcombine.high %v9611, %v9611
        %v9620 = vcombine.high %v9618, %v9618
        %v9621 = vcombine.high %v8931, %v8931
        %v9623 = vunpack.c.l.s4 1983009808
        %v9624 = vunpack.c.0.s8 %v9623
        %v9625 = vlaneseq
        %v9626 = vshrl.u32 %v9625, 7
        %v9627 = vsub.s32 %v9624, %v9626
        %v9628 = vrot.slane %v8931, %v9627
        %v9630 = vunpack.c.l.s4 1983009808
        %v9631 = vunpack.c.0.s8 %v9630
        %v9632 = vlaneseq
        %v9633 = vshrl.u32 %v9632, 7
        %v9634 = vsub.s32 %v9631, %v9633
        %v9635 = vrot.slane %v9621, %v9634
        %v9636 = vcombine.high %v9628, %v9628
        %v9637 = vcombine.high %v9635, %v9635
        %v9638 = vcombine.high %v8932, %v8932
        %v9640 = vunpack.c.l.s4 1983009808
        %v9641 = vunpack.c.0.s8 %v9640
        %v9642 = vlaneseq
        %v9643 = vshrl.u32 %v9642, 7
        %v9644 = vsub.s32 %v9641, %v9643
        %v9645 = vrot.slane %v8932, %v9644
        %v9647 = vunpack.c.l.s4 1983009808
        %v9648 = vunpack.c.0.s8 %v9647
        %v9649 = vlaneseq
        %v9650 = vshrl.u32 %v9649, 7
        %v9651 = vsub.s32 %v9648, %v9650
        %v9652 = vrot.slane %v9638, %v9651
        %v9653 = vcombine.high %v9645, %v9645
        %v9654 = vcombine.high %v9652, %v9652
        %v9656 = vunpack.c.l.s4 1983009808
        %v9657 = vunpack.c.0.s8 %v9656
        %v9658 = vlaneseq
        %v9659 = vshrl.u32 %v9658, 7
        %v9660 = vsub.s32 %v9657, %v9659
        %v9661 = vrot.slane %v8933, %v9660
        %v9662 = vcombine.high %v9661, %v9661
        %v9825 = vmul.f32 %v8982, 0.125
        %v9826 = vmul.f32 %v8990, 0.125
        %v9827 = vmul.f32 %v8989, 0.125
        %v9828 = vmul.f32 %v8991, 0.125
        %v9829 = vmul.f32 %v8999, 0.125
        %v9830 = vmul.f32 %v9007, 0.125
        %v9831 = vmul.f32 %v9006, 0.125
        %v9832 = vmul.f32 %v9008, 0.125
        %v9833 = vmul.f32 %v9016, 0.125
        %v9834 = vmul.f32 %v9057, 0.125
        %v9835 = vmul.f32 %v9059, 0.125
        %v9836 = vmul.f32 %v9067, 0.125
        %v9837 = vmul.f32 %v9075, 0.125
        %v9838 = vmul.f32 %v9074, 0.125
        %v9839 = vmul.f32 %v9076, 0.125
        %v9840 = vmul.f32 %v9084, 0.125
        %v9841 = vmul.f32 %v9092, 0.125
        %v9842 = vmul.f32 %v9091, 0.125
        %v9843 = vmul.f32 %v9135, 0.125
        %v9844 = vmul.f32 %v9143, 0.125
        %v9845 = vmul.f32 %v9142, 0.125
        %v9846 = vmul.f32 %v9144, 0.125
        %v9847 = vmul.f32 %v9152, 0.125
        %v9848 = vmul.f32 %v9160, 0.125
        %v9849 = vmul.f32 %v9159, 0.125
        %v9850 = vmul.f32 %v9161, 0.125
        %v9851 = vmul.f32 %v9169, 0.125
        %v9852 = vmul.f32 %v9210, 0.125
        %v9853 = vmul.f32 %v9212, 0.125
        %v9854 = vmul.f32 %v9220, 0.125
        %v9855 = vmul.f32 %v9228, 0.125
        %v9856 = vmul.f32 %v9227, 0.125
        %v9857 = vmul.f32 %v9229, 0.125
        %v9858 = vmul.f32 %v9237, 0.125
        %v9859 = vmul.f32 %v9245, 0.125
        %v9860 = vmul.f32 %v9244, 0.125
        %v9861 = vmul.f32 %v9288, 0.125
        %v9862 = vmul.f32 %v9296, 0.125
        %v9863 = vmul.f32 %v9295, 0.125
        %v9864 = vmul.f32 %v9297, 0.125
        %v9865 = vmul.f32 %v9305, 0.125
        %v9866 = vmul.f32 %v9313, 0.125
        %v9867 = vmul.f32 %v9312, 0.125
        %v9868 = vmul.f32 %v9314, 0.125
        %v9869 = vmul.f32 %v9322, 0.125
        %v9870 = vmul.f32 %v9363, 0.125
        %v9871 = vmul.f32 %v9365, 0.125
        %v9872 = vmul.f32 %v9373, 0.125
        %v9873 = vmul.f32 %v9381, 0.125
        %v9874 = vmul.f32 %v9380, 0.125
        %v9875 = vmul.f32 %v9382, 0.125
        %v9876 = vmul.f32 %v9390, 0.125
        %v9877 = vmul.f32 %v9398, 0.125
        %v9878 = vmul.f32 %v9397, 0.125
        %v9879 = vmul.f32 %v9441, 0.125
        %v9880 = vmul.f32 %v9449, 0.125
        %v9881 = vmul.f32 %v9448, 0.125
        %v9882 = vmul.f32 %v9450, 0.125
        %v9883 = vmul.f32 %v9458, 0.125
        %v9884 = vmul.f32 %v9466, 0.125
        %v9885 = vmul.f32 %v9465, 0.125
        %v9886 = vmul.f32 %v9467, 0.125
        %v9887 = vmul.f32 %v9475, 0.125
        %v9888 = vmul.f32 %v9516, 0.125
        %v9889 = vmul.f32 %v9518, 0.125
        %v9890 = vmul.f32 %v9526, 0.125
        %v9891 = vmul.f32 %v9534, 0.125
        %v9892 = vmul.f32 %v9533, 0.125
        %v9893 = vmul.f32 %v9535, 0.125
        %v9894 = vmul.f32 %v9543, 0.125
        %v9895 = vmul.f32 %v9551, 0.125
        %v9896 = vmul.f32 %v9550, 0.125
        %v9897 = vmul.f32 %v9024, 0.375
        %v9898 = vmul.f32 %v9023, 0.375
        %v9899 = vmul.f32 %v9025, 0.375
        %v9900 = vmul.f32 %v9033, 0.375
        %v9901 = vmul.f32 %v9041, 0.375
        %v9902 = vmul.f32 %v9040, 0.375
        %v9903 = vmul.f32 %v9042, 0.375
        %v9904 = vmul.f32 %v9050, 0.375
        %v9905 = vmul.f32 %v9058, 0.375
        %v9906 = vmul.f32 %v9093, 0.375
        %v9907 = vmul.f32 %v9101, 0.375
        %v9908 = vmul.f32 %v9109, 0.375
        %v9909 = vmul.f32 %v9108, 0.375
        %v9910 = vmul.f32 %v9110, 0.375
        %v9911 = vmul.f32 %v9118, 0.375
        %v9912 = vmul.f32 %v9126, 0.375
        %v9913 = vmul.f32 %v9125, 0.375
        %v9914 = vmul.f32 %v9127, 0.375
        %v9915 = vmul.f32 %v9177, 0.375
        %v9916 = vmul.f32 %v9176, 0.375
        %v9917 = vmul.f32 %v9178, 0.375
        %v9918 = vmul.f32 %v9186, 0.375
        %v9919 = vmul.f32 %v9194, 0.375
        %v9920 = vmul.f32 %v9193, 0.375
        %v9921 = vmul.f32 %v9195, 0.375
        %v9922 = vmul.f32 %v9203, 0.375
        %v9923 = vmul.f32 %v9211, 0.375
        %v9924 = vmul.f32 %v9246, 0.375
        %v9925 = vmul.f32 %v9254, 0.375
        %v9926 = vmul.f32 %v9262, 0.375
        %v9927 = vmul.f32 %v9261, 0.375
        %v9928 = vmul.f32 %v9263, 0.375
        %v9929 = vmul.f32 %v9271, 0.375
        %v9930 = vmul.f32 %v9279, 0.375
        %v9931 = vmul.f32 %v9278, 0.375
        %v9932 = vmul.f32 %v9280, 0.375
        %v9933 = vmul.f32 %v9330, 0.375
        %v9934 = vmul.f32 %v9329, 0.375
        %v9935 = vmul.f32 %v9331, 0.375
        %v9936 = vmul.f32 %v9339, 0.375
        %v9937 = vmul.f32 %v9347, 0.375
        %v9938 = vmul.f32 %v9346, 0.375
        %v9939 = vmul.f32 %v9348, 0.375
        %v9940 = vmul.f32 %v9356, 0.375
        %v9941 = vmul.f32 %v9364, 0.375
        %v9942 = vmul.f32 %v9399, 0.375
        %v9943 = vmul.f32 %v9407, 0.375
        %v9944 = vmul.f32 %v9415, 0.375
        %v9945 = vmul.f32 %v9414, 0.375
        %v9946 = vmul.f32 %v9416, 0.375
        %v9947 = vmul.f32 %v9424, 0.375
        %v9948 = vmul.f32 %v9432, 0.375
        %v9949 = vmul.f32 %v9431, 0.375
        %v9950 = vmul.f32 %v9433, 0.375
        %v9951 = vmul.f32 %v9483, 0.375
        %v9952 = vmul.f32 %v9482, 0.375
        %v9953 = vmul.f32 %v9484, 0.375
        %v9954 = vmul.f32 %v9492, 0.375
        %v9955 = vmul.f32 %v9500, 0.375
        %v9956 = vmul.f32 %v9499, 0.375
        %v9957 = vmul.f32 %v9501, 0.375
        %v9958 = vmul.f32 %v9509, 0.375
        %v9959 = vmul.f32 %v9517, 0.375
        %v9960 = vmul.f32 %v9552, 0.375
        %v9961 = vmul.f32 %v9560, 0.375
        %v9962 = vmul.f32 %v9568, 0.375
        %v9963 = vmul.f32 %v9567, 0.375
        %v9964 = vmul.f32 %v9569, 0.375
        %v9965 = vmul.f32 %v9577, 0.375
        %v9966 = vmul.f32 %v9585, 0.375
        %v9967 = vmul.f32 %v9584, 0.375
        %v9968 = vmul.f32 %v9586, 0.375
        %v9969 = vadd.f32 %v9825, %v9897
        %v9970 = vadd.f32 %v9826, %v9898
        %v9971 = vadd.f32 %v9827, %v9899
        %v9972 = vadd.f32 %v9828, %v9900
        %v9973 = vadd.f32 %v9829, %v9901
        %v9974 = vadd.f32 %v9830, %v9902
        %v9975 = vadd.f32 %v9831, %v9903
        %v9976 = vadd.f32 %v9832, %v9904
        %v9977 = vadd.f32 %v9833, %v9905
        %v9978 = vadd.f32 %v9834, %v9906
        %v9979 = vadd.f32 %v9835, %v9907
        %v9980 = vadd.f32 %v9836, %v9908
        %v9981 = vadd.f32 %v9837, %v9909
        %v9982 = vadd.f32 %v9838, %v9910
        %v9983 = vadd.f32 %v9839, %v9911
        %v9984 = vadd.f32 %v9840, %v9912
        %v9985 = vadd.f32 %v9841, %v9913
        %v9986 = vadd.f32 %v9842, %v9914
        %v9987 = vadd.f32 %v9843, %v9915
        %v9988 = vadd.f32 %v9844, %v9916
        %v9989 = vadd.f32 %v9845, %v9917
        %v9990 = vadd.f32 %v9846, %v9918
        %v9991 = vadd.f32 %v9847, %v9919
        %v9992 = vadd.f32 %v9848, %v9920
        %v9993 = vadd.f32 %v9849, %v9921
        %v9994 = vadd.f32 %v9850, %v9922
        %v9995 = vadd.f32 %v9851, %v9923
        %v9996 = vadd.f32 %v9852, %v9924
        %v9997 = vadd.f32 %v9853, %v9925
        %v9998 = vadd.f32 %v9854, %v9926
        %v9999 = vadd.f32 %v9855, %v9927
        %v10000 = vadd.f32 %v9856, %v9928
        %v10001 = vadd.f32 %v9857, %v9929
        %v10002 = vadd.f32 %v9858, %v9930
        %v10003 = vadd.f32 %v9859, %v9931
        %v10004 = vadd.f32 %v9860, %v9932
        %v10005 = vadd.f32 %v9861, %v9933
        %v10006 = vadd.f32 %v9862, %v9934
        %v10007 = vadd.f32 %v9863, %v9935
        %v10008 = vadd.f32 %v9864, %v9936
        %v10009 = vadd.f32 %v9865, %v9937
        %v10010 = vadd.f32 %v9866, %v9938
        %v10011 = vadd.f32 %v9867, %v9939
        %v10012 = vadd.f32 %v9868, %v9940
        %v10013 = vadd.f32 %v9869, %v9941
        %v10014 = vadd.f32 %v9870, %v9942
        %v10015 = vadd.f32 %v9871, %v9943
        %v10016 = vadd.f32 %v9872, %v9944
        %v10017 = vadd.f32 %v9873, %v9945
        %v10018 = vadd.f32 %v9874, %v9946
        %v10019 = vadd.f32 %v9875, %v9947
        %v10020 = vadd.f32 %v9876, %v9948
        %v10021 = vadd.f32 %v9877, %v9949
        %v10022 = vadd.f32 %v9878, %v9950
        %v10023 = vadd.f32 %v9879, %v9951
        %v10024 = vadd.f32 %v9880, %v9952
        %v10025 = vadd.f32 %v9881, %v9953
        %v10026 = vadd.f32 %v9882, %v9954
        %v10027 = vadd.f32 %v9883, %v9955
        %v10028 = vadd.f32 %v9884, %v9956
        %v10029 = vadd.f32 %v9885, %v9957
        %v10030 = vadd.f32 %v9886, %v9958
        %v10031 = vadd.f32 %v9887, %v9959
        %v10032 = vadd.f32 %v9888, %v9960
        %v10033 = vadd.f32 %v9889, %v9961
        %v10034 = vadd.f32 %v9890, %v9962
        %v10035 = vadd.f32 %v9891, %v9963
        %v10036 = vadd.f32 %v9892, %v9964
        %v10037 = vadd.f32 %v9893, %v9965
        %v10038 = vadd.f32 %v9894, %v9966
        %v10039 = vadd.f32 %v9895, %v9967
        %v10040 = vadd.f32 %v9896, %v9968
        %v10041 = vmul.f32 %v9057, 0.375
        %v10042 = vmul.f32 %v9059, 0.375
        %v10043 = vmul.f32 %v9067, 0.375
        %v10044 = vmul.f32 %v9075, 0.375
        %v10045 = vmul.f32 %v9074, 0.375
        %v10046 = vmul.f32 %v9076, 0.375
        %v10047 = vmul.f32 %v9084, 0.375
        %v10048 = vmul.f32 %v9092, 0.375
        %v10049 = vmul.f32 %v9091, 0.375
        %v10050 = vmul.f32 %v9135, 0.375
        %v10051 = vmul.f32 %v9143, 0.375
        %v10052 = vmul.f32 %v9142, 0.375
        %v10053 = vmul.f32 %v9144, 0.375
        %v10054 = vmul.f32 %v9152, 0.375
        %v10055 = vmul.f32 %v9160, 0.375
        %v10056 = vmul.f32 %v9159, 0.375
        %v10057 = vmul.f32 %v9161, 0.375
        %v10058 = vmul.f32 %v9169, 0.375
        %v10059 = vmul.f32 %v9210, 0.375
        %v10060 = vmul.f32 %v9212, 0.375
        %v10061 = vmul.f32 %v9220, 0.375
        %v10062 = vmul.f32 %v9228, 0.375
        %v10063 = vmul.f32 %v9227, 0.375
        %v10064 = vmul.f32 %v9229, 0.375
        %v10065 = vmul.f32 %v9237, 0.375
        %v10066 = vmul.f32 %v9245, 0.375
        %v10067 = vmul.f32 %v9244, 0.375
        %v10068 = vmul.f32 %v9288, 0.375
        %v10069 = vmul.f32 %v9296, 0.375
        %v10070 = vmul.f32 %v9295, 0.375
        %v10071 = vmul.f32 %v9297, 0.375
        %v10072 = vmul.f32 %v9305, 0.375
        %v10073 = vmul.f32 %v9313, 0.375
        %v10074 = vmul.f32 %v9312, 0.375
        %v10075 = vmul.f32 %v9314, 0.375
        %v10076 = vmul.f32 %v9322, 0.375
        %v10077 = vmul.f32 %v9363, 0.375
        %v10078 = vmul.f32 %v9365, 0.375
        %v10079 = vmul.f32 %v9373, 0.375
        %v10080 = vmul.f32 %v9381, 0.375
        %v10081 = vmul.f32 %v9380, 0.375
        %v10082 = vmul.f32 %v9382, 0.375
        %v10083 = vmul.f32 %v9390, 0.375
        %v10084 = vmul.f32 %v9398, 0.375
        %v10085 = vmul.f32 %v9397, 0.375
        %v10086 = vmul.f32 %v9441, 0.375
        %v10087 = vmul.f32 %v9449, 0.375
        %v10088 = vmul.f32 %v9448, 0.375
        %v10089 = vmul.f32 %v9450, 0.375
        %v10090 = vmul.f32 %v9458, 0.375
        %v10091 = vmul.f32 %v9466, 0.375
        %v10092 = vmul.f32 %v9465, 0.375
        %v10093 = vmul.f32 %v9467, 0.375
        %v10094 = vmul.f32 %v9475, 0.375
        %v10095 = vmul.f32 %v9516, 0.375
        %v10096 = vmul.f32 %v9518, 0.375
        %v10097 = vmul.f32 %v9526, 0.375
        %v10098 = vmul.f32 %v9534, 0.375
        %v10099 = vmul.f32 %v9533, 0.375
        %v10100 = vmul.f32 %v9535, 0.375
        %v10101 = vmul.f32 %v9543, 0.375
        %v10102 = vmul.f32 %v9551, 0.375
        %v10103 = vmul.f32 %v9550, 0.375
        %v10104 = vmul.f32 %v9594, 0.375
        %v10105 = vmul.f32 %v9602, 0.375
        %v10106 = vmul.f32 %v9601, 0.375
        %v10107 = vmul.f32 %v9603, 0.375
        %v10108 = vmul.f32 %v9611, 0.375
        %v10109 = vmul.f32 %v9619, 0.375
        %v10110 = vmul.f32 %v9618, 0.375
        %v10111 = vmul.f32 %v9620, 0.375
        %v10112 = vmul.f32 %v9628, 0.375
        %v10113 = vadd.f32 %v9969, %v10041
        %v10114 = vadd.f32 %v9970, %v10042
        %v10115 = vadd.f32 %v9971, %v10043
        %v10116 = vadd.f32 %v9972, %v10044
        %v10117 = vadd.f32 %v9973, %v10045
        %v10118 = vadd.f32 %v9974, %v10046
        %v10119 = vadd.f32 %v9975, %v10047
        %v10120 = vadd.f32 %v9976, %v10048
        %v10121 = vadd.f32 %v9977, %v10049
        %v10122 = vadd.f32 %v9978, %v10050
        %v10123 = vadd.f32 %v9979, %v10051
        %v10124 = vadd.f32 %v9980, %v10052
        %v10125 = vadd.f32 %v9981, %v10053
        %v10126 = vadd.f32 %v9982, %v10054
        %v10127 = vadd.f32 %v9983, %v10055
        %v10128 = vadd.f32 %v9984, %v10056
        %v10129 = vadd.f32 %v9985, %v10057
        %v10130 = vadd.f32 %v9986, %v10058
        %v10131 = vadd.f32 %v9987, %v10059
        %v10132 = vadd.f32 %v9988, %v10060
        %v10133 = vadd.f32 %v9989, %v10061
        %v10134 = vadd.f32 %v9990, %v10062
        %v10135 = vadd.f32 %v9991, %v10063
        %v10136 = vadd.f32 %v9992, %v10064
        %v10137 = vadd.f32 %v9993, %v10065
        %v10138 = vadd.f32 %v9994, %v10066
        %v10139 = vadd.f32 %v9995, %v10067
        %v10140 = vadd.f32 %v9996, %v10068
        %v10141 = vadd.f32 %v9997, %v10069
        %v10142 = vadd.f32 %v9998, %v10070
        %v10143 = vadd.f32 %v9999, %v10071
        %v10144 = vadd.f32 %v10000, %v10072
        %v10145 = vadd.f32 %v10001, %v10073
        %v10146 = vadd.f32 %v10002, %v10074
        %v10147 = vadd.f32 %v10003, %v10075
        %v10148 = vadd.f32 %v10004, %v10076
        %v10149 = vadd.f32 %v10005, %v10077
        %v10150 = vadd.f32 %v10006, %v10078
        %v10151 = vadd.f32 %v10007, %v10079
        %v10152 = vadd.f32 %v10008, %v10080
        %v10153 = vadd.f32 %v10009, %v10081
        %v10154 = vadd.f32 %v10010, %v10082
        %v10155 = vadd.f32 %v10011, %v10083
        %v10156 = vadd.f32 %v10012, %v10084
        %v10157 = vadd.f32 %v10013, %v10085
        %v10158 = vadd.f32 %v10014, %v10086
        %v10159 = vadd.f32 %v10015, %v10087
        %v10160 = vadd.f32 %v10016, %v10088
        %v10161 = vadd.f32 %v10017, %v10089
        %v10162 = vadd.f32 %v10018, %v10090
        %v10163 = vadd.f32 %v10019, %v10091
        %v10164 = vadd.f32 %v10020, %v10092
        %v10165 = vadd.f32 %v10021, %v10093
        %v10166 = vadd.f32 %v10022, %v10094
        %v10167 = vadd.f32 %v10023, %v10095
        %v10168 = vadd.f32 %v10024, %v10096
        %v10169 = vadd.f32 %v10025, %v10097
        %v10170 = vadd.f32 %v10026, %v10098
        %v10171 = vadd.f32 %v10027, %v10099
        %v10172 = vadd.f32 %v10028, %v10100
        %v10173 = vadd.f32 %v10029, %v10101
        %v10174 = vadd.f32 %v10030, %v10102
        %v10175 = vadd.f32 %v10031, %v10103
        %v10176 = vadd.f32 %v10032, %v10104
        %v10177 = vadd.f32 %v10033, %v10105
        %v10178 = vadd.f32 %v10034, %v10106
        %v10179 = vadd.f32 %v10035, %v10107
        %v10180 = vadd.f32 %v10036, %v10108
        %v10181 = vadd.f32 %v10037, %v10109
        %v10182 = vadd.f32 %v10038, %v10110
        %v10183 = vadd.f32 %v10039, %v10111
        %v10184 = vadd.f32 %v10040, %v10112
        %v10185 = vmul.f32 %v9093, 0.125
        %v10186 = vmul.f32 %v9101, 0.125
        %v10187 = vmul.f32 %v9109, 0.125
        %v10188 = vmul.f32 %v9108, 0.125
        %v10189 = vmul.f32 %v9110, 0.125
        %v10190 = vmul.f32 %v9118, 0.125
        %v10191 = vmul.f32 %v9126, 0.125
        %v10192 = vmul.f32 %v9125, 0.125
        %v10193 = vmul.f32 %v9127, 0.125
        %v10194 = vmul.f32 %v9177, 0.125
        %v10195 = vmul.f32 %v9176, 0.125
        %v10196 = vmul.f32 %v9178, 0.125
        %v10197 = vmul.f32 %v9186, 0.125
        %v10198 = vmul.f32 %v9194, 0.125
        %v10199 = vmul.f32 %v9193, 0.125
        %v10200 = vmul.f32 %v9195, 0.125
        %v10201 = vmul.f32 %v9203, 0.125
        %v10202 = vmul.f32 %v9211, 0.125
        %v10203 = vmul.f32 %v9246, 0.125
        %v10204 = vmul.f32 %v9254, 0.125
        %v10205 = vmul.f32 %v9262, 0.125
        %v10206 = vmul.f32 %v9261, 0.125
        %v10207 = vmul.f32 %v9263, 0.125
        %v10208 = vmul.f32 %v9271, 0.125
        %v10209 = vmul.f32 %v9279, 0.125
        %v10210 = vmul.f32 %v9278, 0.125
        %v10211 = vmul.f32 %v9280, 0.125
        %v10212 = vmul.f32 %v9330, 0.125
        %v10213 = vmul.f32 %v9329, 0.125
        %v10214 = vmul.f32 %v9331, 0.125
        %v10215 = vmul.f32 %v9339, 0.125
        %v10216 = vmul.f32 %v9347, 0.125
        %v10217 = vmul.f32 %v9346, 0.125
        %v10218 = vmul.f32 %v9348, 0.125
        %v10219 = vmul.f32 %v9356, 0.125
        %v10220 = vmul.f32 %v9364, 0.125
        %v10221 = vmul.f32 %v9399, 0.125
        %v10222 = vmul.f32 %v9407, 0.125
        %v10223 = vmul.f32 %v9415, 0.125
        %v10224 = vmul.f32 %v9414, 0.125
        %v10225 = vmul.f32 %v9416, 0.125
        %v10226 = vmul.f32 %v9424, 0.125
        %v10227 = vmul.f32 %v9432, 0.125
        %v10228 = vmul.f32 %v9431, 0.125
        %v10229 = vmul.f32 %v9433, 0.125
        %v10230 = vmul.f32 %v9483, 0.125
        %v10231 = vmul.f32 %v9482, 0.125
        %v10232 = vmul.f32 %v9484, 0.125
        %v10233 = vmul.f32 %v9492, 0.125
        %v10234 = vmul.f32 %v9500, 0.125
        %v10235 = vmul.f32 %v9499, 0.125
        %v10236 = vmul.f32 %v9501, 0.125
        %v10237 = vmul.f32 %v9509, 0.125
        %v10238 = vmul.f32 %v9517, 0.125
        %v10239 = vmul.f32 %v9552, 0.125
        %v10240 = vmul.f32 %v9560, 0.125
        %v10241 = vmul.f32 %v9568, 0.125
        %v10242 = vmul.f32 %v9567, 0.125
        %v10243 = vmul.f32 %v9569, 0.125
        %v10244 = vmul.f32 %v9577, 0.125
        %v10245 = vmul.f32 %v9585, 0.125
        %v10246 = vmul.f32 %v9584, 0.125
        %v10247 = vmul.f32 %v9586, 0.125
        %v10248 = vmul.f32 %v9636, 0.125
        %v10249 = vmul.f32 %v9635, 0.125
        %v10250 = vmul.f32 %v9637, 0.125
        %v10251 = vmul.f32 %v9645, 0.125
        %v10252 = vmul.f32 %v9653, 0.125
        %v10253 = vmul.f32 %v9652, 0.125
        %v10254 = vmul.f32 %v9654, 0.125
        %v10255 = vmul.f32 %v9661, 0.125
        %v10256 = vmul.f32 %v9662, 0.125
        %v10257 = vadd.f32 %v10113, %v10185
        %v10258 = vadd.f32 %v10114, %v10186
        %v10259 = vadd.f32 %v10115, %v10187
        %v10260 = vadd.f32 %v10116, %v10188
        %v10261 = vadd.f32 %v10117, %v10189
        %v10262 = vadd.f32 %v10118, %v10190
        %v10263 = vadd.f32 %v10119, %v10191
        %v10264 = vadd.f32 %v10120, %v10192
        %v10265 = vadd.f32 %v10121, %v10193
        %v10266 = vadd.f32 %v10122, %v10194
        %v10267 = vadd.f32 %v10123, %v10195
        %v10268 = vadd.f32 %v10124, %v10196
        %v10269 = vadd.f32 %v10125, %v10197
        %v10270 = vadd.f32 %v10126, %v10198
        %v10271 = vadd.f32 %v10127, %v10199
        %v10272 = vadd.f32 %v10128, %v10200
        %v10273 = vadd.f32 %v10129, %v10201
        %v10274 = vadd.f32 %v10130, %v10202
        %v10275 = vadd.f32 %v10131, %v10203
        %v10276 = vadd.f32 %v10132, %v10204
        %v10277 = vadd.f32 %v10133, %v10205
        %v10278 = vadd.f32 %v10134, %v10206
        %v10279 = vadd.f32 %v10135, %v10207
        %v10280 = vadd.f32 %v10136, %v10208
        %v10281 = vadd.f32 %v10137, %v10209
        %v10282 = vadd.f32 %v10138, %v10210
        %v10283 = vadd.f32 %v10139, %v10211
        %v10284 = vadd.f32 %v10140, %v10212
        %v10285 = vadd.f32 %v10141, %v10213
        %v10286 = vadd.f32 %v10142, %v10214
        %v10287 = vadd.f32 %v10143, %v10215
        %v10288 = vadd.f32 %v10144, %v10216
        %v10289 = vadd.f32 %v10145, %v10217
        %v10290 = vadd.f32 %v10146, %v10218
        %v10291 = vadd.f32 %v10147, %v10219
        %v10292 = vadd.f32 %v10148, %v10220
        %v10293 = vadd.f32 %v10149, %v10221
        %v10294 = vadd.f32 %v10150, %v10222
        %v10295 = vadd.f32 %v10151, %v10223
        %v10296 = vadd.f32 %v10152, %v10224
        %v10297 = vadd.f32 %v10153, %v10225
        %v10298 = vadd.f32 %v10154, %v10226
        %v10299 = vadd.f32 %v10155, %v10227
        %v10300 = vadd.f32 %v10156, %v10228
        %v10301 = vadd.f32 %v10157, %v10229
        %v10302 = vadd.f32 %v10158, %v10230
        %v10303 = vadd.f32 %v10159, %v10231
        %v10304 = vadd.f32 %v10160, %v10232
        %v10305 = vadd.f32 %v10161, %v10233
        %v10306 = vadd.f32 %v10162, %v10234
        %v10307 = vadd.f32 %v10163, %v10235
        %v10308 = vadd.f32 %v10164, %v10236
        %v10309 = vadd.f32 %v10165, %v10237
        %v10310 = vadd.f32 %v10166, %v10238
        %v10311 = vadd.f32 %v10167, %v10239
        %v10312 = vadd.f32 %v10168, %v10240
        %v10313 = vadd.f32 %v10169, %v10241
        %v10314 = vadd.f32 %v10170, %v10242
        %v10315 = vadd.f32 %v10171, %v10243
        %v10316 = vadd.f32 %v10172, %v10244
        %v10317 = vadd.f32 %v10173, %v10245
        %v10318 = vadd.f32 %v10174, %v10246
        %v10319 = vadd.f32 %v10175, %v10247
        %v10320 = vadd.f32 %v10176, %v10248
        %v10321 = vadd.f32 %v10177, %v10249
        %v10322 = vadd.f32 %v10178, %v10250
        %v10323 = vadd.f32 %v10179, %v10251
        %v10324 = vadd.f32 %v10180, %v10252
        %v10325 = vadd.f32 %v10181, %v10253
        %v10326 = vadd.f32 %v10182, %v10254
        %v10327 = vadd.f32 %v10183, %v10255
        %v10328 = vadd.f32 %v10184, %v10256
        %v10401 = vcombine.low %v10257, %v10258
        %v10402 = vcombine.low %v10259, %v10260
        %v10404 = vunpack.c.l.s4 1983009808
        %v10405 = vunpack.c.0.s8 %v10404
        %v10406 = vlaneseq
        %v10407 = vshrl.u32 %v10406, 7
        %v10408 = vsub.s32 %v10405, %v10407
        %v10409 = vrot.slane %v10401, %v10408
        %v10411 = vunpack.c.l.s4 1983009808
        %v10412 = vunpack.c.0.s8 %v10411
        %v10413 = vlaneseq
        %v10414 = vshrl.u32 %v10413, 7
        %v10415 = vsub.s32 %v10412, %v10414
        %v10416 = vrot.slane %v10402, %v10415
        %v10417 = vcombine.low %v10409, %v10416
        %v10418 = vcombine.low %v10261, %v10262
        %v10419 = vcombine.low %v10263, %v10264
        %v10421 = vunpack.c.l.s4 1983009808
        %v10422 = vunpack.c.0.s8 %v10421
        %v10423 = vlaneseq
        %v10424 = vshrl.u32 %v10423, 7
        %v10425 = vsub.s32 %v10422, %v10424
        %v10426 = vrot.slane %v10418, %v10425
        %v10428 = vunpack.c.l.s4 1983009808
        %v10429 = vunpack.c.0.s8 %v10428
        %v10430 = vlaneseq
        %v10431 = vshrl.u32 %v10430, 7
        %v10432 = vsub.s32 %v10429, %v10431
        %v10433 = vrot.slane %v10419, %v10432
        %v10434 = vcombine.low %v10426, %v10433
        %v10436 = vunpack.c.l.s4 1983009808
        %v10437 = vunpack.c.0.s8 %v10436
        %v10438 = vlaneseq
        %v10439 = vshrl.u32 %v10438, 7
        %v10440 = vsub.s32 %v10437, %v10439
        %v10441 = vrot.slane %v10265, %v10440
        %v10442 = vcombine.low %v10266, %v10267
        %v10443 = vcombine.low %v10268, %v10269
        %v10445 = vunpack.c.l.s4 1983009808
        %v10446 = vunpack.c.0.s8 %v10445
        %v10447 = vlaneseq
        %v10448 = vshrl.u32 %v10447, 7
        %v10449 = vsub.s32 %v10446, %v10448
        %v10450 = vrot.slane %v10442, %v10449
        %v10452 = vunpack.c.l.s4 1983009808
        %v10453 = vunpack.c.0.s8 %v10452
        %v10454 = vlaneseq
        %v10455 = vshrl.u32 %v10454, 7
        %v10456 = vsub.s32 %v10453, %v10455
        %v10457 = vrot.slane %v10443, %v10456
        %v10458 = vcombine.low %v10450, %v10457
        %v10459 = vcombine.low %v10270, %v10271
        %v10460 = vcombine.low %v10272, %v10273
        %v10462 = vunpack.c.l.s4 1983009808
        %v10463 = vunpack.c.0.s8 %v10462
        %v10464 = vlaneseq
        %v10465 = vshrl.u32 %v10464, 7
        %v10466 = vsub.s32 %v10463, %v10465
        %v10467 = vrot.slane %v10459, %v10466
        %v10469 = vunpack.c.l.s4 1983009808
        %v10470 = vunpack.c.0.s8 %v10469
        %v10471 = vlaneseq
        %v10472 = vshrl.u32 %v10471, 7
        %v10473 = vsub.s32 %v10470, %v10472
        %v10474 = vrot.slane %v10460, %v10473
        %v10475 = vcombine.low %v10467, %v10474
        %v10477 = vunpack.c.l.s4 1983009808
        %v10478 = vunpack.c.0.s8 %v10477
        %v10479 = vlaneseq
        %v10480 = vshrl.u32 %v10479, 7
        %v10481 = vsub.s32 %v10478, %v10480
        %v10482 = vrot.slane %v10274, %v10481
        %v10483 = vcombine.low %v10275, %v10276
        %v10484 = vcombine.low %v10277, %v10278
        %v10486 = vunpack.c.l.s4 1983009808
        %v10487 = vunpack.c.0.s8 %v10486
        %v10488 = vlaneseq
        %v10489 = vshrl.u32 %v10488, 7
        %v10490 = vsub.s32 %v10487, %v10489
        %v10491 = vrot.slane %v10483, %v10490
        %v10493 = vunpack.c.l.s4 1983009808
        %v10494 = vunpack.c.0.s8 %v10493
        %v10495 = vlaneseq
        %v10496 = vshrl.u32 %v10495, 7
        %v10497 = vsub.s32 %v10494, %v10496
        %v10498 = vrot.slane %v10484, %v10497
        %v10499 = vcombine.low %v10491, %v10498
        %v10500 = vcombine.low %v10279, %v10280
        %v10501 = vcombine.low %v10281, %v10282
        %v10503 = vunpack.c.l.s4 1983009808
        %v10504 = vunpack.c.0.s8 %v10503
        %v10505 = vlaneseq
        %v10506 = vshrl.u32 %v10505, 7
        %v10507 = vsub.s32 %v10504, %v10506
        %v10508 = vrot.slane %v10500, %v10507
        %v10510 = vunpack.c.l.s4 1983009808
        %v10511 = vunpack.c.0.s8 %v10510
        %v10512 = vlaneseq
        %v10513 = vshrl.u32 %v10512, 7
        %v10514 = vsub.s32 %v10511, %v10513
        %v10515 = vrot.slane %v10501, %v10514
        %v10516 = vcombine.low %v10508, %v10515
        %v10518 = vunpack.c.l.s4 1983009808
        %v10519 = vunpack.c.0.s8 %v10518
        %v10520 = vlaneseq
        %v10521 = vshrl.u32 %v10520, 7
        %v10522 = vsub.s32 %v10519, %v10521
        %v10523 = vrot.slane %v10283, %v10522
        %v10524 = vcombine.low %v10284, %v10285
        %v10525 = vcombine.low %v10286, %v10287
        %v10527 = vunpack.c.l.s4 1983009808
        %v10528 = vunpack.c.0.s8 %v10527
        %v10529 = vlaneseq
        %v10530 = vshrl.u32 %v10529, 7
        %v10531 = vsub.s32 %v10528, %v10530
        %v10532 = vrot.slane %v10524, %v10531
        %v10534 = vunpack.c.l.s4 1983009808
        %v10535 = vunpack.c.0.s8 %v10534
        %v10536 = vlaneseq
        %v10537 = vshrl.u32 %v10536, 7
        %v10538 = vsub.s32 %v10535, %v10537
        %v10539 = vrot.slane %v10525, %v10538
        %v10540 = vcombine.low %v10532, %v10539
        %v10541 = vcombine.low %v10288, %v10289
        %v10542 = vcombine.low %v10290, %v10291
        %v10544 = vunpack.c.l.s4 1983009808
        %v10545 = vunpack.c.0.s8 %v10544
        %v10546 = vlaneseq
        %v10547 = vshrl.u32 %v10546, 7
        %v10548 = vsub.s32 %v10545, %v10547
        %v10549 = vrot.slane %v10541, %v10548
        %v10551 = vunpack.c.l.s4 1983009808
        %v10552 = vunpack.c.0.s8 %v10551
        %v10553 = vlaneseq
        %v10554 = vshrl.u32 %v10553, 7
        %v10555 = vsub.s32 %v10552, %v10554
        %v10556 = vrot.slane %v10542, %v10555
        %v10557 = vcombine.low %v10549, %v10556
        %v10559 = vunpack.c.l.s4 1983009808
        %v10560 = vunpack.c.0.s8 %v10559
        %v10561 = vlaneseq
        %v10562 = vshrl.u32 %v10561, 7
        %v10563 = vsub.s32 %v10560, %v10562
        %v10564 = vrot.slane %v10292, %v10563
        %v10565 = vcombine.low %v10293, %v10294
        %v10566 = vcombine.low %v10295, %v10296
        %v10568 = vunpack.c.l.s4 1983009808
        %v10569 = vunpack.c.0.s8 %v10568
        %v10570 = vlaneseq
        %v10571 = vshrl.u32 %v10570, 7
        %v10572 = vsub.s32 %v10569, %v10571
        %v10573 = vrot.slane %v10565, %v10572
        %v10575 = vunpack.c.l.s4 1983009808
        %v10576 = vunpack.c.0.s8 %v10575
        %v10577 = vlaneseq
        %v10578 = vshrl.u32 %v10577, 7
        %v10579 = vsub.s32 %v10576, %v10578
        %v10580 = vrot.slane %v10566, %v10579
        %v10581 = vcombine.low %v10573, %v10580
        %v10582 = vcombine.low %v10297, %v10298
        %v10583 = vcombine.low %v10299, %v10300
        %v10585 = vunpack.c.l.s4 1983009808
        %v10586 = vunpack.c.0.s8 %v10585
        %v10587 = vlaneseq
        %v10588 = vshrl.u32 %v10587, 7
        %v10589 = vsub.s32 %v10586, %v10588
        %v10590 = vrot.slane %v10582, %v10589
        %v10592 = vunpack.c.l.s4 1983009808
        %v10593 = vunpack.c.0.s8 %v10592
        %v10594 = vlaneseq
        %v10595 = vshrl.u32 %v10594, 7
        %v10596 = vsub.s32 %v10593, %v10595
        %v10597 = vrot.slane %v10583, %v10596
        %v10598 = vcombine.low %v10590, %v10597
        %v10600 = vunpack.c.l.s4 1983009808
        %v10601 = vunpack.c.0.s8 %v10600
        %v10602 = vlaneseq
        %v10603 = vshrl.u32 %v10602, 7
        %v10604 = vsub.s32 %v10601, %v10603
        %v10605 = vrot.slane %v10301, %v10604
        %v10606 = vcombine.low %v10302, %v10303
        %v10607 = vcombine.low %v10304, %v10305
        %v10609 = vunpack.c.l.s4 1983009808
        %v10610 = vunpack.c.0.s8 %v10609
        %v10611 = vlaneseq
        %v10612 = vshrl.u32 %v10611, 7
        %v10613 = vsub.s32 %v10610, %v10612
        %v10614 = vrot.slane %v10606, %v10613
        %v10616 = vunpack.c.l.s4 1983009808
        %v10617 = vunpack.c.0.s8 %v10616
        %v10618 = vlaneseq
        %v10619 = vshrl.u32 %v10618, 7
        %v10620 = vsub.s32 %v10617, %v10619
        %v10621 = vrot.slane %v10607, %v10620
        %v10622 = vcombine.low %v10614, %v10621
        %v10623 = vcombine.low %v10306, %v10307
        %v10624 = vcombine.low %v10308, %v10309
        %v10626 = vunpack.c.l.s4 1983009808
        %v10627 = vunpack.c.0.s8 %v10626
        %v10628 = vlaneseq
        %v10629 = vshrl.u32 %v10628, 7
        %v10630 = vsub.s32 %v10627, %v10629
        %v10631 = vrot.slane %v10623, %v10630
        %v10633 = vunpack.c.l.s4 1983009808
        %v10634 = vunpack.c.0.s8 %v10633
        %v10635 = vlaneseq
        %v10636 = vshrl.u32 %v10635, 7
        %v10637 = vsub.s32 %v10634, %v10636
        %v10638 = vrot.slane %v10624, %v10637
        %v10639 = vcombine.low %v10631, %v10638
        %v10641 = vunpack.c.l.s4 1983009808
        %v10642 = vunpack.c.0.s8 %v10641
        %v10643 = vlaneseq
        %v10644 = vshrl.u32 %v10643, 7
        %v10645 = vsub.s32 %v10642, %v10644
        %v10646 = vrot.slane %v10310, %v10645
        %v10647 = vcombine.low %v10311, %v10312
        %v10648 = vcombine.low %v10313, %v10314
        %v10650 = vunpack.c.l.s4 1983009808
        %v10651 = vunpack.c.0.s8 %v10650
        %v10652 = vlaneseq
        %v10653 = vshrl.u32 %v10652, 7
        %v10654 = vsub.s32 %v10651, %v10653
        %v10655 = vrot.slane %v10647, %v10654
        %v10657 = vunpack.c.l.s4 1983009808
        %v10658 = vunpack.c.0.s8 %v10657
        %v10659 = vlaneseq
        %v10660 = vshrl.u32 %v10659, 7
        %v10661 = vsub.s32 %v10658, %v10660
        %v10662 = vrot.slane %v10648, %v10661
        %v10663 = vcombine.low %v10655, %v10662
        %v10664 = vcombine.low %v10315, %v10316
        %v10665 = vcombine.low %v10317, %v10318
        %v10667 = vunpack.c.l.s4 1983009808
        %v10668 = vunpack.c.0.s8 %v10667
        %v10669 = vlaneseq
        %v10670 = vshrl.u32 %v10669, 7
        %v10671 = vsub.s32 %v10668, %v10670
        %v10672 = vrot.slane %v10664, %v10671
        %v10674 = vunpack.c.l.s4 1983009808
        %v10675 = vunpack.c.0.s8 %v10674
        %v10676 = vlaneseq
        %v10677 = vshrl.u32 %v10676, 7
        %v10678 = vsub.s32 %v10675, %v10677
        %v10679 = vrot.slane %v10665, %v10678
        %v10680 = vcombine.low %v10672, %v10679
        %v10682 = vunpack.c.l.s4 1983009808
        %v10683 = vunpack.c.0.s8 %v10682
        %v10684 = vlaneseq
        %v10685 = vshrl.u32 %v10684, 7
        %v10686 = vsub.s32 %v10683, %v10685
        %v10687 = vrot.slane %v10319, %v10686
        %v10688 = vcombine.low %v10320, %v10321
        %v10689 = vcombine.low %v10322, %v10323
        %v10691 = vunpack.c.l.s4 1983009808
        %v10692 = vunpack.c.0.s8 %v10691
        %v10693 = vlaneseq
        %v10694 = vshrl.u32 %v10693, 7
        %v10695 = vsub.s32 %v10692, %v10694
        %v10696 = vrot.slane %v10688, %v10695
        %v10698 = vunpack.c.l.s4 1983009808
        %v10699 = vunpack.c.0.s8 %v10698
        %v10700 = vlaneseq
        %v10701 = vshrl.u32 %v10700, 7
        %v10702 = vsub.s32 %v10699, %v10701
        %v10703 = vrot.slane %v10689, %v10702
        %v10704 = vcombine.low %v10696, %v10703
        %v10705 = vcombine.low %v10324, %v10325
        %v10706 = vcombine.low %v10326, %v10327
        %v10708 = vunpack.c.l.s4 1983009808
        %v10709 = vunpack.c.0.s8 %v10708
        %v10710 = vlaneseq
        %v10711 = vshrl.u32 %v10710, 7
        %v10712 = vsub.s32 %v10709, %v10711
        %v10713 = vrot.slane %v10705, %v10712
        %v10715 = vunpack.c.l.s4 1983009808
        %v10716 = vunpack.c.0.s8 %v10715
        %v10717 = vlaneseq
        %v10718 = vshrl.u32 %v10717, 7
        %v10719 = vsub.s32 %v10716, %v10718
        %v10720 = vrot.slane %v10706, %v10719
        %v10721 = vcombine.low %v10713, %v10720
        %v10723 = vunpack.c.l.s4 1983009808
        %v10724 = vunpack.c.0.s8 %v10723
        %v10725 = vlaneseq
        %v10726 = vshrl.u32 %v10725, 7
        %v10727 = vsub.s32 %v10724, %v10726
        %v10728 = vrot.slane %v10328, %v10727
        %vm10753 = vcmask 130048
        %10754 = vst.msk [vmem:[#allocation5] sm:$0xff] %vm10753, %v10417
        %10755 = vst.msk [vmem:[#allocation5 + $0x8] sm:$0xff] %vm10753, %v10434
        %vm10756 = vcmask 123904
        %10757 = vst.msk [vmem:[#allocation5 + $0x10] sm:$0x3] %vm10756, %v10441
        %10758 = vst.msk [vmem:[#allocation5 + $0x18] sm:$0xff] %vm10753, %v10458
        %10759 = vst.msk [vmem:[#allocation5 + $0x20] sm:$0xff] %vm10753, %v10475
        %10760 = vst.msk [vmem:[#allocation5 + $0x28] sm:$0x3] %vm10756, %v10482
        %10761 = vst.msk [vmem:[#allocation5 + $0x30] sm:$0xff] %vm10753, %v10499
        %10762 = vst.msk [vmem:[#allocation5 + $0x38] sm:$0xff] %vm10753, %v10516
        %10763 = vst.msk [vmem:[#allocation5 + $0x40] sm:$0x3] %vm10756, %v10523
        %10764 = vst.msk [vmem:[#allocation5 + $0x48] sm:$0xff] %vm10753, %v10540
        %10765 = vst.msk [vmem:[#allocation5 + $0x50] sm:$0xff] %vm10753, %v10557
        %10766 = vst.msk [vmem:[#allocation5 + $0x58] sm:$0x3] %vm10756, %v10564
        %10767 = vst.msk [vmem:[#allocation5 + $0x60] sm:$0xff] %vm10753, %v10581
        %10768 = vst.msk [vmem:[#allocation5 + $0x68] sm:$0xff] %vm10753, %v10598
        %10769 = vst.msk [vmem:[#allocation5 + $0x70] sm:$0x3] %vm10756, %v10605
        %10770 = vst.msk [vmem:[#allocation5 + $0x78] sm:$0xff] %vm10753, %v10622
        %10771 = vst.msk [vmem:[#allocation5 + $0x80] sm:$0xff] %vm10753, %v10639
        %10772 = vst.msk [vmem:[#allocation5 + $0x88] sm:$0x3] %vm10756, %v10646
        %10773 = vst.msk [vmem:[#allocation5 + $0x90] sm:$0xff] %vm10753, %v10663
        %10774 = vst.msk [vmem:[#allocation5 + $0x98] sm:$0xff] %vm10753, %v10680
        %10775 = vst.msk [vmem:[#allocation5 + $0xa0] sm:$0x3] %vm10756, %v10687
        %10776 = vst.msk [vmem:[#allocation5 + $0xa8] sm:$0xff] %vm10753, %v10704
        %10777 = vst.msk [vmem:[#allocation5 + $0xb0] sm:$0xff] %vm10753, %v10721
        %10778 = vst.msk [vmem:[#allocation5 + $0xb8] sm:$0x3] %vm10756, %v10728
        %v10779 = vld [vmem:[#allocation5] ss:$2 sm:$0xff]
        %s10780 = scalar_lea.vmem [#allocation5], 24
        %v10781 = vld [vmem:[%s10780] ss:$2 sm:$0xff]
        %s10782 = scalar_lea.vmem [#allocation5], 48
        %v10783 = vld [vmem:[%s10782] ss:$2 sm:$0xff]
        %s10784 = scalar_lea.vmem [#allocation5], 72
        %v10785 = vld [vmem:[%s10784] ss:$2 sm:$0xff]
        %s10786 = scalar_lea.vmem [#allocation5], 96
        %v10787 = vld [vmem:[%s10786] ss:$2 sm:$0xff]
        %s10788 = scalar_lea.vmem [#allocation5], 120
        %v10789 = vld [vmem:[%s10788] ss:$2 sm:$0xff]
        %s10790 = scalar_lea.vmem [#allocation5], 144
        %v10791 = vld [vmem:[%s10790] ss:$2 sm:$0xff]
        %s10792 = scalar_lea.vmem [#allocation5], 168
        %v10793 = vld [vmem:[%s10792] ss:$2 sm:$0xff]
        %v10794 = vmul.f32 %v10779, 0.125
        %v10795 = vmul.f32 %v10781, 0.125
        %v10796 = vmul.f32 %v10783, 0.125
        %v10797 = vmul.f32 %v10785, 0.125
        %v10798 = vmul.f32 %v10787, 0.125
        %v10799 = vmul.f32 %v10789, 0.125
        %v10800 = vmul.f32 %v10791, 0.125
        %v10801 = vmul.f32 %v10793, 0.125
        %s10802 = scalar_lea.vmem [#allocation5], 1
        %v10803 = vld [vmem:[%s10802] ss:$2 sm:$0xff]
        %s10804 = scalar_lea.vmem [#allocation5], 25
        %v10805 = vld [vmem:[%s10804] ss:$2 sm:$0xff]
        %s10806 = scalar_lea.vmem [#allocation5], 49
        %v10807 = vld [vmem:[%s10806] ss:$2 sm:$0xff]
        %s10808 = scalar_lea.vmem [#allocation5], 73
        %v10809 = vld [vmem:[%s10808] ss:$2 sm:$0xff]
        %s10810 = scalar_lea.vmem [#allocation5], 97
        %v10811 = vld [vmem:[%s10810] ss:$2 sm:$0xff]
        %s10812 = scalar_lea.vmem [#allocation5], 121
        %v10813 = vld [vmem:[%s10812] ss:$2 sm:$0xff]
        %s10814 = scalar_lea.vmem [#allocation5], 145
        %v10815 = vld [vmem:[%s10814] ss:$2 sm:$0xff]
        %s10816 = scalar_lea.vmem [#allocation5], 169
        %v10817 = vld [vmem:[%s10816] ss:$2 sm:$0xff]
        %v10818 = vmul.f32 %v10803, 0.375
        %v10819 = vmul.f32 %v10805, 0.375
        %v10820 = vmul.f32 %v10807, 0.375
        %v10821 = vmul.f32 %v10809, 0.375
        %v10822 = vmul.f32 %v10811, 0.375
        %v10823 = vmul.f32 %v10813, 0.375
        %v10824 = vmul.f32 %v10815, 0.375
        %v10825 = vmul.f32 %v10817, 0.375
        %v10826 = vadd.f32 %v10794, %v10818
        %v10827 = vadd.f32 %v10795, %v10819
        %v10828 = vadd.f32 %v10796, %v10820
        %v10829 = vadd.f32 %v10797, %v10821
        %v10830 = vadd.f32 %v10798, %v10822
        %v10831 = vadd.f32 %v10799, %v10823
        %v10832 = vadd.f32 %v10800, %v10824
        %v10833 = vadd.f32 %v10801, %v10825
        %s10834 = scalar_lea.vmem [#allocation5], 2
        %v10835 = vld [vmem:[%s10834] ss:$2 sm:$0xff]
        %s10836 = scalar_lea.vmem [#allocation5], 26
        %v10837 = vld [vmem:[%s10836] ss:$2 sm:$0xff]
        %s10838 = scalar_lea.vmem [#allocation5], 50
        %v10839 = vld [vmem:[%s10838] ss:$2 sm:$0xff]
        %s10840 = scalar_lea.vmem [#allocation5], 74
        %v10841 = vld [vmem:[%s10840] ss:$2 sm:$0xff]
        %s10842 = scalar_lea.vmem [#allocation5], 98
        %v10843 = vld [vmem:[%s10842] ss:$2 sm:$0xff]
        %s10844 = scalar_lea.vmem [#allocation5], 122
        %v10845 = vld [vmem:[%s10844] ss:$2 sm:$0xff]
        %s10846 = scalar_lea.vmem [#allocation5], 146
        %v10847 = vld [vmem:[%s10846] ss:$2 sm:$0xff]
        %s10848 = scalar_lea.vmem [#allocation5], 170
        %v10849 = vld [vmem:[%s10848] ss:$2 sm:$0xff]
        %v10850 = vmul.f32 %v10835, 0.375
        %v10851 = vmul.f32 %v10837, 0.375
        %v10852 = vmul.f32 %v10839, 0.375
        %v10853 = vmul.f32 %v10841, 0.375
        %v10854 = vmul.f32 %v10843, 0.375
        %v10855 = vmul.f32 %v10845, 0.375
        %v10856 = vmul.f32 %v10847, 0.375
        %v10857 = vmul.f32 %v10849, 0.375
        %v10858 = vadd.f32 %v10826, %v10850
        %v10859 = vadd.f32 %v10827, %v10851
        %v10860 = vadd.f32 %v10828, %v10852
        %v10861 = vadd.f32 %v10829, %v10853
        %v10862 = vadd.f32 %v10830, %v10854
        %v10863 = vadd.f32 %v10831, %v10855
        %v10864 = vadd.f32 %v10832, %v10856
        %v10865 = vadd.f32 %v10833, %v10857
        %s10866 = scalar_lea.vmem [#allocation5], 3
        %v10867 = vld [vmem:[%s10866] ss:$2 sm:$0xff]
        %s10868 = scalar_lea.vmem [#allocation5], 27
        %v10869 = vld [vmem:[%s10868] ss:$2 sm:$0xff]
        %s10870 = scalar_lea.vmem [#allocation5], 51
        %v10871 = vld [vmem:[%s10870] ss:$2 sm:$0xff]
        %s10872 = scalar_lea.vmem [#allocation5], 75
        %v10873 = vld [vmem:[%s10872] ss:$2 sm:$0xff]
        %s10874 = scalar_lea.vmem [#allocation5], 99
        %v10875 = vld [vmem:[%s10874] ss:$2 sm:$0xff]
        %s10876 = scalar_lea.vmem [#allocation5], 123
        %v10877 = vld [vmem:[%s10876] ss:$2 sm:$0xff]
        %s10878 = scalar_lea.vmem [#allocation5], 147
        %v10879 = vld [vmem:[%s10878] ss:$2 sm:$0xff]
        %s10880 = scalar_lea.vmem [#allocation5], 171
        %v10881 = vld [vmem:[%s10880] ss:$2 sm:$0xff]
        %v10882 = vmul.f32 %v10867, 0.125
        %v10883 = vmul.f32 %v10869, 0.125
        %v10884 = vmul.f32 %v10871, 0.125
        %v10885 = vmul.f32 %v10873, 0.125
        %v10886 = vmul.f32 %v10875, 0.125
        %v10887 = vmul.f32 %v10877, 0.125
        %v10888 = vmul.f32 %v10879, 0.125
        %v10889 = vmul.f32 %v10881, 0.125
        %v10890 = vadd.f32 %v10858, %v10882
        %v10891 = vadd.f32 %v10859, %v10883
        %v10892 = vadd.f32 %v10860, %v10884
        %v10893 = vadd.f32 %v10861, %v10885
        %v10894 = vadd.f32 %v10862, %v10886
        %v10895 = vadd.f32 %v10863, %v10887
        %v10896 = vadd.f32 %v10864, %v10888
        %v10897 = vadd.f32 %v10865, %v10889
        %10898 = vst.msk [vmem:[#allocation4] sm:$0xff] %vm10753, 0.0
        %10899 = vst.msk [vmem:[#allocation4 + $0x8] sm:$0xff] %vm10753, 0.0
        %10900 = vst.msk [vmem:[#allocation4 + $0x10] sm:$0x3] %vm10756, 0.0
        %s10901 = scalar_lea.vmem [#allocation4], 408
        %10902 = vst.msk [vmem:[%s10901] sm:$0xff] %vm10753, 0.0
        %10903 = vst.msk [vmem:[%s10901 + $0x8] sm:$0xff] %vm10753, 0.0
        %10904 = vst.msk [vmem:[%s10901 + $0x10] sm:$0x3] %vm10756, 0.0
        %s10905 = scalar_lea.vmem [#allocation4], 24
        %vm10906 = vcmask 122880
        %10907 = vst.msk [vmem:[%s10905] sm:$0x1] %vm10906, 0.0
        %10908 = vst.msk [vmem:[%s10905 + $0x18] sm:$0x1] %vm10906, 0.0
        %10909 = vst.msk [vmem:[%s10905 + $0x30] sm:$0x1] %vm10906, 0.0
        %10910 = vst.msk [vmem:[%s10905 + $0x48] sm:$0x1] %vm10906, 0.0
        %10911 = vst.msk [vmem:[%s10905 + $0x60] sm:$0x1] %vm10906, 0.0
        %10912 = vst.msk [vmem:[%s10905 + $0x78] sm:$0x1] %vm10906, 0.0
        %10913 = vst.msk [vmem:[%s10905 + $0x90] sm:$0x1] %vm10906, 0.0
        %10914 = vst.msk [vmem:[%s10905 + $0xa8] sm:$0x1] %vm10906, 0.0
        %10915 = vst.msk [vmem:[%s10905 + $0xc0] sm:$0x1] %vm10906, 0.0
        %10916 = vst.msk [vmem:[%s10905 + $0xd8] sm:$0x1] %vm10906, 0.0
        %10917 = vst.msk [vmem:[%s10905 + $0xf0] sm:$0x1] %vm10906, 0.0
        %10918 = vst.msk [vmem:[%s10905 + $0x108] sm:$0x1] %vm10906, 0.0
        %10919 = vst.msk [vmem:[%s10905 + $0x120] sm:$0x1] %vm10906, 0.0
        %10920 = vst.msk [vmem:[%s10905 + $0x138] sm:$0x1] %vm10906, 0.0
        %10921 = vst.msk [vmem:[%s10905 + $0x150] sm:$0x1] %vm10906, 0.0
        %10922 = vst.msk [vmem:[%s10905 + $0x168] sm:$0x1] %vm10906, 0.0
        %10923 = vst.msk [vmem:[%s10905 + $0x11] sm:$0x1] %vm10906, 0.0
        %10924 = vst.msk [vmem:[%s10905 + $0x29] sm:$0x1] %vm10906, 0.0
        %10925 = vst.msk [vmem:[%s10905 + $0x41] sm:$0x1] %vm10906, 0.0
        %10926 = vst.msk [vmem:[%s10905 + $0x59] sm:$0x1] %vm10906, 0.0
        %10927 = vst.msk [vmem:[%s10905 + $0x71] sm:$0x1] %vm10906, 0.0
        %10928 = vst.msk [vmem:[%s10905 + $0x89] sm:$0x1] %vm10906, 0.0
        %10929 = vst.msk [vmem:[%s10905 + $0xa1] sm:$0x1] %vm10906, 0.0
        %10930 = vst.msk [vmem:[%s10905 + $0xb9] sm:$0x1] %vm10906, 0.0
        %10931 = vst.msk [vmem:[%s10905 + $0xd1] sm:$0x1] %vm10906, 0.0
        %10932 = vst.msk [vmem:[%s10905 + $0xe9] sm:$0x1] %vm10906, 0.0
        %10933 = vst.msk [vmem:[%s10905 + $0x101] sm:$0x1] %vm10906, 0.0
        %10934 = vst.msk [vmem:[%s10905 + $0x119] sm:$0x1] %vm10906, 0.0
        %10935 = vst.msk [vmem:[%s10905 + $0x131] sm:$0x1] %vm10906, 0.0
        %10936 = vst.msk [vmem:[%s10905 + $0x149] sm:$0x1] %vm10906, 0.0
        %10937 = vst.msk [vmem:[%s10905 + $0x161] sm:$0x1] %vm10906, 0.0
        %10938 = vst.msk [vmem:[%s10905 + $0x179] sm:$0x1] %vm10906, 0.0
        %10939 = vst.msk [vmem:[%s10905 + $0x1] sm:$0xff] %vm10753, %v1091
        %10940 = vst.msk [vmem:[%s10905 + $0x9] sm:$0xff] %vm10753, %v1096
        %10941 = vst.msk [vmem:[%s10905 + $0x19] sm:$0xff] %vm10753, %v1101
        %10942 = vst.msk [vmem:[%s10905 + $0x21] sm:$0xff] %vm10753, %v1106
        %10943 = vst.msk [vmem:[%s10905 + $0x31] sm:$0xff] %vm10753, %v1111
        %10944 = vst.msk [vmem:[%s10905 + $0x39] sm:$0xff] %vm10753, %v1116
        %10945 = vst.msk [vmem:[%s10905 + $0x49] sm:$0xff] %vm10753, %v1121
        %10946 = vst.msk [vmem:[%s10905 + $0x51] sm:$0xff] %vm10753, %v1126
        %10947 = vst.msk [vmem:[%s10905 + $0x61] sm:$0xff] %vm10753, %v1131
        %10948 = vst.msk [vmem:[%s10905 + $0x69] sm:$0xff] %vm10753, %v1136
        %10949 = vst.msk [vmem:[%s10905 + $0x79] sm:$0xff] %vm10753, %v1141
        %10950 = vst.msk [vmem:[%s10905 + $0x81] sm:$0xff] %vm10753, %v1146
        %10951 = vst.msk [vmem:[%s10905 + $0x91] sm:$0xff] %vm10753, %v1151
        %10952 = vst.msk [vmem:[%s10905 + $0x99] sm:$0xff] %vm10753, %v1156
        %10953 = vst.msk [vmem:[%s10905 + $0xa9] sm:$0xff] %vm10753, %v1161
        %10954 = vst.msk [vmem:[%s10905 + $0xb1] sm:$0xff] %vm10753, %v1166
        %10955 = vst.msk [vmem:[%s10905 + $0xc1] sm:$0xff] %vm10753, %v1171
        %10956 = vst.msk [vmem:[%s10905 + $0xc9] sm:$0xff] %vm10753, %v1176
        %10957 = vst.msk [vmem:[%s10905 + $0xd9] sm:$0xff] %vm10753, %v1181
        %10958 = vst.msk [vmem:[%s10905 + $0xe1] sm:$0xff] %vm10753, %v1186
        %10959 = vst.msk [vmem:[%s10905 + $0xf1] sm:$0xff] %vm10753, %v1191
        %10960 = vst.msk [vmem:[%s10905 + $0xf9] sm:$0xff] %vm10753, %v1196
        %10961 = vst.msk [vmem:[%s10905 + $0x109] sm:$0xff] %vm10753, %v1201
        %10962 = vst.msk [vmem:[%s10905 + $0x111] sm:$0xff] %vm10753, %v1206
        %10963 = vst.msk [vmem:[%s10905 + $0x121] sm:$0xff] %vm10753, %v1211
        %10964 = vst.msk [vmem:[%s10905 + $0x129] sm:$0xff] %vm10753, %v1216
        %10965 = vst.msk [vmem:[%s10905 + $0x139] sm:$0xff] %vm10753, %v1221
        %10966 = vst.msk [vmem:[%s10905 + $0x141] sm:$0xff] %vm10753, %v1226
        %10967 = vst.msk [vmem:[%s10905 + $0x151] sm:$0xff] %vm10753, %v1231
        %10968 = vst.msk [vmem:[%s10905 + $0x159] sm:$0xff] %vm10753, %v1236
        %10969 = vst.msk [vmem:[%s10905 + $0x169] sm:$0xff] %vm10753, %v1241
        %10970 = vst.msk [vmem:[%s10905 + $0x171] sm:$0xff] %vm10753, %v1246
        %v10971 = vld [vmem:[#allocation4] sm:$0xff]
        %v10972 = vld [vmem:[#allocation4 + $0x8] sm:$0xff]
        %v10973 = vld [vmem:[#allocation4 + $0x10] sm:$0x3]
        %v10974 = vld [vmem:[#allocation4 + $0x18] sm:$0xff]
        %v10975 = vld [vmem:[#allocation4 + $0x20] sm:$0xff]
        %v10976 = vld [vmem:[#allocation4 + $0x28] sm:$0x3]
        %v10977 = vld [vmem:[#allocation4 + $0x30] sm:$0xff]
        %v10978 = vld [vmem:[#allocation4 + $0x38] sm:$0xff]
        %v10979 = vld [vmem:[#allocation4 + $0x40] sm:$0x3]
        %v10980 = vld [vmem:[#allocation4 + $0x48] sm:$0xff]
        %v10981 = vld [vmem:[#allocation4 + $0x50] sm:$0xff]
        %v10982 = vld [vmem:[#allocation4 + $0x58] sm:$0x3]
        %v10983 = vld [vmem:[#allocation4 + $0x60] sm:$0xff]
        %v10984 = vld [vmem:[#allocation4 + $0x68] sm:$0xff]
        %v10985 = vld [vmem:[#allocation4 + $0x70] sm:$0x3]
        %v10986 = vld [vmem:[#allocation4 + $0x78] sm:$0xff]
        %v10987 = vld [vmem:[#allocation4 + $0x80] sm:$0xff]
        %v10988 = vld [vmem:[#allocation4 + $0x88] sm:$0x3]
        %v10989 = vld [vmem:[#allocation4 + $0x90] sm:$0xff]
        %v10990 = vld [vmem:[#allocation4 + $0x98] sm:$0xff]
        %v10991 = vld [vmem:[#allocation4 + $0xa0] sm:$0x3]
        %v10992 = vld [vmem:[#allocation4 + $0xa8] sm:$0xff]
        %v10993 = vld [vmem:[#allocation4 + $0xb0] sm:$0xff]
        %v10994 = vld [vmem:[#allocation4 + $0xb8] sm:$0x3]
        %v10995 = vld [vmem:[#allocation4 + $0xc0] sm:$0xff]
        %v10996 = vld [vmem:[#allocation4 + $0xc8] sm:$0xff]
        %v10997 = vld [vmem:[#allocation4 + $0xd0] sm:$0x3]
        %v10998 = vld [vmem:[#allocation4 + $0xd8] sm:$0xff]
        %v10999 = vld [vmem:[#allocation4 + $0xe0] sm:$0xff]
        %v11000 = vld [vmem:[#allocation4 + $0xe8] sm:$0x3]
        %v11001 = vld [vmem:[#allocation4 + $0xf0] sm:$0xff]
        %v11002 = vld [vmem:[#allocation4 + $0xf8] sm:$0xff]
        %v11003 = vld [vmem:[#allocation4 + $0x100] sm:$0x3]
        %v11004 = vld [vmem:[#allocation4 + $0x108] sm:$0xff]
        %v11005 = vld [vmem:[#allocation4 + $0x110] sm:$0xff]
        %v11006 = vld [vmem:[#allocation4 + $0x118] sm:$0x3]
        %v11007 = vld [vmem:[#allocation4 + $0x120] sm:$0xff]
        %v11008 = vld [vmem:[#allocation4 + $0x128] sm:$0xff]
        %v11009 = vld [vmem:[#allocation4 + $0x130] sm:$0x3]
        %v11010 = vld [vmem:[#allocation4 + $0x138] sm:$0xff]
        %v11011 = vld [vmem:[#allocation4 + $0x140] sm:$0xff]
        %v11012 = vld [vmem:[#allocation4 + $0x148] sm:$0x3]
        %v11013 = vld [vmem:[#allocation4 + $0x150] sm:$0xff]
        %v11014 = vld [vmem:[#allocation4 + $0x158] sm:$0xff]
        %v11015 = vld [vmem:[#allocation4 + $0x160] sm:$0x3]
        %v11016 = vld [vmem:[#allocation4 + $0x168] sm:$0xff]
        %v11017 = vld [vmem:[#allocation4 + $0x170] sm:$0xff]
        %v11018 = vld [vmem:[#allocation4 + $0x178] sm:$0x3]
        %v11019 = vld [vmem:[#allocation4 + $0x180] sm:$0xff]
        %v11020 = vld [vmem:[#allocation4 + $0x188] sm:$0xff]
        %v11021 = vld [vmem:[#allocation4 + $0x190] sm:$0x3]
        %v11022 = vld [vmem:[#allocation4 + $0x198] sm:$0xff]
        %v11023 = vld [vmem:[#allocation4 + $0x1a0] sm:$0xff]
        %v11024 = vld [vmem:[#allocation4 + $0x1a8] sm:$0x3]
        %v11025 = vmul.f32 %v10971, 0.125
        %v11026 = vmul.f32 %v10972, 0.125
        %v11027 = vmul.f32 %v10973, 0.125
        %v11028 = vmul.f32 %v10977, 0.125
        %v11029 = vmul.f32 %v10978, 0.125
        %v11030 = vmul.f32 %v10979, 0.125
        %v11031 = vmul.f32 %v10983, 0.125
        %v11032 = vmul.f32 %v10984, 0.125
        %v11033 = vmul.f32 %v10985, 0.125
        %v11034 = vmul.f32 %v10989, 0.125
        %v11035 = vmul.f32 %v10990, 0.125
        %v11036 = vmul.f32 %v10991, 0.125
        %v11037 = vmul.f32 %v10995, 0.125
        %v11038 = vmul.f32 %v10996, 0.125
        %v11039 = vmul.f32 %v10997, 0.125
        %v11040 = vmul.f32 %v11001, 0.125
        %v11041 = vmul.f32 %v11002, 0.125
        %v11042 = vmul.f32 %v11003, 0.125
        %v11043 = vmul.f32 %v11007, 0.125
        %v11044 = vmul.f32 %v11008, 0.125
        %v11045 = vmul.f32 %v11009, 0.125
        %v11046 = vmul.f32 %v11013, 0.125
        %v11047 = vmul.f32 %v11014, 0.125
        %v11048 = vmul.f32 %v11015, 0.125
        %v11049 = vmul.f32 %v10974, 0.375
        %v11050 = vmul.f32 %v10975, 0.375
        %v11051 = vmul.f32 %v10976, 0.375
        %v11052 = vmul.f32 %v10980, 0.375
        %v11053 = vmul.f32 %v10981, 0.375
        %v11054 = vmul.f32 %v10982, 0.375
        %v11055 = vmul.f32 %v10986, 0.375
        %v11056 = vmul.f32 %v10987, 0.375
        %v11057 = vmul.f32 %v10988, 0.375
        %v11058 = vmul.f32 %v10992, 0.375
        %v11059 = vmul.f32 %v10993, 0.375
        %v11060 = vmul.f32 %v10994, 0.375
        %v11061 = vmul.f32 %v10998, 0.375
        %v11062 = vmul.f32 %v10999, 0.375
        %v11063 = vmul.f32 %v11000, 0.375
        %v11064 = vmul.f32 %v11004, 0.375
        %v11065 = vmul.f32 %v11005, 0.375
        %v11066 = vmul.f32 %v11006, 0.375
        %v11067 = vmul.f32 %v11010, 0.375
        %v11068 = vmul.f32 %v11011, 0.375
        %v11069 = vmul.f32 %v11012, 0.375
        %v11070 = vmul.f32 %v11016, 0.375
        %v11071 = vmul.f32 %v11017, 0.375
        %v11072 = vmul.f32 %v11018, 0.375
        %v11073 = vadd.f32 %v11025, %v11049
        %v11074 = vadd.f32 %v11026, %v11050
        %v11075 = vadd.f32 %v11027, %v11051
        %v11076 = vadd.f32 %v11028, %v11052
        %v11077 = vadd.f32 %v11029, %v11053
        %v11078 = vadd.f32 %v11030, %v11054
        %v11079 = vadd.f32 %v11031, %v11055
        %v11080 = vadd.f32 %v11032, %v11056
        %v11081 = vadd.f32 %v11033, %v11057
        %v11082 = vadd.f32 %v11034, %v11058
        %v11083 = vadd.f32 %v11035, %v11059
        %v11084 = vadd.f32 %v11036, %v11060
        %v11085 = vadd.f32 %v11037, %v11061
        %v11086 = vadd.f32 %v11038, %v11062
        %v11087 = vadd.f32 %v11039, %v11063
        %v11088 = vadd.f32 %v11040, %v11064
        %v11089 = vadd.f32 %v11041, %v11065
        %v11090 = vadd.f32 %v11042, %v11066
        %v11091 = vadd.f32 %v11043, %v11067
        %v11092 = vadd.f32 %v11044, %v11068
        %v11093 = vadd.f32 %v11045, %v11069
        %v11094 = vadd.f32 %v11046, %v11070
        %v11095 = vadd.f32 %v11047, %v11071
        %v11096 = vadd.f32 %v11048, %v11072
        %v11097 = vmul.f32 %v10977, 0.375
        %v11098 = vmul.f32 %v10978, 0.375
        %v11099 = vmul.f32 %v10979, 0.375
        %v11100 = vmul.f32 %v10983, 0.375
        %v11101 = vmul.f32 %v10984, 0.375
        %v11102 = vmul.f32 %v10985, 0.375
        %v11103 = vmul.f32 %v10989, 0.375
        %v11104 = vmul.f32 %v10990, 0.375
        %v11105 = vmul.f32 %v10991, 0.375
        %v11106 = vmul.f32 %v10995, 0.375
        %v11107 = vmul.f32 %v10996, 0.375
        %v11108 = vmul.f32 %v10997, 0.375
        %v11109 = vmul.f32 %v11001, 0.375
        %v11110 = vmul.f32 %v11002, 0.375
        %v11111 = vmul.f32 %v11003, 0.375
        %v11112 = vmul.f32 %v11007, 0.375
        %v11113 = vmul.f32 %v11008, 0.375
        %v11114 = vmul.f32 %v11009, 0.375
        %v11115 = vmul.f32 %v11013, 0.375
        %v11116 = vmul.f32 %v11014, 0.375
        %v11117 = vmul.f32 %v11015, 0.375
        %v11118 = vmul.f32 %v11019, 0.375
        %v11119 = vmul.f32 %v11020, 0.375
        %v11120 = vmul.f32 %v11021, 0.375
        %v11121 = vadd.f32 %v11073, %v11097
        %v11122 = vadd.f32 %v11074, %v11098
        %v11123 = vadd.f32 %v11075, %v11099
        %v11124 = vadd.f32 %v11076, %v11100
        %v11125 = vadd.f32 %v11077, %v11101
        %v11126 = vadd.f32 %v11078, %v11102
        %v11127 = vadd.f32 %v11079, %v11103
        %v11128 = vadd.f32 %v11080, %v11104
        %v11129 = vadd.f32 %v11081, %v11105
        %v11130 = vadd.f32 %v11082, %v11106
        %v11131 = vadd.f32 %v11083, %v11107
        %v11132 = vadd.f32 %v11084, %v11108
        %v11133 = vadd.f32 %v11085, %v11109
        %v11134 = vadd.f32 %v11086, %v11110
        %v11135 = vadd.f32 %v11087, %v11111
        %v11136 = vadd.f32 %v11088, %v11112
        %v11137 = vadd.f32 %v11089, %v11113
        %v11138 = vadd.f32 %v11090, %v11114
        %v11139 = vadd.f32 %v11091, %v11115
        %v11140 = vadd.f32 %v11092, %v11116
        %v11141 = vadd.f32 %v11093, %v11117
        %v11142 = vadd.f32 %v11094, %v11118
        %v11143 = vadd.f32 %v11095, %v11119
        %v11144 = vadd.f32 %v11096, %v11120
        %v11145 = vmul.f32 %v10980, 0.125
        %v11146 = vmul.f32 %v10981, 0.125
        %v11147 = vmul.f32 %v10982, 0.125
        %v11148 = vmul.f32 %v10986, 0.125
        %v11149 = vmul.f32 %v10987, 0.125
        %v11150 = vmul.f32 %v10988, 0.125
        %v11151 = vmul.f32 %v10992, 0.125
        %v11152 = vmul.f32 %v10993, 0.125
        %v11153 = vmul.f32 %v10994, 0.125
        %v11154 = vmul.f32 %v10998, 0.125
        %v11155 = vmul.f32 %v10999, 0.125
        %v11156 = vmul.f32 %v11000, 0.125
        %v11157 = vmul.f32 %v11004, 0.125
        %v11158 = vmul.f32 %v11005, 0.125
        %v11159 = vmul.f32 %v11006, 0.125
        %v11160 = vmul.f32 %v11010, 0.125
        %v11161 = vmul.f32 %v11011, 0.125
        %v11162 = vmul.f32 %v11012, 0.125
        %v11163 = vmul.f32 %v11016, 0.125
        %v11164 = vmul.f32 %v11017, 0.125
        %v11165 = vmul.f32 %v11018, 0.125
        %v11166 = vmul.f32 %v11022, 0.125
        %v11167 = vmul.f32 %v11023, 0.125
        %v11168 = vmul.f32 %v11024, 0.125
        %v11169 = vadd.f32 %v11121, %v11145
        %v11170 = vadd.f32 %v11122, %v11146
        %v11171 = vadd.f32 %v11123, %v11147
        %v11172 = vadd.f32 %v11124, %v11148
        %v11173 = vadd.f32 %v11125, %v11149
        %v11174 = vadd.f32 %v11126, %v11150
        %v11175 = vadd.f32 %v11127, %v11151
        %v11176 = vadd.f32 %v11128, %v11152
        %v11177 = vadd.f32 %v11129, %v11153
        %v11178 = vadd.f32 %v11130, %v11154
        %v11179 = vadd.f32 %v11131, %v11155
        %v11180 = vadd.f32 %v11132, %v11156
        %v11181 = vadd.f32 %v11133, %v11157
        %v11182 = vadd.f32 %v11134, %v11158
        %v11183 = vadd.f32 %v11135, %v11159
        %v11184 = vadd.f32 %v11136, %v11160
        %v11185 = vadd.f32 %v11137, %v11161
        %v11186 = vadd.f32 %v11138, %v11162
        %v11187 = vadd.f32 %v11139, %v11163
        %v11188 = vadd.f32 %v11140, %v11164
        %v11189 = vadd.f32 %v11141, %v11165
        %v11190 = vadd.f32 %v11142, %v11166
        %v11191 = vadd.f32 %v11143, %v11167
        %v11192 = vadd.f32 %v11144, %v11168
        %11193 = vst.msk [vmem:[#allocation5] sm:$0xff] %vm10753, %v11169
        %11194 = vst.msk [vmem:[#allocation5 + $0x8] sm:$0xff] %vm10753, %v11170
        %11195 = vst.msk [vmem:[#allocation5 + $0x10] sm:$0x3] %vm10756, %v11171
        %11196 = vst.msk [vmem:[#allocation5 + $0x18] sm:$0xff] %vm10753, %v11172
        %11197 = vst.msk [vmem:[#allocation5 + $0x20] sm:$0xff] %vm10753, %v11173
        %11198 = vst.msk [vmem:[#allocation5 + $0x28] sm:$0x3] %vm10756, %v11174
        %11199 = vst.msk [vmem:[#allocation5 + $0x30] sm:$0xff] %vm10753, %v11175
        %11200 = vst.msk [vmem:[#allocation5 + $0x38] sm:$0xff] %vm10753, %v11176
        %11201 = vst.msk [vmem:[#allocation5 + $0x40] sm:$0x3] %vm10756, %v11177
        %11202 = vst.msk [vmem:[#allocation5 + $0x48] sm:$0xff] %vm10753, %v11178
        %11203 = vst.msk [vmem:[#allocation5 + $0x50] sm:$0xff] %vm10753, %v11179
        %11204 = vst.msk [vmem:[#allocation5 + $0x58] sm:$0x3] %vm10756, %v11180
        %11205 = vst.msk [vmem:[#allocation5 + $0x60] sm:$0xff] %vm10753, %v11181
        %11206 = vst.msk [vmem:[#allocation5 + $0x68] sm:$0xff] %vm10753, %v11182
        %11207 = vst.msk [vmem:[#allocation5 + $0x70] sm:$0x3] %vm10756, %v11183
        %11208 = vst.msk [vmem:[#allocation5 + $0x78] sm:$0xff] %vm10753, %v11184
        %11209 = vst.msk [vmem:[#allocation5 + $0x80] sm:$0xff] %vm10753, %v11185
        %11210 = vst.msk [vmem:[#allocation5 + $0x88] sm:$0x3] %vm10756, %v11186
        %11211 = vst.msk [vmem:[#allocation5 + $0x90] sm:$0xff] %vm10753, %v11187
        %11212 = vst.msk [vmem:[#allocation5 + $0x98] sm:$0xff] %vm10753, %v11188
        %11213 = vst.msk [vmem:[#allocation5 + $0xa0] sm:$0x3] %vm10756, %v11189
        %11214 = vst.msk [vmem:[#allocation5 + $0xa8] sm:$0xff] %vm10753, %v11190
        %11215 = vst.msk [vmem:[#allocation5 + $0xb0] sm:$0xff] %vm10753, %v11191
        %11216 = vst.msk [vmem:[#allocation5 + $0xb8] sm:$0x3] %vm10756, %v11192
        %v11217 = vld [vmem:[#allocation5] ss:$2 sm:$0xff]
        %v11218 = vld [vmem:[%s10780] ss:$2 sm:$0xff]
        %v11219 = vld [vmem:[%s10782] ss:$2 sm:$0xff]
        %v11220 = vld [vmem:[%s10784] ss:$2 sm:$0xff]
        %v11221 = vld [vmem:[%s10786] ss:$2 sm:$0xff]
        %v11222 = vld [vmem:[%s10788] ss:$2 sm:$0xff]
        %v11223 = vld [vmem:[%s10790] ss:$2 sm:$0xff]
        %v11224 = vld [vmem:[%s10792] ss:$2 sm:$0xff]
        %v11225 = vmul.f32 %v11217, 0.125
        %v11226 = vmul.f32 %v11218, 0.125
        %v11227 = vmul.f32 %v11219, 0.125
        %v11228 = vmul.f32 %v11220, 0.125
        %v11229 = vmul.f32 %v11221, 0.125
        %v11230 = vmul.f32 %v11222, 0.125
        %v11231 = vmul.f32 %v11223, 0.125
        %v11232 = vmul.f32 %v11224, 0.125
        %v11233 = vld [vmem:[%s10802] ss:$2 sm:$0xff]
        %v11234 = vld [vmem:[%s10804] ss:$2 sm:$0xff]
        %v11235 = vld [vmem:[%s10806] ss:$2 sm:$0xff]
        %v11236 = vld [vmem:[%s10808] ss:$2 sm:$0xff]
        %v11237 = vld [vmem:[%s10810] ss:$2 sm:$0xff]
        %v11238 = vld [vmem:[%s10812] ss:$2 sm:$0xff]
        %v11239 = vld [vmem:[%s10814] ss:$2 sm:$0xff]
        %v11240 = vld [vmem:[%s10816] ss:$2 sm:$0xff]
        %v11241 = vmul.f32 %v11233, 0.375
        %v11242 = vmul.f32 %v11234, 0.375
        %v11243 = vmul.f32 %v11235, 0.375
        %v11244 = vmul.f32 %v11236, 0.375
        %v11245 = vmul.f32 %v11237, 0.375
        %v11246 = vmul.f32 %v11238, 0.375
        %v11247 = vmul.f32 %v11239, 0.375
        %v11248 = vmul.f32 %v11240, 0.375
        %v11249 = vadd.f32 %v11225, %v11241
        %v11250 = vadd.f32 %v11226, %v11242
        %v11251 = vadd.f32 %v11227, %v11243
        %v11252 = vadd.f32 %v11228, %v11244
        %v11253 = vadd.f32 %v11229, %v11245
        %v11254 = vadd.f32 %v11230, %v11246
        %v11255 = vadd.f32 %v11231, %v11247
        %v11256 = vadd.f32 %v11232, %v11248
        %v11257 = vld [vmem:[%s10834] ss:$2 sm:$0xff]
        %v11258 = vld [vmem:[%s10836] ss:$2 sm:$0xff]
        %v11259 = vld [vmem:[%s10838] ss:$2 sm:$0xff]
        %v11260 = vld [vmem:[%s10840] ss:$2 sm:$0xff]
        %v11261 = vld [vmem:[%s10842] ss:$2 sm:$0xff]
        %v11262 = vld [vmem:[%s10844] ss:$2 sm:$0xff]
        %v11263 = vld [vmem:[%s10846] ss:$2 sm:$0xff]
        %v11264 = vld [vmem:[%s10848] ss:$2 sm:$0xff]
        %v11265 = vmul.f32 %v11257, 0.375
        %v11266 = vmul.f32 %v11258, 0.375
        %v11267 = vmul.f32 %v11259, 0.375
        %v11268 = vmul.f32 %v11260, 0.375
        %v11269 = vmul.f32 %v11261, 0.375
        %v11270 = vmul.f32 %v11262, 0.375
        %v11271 = vmul.f32 %v11263, 0.375
        %v11272 = vmul.f32 %v11264, 0.375
        %v11273 = vadd.f32 %v11249, %v11265
        %v11274 = vadd.f32 %v11250, %v11266
        %v11275 = vadd.f32 %v11251, %v11267
        %v11276 = vadd.f32 %v11252, %v11268
        %v11277 = vadd.f32 %v11253, %v11269
        %v11278 = vadd.f32 %v11254, %v11270
        %v11279 = vadd.f32 %v11255, %v11271
        %v11280 = vadd.f32 %v11256, %v11272
        %v11281 = vld [vmem:[%s10866] ss:$2 sm:$0xff]
        %v11282 = vld [vmem:[%s10868] ss:$2 sm:$0xff]
        %v11283 = vld [vmem:[%s10870] ss:$2 sm:$0xff]
        %v11284 = vld [vmem:[%s10872] ss:$2 sm:$0xff]
        %v11285 = vld [vmem:[%s10874] ss:$2 sm:$0xff]
        %v11286 = vld [vmem:[%s10876] ss:$2 sm:$0xff]
        %v11287 = vld [vmem:[%s10878] ss:$2 sm:$0xff]
        %v11288 = vld [vmem:[%s10880] ss:$2 sm:$0xff]
        %v11289 = vmul.f32 %v11281, 0.125
        %v11290 = vmul.f32 %v11282, 0.125
        %v11291 = vmul.f32 %v11283, 0.125
        %v11292 = vmul.f32 %v11284, 0.125
        %v11293 = vmul.f32 %v11285, 0.125
        %v11294 = vmul.f32 %v11286, 0.125
        %v11295 = vmul.f32 %v11287, 0.125
        %v11296 = vmul.f32 %v11288, 0.125
        %v11297 = vadd.f32 %v11273, %v11289
        %v11298 = vadd.f32 %v11274, %v11290
        %v11299 = vadd.f32 %v11275, %v11291
        %v11300 = vadd.f32 %v11276, %v11292
        %v11301 = vadd.f32 %v11277, %v11293
        %v11302 = vadd.f32 %v11278, %v11294
        %v11303 = vadd.f32 %v11279, %v11295
        %v11304 = vadd.f32 %v11280, %v11296
        %v11305 = vld [vmem:[%s6] sm:$0x1]
        %v11307 = vlaneseq
        %v11308 = vshrl.u32 %v11307, 7
        %v11309 = vsub.s32 0, %v11308
        %v11310 = vrot.slane %v11305, %v11309
        %v11312 = vadd.f32 %v10890, %v11310
        %v11313 = vadd.f32 %v10891, %v11310
        %v11314 = vadd.f32 %v10892, %v11310
        %v11315 = vadd.f32 %v10893, %v11310
        %v11316 = vadd.f32 %v10894, %v11310
        %v11317 = vadd.f32 %v10895, %v11310
        %v11318 = vadd.f32 %v10896, %v11310
        %v11319 = vadd.f32 %v10897, %v11310
        %v11320 = vmul.f32 %v11312, 0.2
        %v11321 = vmul.f32 %v11313, 0.2
        %v11322 = vmul.f32 %v11314, 0.2
        %v11323 = vmul.f32 %v11315, 0.2
        %v11324 = vmul.f32 %v11316, 0.2
        %v11325 = vmul.f32 %v11317, 0.2
        %v11326 = vmul.f32 %v11318, 0.2
        %v11327 = vmul.f32 %v11319, 0.2
        %v11328 = vmax.f32 %v11312, %v11320
        %v11329 = vmax.f32 %v11313, %v11321
        %v11330 = vmax.f32 %v11314, %v11322
        %v11331 = vmax.f32 %v11315, %v11323
        %v11332 = vmax.f32 %v11316, %v11324
        %v11333 = vmax.f32 %v11317, %v11325
        %v11334 = vmax.f32 %v11318, %v11326
        %v11335 = vmax.f32 %v11319, %v11327
        %v11336 = vmul.f32 %v11297, 0.70710677
        %v11337 = vmul.f32 %v11298, 0.70710677
        %v11338 = vmul.f32 %v11299, 0.70710677
        %v11339 = vmul.f32 %v11300, 0.70710677
        %v11340 = vmul.f32 %v11301, 0.70710677
        %v11341 = vmul.f32 %v11302, 0.70710677
        %v11342 = vmul.f32 %v11303, 0.70710677
        %v11343 = vmul.f32 %v11304, 0.70710677
        %v11344 = vadd.f32 %v11328, %v11336
        %v11345 = vadd.f32 %v11329, %v11337
        %v11346 = vadd.f32 %v11330, %v11338
        %v11347 = vadd.f32 %v11331, %v11339
        %v11348 = vadd.f32 %v11332, %v11340
        %v11349 = vadd.f32 %v11333, %v11341
        %v11350 = vadd.f32 %v11334, %v11342
        %v11351 = vadd.f32 %v11335, %v11343
        %11352 = vst.msk [vmem:[%s298] sm:$0xff] %vm10753, %v11344
        %11353 = vst.msk [vmem:[%s298 + $0x8] sm:$0xff] %vm10753, %v11345
        %11354 = vst.msk [vmem:[%s298 + $0x10] sm:$0xff] %vm10753, %v11346
        %11355 = vst.msk [vmem:[%s298 + $0x18] sm:$0xff] %vm10753, %v11347
        %11356 = vst.msk [vmem:[%s298 + $0x20] sm:$0xff] %vm10753, %v11348
        %11357 = vst.msk [vmem:[%s298 + $0x28] sm:$0xff] %vm10753, %v11349
        %11358 = vst.msk [vmem:[%s298 + $0x30] sm:$0xff] %vm10753, %v11350
        %11359 = vst.msk [vmem:[%s298 + $0x38] sm:$0xff] %vm10753, %v11351
        %s11360 = sand.u32 %s203, 1
        %s11361 = scalar_lea.sflag [#allocation7], %s11360
        %s11362 = sand.u32 %s203, 1
        %s11363 = smul.addr %s11362, 64
        %s11364 = scalar_lea.vmem [#allocation6], %s11363
        // Predicated region
        $region53: #{tpu_custom_call.1} parent=51 // pred_check
          %p11365 = pneg %p213
        $region54: #{tpu_custom_call.1} parent=51 // pred_check_branch
          %11367 = sbr.rel (%p11365) target = $region56
        $region55: #{tpu_custom_call.1} parent=51 // pred_region
          %s11369 = ssub.s32 1024, 1024
          %11370 = vsyncadd %s11361, %s11369
          %s11371 = smul.addr %s22, 8
          %s11372 = smul.addr %s11371, 128
          %s11373 = scalar_lea.hbm %s8, %s11372
          %s11374 = sshll.u32 %s11364, 4
          %s11375 = int_to_ptr.vmem [resolvable:$true] %s11374
          %11380 = dma.vmem_to_hbm [thread:$0]  %s11375, 1024, %s11373, %s11361, 128, 128, 8
        $region56: #{tpu_custom_call.1} parent=51 // pred_fallthru
          _
      $region52: #{tpu_custom_call.1} parent=5 // pred_fallthru
        _
      %p11381 = scmp.le.s32.totalorder 2, %s17
      // Predicated region
      $region57: #{tpu_custom_call.1} parent=5 // pred_check
        %p11382 = pneg %p11381
      $region58: #{tpu_custom_call.1} parent=5 // pred_check_branch
        %11384 = sbr.rel (%p11382) target = $region60
      $region59: #{tpu_custom_call.1} parent=5 // pred_region
        %s11385 = ssub.s32 %s17, 2
        // Predicated region
        $region61: #{tpu_custom_call.1} parent=59 // pred_check
          %p11386 = pneg %p219
        $region62: #{tpu_custom_call.1} parent=59 // pred_check_branch
          %11388 = sbr.rel (%p11386) target = $region64
        $region63: #{tpu_custom_call.1} parent=59 // pred_region
          %s11389 = sand.u32 %s204, 1
          %s11390 = scalar_lea.sflag [#allocation7], %s11389
          %s11391 = sand.u32 %s204, 1
          %s11392 = smul.addr %s11391, 64
          %s11393 = scalar_lea.vmem [#allocation6], %s11392
          %11394 = dma.done %s11390, 1024
        $region64: #{tpu_custom_call.1} parent=59 // pred_fallthru
          _
      $region60: #{tpu_custom_call.1} parent=5 // pred_fallthru
        _
    $region6: #{tpu_custom_call.1} parent=1 // loop_footer
      %s21 = sadd.s32 1, %s17
    $region7: #{tpu_custom_call.1} parent=1 // loop_footer_branch
      %16 = sbr.rel target = $region3
    $region8: #{tpu_custom_call.1} parent=1 // loop_exit
      _
    %11395 = vsyncpa [#allocation7], 1
    %s11396 = scalar_lea.sflag [#allocation7], 1
    %11397 = vsyncpa %s11396, 1

</llo_original>
